<compile_context>
chip_gen: v6e
topology: v6e:2x2x1
jax: 0.10.0
libtpu: 0.0.40
codegen_flags: <defaults>
</compile_context>

<pallas_src>
import functools

import jax
import jax.numpy as jnp
from jax.experimental import pallas as pl
from jax.experimental.pallas import tpu as pltpu


# MXU operand dtype.  float32 preserves the reference semantics / tolerance;
# set to jnp.bfloat16 on v6e / v7x for ~2x MXU throughput + half the weight
# DMA bytes (relax the validation tolerance accordingly).
_MXU_DTYPE = jnp.float32

_VMEM_LIMIT = 32 * 1024 * 1024


# ----------------------------------------------------------------------------
# Pallas kernels
# ----------------------------------------------------------------------------
def _conv1_kernel(aff_ref, x_ref, h_ref, w_ref, o_ref, st_ref):
    """Fused CBN#1 + ReLU + 2x nearest upsample + 3x3 conv (+ output stats).

    aff_ref : (B, 2) SMEM   per-batch [scale, shift]  (CBN folded to an affine)
    x_ref   : (1, tr, W, Cin)      low-res row tile of prev
    h_ref   : (1, 1, 2, W, Cin)    [row above, row below] halo (zeros at edges)
    w_ref   : (9, Cin, Cout)       conv_1 weight, tap-major
    o_ref   : (1, 2tr, 2W, Cout)   conv_1 output tile
    st_ref  : (1, 1, 2, 128)       [sum, sum of squares] of this output tile
    """
    _, tr, W, cin = x_ref.shape
    cout = w_ref.shape[2]
    R, C2 = 2 * tr, 2 * W

    b = pl.program_id(0)
    j = pl.program_id(1)
    last = pl.num_programs(1) - 1

    scale = aff_ref[b, 0]
    shift = aff_ref[b, 1]

    x = x_ref[...][0]                       # (tr, W, cin)
    h = h_ref[...][0, 0]                    # (2, W, cin)

    # CBN (per-batch affine) + ReLU; conv zero-padding lives in post-ReLU space,
    # so boundary halo rows are masked to exactly zero.
    y = jnp.maximum(x * scale + shift, 0.0)
    yt = jnp.maximum(h[0] * scale + shift, 0.0) * jnp.where(j > 0, 1.0, 0.0)
    yb = jnp.maximum(h[1] * scale + shift, 0.0) * jnp.where(j < last, 1.0, 0.0)

    # nearest 2x upsample (rows & cols) in VMEM; each halo row contributes
    # exactly one upsampled row (the one adjacent to this tile).
    u_mid = jnp.broadcast_to(y[:, None, :, None, :],
                             (tr, 2, W, 2, cin)).reshape(R, C2, cin)
    u_top = jnp.broadcast_to(yt[:, None, :], (W, 2, cin)).reshape(1, C2, cin)
    u_bot = jnp.broadcast_to(yb[:, None, :], (W, 2, cin)).reshape(1, C2, cin)
    u = jnp.concatenate([u_top, u_mid, u_bot], axis=0)          # (R+2, C2, cin)
    zc = jnp.zeros((R + 2, 1, cin), jnp.float32)
    u = jnp.concatenate([zc, u, zc], axis=1)                    # (R+2, C2+2, cin)

    # in-VMEM im2col: 9 static tap slices, 9 accumulated MXU matmuls.
    acc = jnp.zeros((R * C2, cout), jnp.float32)
    for t in range(9):
        dy, dx = divmod(t, 3)
        tap = u[dy:dy + R, dx:dx + C2, :].reshape(R * C2, cin)
        acc = acc + jnp.dot(tap.astype(w_ref.dtype), w_ref[t],
                            preferred_element_type=jnp.float32)

    o_ref[...] = acc.reshape(1, R, C2, cout)

    # partial statistics of the conv_1 output for the second CBN (fused, so no
    # extra HBM pass over the largest intermediate is needed).
    s1 = jnp.sum(acc)
    s2 = jnp.sum(acc * acc)
    ones = jnp.ones((1, 1, 1, 128), jnp.float32)
    st_ref[...] = jnp.concatenate([ones * s1, ones * s2], axis=2)


def _conv2_kernel(aff_ref, x_ref, h_ref, p_ref, w2_ref, wr_ref, b_ref, o_ref):
    """Fused CBN#2 + ReLU + 3x3 conv_2 + bias + residual (1x1 conv of
    nearest-upsampled prev, computed at low resolution).

    aff_ref : (B, 2) SMEM            per-batch [scale, shift] for CBN#2
    x_ref   : (1, 2tr, 2W, Cmid)     conv_1 output tile
    h_ref   : (1, 1, 2, 2W, Cmid)    row halo of conv_1 output
    p_ref   : (1, tr, W, Cin)        low-res prev tile (residual path)
    w2_ref  : (9, Cmid, Cout)        conv_2 weight, tap-major
    wr_ref  : (Cin, Cout)            residual 1x1 weight
    b_ref   : (1, Cout)              b2 + br (folded bias)
    o_ref   : (1, 2tr, 2W, Cout)
    """
    _, R, C2, cmid = x_ref.shape
    _, tr, W, cin = p_ref.shape
    cout = w2_ref.shape[2]

    b = pl.program_id(0)
    j = pl.program_id(1)
    last = pl.num_programs(1) - 1

    scale = aff_ref[b, 0]
    shift = aff_ref[b, 1]

    x = x_ref[...][0]                       # (R, C2, cmid)
    h = h_ref[...][0, 0]                    # (2, C2, cmid)

    y_mid = jnp.maximum(x * scale + shift, 0.0)
    yt = (jnp.maximum(h[0] * scale + shift, 0.0) *
          jnp.where(j > 0, 1.0, 0.0))[None]
    yb = (jnp.maximum(h[1] * scale + shift, 0.0) *
          jnp.where(j < last, 1.0, 0.0))[None]
    y = jnp.concatenate([yt, y_mid, yb], axis=0)                # (R+2, C2, cmid)
    zc = jnp.zeros((R + 2, 1, cmid), jnp.float32)
    y = jnp.concatenate([zc, y, zc], axis=1)                    # (R+2, C2+2, cmid)

    acc = jnp.zeros((R * C2, cout), jnp.float32)
    for t in range(9):
        dy, dx = divmod(t, 3)
        tap = y[dy:dy + R, dx:dx + C2, :].reshape(R * C2, cmid)
        acc = acc + jnp.dot(tap.astype(w2_ref.dtype), w2_ref[t],
                            preferred_element_type=jnp.float32)

    # residual: 1x1 conv on the low-res prev tile, then nearest-2x upsample of
    # the RESULT (upsample commutes with a 1x1 conv -> 4x fewer FLOPs/bytes).
    p = p_ref[...][0].reshape(tr * W, cin)
    r = jnp.dot(p.astype(wr_ref.dtype), wr_ref[...],
                preferred_element_type=jnp.float32).reshape(tr, W, cout)
    r_up = jnp.broadcast_to(r[:, None, :, None, :],
                            (tr, 2, W, 2, cout)).reshape(R, C2, cout)

    out = acc.reshape(R, C2, cout) + r_up + b_ref[...].reshape(1, 1, cout)
    o_ref[...] = out.reshape(1, R, C2, cout)


# ----------------------------------------------------------------------------
# pallas_call wrappers
# ----------------------------------------------------------------------------
def _conv1_call(affine, prev, halo, w1, tr):
    B, H, W, cin = prev.shape
    cout = w1.shape[2]
    Jr = H // tr
    R, C2 = 2 * tr, 2 * W
    return pl.pallas_call(
        _conv1_kernel,
        grid=(B, Jr),
        in_specs=[
            pl.BlockSpec(memory_space=pltpu.MemorySpace.SMEM),          # affine
            pl.BlockSpec((1, tr, W, cin), lambda b, j: (b, j, 0, 0)),   # prev tile
            pl.BlockSpec((1, 1, 2, W, cin), lambda b, j: (b, j, 0, 0, 0)),  # halo
            pl.BlockSpec((9, cin, cout), lambda b, j: (0, 0, 0)),       # weights
        ],
        out_specs=(
            pl.BlockSpec((1, R, C2, cout), lambda b, j: (b, j, 0, 0)),  # conv_1 out
            pl.BlockSpec((1, 1, 2, 128), lambda b, j: (b, j, 0, 0)),    # tile stats
        ),
        out_shape=(
            jax.ShapeDtypeStruct((B, 2 * H, 2 * W, cout), jnp.float32),
            jax.ShapeDtypeStruct((B, Jr, 2, 128), jnp.float32),
        ),
        compiler_params=pltpu.CompilerParams(
            dimension_semantics=("parallel", "parallel"),
            vmem_limit_bytes=_VMEM_LIMIT),
    )(affine, prev, halo, w1)


def _conv2_call(affine, x1, halo, prev, w2, wr, bias, tr):
    B, H, W, cin = prev.shape
    cmid = x1.shape[3]
    cout = w2.shape[2]
    Jr = H // tr
    R, C2 = 2 * tr, 2 * W
    return pl.pallas_call(
        _conv2_kernel,
        grid=(B, Jr),
        in_specs=[
            pl.BlockSpec(memory_space=pltpu.MemorySpace.SMEM),            # affine
            pl.BlockSpec((1, R, C2, cmid), lambda b, j: (b, j, 0, 0)),    # conv_1 out
            pl.BlockSpec((1, 1, 2, C2, cmid), lambda b, j: (b, j, 0, 0, 0)),  # halo
            pl.BlockSpec((1, tr, W, cin), lambda b, j: (b, j, 0, 0)),     # prev tile
            pl.BlockSpec((9, cmid, cout), lambda b, j: (0, 0, 0)),        # conv_2 w
            pl.BlockSpec((cin, cout), lambda b, j: (0, 0)),               # 1x1 w
            pl.BlockSpec((1, cout), lambda b, j: (0, 0)),                 # b2 + br
        ],
        out_specs=pl.BlockSpec((1, R, C2, cout), lambda b, j: (b, j, 0, 0)),
        out_shape=jax.ShapeDtypeStruct((B, 2 * H, 2 * W, cout), jnp.float32),
        compiler_params=pltpu.CompilerParams(
            dimension_semantics=("parallel", "parallel"),
            vmem_limit_bytes=_VMEM_LIMIT),
    )(affine, x1, halo, prev, w2, wr, bias)


# ----------------------------------------------------------------------------
# Host-side glue (layout plumbing + tiny scalar computations, hoisted out of
# the feature kernels as suggested by the review)
# ----------------------------------------------------------------------------
def _row_halo(x, tile):
    """(B, H, W, C) -> (B, H//tile, 2, W, C): rows [j*tile-1, j*tile+tile]
    per row-block, zero rows at the image boundary."""
    B, H, W, C = x.shape
    J = H // tile
    zero = jnp.zeros((B, 1, W, C), x.dtype)
    top = jnp.concatenate([zero, x[:, tile - 1::tile, :, :][:, :J - 1]], axis=1)
    bot = jnp.concatenate([x[:, tile::tile, :, :], zero], axis=1)
    return jnp.stack([top, bot], axis=2)


def _auto_row_tile(H, W, cin, cout, budget_bytes=4 * 1024 * 1024):
    """Largest divisor of H whose per-step working set (double-buffered blocks
    + in-kernel padded tile + accumulator) stays under a conservative budget."""
    best = 1
    cmax = max(cin, cout)
    for tr in range(1, H + 1):
        if H % tr:
            continue
        R, C2 = 2 * tr, 2 * W
        est = 4 * (2 * R * C2 * cout          # double-buffered output block
                   + 2 * R * C2 * cmax        # double-buffered largest input block
                   + (R + 2) * (C2 + 2) * cmax  # padded VMEM tile
                   + 2 * R * C2 * cout)       # accumulator + staged result
        if est <= budget_bytes:
            best = tr
    return best


def _res_up_layer_nhwc(noise, emb, prev, params, *, row_tile):
    B, H, W, Cin = prev.shape
    cbn = params["cbn1"]
    Cout = params["w1_k"].shape[2]
    H2, W2 = 2 * H, 2 * W

    emb_cat = jnp.concatenate([emb, noise], axis=1).astype(jnp.float32)

    # CBN FC-MLPs, hoisted out of the feature kernels (grid-invariant, tiny).
    hb = jnp.maximum(emb_cat @ cbn["w1b"] + cbn["b1b"], 0.0)
    d_beta = hb @ cbn["w2b"] + cbn["b2b"]                     # (B, 1)
    hg = jnp.maximum(emb_cat @ cbn["w1g"] + cbn["b1g"], 0.0)
    d_gamma = hg @ cbn["w2g"] + cbn["b2g"]                    # (B, 1)
    gamma = cbn["gammas"] + d_gamma
    beta = cbn["betas"] + d_beta

    # CBN#1 statistics: whole-tensor mean / unbiased var of `prev` (smallest
    # tensor; one fused XLA pass).  Fold CBN into a per-batch affine.
    n1 = float(prev.size)
    mean1 = jnp.mean(prev)
    var1 = jnp.sum((prev - mean1) ** 2) / (n1 - 1.0)
    inv1 = jax.lax.rsqrt(var1 + 1e-5)
    scale1 = inv1 * gamma
    shift1 = beta - mean1 * scale1
    affine1 = jnp.concatenate([scale1, shift1], axis=1)       # (B, 2)

    if row_tile is None:
        row_tile = _auto_row_tile(H, W, Cin, Cout)
    assert H % row_tile == 0, (H, row_tile)
    tr = row_tile

    halo1 = _row_halo(prev, tr)
    x1, stats = _conv1_call(affine1, prev, halo1,
                            params["w1_k"].astype(_MXU_DTYPE), tr)

    # CBN#2 statistics from the fused per-tile partial sums (no extra pass).
    n2 = float(B * H2 * W2 * Cout)
    s1 = jnp.sum(stats[:, :, 0, 0])
    s2 = jnp.sum(stats[:, :, 1, 0])
    mean2 = s1 / n2
    var2 = (s2 - n2 * mean2 * mean2) / (n2 - 1.0)
    inv2 = jax.lax.rsqrt(var2 + 1e-5)
    scale2 = inv2 * gamma
    shift2 = beta - mean2 * scale2
    affine2 = jnp.concatenate([scale2, shift2], axis=1)       # (B, 2)

    halo2 = _row_halo(x1, 2 * tr)
    out = _conv2_call(affine2, x1, halo2, prev,
                      params["w2_k"].astype(_MXU_DTYPE),
                      params["wr_k"].astype(_MXU_DTYPE),
                      params["bias_k"], tr)
    return out


@functools.partial(jax.jit, static_argnames=("row_tile",))
def res_up_layer(noise, emb, prev_nchw, params, *, row_tile=None):
    # NCHW <-> NHWC only at the layer boundary; in a full generator stack these
    # two transposes would be hoisted outside the stack (internals are NHWC).
    prev = jnp.transpose(prev_nchw, (0, 2, 3, 1))
    out = _res_up_layer_nhwc(noise, emb, prev, params, row_tile=row_tile)
    return jnp.transpose(out, (0, 3, 1, 2))


# ----------------------------------------------------------------------------
# Deterministic parameter construction
# ----------------------------------------------------------------------------
def spectral_normalize(w):
    # exact spectral normalization of the (Cout, -1) weight matrix
    mat = w.reshape(w.shape[0], -1)
    sigma = jnp.linalg.svd(mat, compute_uv=False)[0]
    return w / sigma


def make_params(key, in_ch, out_ch, cbn_in, emb_size, cbn_hidden, batch_size):
    assert cbn_hidden == 1, "reference CBN broadcasting requires out_size == 1"
    ks = jax.random.split(key, 10)

    def xavier(k, fan_in, fan_out):
        a = (6.0 / (fan_in + fan_out)) ** 0.5
        return jax.random.uniform(k, (fan_in, fan_out), jnp.float32, -a, a)

    def conv_w(k, co, ci, kh, kw):
        bound = 1.0 / ((ci * kh * kw) ** 0.5)
        return jax.random.uniform(k, (co, ci, kh, kw), jnp.float32, -bound, bound)

    cbn1 = dict(
        w1b=xavier(ks[0], cbn_in, emb_size),
        b1b=jnp.full((1, emb_size), 0.1, jnp.float32),
        w2b=xavier(ks[1], emb_size, cbn_hidden),           # (E, 1)
        b2b=jnp.full((1, 1), 0.1, jnp.float32),
        w1g=xavier(ks[2], cbn_in, emb_size),
        b1g=jnp.full((1, emb_size), 0.1, jnp.float32),
        w2g=xavier(ks[3], emb_size, cbn_hidden),
        b2g=jnp.full((1, 1), 0.1, jnp.float32),
        betas=jnp.zeros((batch_size, 1), jnp.float32),
        gammas=jnp.ones((batch_size, 1), jnp.float32),
    )
    # cbn_2 is constructed by the PyTorch module but never used in forward.

    w1 = spectral_normalize(conv_w(ks[4], out_ch, in_ch, 3, 3))
    w2 = spectral_normalize(conv_w(ks[5], out_ch, out_ch, 3, 3))
    b2 = jax.random.uniform(ks[6], (out_ch,), jnp.float32, -0.1, 0.1)
    wr = spectral_normalize(conv_w(ks[7], out_ch, in_ch, 1, 1))
    br = jax.random.uniform(ks[8], (out_ch,), jnp.float32, -0.1, 0.1)

    return dict(
        cbn1=cbn1,
        ref=dict(w1=w1, w2=w2, wr=wr, b2=b2, br=br),
        # kernel-ready layouts: tap-major (dy, dx, cin, cout)
        w1_k=jnp.transpose(w1, (2, 3, 1, 0)).reshape(9, in_ch, out_ch),
        w2_k=jnp.transpose(w2, (2, 3, 1, 0)).reshape(9, out_ch, out_ch),
        wr_k=wr[:, :, 0, 0].T,                               # (Cin, Cout)
        bias_k=(b2 + br).reshape(1, out_ch),                 # b2 + br folded
    )


# ----------------------------------------------------------------------------
# Plain-JAX reference (validation only)
# ----------------------------------------------------------------------------
def reference_forward(noise, emb, prev_nchw, params):
    emb_cat = jnp.concatenate([emb, noise], axis=1)
    p = params["cbn1"]
    r = params["ref"]

    def cbn(feat):
        h1 = jnp.maximum(emb_cat @ p["w1b"] + p["b1b"], 0.0)
        db = h1 @ p["w2b"] + p["b2b"]
        h2 = jnp.maximum(emb_cat @ p["w1g"] + p["b1g"], 0.0)
        dg = h2 @ p["w2g"] + p["b2g"]
        beta = p["betas"] + db
        gamma = p["gammas"] + dg
        mean = jnp.mean(feat)
        var = jnp.sum((feat - mean) ** 2) / (feat.size - 1)
        norm = (feat - mean) / jnp.sqrt(var + 1e-5)
        return norm * gamma[:, :, None, None] + beta[:, :, None, None]

    def conv(x, w):
        return jax.lax.conv_general_dilated(
            x, w, (1, 1), "SAME", dimension_numbers=("NCHW", "OIHW", "NCHW"))

    up = lambda t: jnp.repeat(jnp.repeat(t, 2, axis=2), 2, axis=3)

    x = jnp.maximum(cbn(prev_nchw), 0.0)
    x = up(x)
    x = conv(x, r["w1"])
    x = jnp.maximum(cbn(x), 0.0)
    x = conv(x, r["w2"]) + r["b2"][None, :, None, None]
    res = conv(up(prev_nchw), r["wr"]) + r["br"][None, :, None, None]
    return x + res


# ----------------------------------------------------------------------------
if __name__ == "__main__":
    B, Cin, H, W = 2, 4, 16, 16
    Cout = 8
    emb_dim, noise_dim = 6, 2
    cbn_in = emb_dim + noise_dim       # lstm_size of the CBN
    emb_size = 16
    cbn_hidden = 1                     # must be 1 (see note at top)

    key = jax.random.PRNGKey(0)
    k_prev, k_emb, k_noise, k_par = jax.random.split(key, 4)
    prev = jax.random.normal(k_prev, (B, Cin, H, W), jnp.float32)
    emb = jax.random.normal(k_emb, (B, emb_dim), jnp.float32)
    noise = jax.random.normal(k_noise, (B, noise_dim), jnp.float32)

    params = make_params(k_par, Cin, Cout, cbn_in, emb_size, cbn_hidden, B)

    # row_tile=4 -> 4 row blocks per batch element, exercising both boundary
    # and interior halo paths (row_tile=None auto-sizes against VMEM).
    out = res_up_layer(noise, emb, prev, params, row_tile=4)
    out = jax.block_until_ready(out)
    assert out.shape == (B, Cout, 2 * H, 2 * W), out.shape

    ref = jax.block_until_ready(reference_forward(noise, emb, prev, params))
    err = float(jnp.max(jnp.abs(out - ref)))
    assert err < 2e-3, f"mismatch vs reference: max abs err = {err}"

    print("KERNEL_OK")
</pallas_src>

<mosaic_0001>
module attributes {stable_mosaic.version = 11 : i64} {
  func.func @_conv1_kernel(%arg0: i32, %arg1: i32, %arg2: memref<2x2xf32, #tpu.memory_space<smem>>, %arg3: memref<1x4x16x4xf32, #tpu.memory_space<vmem>>, %arg4: memref<1x1x2x16x4xf32, #tpu.memory_space<vmem>>, %arg5: memref<9x4x8xf32, #tpu.memory_space<vmem>>, %arg6: memref<1x8x32x8xf32, #tpu.memory_space<vmem>>, %arg7: memref<1x1x2x128xf32, #tpu.memory_space<vmem>>) attributes {dimension_semantics = [#tpu.dimension_semantics<parallel>, #tpu.dimension_semantics<parallel>], iteration_bounds = array<i64: 2, 4>, scalar_prefetch = 0 : i64, scratch_operands = 0 : i64, tpu.core_type = #tpu.core_type<tc>, window_params = [{transform_indices = @transform_0, window_bounds = array<i64: 2, 2>}, {transform_indices = @transform_1, window_bounds = array<i64: 1, 4, 16, 4>}, {transform_indices = @transform_2, window_bounds = array<i64: 1, 1, 2, 16, 4>}, {pipeline_mode = #tpu.pipeline_mode<synchronous>, transform_indices = @transform_3, window_bounds = array<i64: 9, 4, 8>}, {transform_indices = @transform_4, window_bounds = array<i64: 1, 8, 32, 8>}, {transform_indices = @transform_5, window_bounds = array<i64: 1, 1, 2, 128>}]} {
    %0 = arith.index_cast %arg0 : i32 to index
    %c0 = arith.constant 0 : index
    %1 = memref.load %arg2[%0, %c0] : memref<2x2xf32, #tpu.memory_space<smem>>
    %2 = arith.index_cast %arg0 : i32 to index
    %c1 = arith.constant 1 : index
    %3 = memref.load %arg2[%2, %c1] : memref<2x2xf32, #tpu.memory_space<smem>>
    %c0_0 = arith.constant 0 : index
    %c0_1 = arith.constant 0 : index
    %c0_2 = arith.constant 0 : index
    %c0_3 = arith.constant 0 : index
    %4 = vector.load %arg3[%c0_0, %c0_1, %c0_2, %c0_3] : memref<1x4x16x4xf32, #tpu.memory_space<vmem>>, vector<1x4x16x4xf32>
    %5 = vector.shape_cast %4 : vector<1x4x16x4xf32> to vector<4x16x4xf32>
    %c0_4 = arith.constant 0 : index
    %c0_5 = arith.constant 0 : index
    %c0_6 = arith.constant 0 : index
    %c0_7 = arith.constant 0 : index
    %c0_8 = arith.constant 0 : index
    %6 = vector.load %arg4[%c0_4, %c0_5, %c0_6, %c0_7, %c0_8] : memref<1x1x2x16x4xf32, #tpu.memory_space<vmem>>, vector<1x1x2x16x4xf32>
    %7 = vector.shape_cast %6 : vector<1x1x2x16x4xf32> to vector<2x16x4xf32>
    %8 = vector.broadcast %1 : f32 to vector<4x16x4xf32>
    %9 = arith.mulf %5, %8 : vector<4x16x4xf32>
    %10 = vector.broadcast %3 : f32 to vector<4x16x4xf32>
    %11 = arith.addf %9, %10 : vector<4x16x4xf32>
    %cst = arith.constant 0.000000e+00 : f32
    %12 = vector.broadcast %cst : f32 to vector<4x16x4xf32>
    %13 = arith.maximumf %11, %12 : vector<4x16x4xf32>
    %14 = vector.extract_strided_slice %7 {offsets = [0, 0, 0], sizes = [1, 16, 4], strides = [1, 1, 1]} : vector<2x16x4xf32> to vector<1x16x4xf32>
    %15 = vector.shape_cast %14 : vector<1x16x4xf32> to vector<16x4xf32>
    %16 = vector.broadcast %1 : f32 to vector<16x4xf32>
    %17 = arith.mulf %15, %16 : vector<16x4xf32>
    %18 = vector.broadcast %3 : f32 to vector<16x4xf32>
    %19 = arith.addf %17, %18 : vector<16x4xf32>
    %cst_9 = arith.constant 0.000000e+00 : f32
    %20 = vector.broadcast %cst_9 : f32 to vector<16x4xf32>
    %21 = arith.maximumf %19, %20 : vector<16x4xf32>
    %c0_i32 = arith.constant 0 : i32
    %22 = arith.cmpi sgt, %arg1, %c0_i32 : i32
    %cst_10 = arith.constant 1.000000e+00 : f32
    %cst_11 = arith.constant 0.000000e+00 : f32
    %23 = arith.select %22, %cst_10, %cst_11 : f32
    %24 = vector.broadcast %23 : f32 to vector<16x4xf32>
    %25 = arith.mulf %21, %24 : vector<16x4xf32>
    %26 = vector.extract_strided_slice %7 {offsets = [1, 0, 0], sizes = [1, 16, 4], strides = [1, 1, 1]} : vector<2x16x4xf32> to vector<1x16x4xf32>
    %27 = vector.shape_cast %26 : vector<1x16x4xf32> to vector<16x4xf32>
    %28 = vector.broadcast %1 : f32 to vector<16x4xf32>
    %29 = arith.mulf %27, %28 : vector<16x4xf32>
    %30 = vector.broadcast %3 : f32 to vector<16x4xf32>
    %31 = arith.addf %29, %30 : vector<16x4xf32>
    %cst_12 = arith.constant 0.000000e+00 : f32
    %32 = vector.broadcast %cst_12 : f32 to vector<16x4xf32>
    %33 = arith.maximumf %31, %32 : vector<16x4xf32>
    %c3_i32 = arith.constant 3 : i32
    %34 = arith.cmpi slt, %arg1, %c3_i32 : i32
    %cst_13 = arith.constant 1.000000e+00 : f32
    %cst_14 = arith.constant 0.000000e+00 : f32
    %35 = arith.select %34, %cst_13, %cst_14 : f32
    %36 = vector.broadcast %35 : f32 to vector<16x4xf32>
    %37 = arith.mulf %33, %36 : vector<16x4xf32>
    %38 = vector.shape_cast %13 : vector<4x16x4xf32> to vector<4x1x16x1x4xf32>
    %39 = vector.shape_cast %38 : vector<4x1x16x1x4xf32> to vector<4x1x16x1x4xf32>
    %40 = vector.broadcast %39 : vector<4x1x16x1x4xf32> to vector<4x2x16x2x4xf32>
    %41 = vector.shape_cast %40 : vector<4x2x16x2x4xf32> to vector<8x32x4xf32>
    %42 = vector.shape_cast %25 : vector<16x4xf32> to vector<16x1x4xf32>
    %43 = vector.shape_cast %42 : vector<16x1x4xf32> to vector<16x1x4xf32>
    %44 = vector.broadcast %43 : vector<16x1x4xf32> to vector<16x2x4xf32>
    %45 = vector.shape_cast %44 : vector<16x2x4xf32> to vector<1x32x4xf32>
    %46 = vector.shape_cast %37 : vector<16x4xf32> to vector<16x1x4xf32>
    %47 = vector.shape_cast %46 : vector<16x1x4xf32> to vector<16x1x4xf32>
    %48 = vector.broadcast %47 : vector<16x1x4xf32> to vector<16x2x4xf32>
    %49 = vector.shape_cast %48 : vector<16x2x4xf32> to vector<1x32x4xf32>
    %50 = tpu.concatenate %45, %41, %49 in 0 : vector<1x32x4xf32>, vector<8x32x4xf32>, vector<1x32x4xf32> -> vector<10x32x4xf32>
    %cst_15 = arith.constant 0.000000e+00 : f32
    %51 = vector.broadcast %cst_15 : f32 to vector<10x1x4xf32>
    %52 = tpu.concatenate %51, %50, %51 in 1 : vector<10x1x4xf32>, vector<10x32x4xf32>, vector<10x1x4xf32> -> vector<10x34x4xf32>
    %cst_16 = arith.constant 0.000000e+00 : f32
    %53 = vector.broadcast %cst_16 : f32 to vector<256x8xf32>
    %54 = vector.extract_strided_slice %52 {offsets = [0, 0, 0], sizes = [8, 32, 4], strides = [1, 1, 1]} : vector<10x34x4xf32> to vector<8x32x4xf32>
    %55 = vector.shape_cast %54 : vector<8x32x4xf32> to vector<256x4xf32>
    %c0_17 = arith.constant 0 : index
    %c0_18 = arith.constant 0 : index
    %c0_19 = arith.constant 0 : index
    %56 = vector.load %arg5[%c0_17, %c0_18, %c0_19] : memref<9x4x8xf32, #tpu.memory_space<vmem>>, vector<1x4x8xf32>
    %57 = vector.shape_cast %56 : vector<1x4x8xf32> to vector<4x8xf32>
    %cst_20 = arith.constant dense<0.000000e+00> : vector<256x8xf32>
    %58 = tpu.matmul %55, %57, %cst_20 {dimension_numbers = #tpu.dot_dimension_numbers<[1], [0], [0], [1], [0, 0, 1, 1], [], []>} : vector<256x4xf32>, vector<4x8xf32>, vector<256x8xf32> -> vector<256x8xf32>
    %59 = arith.addf %53, %58 : vector<256x8xf32>
    %60 = vector.extract_strided_slice %52 {offsets = [0, 1, 0], sizes = [8, 32, 4], strides = [1, 1, 1]} : vector<10x34x4xf32> to vector<8x32x4xf32>
    %61 = vector.shape_cast %60 : vector<8x32x4xf32> to vector<256x4xf32>
    %c1_21 = arith.constant 1 : index
    %c0_22 = arith.constant 0 : index
    %c0_23 = arith.constant 0 : index
    %62 = vector.load %arg5[%c1_21, %c0_22, %c0_23] : memref<9x4x8xf32, #tpu.memory_space<vmem>>, vector<1x4x8xf32>
    %63 = vector.shape_cast %62 : vector<1x4x8xf32> to vector<4x8xf32>
    %cst_24 = arith.constant dense<0.000000e+00> : vector<256x8xf32>
    %64 = tpu.matmul %61, %63, %cst_24 {dimension_numbers = #tpu.dot_dimension_numbers<[1], [0], [0], [1], [0, 0, 1, 1], [], []>} : vector<256x4xf32>, vector<4x8xf32>, vector<256x8xf32> -> vector<256x8xf32>
    %65 = arith.addf %59, %64 : vector<256x8xf32>
    %66 = vector.extract_strided_slice %52 {offsets = [0, 2, 0], sizes = [8, 32, 4], strides = [1, 1, 1]} : vector<10x34x4xf32> to vector<8x32x4xf32>
    %67 = vector.shape_cast %66 : vector<8x32x4xf32> to vector<256x4xf32>
    %c2 = arith.constant 2 : index
    %c0_25 = arith.constant 0 : index
    %c0_26 = arith.constant 0 : index
    %68 = vector.load %arg5[%c2, %c0_25, %c0_26] : memref<9x4x8xf32, #tpu.memory_space<vmem>>, vector<1x4x8xf32>
    %69 = vector.shape_cast %68 : vector<1x4x8xf32> to vector<4x8xf32>
    %cst_27 = arith.constant dense<0.000000e+00> : vector<256x8xf32>
    %70 = tpu.matmul %67, %69, %cst_27 {dimension_numbers = #tpu.dot_dimension_numbers<[1], [0], [0], [1], [0, 0, 1, 1], [], []>} : vector<256x4xf32>, vector<4x8xf32>, vector<256x8xf32> -> vector<256x8xf32>
    %71 = arith.addf %65, %70 : vector<256x8xf32>
    %72 = vector.extract_strided_slice %52 {offsets = [1, 0, 0], sizes = [8, 32, 4], strides = [1, 1, 1]} : vector<10x34x4xf32> to vector<8x32x4xf32>
    %73 = vector.shape_cast %72 : vector<8x32x4xf32> to vector<256x4xf32>
    %c3 = arith.constant 3 : index
    %c0_28 = arith.constant 0 : index
    %c0_29 = arith.constant 0 : index
    %74 = vector.load %arg5[%c3, %c0_28, %c0_29] : memref<9x4x8xf32, #tpu.memory_space<vmem>>, vector<1x4x8xf32>
    %75 = vector.shape_cast %74 : vector<1x4x8xf32> to vector<4x8xf32>
    %cst_30 = arith.constant dense<0.000000e+00> : vector<256x8xf32>
    %76 = tpu.matmul %73, %75, %cst_30 {dimension_numbers = #tpu.dot_dimension_numbers<[1], [0], [0], [1], [0, 0, 1, 1], [], []>} : vector<256x4xf32>, vector<4x8xf32>, vector<256x8xf32> -> vector<256x8xf32>
    %77 = arith.addf %71, %76 : vector<256x8xf32>
    %78 = vector.extract_strided_slice %52 {offsets = [1, 1, 0], sizes = [8, 32, 4], strides = [1, 1, 1]} : vector<10x34x4xf32> to vector<8x32x4xf32>
    %79 = vector.shape_cast %78 : vector<8x32x4xf32> to vector<256x4xf32>
    %c4 = arith.constant 4 : index
    %c0_31 = arith.constant 0 : index
    %c0_32 = arith.constant 0 : index
    %80 = vector.load %arg5[%c4, %c0_31, %c0_32] : memref<9x4x8xf32, #tpu.memory_space<vmem>>, vector<1x4x8xf32>
    %81 = vector.shape_cast %80 : vector<1x4x8xf32> to vector<4x8xf32>
    %cst_33 = arith.constant dense<0.000000e+00> : vector<256x8xf32>
    %82 = tpu.matmul %79, %81, %cst_33 {dimension_numbers = #tpu.dot_dimension_numbers<[1], [0], [0], [1], [0, 0, 1, 1], [], []>} : vector<256x4xf32>, vector<4x8xf32>, vector<256x8xf32> -> vector<256x8xf32>
    %83 = arith.addf %77, %82 : vector<256x8xf32>
    %84 = vector.extract_strided_slice %52 {offsets = [1, 2, 0], sizes = [8, 32, 4], strides = [1, 1, 1]} : vector<10x34x4xf32> to vector<8x32x4xf32>
    %85 = vector.shape_cast %84 : vector<8x32x4xf32> to vector<256x4xf32>
    %c5 = arith.constant 5 : index
    %c0_34 = arith.constant 0 : index
    %c0_35 = arith.constant 0 : index
    %86 = vector.load %arg5[%c5, %c0_34, %c0_35] : memref<9x4x8xf32, #tpu.memory_space<vmem>>, vector<1x4x8xf32>
    %87 = vector.shape_cast %86 : vector<1x4x8xf32> to vector<4x8xf32>
    %cst_36 = arith.constant dense<0.000000e+00> : vector<256x8xf32>
    %88 = tpu.matmul %85, %87, %cst_36 {dimension_numbers = #tpu.dot_dimension_numbers<[1], [0], [0], [1], [0, 0, 1, 1], [], []>} : vector<256x4xf32>, vector<4x8xf32>, vector<256x8xf32> -> vector<256x8xf32>
    %89 = arith.addf %83, %88 : vector<256x8xf32>
    %90 = vector.extract_strided_slice %52 {offsets = [2, 0, 0], sizes = [8, 32, 4], strides = [1, 1, 1]} : vector<10x34x4xf32> to vector<8x32x4xf32>
    %91 = vector.shape_cast %90 : vector<8x32x4xf32> to vector<256x4xf32>
    %c6 = arith.constant 6 : index
    %c0_37 = arith.constant 0 : index
    %c0_38 = arith.constant 0 : index
    %92 = vector.load %arg5[%c6, %c0_37, %c0_38] : memref<9x4x8xf32, #tpu.memory_space<vmem>>, vector<1x4x8xf32>
    %93 = vector.shape_cast %92 : vector<1x4x8xf32> to vector<4x8xf32>
    %cst_39 = arith.constant dense<0.000000e+00> : vector<256x8xf32>
    %94 = tpu.matmul %91, %93, %cst_39 {dimension_numbers = #tpu.dot_dimension_numbers<[1], [0], [0], [1], [0, 0, 1, 1], [], []>} : vector<256x4xf32>, vector<4x8xf32>, vector<256x8xf32> -> vector<256x8xf32>
    %95 = arith.addf %89, %94 : vector<256x8xf32>
    %96 = vector.extract_strided_slice %52 {offsets = [2, 1, 0], sizes = [8, 32, 4], strides = [1, 1, 1]} : vector<10x34x4xf32> to vector<8x32x4xf32>
    %97 = vector.shape_cast %96 : vector<8x32x4xf32> to vector<256x4xf32>
    %c7 = arith.constant 7 : index
    %c0_40 = arith.constant 0 : index
    %c0_41 = arith.constant 0 : index
    %98 = vector.load %arg5[%c7, %c0_40, %c0_41] : memref<9x4x8xf32, #tpu.memory_space<vmem>>, vector<1x4x8xf32>
    %99 = vector.shape_cast %98 : vector<1x4x8xf32> to vector<4x8xf32>
    %cst_42 = arith.constant dense<0.000000e+00> : vector<256x8xf32>
    %100 = tpu.matmul %97, %99, %cst_42 {dimension_numbers = #tpu.dot_dimension_numbers<[1], [0], [0], [1], [0, 0, 1, 1], [], []>} : vector<256x4xf32>, vector<4x8xf32>, vector<256x8xf32> -> vector<256x8xf32>
    %101 = arith.addf %95, %100 : vector<256x8xf32>
    %102 = vector.extract_strided_slice %52 {offsets = [2, 2, 0], sizes = [8, 32, 4], strides = [1, 1, 1]} : vector<10x34x4xf32> to vector<8x32x4xf32>
    %103 = vector.shape_cast %102 : vector<8x32x4xf32> to vector<256x4xf32>
    %c8 = arith.constant 8 : index
    %c0_43 = arith.constant 0 : index
    %c0_44 = arith.constant 0 : index
    %104 = vector.load %arg5[%c8, %c0_43, %c0_44] : memref<9x4x8xf32, #tpu.memory_space<vmem>>, vector<1x4x8xf32>
    %105 = vector.shape_cast %104 : vector<1x4x8xf32> to vector<4x8xf32>
    %cst_45 = arith.constant dense<0.000000e+00> : vector<256x8xf32>
    %106 = tpu.matmul %103, %105, %cst_45 {dimension_numbers = #tpu.dot_dimension_numbers<[1], [0], [0], [1], [0, 0, 1, 1], [], []>} : vector<256x4xf32>, vector<4x8xf32>, vector<256x8xf32> -> vector<256x8xf32>
    %107 = arith.addf %101, %106 : vector<256x8xf32>
    %108 = vector.shape_cast %107 : vector<256x8xf32> to vector<1x8x32x8xf32>
    %c0_46 = arith.constant 0 : index
    %c0_47 = arith.constant 0 : index
    %c0_48 = arith.constant 0 : index
    %c0_49 = arith.constant 0 : index
    %109 = vector.load %arg6[%c0_46, %c0_47, %c0_48, %c0_49] : memref<1x8x32x8xf32, #tpu.memory_space<vmem>>, vector<1x8x32x8xf32>
    tpu.vector_store %arg6[%c0_46, %c0_47, %c0_48, %c0_49], %108 {strides = array<i32>} : memref<1x8x32x8xf32, #tpu.memory_space<vmem>>, vector<1x8x32x8xf32>,
    %110 = vector.shape_cast %107 : vector<256x8xf32> to vector<1x256x8xf32>
    %cst_50 = arith.constant dense<0.000000e+00> : vector<1xf32>
    %111 = vector.multi_reduction <add>, %110, %cst_50 [1, 2] : vector<1x256x8xf32> to vector<1xf32>
    %112 = vector.shape_cast %111 : vector<1xf32> to vector<1x1x1xf32>
    %113 = vector.extract %112[0, 0, 0] : f32 from vector<1x1x1xf32>
    %114 = arith.mulf %107, %107 : vector<256x8xf32>
    %115 = vector.shape_cast %114 : vector<256x8xf32> to vector<1x256x8xf32>
    %cst_51 = arith.constant dense<0.000000e+00> : vector<1xf32>
    %116 = vector.multi_reduction <add>, %115, %cst_51 [1, 2] : vector<1x256x8xf32> to vector<1xf32>
    %117 = vector.shape_cast %116 : vector<1xf32> to vector<1x1x1xf32>
    %118 = vector.extract %117[0, 0, 0] : f32 from vector<1x1x1xf32>
    %cst_52 = arith.constant 1.000000e+00 : f32
    %119 = vector.broadcast %cst_52 : f32 to vector<1x1x1x128xf32>
    %120 = vector.broadcast %113 : f32 to vector<1x1x1x128xf32>
    %121 = arith.mulf %119, %120 : vector<1x1x1x128xf32>
    %122 = vector.broadcast %118 : f32 to vector<1x1x1x128xf32>
    %123 = arith.mulf %119, %122 : vector<1x1x1x128xf32>
    %124 = tpu.concatenate %121, %123 in 2 : vector<1x1x1x128xf32>, vector<1x1x1x128xf32> -> vector<1x1x2x128xf32>
    %c0_53 = arith.constant 0 : index
    %c0_54 = arith.constant 0 : index
    %c0_55 = arith.constant 0 : index
    %c0_56 = arith.constant 0 : index
    %125 = vector.load %arg7[%c0_53, %c0_54, %c0_55, %c0_56] : memref<1x1x2x128xf32, #tpu.memory_space<vmem>>, vector<1x1x2x128xf32>
    tpu.vector_store %arg7[%c0_53, %c0_54, %c0_55, %c0_56], %124 {strides = array<i32>} : memref<1x1x2x128xf32, #tpu.memory_space<vmem>>, vector<1x1x2x128xf32>,
    return
  }
  func.func @transform_0(%arg0: i32, %arg1: i32) -> (i32, i32) {
    %c0_i32 = arith.constant 0 : i32
    %c0_i32_0 = arith.constant 0 : i32
    %c0_i32_1 = arith.constant 0 : i32
    return %c0_i32, %c0_i32_0 : i32, i32
  }
  func.func @transform_1(%arg0: i32, %arg1: i32) -> (i32, i32, i32, i32) {
    %c0_i32 = arith.constant 0 : i32
    %c0_i32_0 = arith.constant 0 : i32
    %c0_i32_1 = arith.constant 0 : i32
    return %arg0, %arg1, %c0_i32, %c0_i32_0 : i32, i32, i32, i32
  }
  func.func @transform_2(%arg0: i32, %arg1: i32) -> (i32, i32, i32, i32, i32) {
    %c0_i32 = arith.constant 0 : i32
    %c0_i32_0 = arith.constant 0 : i32
    %c0_i32_1 = arith.constant 0 : i32
    %c0_i32_2 = arith.constant 0 : i32
    return %arg0, %arg1, %c0_i32, %c0_i32_0, %c0_i32_1 : i32, i32, i32, i32, i32
  }
  func.func @transform_3(%arg0: i32, %arg1: i32) -> (i32, i32, i32) {
    %c0_i32 = arith.constant 0 : i32
    %c0_i32_0 = arith.constant 0 : i32
    %c0_i32_1 = arith.constant 0 : i32
    %c0_i32_2 = arith.constant 0 : i32
    return %c0_i32, %c0_i32_0, %c0_i32_1 : i32, i32, i32
  }
  func.func @transform_4(%arg0: i32, %arg1: i32) -> (i32, i32, i32, i32) {
    %c0_i32 = arith.constant 0 : i32
    %c0_i32_0 = arith.constant 0 : i32
    %c0_i32_1 = arith.constant 0 : i32
    return %arg0, %arg1, %c0_i32, %c0_i32_0 : i32, i32, i32, i32
  }
  func.func @transform_5(%arg0: i32, %arg1: i32) -> (i32, i32, i32, i32) {
    %c0_i32 = arith.constant 0 : i32
    %c0_i32_0 = arith.constant 0 : i32
    %c0_i32_1 = arith.constant 0 : i32
    return %arg0, %arg1, %c0_i32, %c0_i32_0 : i32, i32, i32, i32
  }
}

module attributes {stable_mosaic.version = 11 : i64} {
  func.func @_conv2_kernel(%arg0: i32, %arg1: i32, %arg2: memref<2x2xf32, #tpu.memory_space<smem>>, %arg3: memref<1x8x32x8xf32, #tpu.memory_space<vmem>>, %arg4: memref<1x1x2x32x8xf32, #tpu.memory_space<vmem>>, %arg5: memref<1x4x16x4xf32, #tpu.memory_space<vmem>>, %arg6: memref<9x8x8xf32, #tpu.memory_space<vmem>>, %arg7: memref<4x8xf32, #tpu.memory_space<vmem>>, %arg8: memref<1x8xf32, #tpu.memory_space<vmem>>, %arg9: memref<1x8x32x8xf32, #tpu.memory_space<vmem>>) attributes {dimension_semantics = [#tpu.dimension_semantics<parallel>, #tpu.dimension_semantics<parallel>], iteration_bounds = array<i64: 2, 4>, scalar_prefetch = 0 : i64, scratch_operands = 0 : i64, tpu.core_type = #tpu.core_type<tc>, window_params = [{transform_indices = @transform_0, window_bounds = array<i64: 2, 2>}, {transform_indices = @transform_1, window_bounds = array<i64: 1, 8, 32, 8>}, {transform_indices = @transform_2, window_bounds = array<i64: 1, 1, 2, 32, 8>}, {transform_indices = @transform_3, window_bounds = array<i64: 1, 4, 16, 4>}, {pipeline_mode = #tpu.pipeline_mode<synchronous>, transform_indices = @transform_4, window_bounds = array<i64: 9, 8, 8>}, {pipeline_mode = #tpu.pipeline_mode<synchronous>, transform_indices = @transform_5, window_bounds = array<i64: 4, 8>}, {pipeline_mode = #tpu.pipeline_mode<synchronous>, transform_indices = @transform_6, window_bounds = array<i64: 1, 8>}, {transform_indices = @transform_7, window_bounds = array<i64: 1, 8, 32, 8>}]} {
    %0 = arith.index_cast %arg0 : i32 to index
    %c0 = arith.constant 0 : index
    %1 = memref.load %arg2[%0, %c0] : memref<2x2xf32, #tpu.memory_space<smem>>
    %2 = arith.index_cast %arg0 : i32 to index
    %c1 = arith.constant 1 : index
    %3 = memref.load %arg2[%2, %c1] : memref<2x2xf32, #tpu.memory_space<smem>>
    %c0_0 = arith.constant 0 : index
    %c0_1 = arith.constant 0 : index
    %c0_2 = arith.constant 0 : index
    %c0_3 = arith.constant 0 : index
    %4 = vector.load %arg3[%c0_0, %c0_1, %c0_2, %c0_3] : memref<1x8x32x8xf32, #tpu.memory_space<vmem>>, vector<1x8x32x8xf32>
    %5 = vector.shape_cast %4 : vector<1x8x32x8xf32> to vector<8x32x8xf32>
    %c0_4 = arith.constant 0 : index
    %c0_5 = arith.constant 0 : index
    %c0_6 = arith.constant 0 : index
    %c0_7 = arith.constant 0 : index
    %c0_8 = arith.constant 0 : index
    %6 = vector.load %arg4[%c0_4, %c0_5, %c0_6, %c0_7, %c0_8] : memref<1x1x2x32x8xf32, #tpu.memory_space<vmem>>, vector<1x1x2x32x8xf32>
    %7 = vector.shape_cast %6 : vector<1x1x2x32x8xf32> to vector<2x32x8xf32>
    %8 = vector.broadcast %1 : f32 to vector<8x32x8xf32>
    %9 = arith.mulf %5, %8 : vector<8x32x8xf32>
    %10 = vector.broadcast %3 : f32 to vector<8x32x8xf32>
    %11 = arith.addf %9, %10 : vector<8x32x8xf32>
    %cst = arith.constant 0.000000e+00 : f32
    %12 = vector.broadcast %cst : f32 to vector<8x32x8xf32>
    %13 = arith.maximumf %11, %12 : vector<8x32x8xf32>
    %14 = vector.extract_strided_slice %7 {offsets = [0, 0, 0], sizes = [1, 32, 8], strides = [1, 1, 1]} : vector<2x32x8xf32> to vector<1x32x8xf32>
    %15 = vector.shape_cast %14 : vector<1x32x8xf32> to vector<32x8xf32>
    %16 = vector.broadcast %1 : f32 to vector<32x8xf32>
    %17 = arith.mulf %15, %16 : vector<32x8xf32>
    %18 = vector.broadcast %3 : f32 to vector<32x8xf32>
    %19 = arith.addf %17, %18 : vector<32x8xf32>
    %cst_9 = arith.constant 0.000000e+00 : f32
    %20 = vector.broadcast %cst_9 : f32 to vector<32x8xf32>
    %21 = arith.maximumf %19, %20 : vector<32x8xf32>
    %c0_i32 = arith.constant 0 : i32
    %22 = arith.cmpi sgt, %arg1, %c0_i32 : i32
    %cst_10 = arith.constant 1.000000e+00 : f32
    %cst_11 = arith.constant 0.000000e+00 : f32
    %23 = arith.select %22, %cst_10, %cst_11 : f32
    %24 = vector.broadcast %23 : f32 to vector<32x8xf32>
    %25 = arith.mulf %21, %24 : vector<32x8xf32>
    %26 = vector.shape_cast %25 : vector<32x8xf32> to vector<1x32x8xf32>
    %27 = vector.extract_strided_slice %7 {offsets = [1, 0, 0], sizes = [1, 32, 8], strides = [1, 1, 1]} : vector<2x32x8xf32> to vector<1x32x8xf32>
    %28 = vector.shape_cast %27 : vector<1x32x8xf32> to vector<32x8xf32>
    %29 = vector.broadcast %1 : f32 to vector<32x8xf32>
    %30 = arith.mulf %28, %29 : vector<32x8xf32>
    %31 = vector.broadcast %3 : f32 to vector<32x8xf32>
    %32 = arith.addf %30, %31 : vector<32x8xf32>
    %cst_12 = arith.constant 0.000000e+00 : f32
    %33 = vector.broadcast %cst_12 : f32 to vector<32x8xf32>
    %34 = arith.maximumf %32, %33 : vector<32x8xf32>
    %c3_i32 = arith.constant 3 : i32
    %35 = arith.cmpi slt, %arg1, %c3_i32 : i32
    %cst_13 = arith.constant 1.000000e+00 : f32
    %cst_14 = arith.constant 0.000000e+00 : f32
    %36 = arith.select %35, %cst_13, %cst_14 : f32
    %37 = vector.broadcast %36 : f32 to vector<32x8xf32>
    %38 = arith.mulf %34, %37 : vector<32x8xf32>
    %39 = vector.shape_cast %38 : vector<32x8xf32> to vector<1x32x8xf32>
    %40 = tpu.concatenate %26, %13, %39 in 0 : vector<1x32x8xf32>, vector<8x32x8xf32>, vector<1x32x8xf32> -> vector<10x32x8xf32>
    %cst_15 = arith.constant 0.000000e+00 : f32
    %41 = vector.broadcast %cst_15 : f32 to vector<10x1x8xf32>
    %42 = tpu.concatenate %41, %40, %41 in 1 : vector<10x1x8xf32>, vector<10x32x8xf32>, vector<10x1x8xf32> -> vector<10x34x8xf32>
    %cst_16 = arith.constant 0.000000e+00 : f32
    %43 = vector.broadcast %cst_16 : f32 to vector<256x8xf32>
    %44 = vector.extract_strided_slice %42 {offsets = [0, 0, 0], sizes = [8, 32, 8], strides = [1, 1, 1]} : vector<10x34x8xf32> to vector<8x32x8xf32>
    %45 = vector.shape_cast %44 : vector<8x32x8xf32> to vector<256x8xf32>
    %c0_17 = arith.constant 0 : index
    %c0_18 = arith.constant 0 : index
    %c0_19 = arith.constant 0 : index
    %46 = vector.load %arg6[%c0_17, %c0_18, %c0_19] : memref<9x8x8xf32, #tpu.memory_space<vmem>>, vector<1x8x8xf32>
    %47 = vector.shape_cast %46 : vector<1x8x8xf32> to vector<8x8xf32>
    %cst_20 = arith.constant dense<0.000000e+00> : vector<256x8xf32>
    %48 = tpu.matmul %45, %47, %cst_20 {dimension_numbers = #tpu.dot_dimension_numbers<[1], [0], [0], [1], [0, 0, 1, 1], [], []>} : vector<256x8xf32>, vector<8x8xf32>, vector<256x8xf32> -> vector<256x8xf32>
    %49 = arith.addf %43, %48 : vector<256x8xf32>
    %50 = vector.extract_strided_slice %42 {offsets = [0, 1, 0], sizes = [8, 32, 8], strides = [1, 1, 1]} : vector<10x34x8xf32> to vector<8x32x8xf32>
    %51 = vector.shape_cast %50 : vector<8x32x8xf32> to vector<256x8xf32>
    %c1_21 = arith.constant 1 : index
    %c0_22 = arith.constant 0 : index
    %c0_23 = arith.constant 0 : index
    %52 = vector.load %arg6[%c1_21, %c0_22, %c0_23] : memref<9x8x8xf32, #tpu.memory_space<vmem>>, vector<1x8x8xf32>
    %53 = vector.shape_cast %52 : vector<1x8x8xf32> to vector<8x8xf32>
    %cst_24 = arith.constant dense<0.000000e+00> : vector<256x8xf32>
    %54 = tpu.matmul %51, %53, %cst_24 {dimension_numbers = #tpu.dot_dimension_numbers<[1], [0], [0], [1], [0, 0, 1, 1], [], []>} : vector<256x8xf32>, vector<8x8xf32>, vector<256x8xf32> -> vector<256x8xf32>
    %55 = arith.addf %49, %54 : vector<256x8xf32>
    %56 = vector.extract_strided_slice %42 {offsets = [0, 2, 0], sizes = [8, 32, 8], strides = [1, 1, 1]} : vector<10x34x8xf32> to vector<8x32x8xf32>
    %57 = vector.shape_cast %56 : vector<8x32x8xf32> to vector<256x8xf32>
    %c2 = arith.constant 2 : index
    %c0_25 = arith.constant 0 : index
    %c0_26 = arith.constant 0 : index
    %58 = vector.load %arg6[%c2, %c0_25, %c0_26] : memref<9x8x8xf32, #tpu.memory_space<vmem>>, vector<1x8x8xf32>
    %59 = vector.shape_cast %58 : vector<1x8x8xf32> to vector<8x8xf32>
    %cst_27 = arith.constant dense<0.000000e+00> : vector<256x8xf32>
    %60 = tpu.matmul %57, %59, %cst_27 {dimension_numbers = #tpu.dot_dimension_numbers<[1], [0], [0], [1], [0, 0, 1, 1], [], []>} : vector<256x8xf32>, vector<8x8xf32>, vector<256x8xf32> -> vector<256x8xf32>
    %61 = arith.addf %55, %60 : vector<256x8xf32>
    %62 = vector.extract_strided_slice %42 {offsets = [1, 0, 0], sizes = [8, 32, 8], strides = [1, 1, 1]} : vector<10x34x8xf32> to vector<8x32x8xf32>
    %63 = vector.shape_cast %62 : vector<8x32x8xf32> to vector<256x8xf32>
    %c3 = arith.constant 3 : index
    %c0_28 = arith.constant 0 : index
    %c0_29 = arith.constant 0 : index
    %64 = vector.load %arg6[%c3, %c0_28, %c0_29] : memref<9x8x8xf32, #tpu.memory_space<vmem>>, vector<1x8x8xf32>
    %65 = vector.shape_cast %64 : vector<1x8x8xf32> to vector<8x8xf32>
    %cst_30 = arith.constant dense<0.000000e+00> : vector<256x8xf32>
    %66 = tpu.matmul %63, %65, %cst_30 {dimension_numbers = #tpu.dot_dimension_numbers<[1], [0], [0], [1], [0, 0, 1, 1], [], []>} : vector<256x8xf32>, vector<8x8xf32>, vector<256x8xf32> -> vector<256x8xf32>
    %67 = arith.addf %61, %66 : vector<256x8xf32>
    %68 = vector.extract_strided_slice %42 {offsets = [1, 1, 0], sizes = [8, 32, 8], strides = [1, 1, 1]} : vector<10x34x8xf32> to vector<8x32x8xf32>
    %69 = vector.shape_cast %68 : vector<8x32x8xf32> to vector<256x8xf32>
    %c4 = arith.constant 4 : index
    %c0_31 = arith.constant 0 : index
    %c0_32 = arith.constant 0 : index
    %70 = vector.load %arg6[%c4, %c0_31, %c0_32] : memref<9x8x8xf32, #tpu.memory_space<vmem>>, vector<1x8x8xf32>
    %71 = vector.shape_cast %70 : vector<1x8x8xf32> to vector<8x8xf32>
    %cst_33 = arith.constant dense<0.000000e+00> : vector<256x8xf32>
    %72 = tpu.matmul %69, %71, %cst_33 {dimension_numbers = #tpu.dot_dimension_numbers<[1], [0], [0], [1], [0, 0, 1, 1], [], []>} : vector<256x8xf32>, vector<8x8xf32>, vector<256x8xf32> -> vector<256x8xf32>
    %73 = arith.addf %67, %72 : vector<256x8xf32>
    %74 = vector.extract_strided_slice %42 {offsets = [1, 2, 0], sizes = [8, 32, 8], strides = [1, 1, 1]} : vector<10x34x8xf32> to vector<8x32x8xf32>
    %75 = vector.shape_cast %74 : vector<8x32x8xf32> to vector<256x8xf32>
    %c5 = arith.constant 5 : index
    %c0_34 = arith.constant 0 : index
    %c0_35 = arith.constant 0 : index
    %76 = vector.load %arg6[%c5, %c0_34, %c0_35] : memref<9x8x8xf32, #tpu.memory_space<vmem>>, vector<1x8x8xf32>
    %77 = vector.shape_cast %76 : vector<1x8x8xf32> to vector<8x8xf32>
    %cst_36 = arith.constant dense<0.000000e+00> : vector<256x8xf32>
    %78 = tpu.matmul %75, %77, %cst_36 {dimension_numbers = #tpu.dot_dimension_numbers<[1], [0], [0], [1], [0, 0, 1, 1], [], []>} : vector<256x8xf32>, vector<8x8xf32>, vector<256x8xf32> -> vector<256x8xf32>
    %79 = arith.addf %73, %78 : vector<256x8xf32>
    %80 = vector.extract_strided_slice %42 {offsets = [2, 0, 0], sizes = [8, 32, 8], strides = [1, 1, 1]} : vector<10x34x8xf32> to vector<8x32x8xf32>
    %81 = vector.shape_cast %80 : vector<8x32x8xf32> to vector<256x8xf32>
    %c6 = arith.constant 6 : index
    %c0_37 = arith.constant 0 : index
    %c0_38 = arith.constant 0 : index
    %82 = vector.load %arg6[%c6, %c0_37, %c0_38] : memref<9x8x8xf32, #tpu.memory_space<vmem>>, vector<1x8x8xf32>
    %83 = vector.shape_cast %82 : vector<1x8x8xf32> to vector<8x8xf32>
    %cst_39 = arith.constant dense<0.000000e+00> : vector<256x8xf32>
    %84 = tpu.matmul %81, %83, %cst_39 {dimension_numbers = #tpu.dot_dimension_numbers<[1], [0], [0], [1], [0, 0, 1, 1], [], []>} : vector<256x8xf32>, vector<8x8xf32>, vector<256x8xf32> -> vector<256x8xf32>
    %85 = arith.addf %79, %84 : vector<256x8xf32>
    %86 = vector.extract_strided_slice %42 {offsets = [2, 1, 0], sizes = [8, 32, 8], strides = [1, 1, 1]} : vector<10x34x8xf32> to vector<8x32x8xf32>
    %87 = vector.shape_cast %86 : vector<8x32x8xf32> to vector<256x8xf32>
    %c7 = arith.constant 7 : index
    %c0_40 = arith.constant 0 : index
    %c0_41 = arith.constant 0 : index
    %88 = vector.load %arg6[%c7, %c0_40, %c0_41] : memref<9x8x8xf32, #tpu.memory_space<vmem>>, vector<1x8x8xf32>
    %89 = vector.shape_cast %88 : vector<1x8x8xf32> to vector<8x8xf32>
    %cst_42 = arith.constant dense<0.000000e+00> : vector<256x8xf32>
    %90 = tpu.matmul %87, %89, %cst_42 {dimension_numbers = #tpu.dot_dimension_numbers<[1], [0], [0], [1], [0, 0, 1, 1], [], []>} : vector<256x8xf32>, vector<8x8xf32>, vector<256x8xf32> -> vector<256x8xf32>
    %91 = arith.addf %85, %90 : vector<256x8xf32>
    %92 = vector.extract_strided_slice %42 {offsets = [2, 2, 0], sizes = [8, 32, 8], strides = [1, 1, 1]} : vector<10x34x8xf32> to vector<8x32x8xf32>
    %93 = vector.shape_cast %92 : vector<8x32x8xf32> to vector<256x8xf32>
    %c8 = arith.constant 8 : index
    %c0_43 = arith.constant 0 : index
    %c0_44 = arith.constant 0 : index
    %94 = vector.load %arg6[%c8, %c0_43, %c0_44] : memref<9x8x8xf32, #tpu.memory_space<vmem>>, vector<1x8x8xf32>
    %95 = vector.shape_cast %94 : vector<1x8x8xf32> to vector<8x8xf32>
    %cst_45 = arith.constant dense<0.000000e+00> : vector<256x8xf32>
    %96 = tpu.matmul %93, %95, %cst_45 {dimension_numbers = #tpu.dot_dimension_numbers<[1], [0], [0], [1], [0, 0, 1, 1], [], []>} : vector<256x8xf32>, vector<8x8xf32>, vector<256x8xf32> -> vector<256x8xf32>
    %97 = arith.addf %91, %96 : vector<256x8xf32>
    %c0_46 = arith.constant 0 : index
    %c0_47 = arith.constant 0 : index
    %c0_48 = arith.constant 0 : index
    %c0_49 = arith.constant 0 : index
    %98 = vector.load %arg5[%c0_46, %c0_47, %c0_48, %c0_49] : memref<1x4x16x4xf32, #tpu.memory_space<vmem>>, vector<1x4x16x4xf32>
    %99 = vector.shape_cast %98 : vector<1x4x16x4xf32> to vector<4x16x4xf32>
    %100 = vector.shape_cast %99 : vector<4x16x4xf32> to vector<64x4xf32>
    %c0_50 = arith.constant 0 : index
    %c0_51 = arith.constant 0 : index
    %101 = vector.load %arg7[%c0_50, %c0_51] : memref<4x8xf32, #tpu.memory_space<vmem>>, vector<4x8xf32>
    %cst_52 = arith.constant dense<0.000000e+00> : vector<64x8xf32>
    %102 = tpu.matmul %100, %101, %cst_52 {dimension_numbers = #tpu.dot_dimension_numbers<[1], [0], [0], [1], [0, 0, 1, 1], [], []>} : vector<64x4xf32>, vector<4x8xf32>, vector<64x8xf32> -> vector<64x8xf32>
    %103 = vector.shape_cast %102 : vector<64x8xf32> to vector<4x16x8xf32>
    %104 = vector.shape_cast %103 : vector<4x16x8xf32> to vector<4x1x16x1x8xf32>
    %105 = vector.shape_cast %104 : vector<4x1x16x1x8xf32> to vector<4x1x16x1x8xf32>
    %106 = vector.broadcast %105 : vector<4x1x16x1x8xf32> to vector<4x2x16x2x8xf32>
    %107 = vector.shape_cast %106 : vector<4x2x16x2x8xf32> to vector<8x32x8xf32>
    %108 = vector.shape_cast %97 : vector<256x8xf32> to vector<8x32x8xf32>
    %109 = arith.addf %108, %107 : vector<8x32x8xf32>
    %c0_53 = arith.constant 0 : index
    %c0_54 = arith.constant 0 : index
    %110 = vector.load %arg8[%c0_53, %c0_54] : memref<1x8xf32, #tpu.memory_space<vmem>>, vector<1x8xf32>
    %111 = vector.shape_cast %110 : vector<1x8xf32> to vector<1x1x8xf32>
    %112 = vector.broadcast %111 : vector<1x1x8xf32> to vector<8x32x8xf32>
    %113 = arith.addf %109, %112 : vector<8x32x8xf32>
    %114 = vector.shape_cast %113 : vector<8x32x8xf32> to vector<1x8x32x8xf32>
    %c0_55 = arith.constant 0 : index
    %c0_56 = arith.constant 0 : index
    %c0_57 = arith.constant 0 : index
    %c0_58 = arith.constant 0 : index
    %115 = vector.load %arg9[%c0_55, %c0_56, %c0_57, %c0_58] : memref<1x8x32x8xf32, #tpu.memory_space<vmem>>, vector<1x8x32x8xf32>
    tpu.vector_store %arg9[%c0_55, %c0_56, %c0_57, %c0_58], %114 {strides = array<i32>} : memref<1x8x32x8xf32, #tpu.memory_space<vmem>>, vector<1x8x32x8xf32>,
    return
  }
  func.func @transform_0(%arg0: i32, %arg1: i32) -> (i32, i32) {
    %c0_i32 = arith.constant 0 : i32
    %c0_i32_0 = arith.constant 0 : i32
    %c0_i32_1 = arith.constant 0 : i32
    return %c0_i32, %c0_i32_0 : i32, i32
  }
  func.func @transform_1(%arg0: i32, %arg1: i32) -> (i32, i32, i32, i32) {
    %c0_i32 = arith.constant 0 : i32
    %c0_i32_0 = arith.constant 0 : i32
    %c0_i32_1 = arith.constant 0 : i32
    return %arg0, %arg1, %c0_i32, %c0_i32_0 : i32, i32, i32, i32
  }
  func.func @transform_2(%arg0: i32, %arg1: i32) -> (i32, i32, i32, i32, i32) {
    %c0_i32 = arith.constant 0 : i32
    %c0_i32_0 = arith.constant 0 : i32
    %c0_i32_1 = arith.constant 0 : i32
    %c0_i32_2 = arith.constant 0 : i32
    return %arg0, %arg1, %c0_i32, %c0_i32_0, %c0_i32_1 : i32, i32, i32, i32, i32
  }
  func.func @transform_3(%arg0: i32, %arg1: i32) -> (i32, i32, i32, i32) {
    %c0_i32 = arith.constant 0 : i32
    %c0_i32_0 = arith.constant 0 : i32
    %c0_i32_1 = arith.constant 0 : i32
    return %arg0, %arg1, %c0_i32, %c0_i32_0 : i32, i32, i32, i32
  }
  func.func @transform_4(%arg0: i32, %arg1: i32) -> (i32, i32, i32) {
    %c0_i32 = arith.constant 0 : i32
    %c0_i32_0 = arith.constant 0 : i32
    %c0_i32_1 = arith.constant 0 : i32
    %c0_i32_2 = arith.constant 0 : i32
    return %c0_i32, %c0_i32_0, %c0_i32_1 : i32, i32, i32
  }
  func.func @transform_5(%arg0: i32, %arg1: i32) -> (i32, i32) {
    %c0_i32 = arith.constant 0 : i32
    %c0_i32_0 = arith.constant 0 : i32
    %c0_i32_1 = arith.constant 0 : i32
    return %c0_i32, %c0_i32_0 : i32, i32
  }
  func.func @transform_6(%arg0: i32, %arg1: i32) -> (i32, i32) {
    %c0_i32 = arith.constant 0 : i32
    %c0_i32_0 = arith.constant 0 : i32
    %c0_i32_1 = arith.constant 0 : i32
    return %c0_i32, %c0_i32_0 : i32, i32
  }
  func.func @transform_7(%arg0: i32, %arg1: i32) -> (i32, i32, i32, i32) {
    %c0_i32 = arith.constant 0 : i32
    %c0_i32_0 = arith.constant 0 : i32
    %c0_i32_1 = arith.constant 0 : i32
    return %arg0, %arg1, %c0_i32, %c0_i32_0 : i32, i32, i32, i32
  }
}

</mosaic_0001>

<llo_original>
// kernel: res_up_layer.2
$region0: #{res_up_layer.2}
  #allocation0 [shape = 'u32[]', space=smem, size = 0x4, offset = 0x4, fixed_abs, tag = 'smem constant byte address 0x4 - core index']
  #allocation1 [shape = 'u32[144,128]{1,0:T(1,128)}', space=vmem, size = 0x12000, scoped, tag = 'internal scratch']
  %s0 = inlined_call_operand.vmem [shape: f32[2,2], index: 0, kind: input, shape index: {}]
  %s1 = inlined_call_operand.vmem [shape: f32[2,16,16,4], index: 1, kind: input, shape index: {}]
  %s2 = inlined_call_operand.vmem [shape: f32[2,4,2,16,4], index: 2, kind: input, shape index: {}]
  %s3 = inlined_call_operand.vmem [shape: f32[9,4,8], index: 3, kind: input, shape index: {}]
  %s4 = inlined_call_operand.vmem [shape: f32[2,32,32,8], index: 4, kind: output, shape index: {0}]
  %s5 = inlined_call_operand.vmem [shape: f32[2,4,2,128], index: 5, kind: output, shape index: {1}]
  %6 = xla_tuple %s4, %s5
  %s7 = sld [smem:[#allocation0]]
  $region61: #{res_up_layer.2} parent=0
    _
  %s9 = ssub.s32 1, %s7
  %s10 = scalar_select 0, %s9, %s7
  $region1: #{res_up_layer.2} parent=0
    #allocation2 [shape = 'u8[1024]{0}', space=smem, size = 0x400, scoped, tag = 'input window, operand 0, single buffered']
    #allocation3 [shape = 's32[2]{0}', space=sflag, size = 0x8, scoped, tag = 'scoped memory for res_up_layer.2']
    %11 = vsyncpa [#allocation3], 0
    loop: start=0, step=1, limit=10
    $region2: #{res_up_layer.2} parent=1 // loop_pre_header
      _
    $region3: #{res_up_layer.2} parent=1 // loop_header
      %s13 = sphi 0, %s17
      %p14 = scmp.ge.s32.totalorder %s13, 10
      %s20 = sphi 0, %s32
      %s21 = sphi 0, %s28
      %s22 = sphi 0, %s20
      %s23 = sphi 0, %s21
      %s24 = sphi 0, %s22
      %s25 = sphi 0, %s23
      %s33 = sphi 0, %s33
      %s35 = sphi 0, %s33
      %s36 = sphi 0, %s35
      %s50 = sphi 0, %s36
      %s58 = sphi 0, %s60
      %s61 = sphi 0, %s58
      %s62 = sphi 0, %s61
      %s78 = sphi 0, %s62
      %s86 = sphi 0, %s88
      %s89 = sphi 0, %s86
      %s90 = sphi 0, %s89
      %s106 = sphi 0, %s90
      %s110 = sphi 0, %s110
      %s112 = sphi 0, %s110
      %s113 = sphi 0, %s112
      %s127 = sphi 0, %s113
      %s135 = sphi 0, %s137
      %s138 = sphi 0, %s135
      %s139 = sphi 0, %s138
      %s155 = sphi 0, %s139
      %s163 = sphi 0, %s165
      %s166 = sphi 0, %s163
      %s167 = sphi 0, %s166
      %s183 = sphi 0, %s167
    $region4: #{res_up_layer.2} parent=1 // loop_header_branch
      %16 = sbr.rel (%p14) target = $region8
    $region5: #{res_up_layer.2} parent=1 // loop_body
      %s18 = ssub.s32 %s13, 1
      %s19 = ssub.s32 %s13, 2
      %s26 = sadd.s32 1, %s21
      %p27 = scmp.ge.s32.totalorder %s26, 4
      %s28 = scalar_select %p27, 0, %s26
      %s29 = sadd.s32 1, %s20
      %s30 = scalar_select %p27, %s29, %s20
      %p31 = scmp.ge.s32.totalorder %s30, 2
      %s32 = scalar_select %p31, 0, %s30
      %s34 = sadd.s32 %s33, 1
      %p37 = scmp.eq.s32.totalorder %s13, 7
      %p38 = scmp.ne.s32.totalorder %s33, %s35
      %p39 = scmp.eq.s32.totalorder %s13, 0
      %p40 = por %p38, %p39
      %p41 = scmp.ne.s32.totalorder %s33, %s35
      %p42 = scmp.eq.s32.totalorder %s18, 7
      %p43 = por %p41, %p42
      %p44 = scmp.ne.s32.totalorder %s35, %s36
      %p45 = scmp.eq.s32.totalorder %s18, 0
      %p46 = por %p44, %p45
      %p47 = scmp.ne.s32.totalorder %s35, %s36
      %p48 = scmp.eq.s32.totalorder %s19, 7
      %p49 = por %p47, %p48
      %p51 = scmp.ne.s32.totalorder %s36, %s50
      %p52 = scmp.eq.s32.totalorder %s19, 0
      %p53 = por %p51, %p52
      %s54 = ssub.s32 %s20, %s32
      %s55 = ssub.s32 %s21, %s28
      %s56 = sor.u32 %s54, %s55
      %p57 = scmp.eq.s32.totalorder %s56, 0
      %s59 = sadd.s32 %s58, 1
      %s60 = scalar_select %p57, %s58, %s59
      %p63 = pneg %p57
      %p64 = scmp.eq.s32.totalorder %s13, 7
      %p65 = por %p63, %p64
      %p66 = scmp.ne.s32.totalorder %s58, %s61
      %p67 = scmp.eq.s32.totalorder %s13, 0
      %p68 = por %p66, %p67
      %p69 = scmp.ne.s32.totalorder %s58, %s61
      %p70 = scmp.eq.s32.totalorder %s18, 7
      %p71 = por %p69, %p70
      %p72 = scmp.ne.s32.totalorder %s61, %s62
      %p73 = scmp.eq.s32.totalorder %s18, 0
      %p74 = por %p72, %p73
      %p75 = scmp.ne.s32.totalorder %s61, %s62
      %p76 = scmp.eq.s32.totalorder %s19, 7
      %p77 = por %p75, %p76
      %p79 = scmp.ne.s32.totalorder %s62, %s78
      %p80 = scmp.eq.s32.totalorder %s19, 0
      %p81 = por %p79, %p80
      %s82 = ssub.s32 %s20, %s32
      %s83 = ssub.s32 %s21, %s28
      %s84 = sor.u32 %s82, %s83
      %p85 = scmp.eq.s32.totalorder %s84, 0
      %s87 = sadd.s32 %s86, 1
      %s88 = scalar_select %p85, %s86, %s87
      %p91 = pneg %p85
      %p92 = scmp.eq.s32.totalorder %s13, 7
      %p93 = por %p91, %p92
      %p94 = scmp.ne.s32.totalorder %s86, %s89
      %p95 = scmp.eq.s32.totalorder %s13, 0
      %p96 = por %p94, %p95
      %p97 = scmp.ne.s32.totalorder %s86, %s89
      %p98 = scmp.eq.s32.totalorder %s18, 7
      %p99 = por %p97, %p98
      %p100 = scmp.ne.s32.totalorder %s89, %s90
      %p101 = scmp.eq.s32.totalorder %s18, 0
      %p102 = por %p100, %p101
      %p103 = scmp.ne.s32.totalorder %s89, %s90
      %p104 = scmp.eq.s32.totalorder %s19, 7
      %p105 = por %p103, %p104
      %p107 = scmp.ne.s32.totalorder %s90, %s106
      %p108 = scmp.eq.s32.totalorder %s19, 0
      %p109 = por %p107, %p108
      %s111 = sadd.s32 %s110, 1
      %p114 = scmp.eq.s32.totalorder %s13, 7
      %p115 = scmp.ne.s32.totalorder %s110, %s112
      %p116 = scmp.eq.s32.totalorder %s13, 0
      %p117 = por %p115, %p116
      %p118 = scmp.ne.s32.totalorder %s110, %s112
      %p119 = scmp.eq.s32.totalorder %s18, 7
      %p120 = por %p118, %p119
      %p121 = scmp.ne.s32.totalorder %s112, %s113
      %p122 = scmp.eq.s32.totalorder %s18, 0
      %p123 = por %p121, %p122
      %p124 = scmp.ne.s32.totalorder %s112, %s113
      %p125 = scmp.eq.s32.totalorder %s19, 7
      %p126 = por %p124, %p125
      %p128 = scmp.ne.s32.totalorder %s113, %s127
      %p129 = scmp.eq.s32.totalorder %s19, 0
      %p130 = por %p128, %p129
      %s131 = ssub.s32 %s20, %s32
      %s132 = ssub.s32 %s21, %s28
      %s133 = sor.u32 %s131, %s132
      %p134 = scmp.eq.s32.totalorder %s133, 0
      %s136 = sadd.s32 %s135, 1
      %s137 = scalar_select %p134, %s135, %s136
      %p140 = pneg %p134
      %p141 = scmp.eq.s32.totalorder %s13, 7
      %p142 = por %p140, %p141
      %p143 = scmp.ne.s32.totalorder %s135, %s138
      %p144 = scmp.eq.s32.totalorder %s13, 0
      %p145 = por %p143, %p144
      %p146 = scmp.ne.s32.totalorder %s135, %s138
      %p147 = scmp.eq.s32.totalorder %s18, 7
      %p148 = por %p146, %p147
      %p149 = scmp.ne.s32.totalorder %s138, %s139
      %p150 = scmp.eq.s32.totalorder %s18, 0
      %p151 = por %p149, %p150
      %p152 = scmp.ne.s32.totalorder %s138, %s139
      %p153 = scmp.eq.s32.totalorder %s19, 7
      %p154 = por %p152, %p153
      %p156 = scmp.ne.s32.totalorder %s139, %s155
      %p157 = scmp.eq.s32.totalorder %s19, 0
      %p158 = por %p156, %p157
      %s159 = ssub.s32 %s20, %s32
      %s160 = ssub.s32 %s21, %s28
      %s161 = sor.u32 %s159, %s160
      %p162 = scmp.eq.s32.totalorder %s161, 0
      %s164 = sadd.s32 %s163, 1
      %s165 = scalar_select %p162, %s163, %s164
      %p168 = pneg %p162
      %p169 = scmp.eq.s32.totalorder %s13, 7
      %p170 = por %p168, %p169
      %p171 = scmp.ne.s32.totalorder %s163, %s166
      %p172 = scmp.eq.s32.totalorder %s13, 0
      %p173 = por %p171, %p172
      %p174 = scmp.ne.s32.totalorder %s163, %s166
      %p175 = scmp.eq.s32.totalorder %s18, 7
      %p176 = por %p174, %p175
      %p177 = scmp.ne.s32.totalorder %s166, %s167
      %p178 = scmp.eq.s32.totalorder %s18, 0
      %p179 = por %p177, %p178
      %p180 = scmp.ne.s32.totalorder %s166, %s167
      %p181 = scmp.eq.s32.totalorder %s19, 7
      %p182 = por %p180, %p181
      %p184 = scmp.ne.s32.totalorder %s167, %s183
      %p185 = scmp.eq.s32.totalorder %s19, 0
      %p186 = por %p184, %p185
      %p187 = scmp.le.s32.totalorder 1, %s13
      %p188 = scmp.lt.s32.totalorder %s13, 9
      %p189 = pnand %p187, %p188
      %p190 = pneg %p189
      // Predicated region
      $region9: #{res_up_layer.2} parent=5 // pred_check
        _
      $region10: #{res_up_layer.2} parent=5 // pred_check_branch
        %192 = sbr.rel (%p189) target = $region12
      $region11: #{res_up_layer.2} parent=5 // pred_region
        %s193 = ssub.s32 %s13, 1
        // Predicated region
        $region13: #{res_up_layer.2} parent=11 // pred_check
          %p194 = pneg %p46
        $region14: #{res_up_layer.2} parent=11 // pred_check_branch
          %196 = sbr.rel (%p194) target = $region16
        $region15: #{res_up_layer.2} parent=11 // pred_region
          %s198 = ssub.s32 32, 32
          %199 = vsyncadd [#allocation3], %s198
          %s201 = sshll.u32 %s0, 4
          %s202 = int_to_ptr.vmem [resolvable:$true] %s201
          %204 = dma.vmem_to_smem %s202, 32, [#allocation2], [#allocation3]
        $region16: #{res_up_layer.2} parent=11 // pred_fallthru
          _
        // Predicated region
        $region17: #{res_up_layer.2} parent=11 // pred_check
          %p205 = pneg %p123
        $region18: #{res_up_layer.2} parent=11 // pred_check_branch
          %207 = sbr.rel (%p205) target = $region20
        $region19: #{res_up_layer.2} parent=11 // pred_region
          _
        $region20: #{res_up_layer.2} parent=11 // pred_fallthru
          _
      $region12: #{res_up_layer.2} parent=5 // pred_fallthru
        _
      %p208 = scmp.lt.s32.totalorder %s13, 8
      // Predicated region
      $region21: #{res_up_layer.2} parent=5 // pred_check
        %p209 = pneg %p208
      $region22: #{res_up_layer.2} parent=5 // pred_check_branch
        %211 = sbr.rel (%p209) target = $region24
      $region23: #{res_up_layer.2} parent=5 // pred_region
        // Predicated region
        $region25: #{res_up_layer.2} parent=23 // pred_check
          %p212 = pneg %p68
        $region26: #{res_up_layer.2} parent=23 // pred_check_branch
          %214 = sbr.rel (%p212) target = $region28
        $region27: #{res_up_layer.2} parent=23 // pred_region
          %s215 = smul.u32 4, %s21
          %p216 = scmp.lt.s32.totalorder %s20, 1
          %s217 = scalar_select %p216, %s20, 1
          %p218 = scmp.lt.s32.totalorder %s215, 15
          %s219 = scalar_select %p218, %s215, 15
          %s220 = smul.addr %s219, 2
          %s221 = smul.addr %s217, 32
          %s222 = sadd.s32 %s220, %s221
          %s223 = smul.addr %s222, 8
          %s224 = scalar_lea.vmem %s1, %s223
          %s225 = smul.u32 4, %s21
        $region28: #{res_up_layer.2} parent=23 // pred_fallthru
          _
        // Predicated region
        $region29: #{res_up_layer.2} parent=23 // pred_check
          %p226 = pneg %p96
        $region30: #{res_up_layer.2} parent=23 // pred_check_branch
          %228 = sbr.rel (%p226) target = $region32
        $region31: #{res_up_layer.2} parent=23 // pred_region
          %p229 = scmp.lt.s32.totalorder %s20, 1
          %s230 = scalar_select %p229, %s20, 1
          %p231 = scmp.lt.s32.totalorder %s21, 3
          %s232 = scalar_select %p231, %s21, 3
          %s233 = smul.addr %s232, 4
          %s234 = smul.addr %s230, 16
          %s235 = sadd.s32 %s233, %s234
          %s236 = smul.addr %s235, 8
          %s237 = scalar_lea.vmem %s2, %s236
        $region32: #{res_up_layer.2} parent=23 // pred_fallthru
          _
      $region24: #{res_up_layer.2} parent=5 // pred_fallthru
        _
      %p238 = scmp.le.s32.totalorder 1, %s13
      %p239 = scmp.lt.s32.totalorder %s13, 9
      %p240 = pnand %p238, %p239
      %p241 = pneg %p240
      // Predicated region
      $region33: #{res_up_layer.2} parent=5 // pred_check
        _
      $region34: #{res_up_layer.2} parent=5 // pred_check_branch
        %243 = sbr.rel (%p240) target = $region36
      $region35: #{res_up_layer.2} parent=5 // pred_region
        %s244 = ssub.s32 %s13, 1
        // Predicated region
        $region37: #{res_up_layer.2} parent=35 // pred_check
          %p245 = pneg %p46
        $region38: #{res_up_layer.2} parent=35 // pred_check_branch
          %247 = sbr.rel (%p245) target = $region40
        $region39: #{res_up_layer.2} parent=35 // pred_region
          %248 = dma.done [#allocation3], 32
        $region40: #{res_up_layer.2} parent=35 // pred_fallthru
          _
        %249 = sfence
        %p250 = pneg %p46
        %p251 = pneg %p43
        %s252 = smul.u32 4, %s23
        %p253 = scmp.lt.s32.totalorder %s22, 1
        %s254 = scalar_select %p253, %s22, 1
        %p255 = scmp.lt.s32.totalorder %s252, 15
        %s256 = scalar_select %p255, %s252, 15
        %s257 = smul.addr %s256, 2
        %s258 = smul.addr %s254, 32
        %s259 = sadd.s32 %s257, %s258
        %s260 = smul.addr %s259, 8
        %s261 = scalar_lea.vmem %s1, %s260
        %p262 = pneg %p74
        %p263 = pneg %p71
        %p264 = scmp.lt.s32.totalorder %s22, 1
        %s265 = scalar_select %p264, %s22, 1
        %p266 = scmp.lt.s32.totalorder %s23, 3
        %s267 = scalar_select %p266, %s23, 3
        %s268 = smul.addr %s267, 4
        %s269 = smul.addr %s265, 16
        %s270 = sadd.s32 %s268, %s269
        %s271 = smul.addr %s270, 8
        %s272 = scalar_lea.vmem %s2, %s271
        %p273 = pneg %p102
        %p274 = pneg %p99
        %p275 = pneg %p123
        %p276 = pneg %p120
        %p277 = pneg %p151
        %p278 = pneg %p148
        %s279 = smul.u32 8, %s23
        %p280 = scmp.lt.s32.totalorder %s22, 1
        %s281 = scalar_select %p280, %s22, 1
        %p282 = scmp.lt.s32.totalorder %s279, 31
        %s283 = scalar_select %p282, %s279, 31
        %s284 = smul.addr %s283, 4
        %s285 = smul.addr %s281, 128
        %s286 = sadd.s32 %s284, %s285
        %s287 = smul.addr %s286, 8
        %s288 = scalar_lea.vmem %s4, %s287
        %p289 = pneg %p179
        %p290 = pneg %p176
        %p291 = scmp.lt.s32.totalorder %s22, 1
        %s292 = scalar_select %p291, %s22, 1
        %p293 = scmp.lt.s32.totalorder %s23, 3
        %s294 = scalar_select %p293, %s23, 3
        %s295 = smul.addr %s292, 4
        %s296 = sadd.s32 %s294, %s295
        %s297 = smul.addr %s296, 2
        %s298 = scalar_lea.vmem %s5, %s297
        %s299 = smul.u32 4, %s23
        %p300 = scmp.lt.s32.totalorder %s22, 1
        %s301 = scalar_select %p300, %s22, 1
        %p302 = scmp.lt.s32.totalorder %s299, 15
        %s303 = scalar_select %p302, %s299, 15
        %s304 = smul.addr %s303, 2
        %s305 = smul.addr %s301, 32
        %s306 = sadd.s32 %s304, %s305
        %s307 = smul.addr %s306, 8
        %s308 = scalar_lea.vmem %s1, %s307
        %s309 = smul.u32 4, %s23
        %p310 = scmp.lt.s32.totalorder %s22, 1
        %s311 = scalar_select %p310, %s22, 1
        %p312 = scmp.lt.s32.totalorder %s23, 3
        %s313 = scalar_select %p312, %s23, 3
        %s314 = smul.addr %s313, 4
        %s315 = smul.addr %s311, 16
        %s316 = sadd.s32 %s314, %s315
        %s317 = smul.addr %s316, 8
        %s318 = scalar_lea.vmem %s2, %s317
        %s319 = smul.u32 8, %s23
        %p320 = scmp.lt.s32.totalorder %s22, 1
        %s321 = scalar_select %p320, %s22, 1
        %p322 = scmp.lt.s32.totalorder %s319, 31
        %s323 = scalar_select %p322, %s319, 31
        %s324 = smul.addr %s323, 4
        %s325 = smul.addr %s321, 128
        %s326 = sadd.s32 %s324, %s325
        %s327 = smul.addr %s326, 8
        %s328 = scalar_lea.vmem %s4, %s327
        %s329 = smul.u32 8, %s23
        %p330 = scmp.lt.s32.totalorder %s22, 1
        %s331 = scalar_select %p330, %s22, 1
        %p332 = scmp.lt.s32.totalorder %s23, 3
        %s333 = scalar_select %p332, %s23, 3
        %s334 = smul.addr %s331, 4
        %s335 = sadd.s32 %s333, %s334
        %s336 = smul.addr %s335, 2
        %s337 = scalar_lea.vmem %s5, %s336
        %s338 = smul.u32 %s22, 128
        %s339 = sld [smem:[#allocation2 + %s338]]
        %s340 = sadd.s32 %s338, 1
        %s341 = sld [smem:[#allocation2 + %s340]]
        %v342 = vld [vmem:[%s308] sm:$0xff]
        %v343 = vld [vmem:[%s308 + $0x8] sm:$0xff]
        %v344 = vld [vmem:[%s308 + $0x10] sm:$0xff]
        %v345 = vld [vmem:[%s308 + $0x18] sm:$0xff]
        %v346 = vld [vmem:[%s308 + $0x20] sm:$0xff]
        %v347 = vld [vmem:[%s308 + $0x28] sm:$0xff]
        %v348 = vld [vmem:[%s308 + $0x30] sm:$0xff]
        %v349 = vld [vmem:[%s308 + $0x38] sm:$0xff]
        %v350 = vld [vmem:[%s318] sm:$0xff]
        %v351 = vld [vmem:[%s318 + $0x8] sm:$0xff]
        %v352 = vld [vmem:[%s318 + $0x10] sm:$0xff]
        %v353 = vld [vmem:[%s318 + $0x18] sm:$0xff]
        %v354 = vstv %s339
        %v355 = vmul.f32 %v342, %v354
        %v356 = vmul.f32 %v343, %v354
        %v357 = vmul.f32 %v344, %v354
        %v358 = vmul.f32 %v345, %v354
        %v359 = vmul.f32 %v346, %v354
        %v360 = vmul.f32 %v347, %v354
        %v361 = vmul.f32 %v348, %v354
        %v362 = vmul.f32 %v349, %v354
        %v363 = vstv %s341
        %v364 = vadd.f32 %v355, %v363
        %v365 = vadd.f32 %v356, %v363
        %v366 = vadd.f32 %v357, %v363
        %v367 = vadd.f32 %v358, %v363
        %v368 = vadd.f32 %v359, %v363
        %v369 = vadd.f32 %v360, %v363
        %v370 = vadd.f32 %v361, %v363
        %v371 = vadd.f32 %v362, %v363
        %v372 = vmax.f32 %v364, 0.0
        %v373 = vmax.f32 %v365, 0.0
        %v374 = vmax.f32 %v366, 0.0
        %v375 = vmax.f32 %v367, 0.0
        %v376 = vmax.f32 %v368, 0.0
        %v377 = vmax.f32 %v369, 0.0
        %v378 = vmax.f32 %v370, 0.0
        %v379 = vmax.f32 %v371, 0.0
        %v380 = vmul.f32 %v350, %v354
        %v381 = vmul.f32 %v351, %v354
        %v382 = vadd.f32 %v380, %v363
        %v383 = vadd.f32 %v381, %v363
        %v384 = vmax.f32 %v382, 0.0
        %v385 = vmax.f32 %v383, 0.0
        %p386 = scmp.gt.s32.totalorder %s23, 0
        %s387 = scalar_select %p386, 1.0, 0.0
        %v388 = vstv %s387
        %v389 = vmul.f32 %v384, %v388
        %v390 = vmul.f32 %v385, %v388
        %v391 = vmul.f32 %v352, %v354
        %v392 = vmul.f32 %v353, %v354
        %v393 = vadd.f32 %v391, %v363
        %v394 = vadd.f32 %v392, %v363
        %v395 = vmax.f32 %v393, 0.0
        %v396 = vmax.f32 %v394, 0.0
        %p397 = scmp.lt.s32.totalorder %s23, 3
        %s398 = scalar_select %p397, 1.0, 0.0
        %v399 = vstv %s398
        %v400 = vmul.f32 %v395, %v399
        %v401 = vmul.f32 %v396, %v399
        %v410 = vcombine.high %v372, %v372
        %v412 = vunpack.c.l.s4 1966171168
        %v413 = vunpack.c.0.s8 %v412
        %v414 = vlaneseq
        %v415 = vshrl.u32 %v414, 7
        %v416 = vsub.s32 %v413, %v415
        %v417 = vrot.slane %v372, %v416
        %v419 = vunpack.c.l.s4 1966171168
        %v420 = vunpack.c.0.s8 %v419
        %v421 = vlaneseq
        %v422 = vshrl.u32 %v421, 7
        %v423 = vsub.s32 %v420, %v422
        %v424 = vrot.slane %v410, %v423
        %v425 = vcombine.high %v417, %v417
        %v426 = vcombine.high %v424, %v424
        %v428 = vunpack.c.l.s4 1966171168
        %v429 = vunpack.c.0.s8 %v428
        %v430 = vlaneseq
        %v431 = vshrl.u32 %v430, 7
        %v432 = vsub.s32 %v429, %v431
        %v433 = vrot.slane %v417, %v432
        %v435 = vunpack.c.l.s4 1966171168
        %v436 = vunpack.c.0.s8 %v435
        %v437 = vlaneseq
        %v438 = vshrl.u32 %v437, 7
        %v439 = vsub.s32 %v436, %v438
        %v440 = vrot.slane %v424, %v439
        %v442 = vunpack.c.l.s4 1966171168
        %v443 = vunpack.c.0.s8 %v442
        %v444 = vlaneseq
        %v445 = vshrl.u32 %v444, 7
        %v446 = vsub.s32 %v443, %v445
        %v447 = vrot.slane %v425, %v446
        %v449 = vunpack.c.l.s4 1966171168
        %v450 = vunpack.c.0.s8 %v449
        %v451 = vlaneseq
        %v452 = vshrl.u32 %v451, 7
        %v453 = vsub.s32 %v450, %v452
        %v454 = vrot.slane %v426, %v453
        %v455 = vcombine.high %v433, %v433
        %v456 = vcombine.high %v440, %v440
        %v457 = vcombine.high %v447, %v447
        %v458 = vcombine.high %v454, %v454
        %v459 = vcombine.high %v373, %v373
        %v461 = vunpack.c.l.s4 1966171168
        %v462 = vunpack.c.0.s8 %v461
        %v463 = vlaneseq
        %v464 = vshrl.u32 %v463, 7
        %v465 = vsub.s32 %v462, %v464
        %v466 = vrot.slane %v373, %v465
        %v468 = vunpack.c.l.s4 1966171168
        %v469 = vunpack.c.0.s8 %v468
        %v470 = vlaneseq
        %v471 = vshrl.u32 %v470, 7
        %v472 = vsub.s32 %v469, %v471
        %v473 = vrot.slane %v459, %v472
        %v474 = vcombine.high %v466, %v466
        %v475 = vcombine.high %v473, %v473
        %v477 = vunpack.c.l.s4 1966171168
        %v478 = vunpack.c.0.s8 %v477
        %v479 = vlaneseq
        %v480 = vshrl.u32 %v479, 7
        %v481 = vsub.s32 %v478, %v480
        %v482 = vrot.slane %v466, %v481
        %v484 = vunpack.c.l.s4 1966171168
        %v485 = vunpack.c.0.s8 %v484
        %v486 = vlaneseq
        %v487 = vshrl.u32 %v486, 7
        %v488 = vsub.s32 %v485, %v487
        %v489 = vrot.slane %v473, %v488
        %v491 = vunpack.c.l.s4 1966171168
        %v492 = vunpack.c.0.s8 %v491
        %v493 = vlaneseq
        %v494 = vshrl.u32 %v493, 7
        %v495 = vsub.s32 %v492, %v494
        %v496 = vrot.slane %v474, %v495
        %v498 = vunpack.c.l.s4 1966171168
        %v499 = vunpack.c.0.s8 %v498
        %v500 = vlaneseq
        %v501 = vshrl.u32 %v500, 7
        %v502 = vsub.s32 %v499, %v501
        %v503 = vrot.slane %v475, %v502
        %v504 = vcombine.high %v482, %v482
        %v505 = vcombine.high %v489, %v489
        %v506 = vcombine.high %v496, %v496
        %v507 = vcombine.high %v503, %v503
        %v508 = vcombine.high %v374, %v374
        %v510 = vunpack.c.l.s4 1966171168
        %v511 = vunpack.c.0.s8 %v510
        %v512 = vlaneseq
        %v513 = vshrl.u32 %v512, 7
        %v514 = vsub.s32 %v511, %v513
        %v515 = vrot.slane %v374, %v514
        %v517 = vunpack.c.l.s4 1966171168
        %v518 = vunpack.c.0.s8 %v517
        %v519 = vlaneseq
        %v520 = vshrl.u32 %v519, 7
        %v521 = vsub.s32 %v518, %v520
        %v522 = vrot.slane %v508, %v521
        %v523 = vcombine.high %v515, %v515
        %v524 = vcombine.high %v522, %v522
        %v526 = vunpack.c.l.s4 1966171168
        %v527 = vunpack.c.0.s8 %v526
        %v528 = vlaneseq
        %v529 = vshrl.u32 %v528, 7
        %v530 = vsub.s32 %v527, %v529
        %v531 = vrot.slane %v515, %v530
        %v533 = vunpack.c.l.s4 1966171168
        %v534 = vunpack.c.0.s8 %v533
        %v535 = vlaneseq
        %v536 = vshrl.u32 %v535, 7
        %v537 = vsub.s32 %v534, %v536
        %v538 = vrot.slane %v522, %v537
        %v540 = vunpack.c.l.s4 1966171168
        %v541 = vunpack.c.0.s8 %v540
        %v542 = vlaneseq
        %v543 = vshrl.u32 %v542, 7
        %v544 = vsub.s32 %v541, %v543
        %v545 = vrot.slane %v523, %v544
        %v547 = vunpack.c.l.s4 1966171168
        %v548 = vunpack.c.0.s8 %v547
        %v549 = vlaneseq
        %v550 = vshrl.u32 %v549, 7
        %v551 = vsub.s32 %v548, %v550
        %v552 = vrot.slane %v524, %v551
        %v553 = vcombine.high %v531, %v531
        %v554 = vcombine.high %v538, %v538
        %v555 = vcombine.high %v545, %v545
        %v556 = vcombine.high %v552, %v552
        %v557 = vcombine.high %v375, %v375
        %v559 = vunpack.c.l.s4 1966171168
        %v560 = vunpack.c.0.s8 %v559
        %v561 = vlaneseq
        %v562 = vshrl.u32 %v561, 7
        %v563 = vsub.s32 %v560, %v562
        %v564 = vrot.slane %v375, %v563
        %v566 = vunpack.c.l.s4 1966171168
        %v567 = vunpack.c.0.s8 %v566
        %v568 = vlaneseq
        %v569 = vshrl.u32 %v568, 7
        %v570 = vsub.s32 %v567, %v569
        %v571 = vrot.slane %v557, %v570
        %v572 = vcombine.high %v564, %v564
        %v573 = vcombine.high %v571, %v571
        %v575 = vunpack.c.l.s4 1966171168
        %v576 = vunpack.c.0.s8 %v575
        %v577 = vlaneseq
        %v578 = vshrl.u32 %v577, 7
        %v579 = vsub.s32 %v576, %v578
        %v580 = vrot.slane %v564, %v579
        %v582 = vunpack.c.l.s4 1966171168
        %v583 = vunpack.c.0.s8 %v582
        %v584 = vlaneseq
        %v585 = vshrl.u32 %v584, 7
        %v586 = vsub.s32 %v583, %v585
        %v587 = vrot.slane %v571, %v586
        %v589 = vunpack.c.l.s4 1966171168
        %v590 = vunpack.c.0.s8 %v589
        %v591 = vlaneseq
        %v592 = vshrl.u32 %v591, 7
        %v593 = vsub.s32 %v590, %v592
        %v594 = vrot.slane %v572, %v593
        %v596 = vunpack.c.l.s4 1966171168
        %v597 = vunpack.c.0.s8 %v596
        %v598 = vlaneseq
        %v599 = vshrl.u32 %v598, 7
        %v600 = vsub.s32 %v597, %v599
        %v601 = vrot.slane %v573, %v600
        %v602 = vcombine.high %v580, %v580
        %v603 = vcombine.high %v587, %v587
        %v604 = vcombine.high %v594, %v594
        %v605 = vcombine.high %v601, %v601
        %v606 = vcombine.high %v376, %v376
        %v608 = vunpack.c.l.s4 1966171168
        %v609 = vunpack.c.0.s8 %v608
        %v610 = vlaneseq
        %v611 = vshrl.u32 %v610, 7
        %v612 = vsub.s32 %v609, %v611
        %v613 = vrot.slane %v376, %v612
        %v615 = vunpack.c.l.s4 1966171168
        %v616 = vunpack.c.0.s8 %v615
        %v617 = vlaneseq
        %v618 = vshrl.u32 %v617, 7
        %v619 = vsub.s32 %v616, %v618
        %v620 = vrot.slane %v606, %v619
        %v621 = vcombine.high %v613, %v613
        %v622 = vcombine.high %v620, %v620
        %v624 = vunpack.c.l.s4 1966171168
        %v625 = vunpack.c.0.s8 %v624
        %v626 = vlaneseq
        %v627 = vshrl.u32 %v626, 7
        %v628 = vsub.s32 %v625, %v627
        %v629 = vrot.slane %v613, %v628
        %v631 = vunpack.c.l.s4 1966171168
        %v632 = vunpack.c.0.s8 %v631
        %v633 = vlaneseq
        %v634 = vshrl.u32 %v633, 7
        %v635 = vsub.s32 %v632, %v634
        %v636 = vrot.slane %v620, %v635
        %v638 = vunpack.c.l.s4 1966171168
        %v639 = vunpack.c.0.s8 %v638
        %v640 = vlaneseq
        %v641 = vshrl.u32 %v640, 7
        %v642 = vsub.s32 %v639, %v641
        %v643 = vrot.slane %v621, %v642
        %v645 = vunpack.c.l.s4 1966171168
        %v646 = vunpack.c.0.s8 %v645
        %v647 = vlaneseq
        %v648 = vshrl.u32 %v647, 7
        %v649 = vsub.s32 %v646, %v648
        %v650 = vrot.slane %v622, %v649
        %v651 = vcombine.high %v629, %v629
        %v652 = vcombine.high %v636, %v636
        %v653 = vcombine.high %v643, %v643
        %v654 = vcombine.high %v650, %v650
        %v655 = vcombine.high %v377, %v377
        %v657 = vunpack.c.l.s4 1966171168
        %v658 = vunpack.c.0.s8 %v657
        %v659 = vlaneseq
        %v660 = vshrl.u32 %v659, 7
        %v661 = vsub.s32 %v658, %v660
        %v662 = vrot.slane %v377, %v661
        %v664 = vunpack.c.l.s4 1966171168
        %v665 = vunpack.c.0.s8 %v664
        %v666 = vlaneseq
        %v667 = vshrl.u32 %v666, 7
        %v668 = vsub.s32 %v665, %v667
        %v669 = vrot.slane %v655, %v668
        %v670 = vcombine.high %v662, %v662
        %v671 = vcombine.high %v669, %v669
        %v673 = vunpack.c.l.s4 1966171168
        %v674 = vunpack.c.0.s8 %v673
        %v675 = vlaneseq
        %v676 = vshrl.u32 %v675, 7
        %v677 = vsub.s32 %v674, %v676
        %v678 = vrot.slane %v662, %v677
        %v680 = vunpack.c.l.s4 1966171168
        %v681 = vunpack.c.0.s8 %v680
        %v682 = vlaneseq
        %v683 = vshrl.u32 %v682, 7
        %v684 = vsub.s32 %v681, %v683
        %v685 = vrot.slane %v669, %v684
        %v687 = vunpack.c.l.s4 1966171168
        %v688 = vunpack.c.0.s8 %v687
        %v689 = vlaneseq
        %v690 = vshrl.u32 %v689, 7
        %v691 = vsub.s32 %v688, %v690
        %v692 = vrot.slane %v670, %v691
        %v694 = vunpack.c.l.s4 1966171168
        %v695 = vunpack.c.0.s8 %v694
        %v696 = vlaneseq
        %v697 = vshrl.u32 %v696, 7
        %v698 = vsub.s32 %v695, %v697
        %v699 = vrot.slane %v671, %v698
        %v700 = vcombine.high %v678, %v678
        %v701 = vcombine.high %v685, %v685
        %v702 = vcombine.high %v692, %v692
        %v703 = vcombine.high %v699, %v699
        %v704 = vcombine.high %v378, %v378
        %v706 = vunpack.c.l.s4 1966171168
        %v707 = vunpack.c.0.s8 %v706
        %v708 = vlaneseq
        %v709 = vshrl.u32 %v708, 7
        %v710 = vsub.s32 %v707, %v709
        %v711 = vrot.slane %v378, %v710
        %v713 = vunpack.c.l.s4 1966171168
        %v714 = vunpack.c.0.s8 %v713
        %v715 = vlaneseq
        %v716 = vshrl.u32 %v715, 7
        %v717 = vsub.s32 %v714, %v716
        %v718 = vrot.slane %v704, %v717
        %v719 = vcombine.high %v711, %v711
        %v720 = vcombine.high %v718, %v718
        %v722 = vunpack.c.l.s4 1966171168
        %v723 = vunpack.c.0.s8 %v722
        %v724 = vlaneseq
        %v725 = vshrl.u32 %v724, 7
        %v726 = vsub.s32 %v723, %v725
        %v727 = vrot.slane %v711, %v726
        %v729 = vunpack.c.l.s4 1966171168
        %v730 = vunpack.c.0.s8 %v729
        %v731 = vlaneseq
        %v732 = vshrl.u32 %v731, 7
        %v733 = vsub.s32 %v730, %v732
        %v734 = vrot.slane %v718, %v733
        %v736 = vunpack.c.l.s4 1966171168
        %v737 = vunpack.c.0.s8 %v736
        %v738 = vlaneseq
        %v739 = vshrl.u32 %v738, 7
        %v740 = vsub.s32 %v737, %v739
        %v741 = vrot.slane %v719, %v740
        %v743 = vunpack.c.l.s4 1966171168
        %v744 = vunpack.c.0.s8 %v743
        %v745 = vlaneseq
        %v746 = vshrl.u32 %v745, 7
        %v747 = vsub.s32 %v744, %v746
        %v748 = vrot.slane %v720, %v747
        %v749 = vcombine.high %v727, %v727
        %v750 = vcombine.high %v734, %v734
        %v751 = vcombine.high %v741, %v741
        %v752 = vcombine.high %v748, %v748
        %v753 = vcombine.high %v379, %v379
        %v755 = vunpack.c.l.s4 1966171168
        %v756 = vunpack.c.0.s8 %v755
        %v757 = vlaneseq
        %v758 = vshrl.u32 %v757, 7
        %v759 = vsub.s32 %v756, %v758
        %v760 = vrot.slane %v379, %v759
        %v762 = vunpack.c.l.s4 1966171168
        %v763 = vunpack.c.0.s8 %v762
        %v764 = vlaneseq
        %v765 = vshrl.u32 %v764, 7
        %v766 = vsub.s32 %v763, %v765
        %v767 = vrot.slane %v753, %v766
        %v768 = vcombine.high %v760, %v760
        %v769 = vcombine.high %v767, %v767
        %v771 = vunpack.c.l.s4 1966171168
        %v772 = vunpack.c.0.s8 %v771
        %v773 = vlaneseq
        %v774 = vshrl.u32 %v773, 7
        %v775 = vsub.s32 %v772, %v774
        %v776 = vrot.slane %v760, %v775
        %v778 = vunpack.c.l.s4 1966171168
        %v779 = vunpack.c.0.s8 %v778
        %v780 = vlaneseq
        %v781 = vshrl.u32 %v780, 7
        %v782 = vsub.s32 %v779, %v781
        %v783 = vrot.slane %v767, %v782
        %v785 = vunpack.c.l.s4 1966171168
        %v786 = vunpack.c.0.s8 %v785
        %v787 = vlaneseq
        %v788 = vshrl.u32 %v787, 7
        %v789 = vsub.s32 %v786, %v788
        %v790 = vrot.slane %v768, %v789
        %v792 = vunpack.c.l.s4 1966171168
        %v793 = vunpack.c.0.s8 %v792
        %v794 = vlaneseq
        %v795 = vshrl.u32 %v794, 7
        %v796 = vsub.s32 %v793, %v795
        %v797 = vrot.slane %v769, %v796
        %v798 = vcombine.high %v776, %v776
        %v799 = vcombine.high %v783, %v783
        %v800 = vcombine.high %v790, %v790
        %v801 = vcombine.high %v797, %v797
        %v802 = vlaneseq
        %v803 = vshrl.u32 %v802, 7
        %v804 = vsub.s32 0, %v803
        %v805 = vrot.slane %v433, %v804
        %v806 = vlaneseq
        %v807 = vshrl.u32 %v806, 7
        %v808 = vsub.s32 0, %v807
        %v809 = vrot.slane %v447, %v808
        %v810 = vlaneseq
        %v811 = vshrl.u32 %v810, 7
        %v812 = vsub.s32 0, %v811
        %v813 = vrot.slane %v455, %v812
        %v814 = vlaneseq
        %v815 = vshrl.u32 %v814, 7
        %v816 = vsub.s32 0, %v815
        %v817 = vrot.slane %v457, %v816
        %v818 = vlaneseq
        %v819 = vshrl.u32 %v818, 7
        %v820 = vsub.s32 0, %v819
        %v821 = vrot.slane %v440, %v820
        %v822 = vlaneseq
        %v823 = vshrl.u32 %v822, 7
        %v824 = vsub.s32 0, %v823
        %v825 = vrot.slane %v454, %v824
        %v826 = vlaneseq
        %v827 = vshrl.u32 %v826, 7
        %v828 = vsub.s32 0, %v827
        %v829 = vrot.slane %v456, %v828
        %v830 = vlaneseq
        %v831 = vshrl.u32 %v830, 7
        %v832 = vsub.s32 0, %v831
        %v833 = vrot.slane %v458, %v832
        %v834 = vlaneseq
        %v835 = vshrl.u32 %v834, 7
        %v836 = vsub.s32 0, %v835
        %v837 = vrot.slane %v482, %v836
        %v838 = vlaneseq
        %v839 = vshrl.u32 %v838, 7
        %v840 = vsub.s32 0, %v839
        %v841 = vrot.slane %v496, %v840
        %v842 = vlaneseq
        %v843 = vshrl.u32 %v842, 7
        %v844 = vsub.s32 0, %v843
        %v845 = vrot.slane %v504, %v844
        %v846 = vlaneseq
        %v847 = vshrl.u32 %v846, 7
        %v848 = vsub.s32 0, %v847
        %v849 = vrot.slane %v506, %v848
        %v850 = vlaneseq
        %v851 = vshrl.u32 %v850, 7
        %v852 = vsub.s32 0, %v851
        %v853 = vrot.slane %v489, %v852
        %v854 = vlaneseq
        %v855 = vshrl.u32 %v854, 7
        %v856 = vsub.s32 0, %v855
        %v857 = vrot.slane %v503, %v856
        %v858 = vlaneseq
        %v859 = vshrl.u32 %v858, 7
        %v860 = vsub.s32 0, %v859
        %v861 = vrot.slane %v505, %v860
        %v862 = vlaneseq
        %v863 = vshrl.u32 %v862, 7
        %v864 = vsub.s32 0, %v863
        %v865 = vrot.slane %v507, %v864
        %v866 = vlaneseq
        %v867 = vshrl.u32 %v866, 7
        %v868 = vsub.s32 0, %v867
        %v869 = vrot.slane %v531, %v868
        %v870 = vlaneseq
        %v871 = vshrl.u32 %v870, 7
        %v872 = vsub.s32 0, %v871
        %v873 = vrot.slane %v545, %v872
        %v874 = vlaneseq
        %v875 = vshrl.u32 %v874, 7
        %v876 = vsub.s32 0, %v875
        %v877 = vrot.slane %v553, %v876
        %v878 = vlaneseq
        %v879 = vshrl.u32 %v878, 7
        %v880 = vsub.s32 0, %v879
        %v881 = vrot.slane %v555, %v880
        %v882 = vlaneseq
        %v883 = vshrl.u32 %v882, 7
        %v884 = vsub.s32 0, %v883
        %v885 = vrot.slane %v538, %v884
        %v886 = vlaneseq
        %v887 = vshrl.u32 %v886, 7
        %v888 = vsub.s32 0, %v887
        %v889 = vrot.slane %v552, %v888
        %v890 = vlaneseq
        %v891 = vshrl.u32 %v890, 7
        %v892 = vsub.s32 0, %v891
        %v893 = vrot.slane %v554, %v892
        %v894 = vlaneseq
        %v895 = vshrl.u32 %v894, 7
        %v896 = vsub.s32 0, %v895
        %v897 = vrot.slane %v556, %v896
        %v898 = vlaneseq
        %v899 = vshrl.u32 %v898, 7
        %v900 = vsub.s32 0, %v899
        %v901 = vrot.slane %v580, %v900
        %v902 = vlaneseq
        %v903 = vshrl.u32 %v902, 7
        %v904 = vsub.s32 0, %v903
        %v905 = vrot.slane %v594, %v904
        %v906 = vlaneseq
        %v907 = vshrl.u32 %v906, 7
        %v908 = vsub.s32 0, %v907
        %v909 = vrot.slane %v602, %v908
        %v910 = vlaneseq
        %v911 = vshrl.u32 %v910, 7
        %v912 = vsub.s32 0, %v911
        %v913 = vrot.slane %v604, %v912
        %v914 = vlaneseq
        %v915 = vshrl.u32 %v914, 7
        %v916 = vsub.s32 0, %v915
        %v917 = vrot.slane %v587, %v916
        %v918 = vlaneseq
        %v919 = vshrl.u32 %v918, 7
        %v920 = vsub.s32 0, %v919
        %v921 = vrot.slane %v601, %v920
        %v922 = vlaneseq
        %v923 = vshrl.u32 %v922, 7
        %v924 = vsub.s32 0, %v923
        %v925 = vrot.slane %v603, %v924
        %v926 = vlaneseq
        %v927 = vshrl.u32 %v926, 7
        %v928 = vsub.s32 0, %v927
        %v929 = vrot.slane %v605, %v928
        %v930 = vlaneseq
        %v931 = vshrl.u32 %v930, 7
        %v932 = vsub.s32 0, %v931
        %v933 = vrot.slane %v629, %v932
        %v934 = vlaneseq
        %v935 = vshrl.u32 %v934, 7
        %v936 = vsub.s32 0, %v935
        %v937 = vrot.slane %v643, %v936
        %v938 = vlaneseq
        %v939 = vshrl.u32 %v938, 7
        %v940 = vsub.s32 0, %v939
        %v941 = vrot.slane %v651, %v940
        %v942 = vlaneseq
        %v943 = vshrl.u32 %v942, 7
        %v944 = vsub.s32 0, %v943
        %v945 = vrot.slane %v653, %v944
        %v946 = vlaneseq
        %v947 = vshrl.u32 %v946, 7
        %v948 = vsub.s32 0, %v947
        %v949 = vrot.slane %v636, %v948
        %v950 = vlaneseq
        %v951 = vshrl.u32 %v950, 7
        %v952 = vsub.s32 0, %v951
        %v953 = vrot.slane %v650, %v952
        %v954 = vlaneseq
        %v955 = vshrl.u32 %v954, 7
        %v956 = vsub.s32 0, %v955
        %v957 = vrot.slane %v652, %v956
        %v958 = vlaneseq
        %v959 = vshrl.u32 %v958, 7
        %v960 = vsub.s32 0, %v959
        %v961 = vrot.slane %v654, %v960
        %v962 = vlaneseq
        %v963 = vshrl.u32 %v962, 7
        %v964 = vsub.s32 0, %v963
        %v965 = vrot.slane %v678, %v964
        %v966 = vlaneseq
        %v967 = vshrl.u32 %v966, 7
        %v968 = vsub.s32 0, %v967
        %v969 = vrot.slane %v692, %v968
        %v970 = vlaneseq
        %v971 = vshrl.u32 %v970, 7
        %v972 = vsub.s32 0, %v971
        %v973 = vrot.slane %v700, %v972
        %v974 = vlaneseq
        %v975 = vshrl.u32 %v974, 7
        %v976 = vsub.s32 0, %v975
        %v977 = vrot.slane %v702, %v976
        %v978 = vlaneseq
        %v979 = vshrl.u32 %v978, 7
        %v980 = vsub.s32 0, %v979
        %v981 = vrot.slane %v685, %v980
        %v982 = vlaneseq
        %v983 = vshrl.u32 %v982, 7
        %v984 = vsub.s32 0, %v983
        %v985 = vrot.slane %v699, %v984
        %v986 = vlaneseq
        %v987 = vshrl.u32 %v986, 7
        %v988 = vsub.s32 0, %v987
        %v989 = vrot.slane %v701, %v988
        %v990 = vlaneseq
        %v991 = vshrl.u32 %v990, 7
        %v992 = vsub.s32 0, %v991
        %v993 = vrot.slane %v703, %v992
        %v994 = vlaneseq
        %v995 = vshrl.u32 %v994, 7
        %v996 = vsub.s32 0, %v995
        %v997 = vrot.slane %v727, %v996
        %v998 = vlaneseq
        %v999 = vshrl.u32 %v998, 7
        %v1000 = vsub.s32 0, %v999
        %v1001 = vrot.slane %v741, %v1000
        %v1002 = vlaneseq
        %v1003 = vshrl.u32 %v1002, 7
        %v1004 = vsub.s32 0, %v1003
        %v1005 = vrot.slane %v749, %v1004
        %v1006 = vlaneseq
        %v1007 = vshrl.u32 %v1006, 7
        %v1008 = vsub.s32 0, %v1007
        %v1009 = vrot.slane %v751, %v1008
        %v1010 = vlaneseq
        %v1011 = vshrl.u32 %v1010, 7
        %v1012 = vsub.s32 0, %v1011
        %v1013 = vrot.slane %v734, %v1012
        %v1014 = vlaneseq
        %v1015 = vshrl.u32 %v1014, 7
        %v1016 = vsub.s32 0, %v1015
        %v1017 = vrot.slane %v748, %v1016
        %v1018 = vlaneseq
        %v1019 = vshrl.u32 %v1018, 7
        %v1020 = vsub.s32 0, %v1019
        %v1021 = vrot.slane %v750, %v1020
        %v1022 = vlaneseq
        %v1023 = vshrl.u32 %v1022, 7
        %v1024 = vsub.s32 0, %v1023
        %v1025 = vrot.slane %v752, %v1024
        %v1026 = vlaneseq
        %v1027 = vshrl.u32 %v1026, 7
        %v1028 = vsub.s32 0, %v1027
        %v1029 = vrot.slane %v776, %v1028
        %v1030 = vlaneseq
        %v1031 = vshrl.u32 %v1030, 7
        %v1032 = vsub.s32 0, %v1031
        %v1033 = vrot.slane %v790, %v1032
        %v1034 = vlaneseq
        %v1035 = vshrl.u32 %v1034, 7
        %v1036 = vsub.s32 0, %v1035
        %v1037 = vrot.slane %v798, %v1036
        %v1038 = vlaneseq
        %v1039 = vshrl.u32 %v1038, 7
        %v1040 = vsub.s32 0, %v1039
        %v1041 = vrot.slane %v800, %v1040
        %v1042 = vlaneseq
        %v1043 = vshrl.u32 %v1042, 7
        %v1044 = vsub.s32 0, %v1043
        %v1045 = vrot.slane %v783, %v1044
        %v1046 = vlaneseq
        %v1047 = vshrl.u32 %v1046, 7
        %v1048 = vsub.s32 0, %v1047
        %v1049 = vrot.slane %v797, %v1048
        %v1050 = vlaneseq
        %v1051 = vshrl.u32 %v1050, 7
        %v1052 = vsub.s32 0, %v1051
        %v1053 = vrot.slane %v799, %v1052
        %v1054 = vlaneseq
        %v1055 = vshrl.u32 %v1054, 7
        %v1056 = vsub.s32 0, %v1055
        %v1057 = vrot.slane %v801, %v1056
        %v1060 = vcombine.high %v389, %v389
        %v1062 = vunpack.c.l.s4 1966171168
        %v1063 = vunpack.c.0.s8 %v1062
        %v1064 = vlaneseq
        %v1065 = vshrl.u32 %v1064, 7
        %v1066 = vsub.s32 %v1063, %v1065
        %v1067 = vrot.slane %v389, %v1066
        %v1069 = vunpack.c.l.s4 1966171168
        %v1070 = vunpack.c.0.s8 %v1069
        %v1071 = vlaneseq
        %v1072 = vshrl.u32 %v1071, 7
        %v1073 = vsub.s32 %v1070, %v1072
        %v1074 = vrot.slane %v1060, %v1073
        %v1075 = vcombine.high %v1067, %v1067
        %v1076 = vcombine.high %v1074, %v1074
        %v1078 = vunpack.c.l.s4 1966171168
        %v1079 = vunpack.c.0.s8 %v1078
        %v1080 = vlaneseq
        %v1081 = vshrl.u32 %v1080, 7
        %v1082 = vsub.s32 %v1079, %v1081
        %v1083 = vrot.slane %v1067, %v1082
        %v1085 = vunpack.c.l.s4 1966171168
        %v1086 = vunpack.c.0.s8 %v1085
        %v1087 = vlaneseq
        %v1088 = vshrl.u32 %v1087, 7
        %v1089 = vsub.s32 %v1086, %v1088
        %v1090 = vrot.slane %v1074, %v1089
        %v1092 = vunpack.c.l.s4 1966171168
        %v1093 = vunpack.c.0.s8 %v1092
        %v1094 = vlaneseq
        %v1095 = vshrl.u32 %v1094, 7
        %v1096 = vsub.s32 %v1093, %v1095
        %v1097 = vrot.slane %v1075, %v1096
        %v1099 = vunpack.c.l.s4 1966171168
        %v1100 = vunpack.c.0.s8 %v1099
        %v1101 = vlaneseq
        %v1102 = vshrl.u32 %v1101, 7
        %v1103 = vsub.s32 %v1100, %v1102
        %v1104 = vrot.slane %v1076, %v1103
        %v1105 = vcombine.high %v1083, %v1083
        %v1106 = vcombine.high %v1090, %v1090
        %v1107 = vcombine.high %v1097, %v1097
        %v1108 = vcombine.high %v1104, %v1104
        %v1109 = vcombine.high %v390, %v390
        %v1111 = vunpack.c.l.s4 1966171168
        %v1112 = vunpack.c.0.s8 %v1111
        %v1113 = vlaneseq
        %v1114 = vshrl.u32 %v1113, 7
        %v1115 = vsub.s32 %v1112, %v1114
        %v1116 = vrot.slane %v390, %v1115
        %v1118 = vunpack.c.l.s4 1966171168
        %v1119 = vunpack.c.0.s8 %v1118
        %v1120 = vlaneseq
        %v1121 = vshrl.u32 %v1120, 7
        %v1122 = vsub.s32 %v1119, %v1121
        %v1123 = vrot.slane %v1109, %v1122
        %v1124 = vcombine.high %v1116, %v1116
        %v1125 = vcombine.high %v1123, %v1123
        %v1127 = vunpack.c.l.s4 1966171168
        %v1128 = vunpack.c.0.s8 %v1127
        %v1129 = vlaneseq
        %v1130 = vshrl.u32 %v1129, 7
        %v1131 = vsub.s32 %v1128, %v1130
        %v1132 = vrot.slane %v1116, %v1131
        %v1134 = vunpack.c.l.s4 1966171168
        %v1135 = vunpack.c.0.s8 %v1134
        %v1136 = vlaneseq
        %v1137 = vshrl.u32 %v1136, 7
        %v1138 = vsub.s32 %v1135, %v1137
        %v1139 = vrot.slane %v1123, %v1138
        %v1141 = vunpack.c.l.s4 1966171168
        %v1142 = vunpack.c.0.s8 %v1141
        %v1143 = vlaneseq
        %v1144 = vshrl.u32 %v1143, 7
        %v1145 = vsub.s32 %v1142, %v1144
        %v1146 = vrot.slane %v1124, %v1145
        %v1148 = vunpack.c.l.s4 1966171168
        %v1149 = vunpack.c.0.s8 %v1148
        %v1150 = vlaneseq
        %v1151 = vshrl.u32 %v1150, 7
        %v1152 = vsub.s32 %v1149, %v1151
        %v1153 = vrot.slane %v1125, %v1152
        %v1154 = vcombine.high %v1132, %v1132
        %v1155 = vcombine.high %v1139, %v1139
        %v1156 = vcombine.high %v1146, %v1146
        %v1157 = vcombine.high %v1153, %v1153
        %v1158 = vlaneseq
        %v1159 = vshrl.u32 %v1158, 7
        %v1160 = vsub.s32 0, %v1159
        %v1161 = vrot.slane %v1083, %v1160
        %v1162 = vlaneseq
        %v1163 = vshrl.u32 %v1162, 7
        %v1164 = vsub.s32 0, %v1163
        %v1165 = vrot.slane %v1097, %v1164
        %v1166 = vlaneseq
        %v1167 = vshrl.u32 %v1166, 7
        %v1168 = vsub.s32 0, %v1167
        %v1169 = vrot.slane %v1105, %v1168
        %v1170 = vlaneseq
        %v1171 = vshrl.u32 %v1170, 7
        %v1172 = vsub.s32 0, %v1171
        %v1173 = vrot.slane %v1107, %v1172
        %v1174 = vlaneseq
        %v1175 = vshrl.u32 %v1174, 7
        %v1176 = vsub.s32 0, %v1175
        %v1177 = vrot.slane %v1090, %v1176
        %v1178 = vlaneseq
        %v1179 = vshrl.u32 %v1178, 7
        %v1180 = vsub.s32 0, %v1179
        %v1181 = vrot.slane %v1104, %v1180
        %v1182 = vlaneseq
        %v1183 = vshrl.u32 %v1182, 7
        %v1184 = vsub.s32 0, %v1183
        %v1185 = vrot.slane %v1106, %v1184
        %v1186 = vlaneseq
        %v1187 = vshrl.u32 %v1186, 7
        %v1188 = vsub.s32 0, %v1187
        %v1189 = vrot.slane %v1108, %v1188
        %v1190 = vlaneseq
        %v1191 = vshrl.u32 %v1190, 7
        %v1192 = vsub.s32 0, %v1191
        %v1193 = vrot.slane %v1132, %v1192
        %v1194 = vlaneseq
        %v1195 = vshrl.u32 %v1194, 7
        %v1196 = vsub.s32 0, %v1195
        %v1197 = vrot.slane %v1146, %v1196
        %v1198 = vlaneseq
        %v1199 = vshrl.u32 %v1198, 7
        %v1200 = vsub.s32 0, %v1199
        %v1201 = vrot.slane %v1154, %v1200
        %v1202 = vlaneseq
        %v1203 = vshrl.u32 %v1202, 7
        %v1204 = vsub.s32 0, %v1203
        %v1205 = vrot.slane %v1156, %v1204
        %v1206 = vlaneseq
        %v1207 = vshrl.u32 %v1206, 7
        %v1208 = vsub.s32 0, %v1207
        %v1209 = vrot.slane %v1139, %v1208
        %v1210 = vlaneseq
        %v1211 = vshrl.u32 %v1210, 7
        %v1212 = vsub.s32 0, %v1211
        %v1213 = vrot.slane %v1153, %v1212
        %v1214 = vlaneseq
        %v1215 = vshrl.u32 %v1214, 7
        %v1216 = vsub.s32 0, %v1215
        %v1217 = vrot.slane %v1155, %v1216
        %v1218 = vlaneseq
        %v1219 = vshrl.u32 %v1218, 7
        %v1220 = vsub.s32 0, %v1219
        %v1221 = vrot.slane %v1157, %v1220
        %v1224 = vcombine.high %v400, %v400
        %v1226 = vunpack.c.l.s4 1966171168
        %v1227 = vunpack.c.0.s8 %v1226
        %v1228 = vlaneseq
        %v1229 = vshrl.u32 %v1228, 7
        %v1230 = vsub.s32 %v1227, %v1229
        %v1231 = vrot.slane %v400, %v1230
        %v1233 = vunpack.c.l.s4 1966171168
        %v1234 = vunpack.c.0.s8 %v1233
        %v1235 = vlaneseq
        %v1236 = vshrl.u32 %v1235, 7
        %v1237 = vsub.s32 %v1234, %v1236
        %v1238 = vrot.slane %v1224, %v1237
        %v1239 = vcombine.high %v1231, %v1231
        %v1240 = vcombine.high %v1238, %v1238
        %v1242 = vunpack.c.l.s4 1966171168
        %v1243 = vunpack.c.0.s8 %v1242
        %v1244 = vlaneseq
        %v1245 = vshrl.u32 %v1244, 7
        %v1246 = vsub.s32 %v1243, %v1245
        %v1247 = vrot.slane %v1231, %v1246
        %v1249 = vunpack.c.l.s4 1966171168
        %v1250 = vunpack.c.0.s8 %v1249
        %v1251 = vlaneseq
        %v1252 = vshrl.u32 %v1251, 7
        %v1253 = vsub.s32 %v1250, %v1252
        %v1254 = vrot.slane %v1238, %v1253
        %v1256 = vunpack.c.l.s4 1966171168
        %v1257 = vunpack.c.0.s8 %v1256
        %v1258 = vlaneseq
        %v1259 = vshrl.u32 %v1258, 7
        %v1260 = vsub.s32 %v1257, %v1259
        %v1261 = vrot.slane %v1239, %v1260
        %v1263 = vunpack.c.l.s4 1966171168
        %v1264 = vunpack.c.0.s8 %v1263
        %v1265 = vlaneseq
        %v1266 = vshrl.u32 %v1265, 7
        %v1267 = vsub.s32 %v1264, %v1266
        %v1268 = vrot.slane %v1240, %v1267
        %v1269 = vcombine.high %v1247, %v1247
        %v1270 = vcombine.high %v1254, %v1254
        %v1271 = vcombine.high %v1261, %v1261
        %v1272 = vcombine.high %v1268, %v1268
        %v1273 = vcombine.high %v401, %v401
        %v1275 = vunpack.c.l.s4 1966171168
        %v1276 = vunpack.c.0.s8 %v1275
        %v1277 = vlaneseq
        %v1278 = vshrl.u32 %v1277, 7
        %v1279 = vsub.s32 %v1276, %v1278
        %v1280 = vrot.slane %v401, %v1279
        %v1282 = vunpack.c.l.s4 1966171168
        %v1283 = vunpack.c.0.s8 %v1282
        %v1284 = vlaneseq
        %v1285 = vshrl.u32 %v1284, 7
        %v1286 = vsub.s32 %v1283, %v1285
        %v1287 = vrot.slane %v1273, %v1286
        %v1288 = vcombine.high %v1280, %v1280
        %v1289 = vcombine.high %v1287, %v1287
        %v1291 = vunpack.c.l.s4 1966171168
        %v1292 = vunpack.c.0.s8 %v1291
        %v1293 = vlaneseq
        %v1294 = vshrl.u32 %v1293, 7
        %v1295 = vsub.s32 %v1292, %v1294
        %v1296 = vrot.slane %v1280, %v1295
        %v1298 = vunpack.c.l.s4 1966171168
        %v1299 = vunpack.c.0.s8 %v1298
        %v1300 = vlaneseq
        %v1301 = vshrl.u32 %v1300, 7
        %v1302 = vsub.s32 %v1299, %v1301
        %v1303 = vrot.slane %v1287, %v1302
        %v1305 = vunpack.c.l.s4 1966171168
        %v1306 = vunpack.c.0.s8 %v1305
        %v1307 = vlaneseq
        %v1308 = vshrl.u32 %v1307, 7
        %v1309 = vsub.s32 %v1306, %v1308
        %v1310 = vrot.slane %v1288, %v1309
        %v1312 = vunpack.c.l.s4 1966171168
        %v1313 = vunpack.c.0.s8 %v1312
        %v1314 = vlaneseq
        %v1315 = vshrl.u32 %v1314, 7
        %v1316 = vsub.s32 %v1313, %v1315
        %v1317 = vrot.slane %v1289, %v1316
        %v1318 = vcombine.high %v1296, %v1296
        %v1319 = vcombine.high %v1303, %v1303
        %v1320 = vcombine.high %v1310, %v1310
        %v1321 = vcombine.high %v1317, %v1317
        %v1322 = vlaneseq
        %v1323 = vshrl.u32 %v1322, 7
        %v1324 = vsub.s32 0, %v1323
        %v1325 = vrot.slane %v1247, %v1324
        %v1326 = vlaneseq
        %v1327 = vshrl.u32 %v1326, 7
        %v1328 = vsub.s32 0, %v1327
        %v1329 = vrot.slane %v1261, %v1328
        %v1330 = vlaneseq
        %v1331 = vshrl.u32 %v1330, 7
        %v1332 = vsub.s32 0, %v1331
        %v1333 = vrot.slane %v1269, %v1332
        %v1334 = vlaneseq
        %v1335 = vshrl.u32 %v1334, 7
        %v1336 = vsub.s32 0, %v1335
        %v1337 = vrot.slane %v1271, %v1336
        %v1338 = vlaneseq
        %v1339 = vshrl.u32 %v1338, 7
        %v1340 = vsub.s32 0, %v1339
        %v1341 = vrot.slane %v1254, %v1340
        %v1342 = vlaneseq
        %v1343 = vshrl.u32 %v1342, 7
        %v1344 = vsub.s32 0, %v1343
        %v1345 = vrot.slane %v1268, %v1344
        %v1346 = vlaneseq
        %v1347 = vshrl.u32 %v1346, 7
        %v1348 = vsub.s32 0, %v1347
        %v1349 = vrot.slane %v1270, %v1348
        %v1350 = vlaneseq
        %v1351 = vshrl.u32 %v1350, 7
        %v1352 = vsub.s32 0, %v1351
        %v1353 = vrot.slane %v1272, %v1352
        %v1354 = vlaneseq
        %v1355 = vshrl.u32 %v1354, 7
        %v1356 = vsub.s32 0, %v1355
        %v1357 = vrot.slane %v1296, %v1356
        %v1358 = vlaneseq
        %v1359 = vshrl.u32 %v1358, 7
        %v1360 = vsub.s32 0, %v1359
        %v1361 = vrot.slane %v1310, %v1360
        %v1362 = vlaneseq
        %v1363 = vshrl.u32 %v1362, 7
        %v1364 = vsub.s32 0, %v1363
        %v1365 = vrot.slane %v1318, %v1364
        %v1366 = vlaneseq
        %v1367 = vshrl.u32 %v1366, 7
        %v1368 = vsub.s32 0, %v1367
        %v1369 = vrot.slane %v1320, %v1368
        %v1370 = vlaneseq
        %v1371 = vshrl.u32 %v1370, 7
        %v1372 = vsub.s32 0, %v1371
        %v1373 = vrot.slane %v1303, %v1372
        %v1374 = vlaneseq
        %v1375 = vshrl.u32 %v1374, 7
        %v1376 = vsub.s32 0, %v1375
        %v1377 = vrot.slane %v1317, %v1376
        %v1378 = vlaneseq
        %v1379 = vshrl.u32 %v1378, 7
        %v1380 = vsub.s32 0, %v1379
        %v1381 = vrot.slane %v1319, %v1380
        %v1382 = vlaneseq
        %v1383 = vshrl.u32 %v1382, 7
        %v1384 = vsub.s32 0, %v1383
        %v1385 = vrot.slane %v1321, %v1384
        %v1386 = vcombine.low %v1161, %v1165
        %v1387 = vcombine.low %v1169, %v1173
        %v1389 = vunpack.c.l.s4 1983009808
        %v1390 = vunpack.c.0.s8 %v1389
        %v1391 = vlaneseq
        %v1392 = vshrl.u32 %v1391, 7
        %v1393 = vsub.s32 %v1390, %v1392
        %v1394 = vrot.slane %v1386, %v1393
        %v1396 = vunpack.c.l.s4 1983009808
        %v1397 = vunpack.c.0.s8 %v1396
        %v1398 = vlaneseq
        %v1399 = vshrl.u32 %v1398, 7
        %v1400 = vsub.s32 %v1397, %v1399
        %v1401 = vrot.slane %v1387, %v1400
        %v1402 = vcombine.low %v1394, %v1401
        %v1403 = vcombine.low %v1177, %v1181
        %v1404 = vcombine.low %v1185, %v1189
        %v1406 = vunpack.c.l.s4 1983009808
        %v1407 = vunpack.c.0.s8 %v1406
        %v1408 = vlaneseq
        %v1409 = vshrl.u32 %v1408, 7
        %v1410 = vsub.s32 %v1407, %v1409
        %v1411 = vrot.slane %v1403, %v1410
        %v1413 = vunpack.c.l.s4 1983009808
        %v1414 = vunpack.c.0.s8 %v1413
        %v1415 = vlaneseq
        %v1416 = vshrl.u32 %v1415, 7
        %v1417 = vsub.s32 %v1414, %v1416
        %v1418 = vrot.slane %v1404, %v1417
        %v1419 = vcombine.low %v1411, %v1418
        %v1420 = vcombine.low %v1193, %v1197
        %v1421 = vcombine.low %v1201, %v1205
        %v1423 = vunpack.c.l.s4 1983009808
        %v1424 = vunpack.c.0.s8 %v1423
        %v1425 = vlaneseq
        %v1426 = vshrl.u32 %v1425, 7
        %v1427 = vsub.s32 %v1424, %v1426
        %v1428 = vrot.slane %v1420, %v1427
        %v1430 = vunpack.c.l.s4 1983009808
        %v1431 = vunpack.c.0.s8 %v1430
        %v1432 = vlaneseq
        %v1433 = vshrl.u32 %v1432, 7
        %v1434 = vsub.s32 %v1431, %v1433
        %v1435 = vrot.slane %v1421, %v1434
        %v1436 = vcombine.low %v1428, %v1435
        %v1437 = vcombine.low %v1209, %v1213
        %v1438 = vcombine.low %v1217, %v1221
        %v1440 = vunpack.c.l.s4 1983009808
        %v1441 = vunpack.c.0.s8 %v1440
        %v1442 = vlaneseq
        %v1443 = vshrl.u32 %v1442, 7
        %v1444 = vsub.s32 %v1441, %v1443
        %v1445 = vrot.slane %v1437, %v1444
        %v1447 = vunpack.c.l.s4 1983009808
        %v1448 = vunpack.c.0.s8 %v1447
        %v1449 = vlaneseq
        %v1450 = vshrl.u32 %v1449, 7
        %v1451 = vsub.s32 %v1448, %v1450
        %v1452 = vrot.slane %v1438, %v1451
        %v1453 = vcombine.low %v1445, %v1452
        %v1454 = vcombine.low %v805, %v809
        %v1455 = vcombine.low %v813, %v817
        %v1457 = vunpack.c.l.s4 1983009808
        %v1458 = vunpack.c.0.s8 %v1457
        %v1459 = vlaneseq
        %v1460 = vshrl.u32 %v1459, 7
        %v1461 = vsub.s32 %v1458, %v1460
        %v1462 = vrot.slane %v1454, %v1461
        %v1464 = vunpack.c.l.s4 1983009808
        %v1465 = vunpack.c.0.s8 %v1464
        %v1466 = vlaneseq
        %v1467 = vshrl.u32 %v1466, 7
        %v1468 = vsub.s32 %v1465, %v1467
        %v1469 = vrot.slane %v1455, %v1468
        %v1470 = vcombine.low %v1462, %v1469
        %v1471 = vcombine.low %v821, %v825
        %v1472 = vcombine.low %v829, %v833
        %v1474 = vunpack.c.l.s4 1983009808
        %v1475 = vunpack.c.0.s8 %v1474
        %v1476 = vlaneseq
        %v1477 = vshrl.u32 %v1476, 7
        %v1478 = vsub.s32 %v1475, %v1477
        %v1479 = vrot.slane %v1471, %v1478
        %v1481 = vunpack.c.l.s4 1983009808
        %v1482 = vunpack.c.0.s8 %v1481
        %v1483 = vlaneseq
        %v1484 = vshrl.u32 %v1483, 7
        %v1485 = vsub.s32 %v1482, %v1484
        %v1486 = vrot.slane %v1472, %v1485
        %v1487 = vcombine.low %v1479, %v1486
        %v1488 = vcombine.low %v837, %v841
        %v1489 = vcombine.low %v845, %v849
        %v1491 = vunpack.c.l.s4 1983009808
        %v1492 = vunpack.c.0.s8 %v1491
        %v1493 = vlaneseq
        %v1494 = vshrl.u32 %v1493, 7
        %v1495 = vsub.s32 %v1492, %v1494
        %v1496 = vrot.slane %v1488, %v1495
        %v1498 = vunpack.c.l.s4 1983009808
        %v1499 = vunpack.c.0.s8 %v1498
        %v1500 = vlaneseq
        %v1501 = vshrl.u32 %v1500, 7
        %v1502 = vsub.s32 %v1499, %v1501
        %v1503 = vrot.slane %v1489, %v1502
        %v1504 = vcombine.low %v1496, %v1503
        %v1505 = vcombine.low %v853, %v857
        %v1506 = vcombine.low %v861, %v865
        %v1508 = vunpack.c.l.s4 1983009808
        %v1509 = vunpack.c.0.s8 %v1508
        %v1510 = vlaneseq
        %v1511 = vshrl.u32 %v1510, 7
        %v1512 = vsub.s32 %v1509, %v1511
        %v1513 = vrot.slane %v1505, %v1512
        %v1515 = vunpack.c.l.s4 1983009808
        %v1516 = vunpack.c.0.s8 %v1515
        %v1517 = vlaneseq
        %v1518 = vshrl.u32 %v1517, 7
        %v1519 = vsub.s32 %v1516, %v1518
        %v1520 = vrot.slane %v1506, %v1519
        %v1521 = vcombine.low %v1513, %v1520
        %v1522 = vcombine.low %v869, %v873
        %v1523 = vcombine.low %v877, %v881
        %v1525 = vunpack.c.l.s4 1983009808
        %v1526 = vunpack.c.0.s8 %v1525
        %v1527 = vlaneseq
        %v1528 = vshrl.u32 %v1527, 7
        %v1529 = vsub.s32 %v1526, %v1528
        %v1530 = vrot.slane %v1522, %v1529
        %v1532 = vunpack.c.l.s4 1983009808
        %v1533 = vunpack.c.0.s8 %v1532
        %v1534 = vlaneseq
        %v1535 = vshrl.u32 %v1534, 7
        %v1536 = vsub.s32 %v1533, %v1535
        %v1537 = vrot.slane %v1523, %v1536
        %v1538 = vcombine.low %v1530, %v1537
        %v1539 = vcombine.low %v885, %v889
        %v1540 = vcombine.low %v893, %v897
        %v1542 = vunpack.c.l.s4 1983009808
        %v1543 = vunpack.c.0.s8 %v1542
        %v1544 = vlaneseq
        %v1545 = vshrl.u32 %v1544, 7
        %v1546 = vsub.s32 %v1543, %v1545
        %v1547 = vrot.slane %v1539, %v1546
        %v1549 = vunpack.c.l.s4 1983009808
        %v1550 = vunpack.c.0.s8 %v1549
        %v1551 = vlaneseq
        %v1552 = vshrl.u32 %v1551, 7
        %v1553 = vsub.s32 %v1550, %v1552
        %v1554 = vrot.slane %v1540, %v1553
        %v1555 = vcombine.low %v1547, %v1554
        %v1556 = vcombine.low %v901, %v905
        %v1557 = vcombine.low %v909, %v913
        %v1559 = vunpack.c.l.s4 1983009808
        %v1560 = vunpack.c.0.s8 %v1559
        %v1561 = vlaneseq
        %v1562 = vshrl.u32 %v1561, 7
        %v1563 = vsub.s32 %v1560, %v1562
        %v1564 = vrot.slane %v1556, %v1563
        %v1566 = vunpack.c.l.s4 1983009808
        %v1567 = vunpack.c.0.s8 %v1566
        %v1568 = vlaneseq
        %v1569 = vshrl.u32 %v1568, 7
        %v1570 = vsub.s32 %v1567, %v1569
        %v1571 = vrot.slane %v1557, %v1570
        %v1572 = vcombine.low %v1564, %v1571
        %v1573 = vcombine.low %v917, %v921
        %v1574 = vcombine.low %v925, %v929
        %v1576 = vunpack.c.l.s4 1983009808
        %v1577 = vunpack.c.0.s8 %v1576
        %v1578 = vlaneseq
        %v1579 = vshrl.u32 %v1578, 7
        %v1580 = vsub.s32 %v1577, %v1579
        %v1581 = vrot.slane %v1573, %v1580
        %v1583 = vunpack.c.l.s4 1983009808
        %v1584 = vunpack.c.0.s8 %v1583
        %v1585 = vlaneseq
        %v1586 = vshrl.u32 %v1585, 7
        %v1587 = vsub.s32 %v1584, %v1586
        %v1588 = vrot.slane %v1574, %v1587
        %v1589 = vcombine.low %v1581, %v1588
        %v1590 = vcombine.low %v933, %v937
        %v1591 = vcombine.low %v941, %v945
        %v1593 = vunpack.c.l.s4 1983009808
        %v1594 = vunpack.c.0.s8 %v1593
        %v1595 = vlaneseq
        %v1596 = vshrl.u32 %v1595, 7
        %v1597 = vsub.s32 %v1594, %v1596
        %v1598 = vrot.slane %v1590, %v1597
        %v1600 = vunpack.c.l.s4 1983009808
        %v1601 = vunpack.c.0.s8 %v1600
        %v1602 = vlaneseq
        %v1603 = vshrl.u32 %v1602, 7
        %v1604 = vsub.s32 %v1601, %v1603
        %v1605 = vrot.slane %v1591, %v1604
        %v1606 = vcombine.low %v1598, %v1605
        %v1607 = vcombine.low %v949, %v953
        %v1608 = vcombine.low %v957, %v961
        %v1610 = vunpack.c.l.s4 1983009808
        %v1611 = vunpack.c.0.s8 %v1610
        %v1612 = vlaneseq
        %v1613 = vshrl.u32 %v1612, 7
        %v1614 = vsub.s32 %v1611, %v1613
        %v1615 = vrot.slane %v1607, %v1614
        %v1617 = vunpack.c.l.s4 1983009808
        %v1618 = vunpack.c.0.s8 %v1617
        %v1619 = vlaneseq
        %v1620 = vshrl.u32 %v1619, 7
        %v1621 = vsub.s32 %v1618, %v1620
        %v1622 = vrot.slane %v1608, %v1621
        %v1623 = vcombine.low %v1615, %v1622
        %v1624 = vcombine.low %v965, %v969
        %v1625 = vcombine.low %v973, %v977
        %v1627 = vunpack.c.l.s4 1983009808
        %v1628 = vunpack.c.0.s8 %v1627
        %v1629 = vlaneseq
        %v1630 = vshrl.u32 %v1629, 7
        %v1631 = vsub.s32 %v1628, %v1630
        %v1632 = vrot.slane %v1624, %v1631
        %v1634 = vunpack.c.l.s4 1983009808
        %v1635 = vunpack.c.0.s8 %v1634
        %v1636 = vlaneseq
        %v1637 = vshrl.u32 %v1636, 7
        %v1638 = vsub.s32 %v1635, %v1637
        %v1639 = vrot.slane %v1625, %v1638
        %v1640 = vcombine.low %v1632, %v1639
        %v1641 = vcombine.low %v981, %v985
        %v1642 = vcombine.low %v989, %v993
        %v1644 = vunpack.c.l.s4 1983009808
        %v1645 = vunpack.c.0.s8 %v1644
        %v1646 = vlaneseq
        %v1647 = vshrl.u32 %v1646, 7
        %v1648 = vsub.s32 %v1645, %v1647
        %v1649 = vrot.slane %v1641, %v1648
        %v1651 = vunpack.c.l.s4 1983009808
        %v1652 = vunpack.c.0.s8 %v1651
        %v1653 = vlaneseq
        %v1654 = vshrl.u32 %v1653, 7
        %v1655 = vsub.s32 %v1652, %v1654
        %v1656 = vrot.slane %v1642, %v1655
        %v1657 = vcombine.low %v1649, %v1656
        %v1658 = vcombine.low %v997, %v1001
        %v1659 = vcombine.low %v1005, %v1009
        %v1661 = vunpack.c.l.s4 1983009808
        %v1662 = vunpack.c.0.s8 %v1661
        %v1663 = vlaneseq
        %v1664 = vshrl.u32 %v1663, 7
        %v1665 = vsub.s32 %v1662, %v1664
        %v1666 = vrot.slane %v1658, %v1665
        %v1668 = vunpack.c.l.s4 1983009808
        %v1669 = vunpack.c.0.s8 %v1668
        %v1670 = vlaneseq
        %v1671 = vshrl.u32 %v1670, 7
        %v1672 = vsub.s32 %v1669, %v1671
        %v1673 = vrot.slane %v1659, %v1672
        %v1674 = vcombine.low %v1666, %v1673
        %v1675 = vcombine.low %v1013, %v1017
        %v1676 = vcombine.low %v1021, %v1025
        %v1678 = vunpack.c.l.s4 1983009808
        %v1679 = vunpack.c.0.s8 %v1678
        %v1680 = vlaneseq
        %v1681 = vshrl.u32 %v1680, 7
        %v1682 = vsub.s32 %v1679, %v1681
        %v1683 = vrot.slane %v1675, %v1682
        %v1685 = vunpack.c.l.s4 1983009808
        %v1686 = vunpack.c.0.s8 %v1685
        %v1687 = vlaneseq
        %v1688 = vshrl.u32 %v1687, 7
        %v1689 = vsub.s32 %v1686, %v1688
        %v1690 = vrot.slane %v1676, %v1689
        %v1691 = vcombine.low %v1683, %v1690
        %v1692 = vcombine.low %v1029, %v1033
        %v1693 = vcombine.low %v1037, %v1041
        %v1695 = vunpack.c.l.s4 1983009808
        %v1696 = vunpack.c.0.s8 %v1695
        %v1697 = vlaneseq
        %v1698 = vshrl.u32 %v1697, 7
        %v1699 = vsub.s32 %v1696, %v1698
        %v1700 = vrot.slane %v1692, %v1699
        %v1702 = vunpack.c.l.s4 1983009808
        %v1703 = vunpack.c.0.s8 %v1702
        %v1704 = vlaneseq
        %v1705 = vshrl.u32 %v1704, 7
        %v1706 = vsub.s32 %v1703, %v1705
        %v1707 = vrot.slane %v1693, %v1706
        %v1708 = vcombine.low %v1700, %v1707
        %v1709 = vcombine.low %v1045, %v1049
        %v1710 = vcombine.low %v1053, %v1057
        %v1712 = vunpack.c.l.s4 1983009808
        %v1713 = vunpack.c.0.s8 %v1712
        %v1714 = vlaneseq
        %v1715 = vshrl.u32 %v1714, 7
        %v1716 = vsub.s32 %v1713, %v1715
        %v1717 = vrot.slane %v1709, %v1716
        %v1719 = vunpack.c.l.s4 1983009808
        %v1720 = vunpack.c.0.s8 %v1719
        %v1721 = vlaneseq
        %v1722 = vshrl.u32 %v1721, 7
        %v1723 = vsub.s32 %v1720, %v1722
        %v1724 = vrot.slane %v1710, %v1723
        %v1725 = vcombine.low %v1717, %v1724
        %v1726 = vcombine.low %v1325, %v1329
        %v1727 = vcombine.low %v1333, %v1337
        %v1729 = vunpack.c.l.s4 1983009808
        %v1730 = vunpack.c.0.s8 %v1729
        %v1731 = vlaneseq
        %v1732 = vshrl.u32 %v1731, 7
        %v1733 = vsub.s32 %v1730, %v1732
        %v1734 = vrot.slane %v1726, %v1733
        %v1736 = vunpack.c.l.s4 1983009808
        %v1737 = vunpack.c.0.s8 %v1736
        %v1738 = vlaneseq
        %v1739 = vshrl.u32 %v1738, 7
        %v1740 = vsub.s32 %v1737, %v1739
        %v1741 = vrot.slane %v1727, %v1740
        %v1742 = vcombine.low %v1734, %v1741
        %v1743 = vcombine.low %v1341, %v1345
        %v1744 = vcombine.low %v1349, %v1353
        %v1746 = vunpack.c.l.s4 1983009808
        %v1747 = vunpack.c.0.s8 %v1746
        %v1748 = vlaneseq
        %v1749 = vshrl.u32 %v1748, 7
        %v1750 = vsub.s32 %v1747, %v1749
        %v1751 = vrot.slane %v1743, %v1750
        %v1753 = vunpack.c.l.s4 1983009808
        %v1754 = vunpack.c.0.s8 %v1753
        %v1755 = vlaneseq
        %v1756 = vshrl.u32 %v1755, 7
        %v1757 = vsub.s32 %v1754, %v1756
        %v1758 = vrot.slane %v1744, %v1757
        %v1759 = vcombine.low %v1751, %v1758
        %v1760 = vcombine.low %v1357, %v1361
        %v1761 = vcombine.low %v1365, %v1369
        %v1763 = vunpack.c.l.s4 1983009808
        %v1764 = vunpack.c.0.s8 %v1763
        %v1765 = vlaneseq
        %v1766 = vshrl.u32 %v1765, 7
        %v1767 = vsub.s32 %v1764, %v1766
        %v1768 = vrot.slane %v1760, %v1767
        %v1770 = vunpack.c.l.s4 1983009808
        %v1771 = vunpack.c.0.s8 %v1770
        %v1772 = vlaneseq
        %v1773 = vshrl.u32 %v1772, 7
        %v1774 = vsub.s32 %v1771, %v1773
        %v1775 = vrot.slane %v1761, %v1774
        %v1776 = vcombine.low %v1768, %v1775
        %v1777 = vcombine.low %v1373, %v1377
        %v1778 = vcombine.low %v1381, %v1385
        %v1780 = vunpack.c.l.s4 1983009808
        %v1781 = vunpack.c.0.s8 %v1780
        %v1782 = vlaneseq
        %v1783 = vshrl.u32 %v1782, 7
        %v1784 = vsub.s32 %v1781, %v1783
        %v1785 = vrot.slane %v1777, %v1784
        %v1787 = vunpack.c.l.s4 1983009808
        %v1788 = vunpack.c.0.s8 %v1787
        %v1789 = vlaneseq
        %v1790 = vshrl.u32 %v1789, 7
        %v1791 = vsub.s32 %v1788, %v1790
        %v1792 = vrot.slane %v1778, %v1791
        %v1793 = vcombine.low %v1785, %v1792
        %vm1794 = vcmask 1040384
        %v1795 = vrot.slane %v1402, 7
        %v1796 = vrot.slane %v1419, 7
        %v1797 = vsel %vm1794, %v1795, %v1796
        %v1798 = vrot.slane %v1436, 7
        %v1799 = vsel %vm1794, %v1796, %v1798
        %v1800 = vrot.slane %v1453, 7
        %v1801 = vsel %vm1794, %v1798, %v1800
        %v1802 = vrot.slane %v1470, 7
        %v1803 = vrot.slane %v1487, 7
        %v1804 = vsel %vm1794, %v1802, %v1803
        %v1805 = vrot.slane %v1504, 7
        %v1806 = vsel %vm1794, %v1803, %v1805
        %v1807 = vrot.slane %v1521, 7
        %v1808 = vsel %vm1794, %v1805, %v1807
        %v1809 = vrot.slane %v1538, 7
        %v1810 = vrot.slane %v1555, 7
        %v1811 = vsel %vm1794, %v1809, %v1810
        %v1812 = vrot.slane %v1572, 7
        %v1813 = vsel %vm1794, %v1810, %v1812
        %v1814 = vrot.slane %v1589, 7
        %v1815 = vsel %vm1794, %v1812, %v1814
        %v1816 = vrot.slane %v1606, 7
        %v1817 = vrot.slane %v1623, 7
        %v1818 = vsel %vm1794, %v1816, %v1817
        %v1819 = vrot.slane %v1640, 7
        %v1820 = vsel %vm1794, %v1817, %v1819
        %v1821 = vrot.slane %v1657, 7
        %v1822 = vsel %vm1794, %v1819, %v1821
        %v1823 = vrot.slane %v1674, 7
        %v1824 = vrot.slane %v1691, 7
        %v1825 = vsel %vm1794, %v1823, %v1824
        %v1826 = vrot.slane %v1708, 7
        %v1827 = vsel %vm1794, %v1824, %v1826
        %v1828 = vrot.slane %v1725, 7
        %v1829 = vsel %vm1794, %v1826, %v1828
        %v1830 = vrot.slane %v1742, 7
        %v1831 = vrot.slane %v1759, 7
        %v1832 = vsel %vm1794, %v1830, %v1831
        %v1833 = vrot.slane %v1776, 7
        %v1834 = vsel %vm1794, %v1831, %v1833
        %v1835 = vrot.slane %v1793, 7
        %v1836 = vsel %vm1794, %v1833, %v1835
        %v1849 = vsel %vm1794, 0.0, %v1795
        %v1850 = vsel %vm1794, 0.0, %v1802
        %v1851 = vsel %vm1794, 0.0, %v1809
        %v1852 = vsel %vm1794, 0.0, %v1816
        %v1853 = vsel %vm1794, 0.0, %v1823
        %v1854 = vsel %vm1794, 0.0, %v1830
        %v1855 = vsel %vm1794, %v1800, 0.0
        %v1856 = vsel %vm1794, %v1807, 0.0
        %v1857 = vsel %vm1794, %v1814, 0.0
        %v1858 = vsel %vm1794, %v1821, 0.0
        %v1859 = vsel %vm1794, %v1828, 0.0
        %v1860 = vsel %vm1794, %v1835, 0.0
        %v1861 = vld [vmem:[%s3] sm:$0xf]
        %vm1872 = vcmask 1046528
        %v1873 = vrot.slane %v1849, 1
        %v1874 = vrot.slane %v1797, 1
        %v1875 = vsel %vm1872, %v1873, %v1874
        %v1876 = vrot.slane %v1799, 1
        %v1877 = vsel %vm1872, %v1874, %v1876
        %v1878 = vrot.slane %v1801, 1
        %v1879 = vsel %vm1872, %v1876, %v1878
        %v1880 = vrot.slane %v1855, 1
        %v1881 = vsel %vm1872, %v1878, %v1880
        %v1882 = vrot.slane %v1850, 1
        %v1883 = vrot.slane %v1804, 1
        %v1884 = vsel %vm1872, %v1882, %v1883
        %v1885 = vrot.slane %v1806, 1
        %v1886 = vsel %vm1872, %v1883, %v1885
        %v1887 = vrot.slane %v1808, 1
        %v1888 = vsel %vm1872, %v1885, %v1887
        %v1889 = vrot.slane %v1856, 1
        %v1890 = vsel %vm1872, %v1887, %v1889
        %v1891 = vrot.slane %v1851, 1
        %v1892 = vrot.slane %v1811, 1
        %v1893 = vsel %vm1872, %v1891, %v1892
        %v1894 = vrot.slane %v1813, 1
        %v1895 = vsel %vm1872, %v1892, %v1894
        %v1896 = vrot.slane %v1815, 1
        %v1897 = vsel %vm1872, %v1894, %v1896
        %v1898 = vrot.slane %v1857, 1
        %v1899 = vsel %vm1872, %v1896, %v1898
        %v1900 = vrot.slane %v1852, 1
        %v1901 = vrot.slane %v1818, 1
        %v1902 = vsel %vm1872, %v1900, %v1901
        %v1903 = vrot.slane %v1820, 1
        %v1904 = vsel %vm1872, %v1901, %v1903
        %v1905 = vrot.slane %v1822, 1
        %v1906 = vsel %vm1872, %v1903, %v1905
        %v1907 = vrot.slane %v1858, 1
        %v1908 = vsel %vm1872, %v1905, %v1907
        %v1909 = vrot.slane %v1853, 1
        %v1910 = vrot.slane %v1825, 1
        %v1911 = vsel %vm1872, %v1909, %v1910
        %v1912 = vrot.slane %v1827, 1
        %v1913 = vsel %vm1872, %v1910, %v1912
        %v1914 = vrot.slane %v1829, 1
        %v1915 = vsel %vm1872, %v1912, %v1914
        %v1916 = vrot.slane %v1859, 1
        %v1917 = vsel %vm1872, %v1914, %v1916
        %s1918 = scalar_lea.vmem %s3, 4
        %v1919 = vld [vmem:[%s1918] sm:$0xf]
        %vm1920 = vcmask 31744
        %v1921 = vsel %vm1920, %v1875, 0
        %v1923 = vsel %vm1920, %v1877, 0
        %v1925 = vsel %vm1920, %v1879, 0
        %v1927 = vsel %vm1920, %v1881, 0
        %v1929 = vsel %vm1920, %v1884, 0
        %v1931 = vsel %vm1920, %v1886, 0
        %v1933 = vsel %vm1920, %v1888, 0
        %v1935 = vsel %vm1920, %v1890, 0
        %v1937 = vsel %vm1920, %v1893, 0
        %v1939 = vsel %vm1920, %v1895, 0
        %v1941 = vsel %vm1920, %v1897, 0
        %v1943 = vsel %vm1920, %v1899, 0
        %v1945 = vsel %vm1920, %v1902, 0
        %v1947 = vsel %vm1920, %v1904, 0
        %v1949 = vsel %vm1920, %v1906, 0
        %v1951 = vsel %vm1920, %v1908, 0
        %v1953 = vsel %vm1920, %v1911, 0
        %v1955 = vsel %vm1920, %v1913, 0
        %v1957 = vsel %vm1920, %v1915, 0
        %v1959 = vsel %vm1920, %v1917, 0
        %vm1961 = vcmask 1043456
        %v1963 = vsel %vm1961, %v1919, 0
        %1965 = vmatprep.subr.mxu0 0.0
        %1966 = vmatpush1.msra.mxu0 0.0
        %1967 = vmatprep.subr.mxu0 0.0
        %1968 = vmatpush1.msra.mxu0 0.0
        %1969 = vmatprep.subr.mxu0 0.0
        %1970 = vmatpush1.msra.mxu0 0.0
        %1971 = vmatprep.subr.mxu0 0.0
        %1972 = vmatpush1.msra.mxu0 0.0
        %1973 = vmatprep.subr.mxu0 0.0
        %1974 = vmatpush1.msra.mxu0 0.0
        %1975 = vmatprep.subr.mxu0 0.0
        %1976 = vmatpush1.msra.mxu0 0.0
        %1977 = vmatprep.subr.mxu0 0.0
        %1978 = vmatpush1.msra.mxu0 0.0
        %1979 = vmatprep.subr.mxu0 0.0
        %1980 = vmatpush1.msra.mxu0 0.0
        %1981 = vmatprep.subr.mxu0 0.0
        %1982 = vmatpush1.msra.mxu0 0.0
        %1983 = vmatprep.subr.mxu0 0.0
        %1984 = vmatpush1.msra.mxu0 0.0
        %1985 = vmatprep.subr.mxu0 0.0
        %1986 = vmatpush1.msra.mxu0 0.0
        %1987 = vmatprep.subr.mxu0 0.0
        %1988 = vmatpush1.msra.mxu0 0.0
        %1989 = vmatprep.subr.mxu0 0.0
        %1990 = vmatpush1.msra.mxu0 0.0
        %1991 = vmatprep.subr.mxu0 0.0
        %1992 = vmatpush1.msra.mxu0 0.0
        %1993 = vmatprep.subr.mxu0 0.0
        %1994 = vmatpush1.msra.mxu0 0.0
        %1995 = vmatprep.subr.mxu0 0.0
        %1996 = vmatpush1.msra.mxu0 %v1963
        %1997 = vmatprep.subr.mxu0 0.0
        %1998 = vmatpush2.msra.mxu0 0.0
        %1999 = vmatprep.subr.mxu0 0.0
        %2000 = vmatpush2.msra.mxu0 0.0
        %2001 = vmatprep.subr.mxu0 0.0
        %2002 = vmatpush2.msra.mxu0 0.0
        %2003 = vmatprep.subr.mxu0 0.0
        %2004 = vmatpush2.msra.mxu0 0.0
        %2005 = vmatprep.subr.mxu0 0.0
        %2006 = vmatpush2.msra.mxu0 0.0
        %2007 = vmatprep.subr.mxu0 0.0
        %2008 = vmatpush2.msra.mxu0 0.0
        %2009 = vmatprep.subr.mxu0 0.0
        %2010 = vmatpush2.msra.mxu0 0.0
        %2011 = vmatprep.subr.mxu0 0.0
        %2012 = vmatpush2.msra.mxu0 0.0
        %2013 = vmatprep.subr.mxu0 0.0
        %2014 = vmatpush2.msra.mxu0 0.0
        %2015 = vmatprep.subr.mxu0 0.0
        %2016 = vmatpush2.msra.mxu0 0.0
        %2017 = vmatprep.subr.mxu0 0.0
        %2018 = vmatpush2.msra.mxu0 0.0
        %2019 = vmatprep.subr.mxu0 0.0
        %2020 = vmatpush2.msra.mxu0 0.0
        %2021 = vmatprep.subr.mxu0 0.0
        %2022 = vmatpush2.msra.mxu0 0.0
        %2023 = vmatprep.subr.mxu0 0.0
        %2024 = vmatpush2.msra.mxu0 0.0
        %2025 = vmatprep.subr.mxu0 0.0
        %2026 = vmatpush2.msra.mxu0 0.0
        %2027 = vmatprep.subr.mxu0 0.0
        %2028 = vmatpush2.msra.mxu0 0.0
        %2029 = vmatprep.mubr.f32.mxu0 0.0
        %2030 = vmatmul.mubr.f32.gmra.mxu0 %v1921
        %v2031 = vpop.f32.mrf.mxu0
        %v2032 = vadd.f32 0.0, %v2031
        %v2033 = vpop.f32.mrf.mxu0
        %2034 = vmatprep.mubr.f32.mxu0 0.0
        %2035 = vmatmul.mubr.f32.gmra.mxu0 %v1923
        %v2036 = vpop.f32.mrf.mxu0
        %v2037 = vadd.f32 0.0, %v2036
        %v2038 = vpop.f32.mrf.mxu0
        %2039 = vmatprep.mubr.f32.mxu0 0.0
        %2040 = vmatmul.mubr.f32.gmra.mxu0 %v1925
        %v2041 = vpop.f32.mrf.mxu0
        %v2042 = vadd.f32 0.0, %v2041
        %v2043 = vpop.f32.mrf.mxu0
        %2044 = vmatprep.mubr.f32.mxu0 0.0
        %2045 = vmatmul.mubr.f32.gmra.mxu0 %v1927
        %v2046 = vpop.f32.mrf.mxu0
        %v2047 = vadd.f32 0.0, %v2046
        %v2048 = vpop.f32.mrf.mxu0
        %2049 = vmatprep.mubr.f32.mxu0 0.0
        %2050 = vmatmul.mubr.f32.gmra.mxu0 %v1929
        %v2051 = vpop.f32.mrf.mxu0
        %v2052 = vadd.f32 0.0, %v2051
        %v2053 = vpop.f32.mrf.mxu0
        %2054 = vmatprep.mubr.f32.mxu0 0.0
        %2055 = vmatmul.mubr.f32.gmra.mxu0 %v1931
        %v2056 = vpop.f32.mrf.mxu0
        %v2057 = vadd.f32 0.0, %v2056
        %v2058 = vpop.f32.mrf.mxu0
        %2059 = vmatprep.mubr.f32.mxu0 0.0
        %2060 = vmatmul.mubr.f32.gmra.mxu0 %v1933
        %v2061 = vpop.f32.mrf.mxu0
        %v2062 = vadd.f32 0.0, %v2061
        %v2063 = vpop.f32.mrf.mxu0
        %2064 = vmatprep.mubr.f32.mxu0 0.0
        %2065 = vmatmul.mubr.f32.gmra.mxu0 %v1935
        %v2066 = vpop.f32.mrf.mxu0
        %v2067 = vadd.f32 0.0, %v2066
        %v2068 = vpop.f32.mrf.mxu0
        %2069 = vmatprep.mubr.f32.mxu0 0.0
        %2070 = vmatmul.mubr.f32.gmra.mxu0 %v1929
        %v2071 = vpop.f32.mrf.mxu0
        %v2072 = vadd.f32 0.0, %v2071
        %v2073 = vpop.f32.mrf.mxu0
        %2074 = vmatprep.mubr.f32.mxu0 0.0
        %2075 = vmatmul.mubr.f32.gmra.mxu0 %v1931
        %v2076 = vpop.f32.mrf.mxu0
        %v2077 = vadd.f32 0.0, %v2076
        %v2078 = vpop.f32.mrf.mxu0
        %2079 = vmatprep.mubr.f32.mxu0 0.0
        %2080 = vmatmul.mubr.f32.gmra.mxu0 %v1933
        %v2081 = vpop.f32.mrf.mxu0
        %v2082 = vadd.f32 0.0, %v2081
        %v2083 = vpop.f32.mrf.mxu0
        %2084 = vmatprep.mubr.f32.mxu0 0.0
        %2085 = vmatmul.mubr.f32.gmra.mxu0 %v1935
        %v2086 = vpop.f32.mrf.mxu0
        %v2087 = vadd.f32 0.0, %v2086
        %v2088 = vpop.f32.mrf.mxu0
        %2089 = vmatprep.mubr.f32.mxu0 0.0
        %2090 = vmatmul.mubr.f32.gmra.mxu0 %v1937
        %v2091 = vpop.f32.mrf.mxu0
        %v2092 = vadd.f32 0.0, %v2091
        %v2093 = vpop.f32.mrf.mxu0
        %2094 = vmatprep.mubr.f32.mxu0 0.0
        %2095 = vmatmul.mubr.f32.gmra.mxu0 %v1939
        %v2096 = vpop.f32.mrf.mxu0
        %v2097 = vadd.f32 0.0, %v2096
        %v2098 = vpop.f32.mrf.mxu0
        %2099 = vmatprep.mubr.f32.mxu0 0.0
        %2100 = vmatmul.mubr.f32.gmra.mxu0 %v1941
        %v2101 = vpop.f32.mrf.mxu0
        %v2102 = vadd.f32 0.0, %v2101
        %v2103 = vpop.f32.mrf.mxu0
        %2104 = vmatprep.mubr.f32.mxu0 0.0
        %2105 = vmatmul.mubr.f32.gmra.mxu0 %v1943
        %v2106 = vpop.f32.mrf.mxu0
        %v2107 = vadd.f32 0.0, %v2106
        %v2108 = vpop.f32.mrf.mxu0
        %2109 = vmatprep.mubr.f32.mxu0 0.0
        %2110 = vmatmul.mubr.f32.gmra.mxu0 %v1937
        %v2111 = vpop.f32.mrf.mxu0
        %v2112 = vadd.f32 0.0, %v2111
        %v2113 = vpop.f32.mrf.mxu0
        %2114 = vmatprep.mubr.f32.mxu0 0.0
        %2115 = vmatmul.mubr.f32.gmra.mxu0 %v1939
        %v2116 = vpop.f32.mrf.mxu0
        %v2117 = vadd.f32 0.0, %v2116
        %v2118 = vpop.f32.mrf.mxu0
        %2119 = vmatprep.mubr.f32.mxu0 0.0
        %2120 = vmatmul.mubr.f32.gmra.mxu0 %v1941
        %v2121 = vpop.f32.mrf.mxu0
        %v2122 = vadd.f32 0.0, %v2121
        %v2123 = vpop.f32.mrf.mxu0
        %2124 = vmatprep.mubr.f32.mxu0 0.0
        %2125 = vmatmul.mubr.f32.gmra.mxu0 %v1943
        %v2126 = vpop.f32.mrf.mxu0
        %v2127 = vadd.f32 0.0, %v2126
        %v2128 = vpop.f32.mrf.mxu0
        %2129 = vmatprep.mubr.f32.mxu0 0.0
        %2130 = vmatmul.mubr.f32.gmra.mxu0 %v1945
        %v2131 = vpop.f32.mrf.mxu0
        %v2132 = vadd.f32 0.0, %v2131
        %v2133 = vpop.f32.mrf.mxu0
        %2134 = vmatprep.mubr.f32.mxu0 0.0
        %2135 = vmatmul.mubr.f32.gmra.mxu0 %v1947
        %v2136 = vpop.f32.mrf.mxu0
        %v2137 = vadd.f32 0.0, %v2136
        %v2138 = vpop.f32.mrf.mxu0
        %2139 = vmatprep.mubr.f32.mxu0 0.0
        %2140 = vmatmul.mubr.f32.gmra.mxu0 %v1949
        %v2141 = vpop.f32.mrf.mxu0
        %v2142 = vadd.f32 0.0, %v2141
        %v2143 = vpop.f32.mrf.mxu0
        %2144 = vmatprep.mubr.f32.mxu0 0.0
        %2145 = vmatmul.mubr.f32.gmra.mxu0 %v1951
        %v2146 = vpop.f32.mrf.mxu0
        %v2147 = vadd.f32 0.0, %v2146
        %v2148 = vpop.f32.mrf.mxu0
        %2149 = vmatprep.mubr.f32.mxu0 0.0
        %2150 = vmatmul.mubr.f32.gmra.mxu0 %v1945
        %v2151 = vpop.f32.mrf.mxu0
        %v2152 = vadd.f32 0.0, %v2151
        %v2153 = vpop.f32.mrf.mxu0
        %2154 = vmatprep.mubr.f32.mxu0 0.0
        %2155 = vmatmul.mubr.f32.gmra.mxu0 %v1947
        %v2156 = vpop.f32.mrf.mxu0
        %v2157 = vadd.f32 0.0, %v2156
        %v2158 = vpop.f32.mrf.mxu0
        %2159 = vmatprep.mubr.f32.mxu0 0.0
        %2160 = vmatmul.mubr.f32.gmra.mxu0 %v1949
        %v2161 = vpop.f32.mrf.mxu0
        %v2162 = vadd.f32 0.0, %v2161
        %v2163 = vpop.f32.mrf.mxu0
        %2164 = vmatprep.mubr.f32.mxu0 0.0
        %2165 = vmatmul.mubr.f32.gmra.mxu0 %v1951
        %v2166 = vpop.f32.mrf.mxu0
        %v2167 = vadd.f32 0.0, %v2166
        %v2168 = vpop.f32.mrf.mxu0
        %2169 = vmatprep.mubr.f32.mxu0 0.0
        %2170 = vmatmul.mubr.f32.gmra.mxu0 %v1953
        %v2171 = vpop.f32.mrf.mxu0
        %v2172 = vadd.f32 0.0, %v2171
        %v2173 = vpop.f32.mrf.mxu0
        %2174 = vmatprep.mubr.f32.mxu0 0.0
        %2175 = vmatmul.mubr.f32.gmra.mxu0 %v1955
        %v2176 = vpop.f32.mrf.mxu0
        %v2177 = vadd.f32 0.0, %v2176
        %v2178 = vpop.f32.mrf.mxu0
        %2179 = vmatprep.mubr.f32.mxu0 0.0
        %2180 = vmatmul.mubr.f32.gmra.mxu0 %v1957
        %v2181 = vpop.f32.mrf.mxu0
        %v2182 = vadd.f32 0.0, %v2181
        %v2183 = vpop.f32.mrf.mxu0
        %2184 = vmatprep.mubr.f32.mxu0 0.0
        %2185 = vmatmul.mubr.f32.gmra.mxu0 %v1959
        %v2186 = vpop.f32.mrf.mxu0
        %v2187 = vadd.f32 0.0, %v2186
        %v2188 = vpop.f32.mrf.mxu0
        %2189 = vdwg.mxu0
        %v2190 = vsel %vm1920, %v1849, 0
        %v2192 = vsel %vm1920, %v1797, 0
        %v2194 = vsel %vm1920, %v1799, 0
        %v2196 = vsel %vm1920, %v1801, 0
        %v2198 = vsel %vm1920, %v1850, 0
        %v2200 = vsel %vm1920, %v1804, 0
        %v2202 = vsel %vm1920, %v1806, 0
        %v2204 = vsel %vm1920, %v1808, 0
        %v2206 = vsel %vm1920, %v1851, 0
        %v2208 = vsel %vm1920, %v1811, 0
        %v2210 = vsel %vm1920, %v1813, 0
        %v2212 = vsel %vm1920, %v1815, 0
        %v2214 = vsel %vm1920, %v1852, 0
        %v2216 = vsel %vm1920, %v1818, 0
        %v2218 = vsel %vm1920, %v1820, 0
        %v2220 = vsel %vm1920, %v1822, 0
        %v2222 = vsel %vm1920, %v1853, 0
        %v2224 = vsel %vm1920, %v1825, 0
        %v2226 = vsel %vm1920, %v1827, 0
        %v2228 = vsel %vm1920, %v1829, 0
        %v2231 = vsel %vm1961, %v1861, 0
        %2233 = vmatprep.subr.mxu0 0.0
        %2234 = vmatpush1.msra.mxu0 0.0
        %2235 = vmatprep.subr.mxu0 0.0
        %2236 = vmatpush1.msra.mxu0 0.0
        %2237 = vmatprep.subr.mxu0 0.0
        %2238 = vmatpush1.msra.mxu0 0.0
        %2239 = vmatprep.subr.mxu0 0.0
        %2240 = vmatpush1.msra.mxu0 0.0
        %2241 = vmatprep.subr.mxu0 0.0
        %2242 = vmatpush1.msra.mxu0 0.0
        %2243 = vmatprep.subr.mxu0 0.0
        %2244 = vmatpush1.msra.mxu0 0.0
        %2245 = vmatprep.subr.mxu0 0.0
        %2246 = vmatpush1.msra.mxu0 0.0
        %2247 = vmatprep.subr.mxu0 0.0
        %2248 = vmatpush1.msra.mxu0 0.0
        %2249 = vmatprep.subr.mxu0 0.0
        %2250 = vmatpush1.msra.mxu0 0.0
        %2251 = vmatprep.subr.mxu0 0.0
        %2252 = vmatpush1.msra.mxu0 0.0
        %2253 = vmatprep.subr.mxu0 0.0
        %2254 = vmatpush1.msra.mxu0 0.0
        %2255 = vmatprep.subr.mxu0 0.0
        %2256 = vmatpush1.msra.mxu0 0.0
        %2257 = vmatprep.subr.mxu0 0.0
        %2258 = vmatpush1.msra.mxu0 0.0
        %2259 = vmatprep.subr.mxu0 0.0
        %2260 = vmatpush1.msra.mxu0 0.0
        %2261 = vmatprep.subr.mxu0 0.0
        %2262 = vmatpush1.msra.mxu0 0.0
        %2263 = vmatprep.subr.mxu0 0.0
        %2264 = vmatpush1.msra.mxu0 %v2231
        %2265 = vmatprep.subr.mxu0 0.0
        %2266 = vmatpush2.msra.mxu0 0.0
        %2267 = vmatprep.subr.mxu0 0.0
        %2268 = vmatpush2.msra.mxu0 0.0
        %2269 = vmatprep.subr.mxu0 0.0
        %2270 = vmatpush2.msra.mxu0 0.0
        %2271 = vmatprep.subr.mxu0 0.0
        %2272 = vmatpush2.msra.mxu0 0.0
        %2273 = vmatprep.subr.mxu0 0.0
        %2274 = vmatpush2.msra.mxu0 0.0
        %2275 = vmatprep.subr.mxu0 0.0
        %2276 = vmatpush2.msra.mxu0 0.0
        %2277 = vmatprep.subr.mxu0 0.0
        %2278 = vmatpush2.msra.mxu0 0.0
        %2279 = vmatprep.subr.mxu0 0.0
        %2280 = vmatpush2.msra.mxu0 0.0
        %2281 = vmatprep.subr.mxu0 0.0
        %2282 = vmatpush2.msra.mxu0 0.0
        %2283 = vmatprep.subr.mxu0 0.0
        %2284 = vmatpush2.msra.mxu0 0.0
        %2285 = vmatprep.subr.mxu0 0.0
        %2286 = vmatpush2.msra.mxu0 0.0
        %2287 = vmatprep.subr.mxu0 0.0
        %2288 = vmatpush2.msra.mxu0 0.0
        %2289 = vmatprep.subr.mxu0 0.0
        %2290 = vmatpush2.msra.mxu0 0.0
        %2291 = vmatprep.subr.mxu0 0.0
        %2292 = vmatpush2.msra.mxu0 0.0
        %2293 = vmatprep.subr.mxu0 0.0
        %2294 = vmatpush2.msra.mxu0 0.0
        %2295 = vmatprep.subr.mxu0 0.0
        %2296 = vmatpush2.msra.mxu0 0.0
        %2297 = vmatprep.mubr.f32.mxu0 0.0
        %2298 = vmatmul.mubr.f32.gmra.mxu0 %v2190
        %v2299 = vpop.f32.mrf.mxu0
        %v2300 = vadd.f32 %v2032, %v2299
        %v2301 = vpop.f32.mrf.mxu0
        %2302 = vmatprep.mubr.f32.mxu0 0.0
        %2303 = vmatmul.mubr.f32.gmra.mxu0 %v2192
        %v2304 = vpop.f32.mrf.mxu0
        %v2305 = vadd.f32 %v2037, %v2304
        %v2306 = vpop.f32.mrf.mxu0
        %2307 = vmatprep.mubr.f32.mxu0 0.0
        %2308 = vmatmul.mubr.f32.gmra.mxu0 %v2194
        %v2309 = vpop.f32.mrf.mxu0
        %v2310 = vadd.f32 %v2042, %v2309
        %v2311 = vpop.f32.mrf.mxu0
        %2312 = vmatprep.mubr.f32.mxu0 0.0
        %2313 = vmatmul.mubr.f32.gmra.mxu0 %v2196
        %v2314 = vpop.f32.mrf.mxu0
        %v2315 = vadd.f32 %v2047, %v2314
        %v2316 = vpop.f32.mrf.mxu0
        %2317 = vmatprep.mubr.f32.mxu0 0.0
        %2318 = vmatmul.mubr.f32.gmra.mxu0 %v2198
        %v2319 = vpop.f32.mrf.mxu0
        %v2320 = vadd.f32 %v2052, %v2319
        %v2321 = vpop.f32.mrf.mxu0
        %2322 = vmatprep.mubr.f32.mxu0 0.0
        %2323 = vmatmul.mubr.f32.gmra.mxu0 %v2200
        %v2324 = vpop.f32.mrf.mxu0
        %v2325 = vadd.f32 %v2057, %v2324
        %v2326 = vpop.f32.mrf.mxu0
        %2327 = vmatprep.mubr.f32.mxu0 0.0
        %2328 = vmatmul.mubr.f32.gmra.mxu0 %v2202
        %v2329 = vpop.f32.mrf.mxu0
        %v2330 = vadd.f32 %v2062, %v2329
        %v2331 = vpop.f32.mrf.mxu0
        %2332 = vmatprep.mubr.f32.mxu0 0.0
        %2333 = vmatmul.mubr.f32.gmra.mxu0 %v2204
        %v2334 = vpop.f32.mrf.mxu0
        %v2335 = vadd.f32 %v2067, %v2334
        %v2336 = vpop.f32.mrf.mxu0
        %2337 = vmatprep.mubr.f32.mxu0 0.0
        %2338 = vmatmul.mubr.f32.gmra.mxu0 %v2198
        %v2339 = vpop.f32.mrf.mxu0
        %v2340 = vadd.f32 %v2072, %v2339
        %v2341 = vpop.f32.mrf.mxu0
        %2342 = vmatprep.mubr.f32.mxu0 0.0
        %2343 = vmatmul.mubr.f32.gmra.mxu0 %v2200
        %v2344 = vpop.f32.mrf.mxu0
        %v2345 = vadd.f32 %v2077, %v2344
        %v2346 = vpop.f32.mrf.mxu0
        %2347 = vmatprep.mubr.f32.mxu0 0.0
        %2348 = vmatmul.mubr.f32.gmra.mxu0 %v2202
        %v2349 = vpop.f32.mrf.mxu0
        %v2350 = vadd.f32 %v2082, %v2349
        %v2351 = vpop.f32.mrf.mxu0
        %2352 = vmatprep.mubr.f32.mxu0 0.0
        %2353 = vmatmul.mubr.f32.gmra.mxu0 %v2204
        %v2354 = vpop.f32.mrf.mxu0
        %v2355 = vadd.f32 %v2087, %v2354
        %v2356 = vpop.f32.mrf.mxu0
        %2357 = vmatprep.mubr.f32.mxu0 0.0
        %2358 = vmatmul.mubr.f32.gmra.mxu0 %v2206
        %v2359 = vpop.f32.mrf.mxu0
        %v2360 = vadd.f32 %v2092, %v2359
        %v2361 = vpop.f32.mrf.mxu0
        %2362 = vmatprep.mubr.f32.mxu0 0.0
        %2363 = vmatmul.mubr.f32.gmra.mxu0 %v2208
        %v2364 = vpop.f32.mrf.mxu0
        %v2365 = vadd.f32 %v2097, %v2364
        %v2366 = vpop.f32.mrf.mxu0
        %2367 = vmatprep.mubr.f32.mxu0 0.0
        %2368 = vmatmul.mubr.f32.gmra.mxu0 %v2210
        %v2369 = vpop.f32.mrf.mxu0
        %v2370 = vadd.f32 %v2102, %v2369
        %v2371 = vpop.f32.mrf.mxu0
        %2372 = vmatprep.mubr.f32.mxu0 0.0
        %2373 = vmatmul.mubr.f32.gmra.mxu0 %v2212
        %v2374 = vpop.f32.mrf.mxu0
        %v2375 = vadd.f32 %v2107, %v2374
        %v2376 = vpop.f32.mrf.mxu0
        %2377 = vmatprep.mubr.f32.mxu0 0.0
        %2378 = vmatmul.mubr.f32.gmra.mxu0 %v2206
        %v2379 = vpop.f32.mrf.mxu0
        %v2380 = vadd.f32 %v2112, %v2379
        %v2381 = vpop.f32.mrf.mxu0
        %2382 = vmatprep.mubr.f32.mxu0 0.0
        %2383 = vmatmul.mubr.f32.gmra.mxu0 %v2208
        %v2384 = vpop.f32.mrf.mxu0
        %v2385 = vadd.f32 %v2117, %v2384
        %v2386 = vpop.f32.mrf.mxu0
        %2387 = vmatprep.mubr.f32.mxu0 0.0
        %2388 = vmatmul.mubr.f32.gmra.mxu0 %v2210
        %v2389 = vpop.f32.mrf.mxu0
        %v2390 = vadd.f32 %v2122, %v2389
        %v2391 = vpop.f32.mrf.mxu0
        %2392 = vmatprep.mubr.f32.mxu0 0.0
        %2393 = vmatmul.mubr.f32.gmra.mxu0 %v2212
        %v2394 = vpop.f32.mrf.mxu0
        %v2395 = vadd.f32 %v2127, %v2394
        %v2396 = vpop.f32.mrf.mxu0
        %2397 = vmatprep.mubr.f32.mxu0 0.0
        %2398 = vmatmul.mubr.f32.gmra.mxu0 %v2214
        %v2399 = vpop.f32.mrf.mxu0
        %v2400 = vadd.f32 %v2132, %v2399
        %v2401 = vpop.f32.mrf.mxu0
        %2402 = vmatprep.mubr.f32.mxu0 0.0
        %2403 = vmatmul.mubr.f32.gmra.mxu0 %v2216
        %v2404 = vpop.f32.mrf.mxu0
        %v2405 = vadd.f32 %v2137, %v2404
        %v2406 = vpop.f32.mrf.mxu0
        %2407 = vmatprep.mubr.f32.mxu0 0.0
        %2408 = vmatmul.mubr.f32.gmra.mxu0 %v2218
        %v2409 = vpop.f32.mrf.mxu0
        %v2410 = vadd.f32 %v2142, %v2409
        %v2411 = vpop.f32.mrf.mxu0
        %2412 = vmatprep.mubr.f32.mxu0 0.0
        %2413 = vmatmul.mubr.f32.gmra.mxu0 %v2220
        %v2414 = vpop.f32.mrf.mxu0
        %v2415 = vadd.f32 %v2147, %v2414
        %v2416 = vpop.f32.mrf.mxu0
        %2417 = vmatprep.mubr.f32.mxu0 0.0
        %2418 = vmatmul.mubr.f32.gmra.mxu0 %v2214
        %v2419 = vpop.f32.mrf.mxu0
        %v2420 = vadd.f32 %v2152, %v2419
        %v2421 = vpop.f32.mrf.mxu0
        %2422 = vmatprep.mubr.f32.mxu0 0.0
        %2423 = vmatmul.mubr.f32.gmra.mxu0 %v2216
        %v2424 = vpop.f32.mrf.mxu0
        %v2425 = vadd.f32 %v2157, %v2424
        %v2426 = vpop.f32.mrf.mxu0
        %2427 = vmatprep.mubr.f32.mxu0 0.0
        %2428 = vmatmul.mubr.f32.gmra.mxu0 %v2218
        %v2429 = vpop.f32.mrf.mxu0
        %v2430 = vadd.f32 %v2162, %v2429
        %v2431 = vpop.f32.mrf.mxu0
        %2432 = vmatprep.mubr.f32.mxu0 0.0
        %2433 = vmatmul.mubr.f32.gmra.mxu0 %v2220
        %v2434 = vpop.f32.mrf.mxu0
        %v2435 = vadd.f32 %v2167, %v2434
        %v2436 = vpop.f32.mrf.mxu0
        %2437 = vmatprep.mubr.f32.mxu0 0.0
        %2438 = vmatmul.mubr.f32.gmra.mxu0 %v2222
        %v2439 = vpop.f32.mrf.mxu0
        %v2440 = vadd.f32 %v2172, %v2439
        %v2441 = vpop.f32.mrf.mxu0
        %2442 = vmatprep.mubr.f32.mxu0 0.0
        %2443 = vmatmul.mubr.f32.gmra.mxu0 %v2224
        %v2444 = vpop.f32.mrf.mxu0
        %v2445 = vadd.f32 %v2177, %v2444
        %v2446 = vpop.f32.mrf.mxu0
        %2447 = vmatprep.mubr.f32.mxu0 0.0
        %2448 = vmatmul.mubr.f32.gmra.mxu0 %v2226
        %v2449 = vpop.f32.mrf.mxu0
        %v2450 = vadd.f32 %v2182, %v2449
        %v2451 = vpop.f32.mrf.mxu0
        %2452 = vmatprep.mubr.f32.mxu0 0.0
        %2453 = vmatmul.mubr.f32.gmra.mxu0 %v2228
        %v2454 = vpop.f32.mrf.mxu0
        %v2455 = vadd.f32 %v2187, %v2454
        %v2456 = vpop.f32.mrf.mxu0
        %2457 = vdwg.mxu0
        %vm2458 = vcmask 1045504
        %v2459 = vrot.slane %v1849, 2
        %v2460 = vrot.slane %v1797, 2
        %v2461 = vsel %vm2458, %v2459, %v2460
        %v2462 = vrot.slane %v1799, 2
        %v2463 = vsel %vm2458, %v2460, %v2462
        %v2464 = vrot.slane %v1801, 2
        %v2465 = vsel %vm2458, %v2462, %v2464
        %v2466 = vrot.slane %v1855, 2
        %v2467 = vsel %vm2458, %v2464, %v2466
        %v2468 = vrot.slane %v1850, 2
        %v2469 = vrot.slane %v1804, 2
        %v2470 = vsel %vm2458, %v2468, %v2469
        %v2471 = vrot.slane %v1806, 2
        %v2472 = vsel %vm2458, %v2469, %v2471
        %v2473 = vrot.slane %v1808, 2
        %v2474 = vsel %vm2458, %v2471, %v2473
        %v2475 = vrot.slane %v1856, 2
        %v2476 = vsel %vm2458, %v2473, %v2475
        %v2477 = vrot.slane %v1851, 2
        %v2478 = vrot.slane %v1811, 2
        %v2479 = vsel %vm2458, %v2477, %v2478
        %v2480 = vrot.slane %v1813, 2
        %v2481 = vsel %vm2458, %v2478, %v2480
        %v2482 = vrot.slane %v1815, 2
        %v2483 = vsel %vm2458, %v2480, %v2482
        %v2484 = vrot.slane %v1857, 2
        %v2485 = vsel %vm2458, %v2482, %v2484
        %v2486 = vrot.slane %v1852, 2
        %v2487 = vrot.slane %v1818, 2
        %v2488 = vsel %vm2458, %v2486, %v2487
        %v2489 = vrot.slane %v1820, 2
        %v2490 = vsel %vm2458, %v2487, %v2489
        %v2491 = vrot.slane %v1822, 2
        %v2492 = vsel %vm2458, %v2489, %v2491
        %v2493 = vrot.slane %v1858, 2
        %v2494 = vsel %vm2458, %v2491, %v2493
        %v2495 = vrot.slane %v1853, 2
        %v2496 = vrot.slane %v1825, 2
        %v2497 = vsel %vm2458, %v2495, %v2496
        %v2498 = vrot.slane %v1827, 2
        %v2499 = vsel %vm2458, %v2496, %v2498
        %v2500 = vrot.slane %v1829, 2
        %v2501 = vsel %vm2458, %v2498, %v2500
        %v2502 = vrot.slane %v1859, 2
        %v2503 = vsel %vm2458, %v2500, %v2502
        %s2504 = scalar_lea.vmem %s3, 8
        %v2505 = vld [vmem:[%s2504] sm:$0xf]
        %v2506 = vsel %vm1920, %v2461, 0
        %v2508 = vsel %vm1920, %v2463, 0
        %v2510 = vsel %vm1920, %v2465, 0
        %v2512 = vsel %vm1920, %v2467, 0
        %v2514 = vsel %vm1920, %v2470, 0
        %v2516 = vsel %vm1920, %v2472, 0
        %v2518 = vsel %vm1920, %v2474, 0
        %v2520 = vsel %vm1920, %v2476, 0
        %v2522 = vsel %vm1920, %v2479, 0
        %v2524 = vsel %vm1920, %v2481, 0
        %v2526 = vsel %vm1920, %v2483, 0
        %v2528 = vsel %vm1920, %v2485, 0
        %v2530 = vsel %vm1920, %v2488, 0
        %v2532 = vsel %vm1920, %v2490, 0
        %v2534 = vsel %vm1920, %v2492, 0
        %v2536 = vsel %vm1920, %v2494, 0
        %v2538 = vsel %vm1920, %v2497, 0
        %v2540 = vsel %vm1920, %v2499, 0
        %v2542 = vsel %vm1920, %v2501, 0
        %v2544 = vsel %vm1920, %v2503, 0
        %v2547 = vsel %vm1961, %v2505, 0
        %2549 = vmatprep.subr.mxu0 0.0
        %2550 = vmatpush1.msra.mxu0 0.0
        %2551 = vmatprep.subr.mxu0 0.0
        %2552 = vmatpush1.msra.mxu0 0.0
        %2553 = vmatprep.subr.mxu0 0.0
        %2554 = vmatpush1.msra.mxu0 0.0
        %2555 = vmatprep.subr.mxu0 0.0
        %2556 = vmatpush1.msra.mxu0 0.0
        %2557 = vmatprep.subr.mxu0 0.0
        %2558 = vmatpush1.msra.mxu0 0.0
        %2559 = vmatprep.subr.mxu0 0.0
        %2560 = vmatpush1.msra.mxu0 0.0
        %2561 = vmatprep.subr.mxu0 0.0
        %2562 = vmatpush1.msra.mxu0 0.0
        %2563 = vmatprep.subr.mxu0 0.0
        %2564 = vmatpush1.msra.mxu0 0.0
        %2565 = vmatprep.subr.mxu0 0.0
        %2566 = vmatpush1.msra.mxu0 0.0
        %2567 = vmatprep.subr.mxu0 0.0
        %2568 = vmatpush1.msra.mxu0 0.0
        %2569 = vmatprep.subr.mxu0 0.0
        %2570 = vmatpush1.msra.mxu0 0.0
        %2571 = vmatprep.subr.mxu0 0.0
        %2572 = vmatpush1.msra.mxu0 0.0
        %2573 = vmatprep.subr.mxu0 0.0
        %2574 = vmatpush1.msra.mxu0 0.0
        %2575 = vmatprep.subr.mxu0 0.0
        %2576 = vmatpush1.msra.mxu0 0.0
        %2577 = vmatprep.subr.mxu0 0.0
        %2578 = vmatpush1.msra.mxu0 0.0
        %2579 = vmatprep.subr.mxu0 0.0
        %2580 = vmatpush1.msra.mxu0 %v2547
        %2581 = vmatprep.subr.mxu0 0.0
        %2582 = vmatpush2.msra.mxu0 0.0
        %2583 = vmatprep.subr.mxu0 0.0
        %2584 = vmatpush2.msra.mxu0 0.0
        %2585 = vmatprep.subr.mxu0 0.0
        %2586 = vmatpush2.msra.mxu0 0.0
        %2587 = vmatprep.subr.mxu0 0.0
        %2588 = vmatpush2.msra.mxu0 0.0
        %2589 = vmatprep.subr.mxu0 0.0
        %2590 = vmatpush2.msra.mxu0 0.0
        %2591 = vmatprep.subr.mxu0 0.0
        %2592 = vmatpush2.msra.mxu0 0.0
        %2593 = vmatprep.subr.mxu0 0.0
        %2594 = vmatpush2.msra.mxu0 0.0
        %2595 = vmatprep.subr.mxu0 0.0
        %2596 = vmatpush2.msra.mxu0 0.0
        %2597 = vmatprep.subr.mxu0 0.0
        %2598 = vmatpush2.msra.mxu0 0.0
        %2599 = vmatprep.subr.mxu0 0.0
        %2600 = vmatpush2.msra.mxu0 0.0
        %2601 = vmatprep.subr.mxu0 0.0
        %2602 = vmatpush2.msra.mxu0 0.0
        %2603 = vmatprep.subr.mxu0 0.0
        %2604 = vmatpush2.msra.mxu0 0.0
        %2605 = vmatprep.subr.mxu0 0.0
        %2606 = vmatpush2.msra.mxu0 0.0
        %2607 = vmatprep.subr.mxu0 0.0
        %2608 = vmatpush2.msra.mxu0 0.0
        %2609 = vmatprep.subr.mxu0 0.0
        %2610 = vmatpush2.msra.mxu0 0.0
        %2611 = vmatprep.subr.mxu0 0.0
        %2612 = vmatpush2.msra.mxu0 0.0
        %2613 = vmatprep.mubr.f32.mxu0 0.0
        %2614 = vmatmul.mubr.f32.gmra.mxu0 %v2506
        %v2615 = vpop.f32.mrf.mxu0
        %v2616 = vadd.f32 0.0, %v2615
        %v2617 = vpop.f32.mrf.mxu0
        %2618 = vmatprep.mubr.f32.mxu0 0.0
        %2619 = vmatmul.mubr.f32.gmra.mxu0 %v2508
        %v2620 = vpop.f32.mrf.mxu0
        %v2621 = vadd.f32 0.0, %v2620
        %v2622 = vpop.f32.mrf.mxu0
        %2623 = vmatprep.mubr.f32.mxu0 0.0
        %2624 = vmatmul.mubr.f32.gmra.mxu0 %v2510
        %v2625 = vpop.f32.mrf.mxu0
        %v2626 = vadd.f32 0.0, %v2625
        %v2627 = vpop.f32.mrf.mxu0
        %2628 = vmatprep.mubr.f32.mxu0 0.0
        %2629 = vmatmul.mubr.f32.gmra.mxu0 %v2512
        %v2630 = vpop.f32.mrf.mxu0
        %v2631 = vadd.f32 0.0, %v2630
        %v2632 = vpop.f32.mrf.mxu0
        %2633 = vmatprep.mubr.f32.mxu0 0.0
        %2634 = vmatmul.mubr.f32.gmra.mxu0 %v2514
        %v2635 = vpop.f32.mrf.mxu0
        %v2636 = vadd.f32 0.0, %v2635
        %v2637 = vpop.f32.mrf.mxu0
        %2638 = vmatprep.mubr.f32.mxu0 0.0
        %2639 = vmatmul.mubr.f32.gmra.mxu0 %v2516
        %v2640 = vpop.f32.mrf.mxu0
        %v2641 = vadd.f32 0.0, %v2640
        %v2642 = vpop.f32.mrf.mxu0
        %2643 = vmatprep.mubr.f32.mxu0 0.0
        %2644 = vmatmul.mubr.f32.gmra.mxu0 %v2518
        %v2645 = vpop.f32.mrf.mxu0
        %v2646 = vadd.f32 0.0, %v2645
        %v2647 = vpop.f32.mrf.mxu0
        %2648 = vmatprep.mubr.f32.mxu0 0.0
        %2649 = vmatmul.mubr.f32.gmra.mxu0 %v2520
        %v2650 = vpop.f32.mrf.mxu0
        %v2651 = vadd.f32 0.0, %v2650
        %v2652 = vpop.f32.mrf.mxu0
        %2653 = vmatprep.mubr.f32.mxu0 0.0
        %2654 = vmatmul.mubr.f32.gmra.mxu0 %v2514
        %v2655 = vpop.f32.mrf.mxu0
        %v2656 = vadd.f32 0.0, %v2655
        %v2657 = vpop.f32.mrf.mxu0
        %2658 = vmatprep.mubr.f32.mxu0 0.0
        %2659 = vmatmul.mubr.f32.gmra.mxu0 %v2516
        %v2660 = vpop.f32.mrf.mxu0
        %v2661 = vadd.f32 0.0, %v2660
        %v2662 = vpop.f32.mrf.mxu0
        %2663 = vmatprep.mubr.f32.mxu0 0.0
        %2664 = vmatmul.mubr.f32.gmra.mxu0 %v2518
        %v2665 = vpop.f32.mrf.mxu0
        %v2666 = vadd.f32 0.0, %v2665
        %v2667 = vpop.f32.mrf.mxu0
        %2668 = vmatprep.mubr.f32.mxu0 0.0
        %2669 = vmatmul.mubr.f32.gmra.mxu0 %v2520
        %v2670 = vpop.f32.mrf.mxu0
        %v2671 = vadd.f32 0.0, %v2670
        %v2672 = vpop.f32.mrf.mxu0
        %2673 = vmatprep.mubr.f32.mxu0 0.0
        %2674 = vmatmul.mubr.f32.gmra.mxu0 %v2522
        %v2675 = vpop.f32.mrf.mxu0
        %v2676 = vadd.f32 0.0, %v2675
        %v2677 = vpop.f32.mrf.mxu0
        %2678 = vmatprep.mubr.f32.mxu0 0.0
        %2679 = vmatmul.mubr.f32.gmra.mxu0 %v2524
        %v2680 = vpop.f32.mrf.mxu0
        %v2681 = vadd.f32 0.0, %v2680
        %v2682 = vpop.f32.mrf.mxu0
        %2683 = vmatprep.mubr.f32.mxu0 0.0
        %2684 = vmatmul.mubr.f32.gmra.mxu0 %v2526
        %v2685 = vpop.f32.mrf.mxu0
        %v2686 = vadd.f32 0.0, %v2685
        %v2687 = vpop.f32.mrf.mxu0
        %2688 = vmatprep.mubr.f32.mxu0 0.0
        %2689 = vmatmul.mubr.f32.gmra.mxu0 %v2528
        %v2690 = vpop.f32.mrf.mxu0
        %v2691 = vadd.f32 0.0, %v2690
        %v2692 = vpop.f32.mrf.mxu0
        %2693 = vmatprep.mubr.f32.mxu0 0.0
        %2694 = vmatmul.mubr.f32.gmra.mxu0 %v2522
        %v2695 = vpop.f32.mrf.mxu0
        %v2696 = vadd.f32 0.0, %v2695
        %v2697 = vpop.f32.mrf.mxu0
        %2698 = vmatprep.mubr.f32.mxu0 0.0
        %2699 = vmatmul.mubr.f32.gmra.mxu0 %v2524
        %v2700 = vpop.f32.mrf.mxu0
        %v2701 = vadd.f32 0.0, %v2700
        %v2702 = vpop.f32.mrf.mxu0
        %2703 = vmatprep.mubr.f32.mxu0 0.0
        %2704 = vmatmul.mubr.f32.gmra.mxu0 %v2526
        %v2705 = vpop.f32.mrf.mxu0
        %v2706 = vadd.f32 0.0, %v2705
        %v2707 = vpop.f32.mrf.mxu0
        %2708 = vmatprep.mubr.f32.mxu0 0.0
        %2709 = vmatmul.mubr.f32.gmra.mxu0 %v2528
        %v2710 = vpop.f32.mrf.mxu0
        %v2711 = vadd.f32 0.0, %v2710
        %v2712 = vpop.f32.mrf.mxu0
        %2713 = vmatprep.mubr.f32.mxu0 0.0
        %2714 = vmatmul.mubr.f32.gmra.mxu0 %v2530
        %v2715 = vpop.f32.mrf.mxu0
        %v2716 = vadd.f32 0.0, %v2715
        %v2717 = vpop.f32.mrf.mxu0
        %2718 = vmatprep.mubr.f32.mxu0 0.0
        %2719 = vmatmul.mubr.f32.gmra.mxu0 %v2532
        %v2720 = vpop.f32.mrf.mxu0
        %v2721 = vadd.f32 0.0, %v2720
        %v2722 = vpop.f32.mrf.mxu0
        %2723 = vmatprep.mubr.f32.mxu0 0.0
        %2724 = vmatmul.mubr.f32.gmra.mxu0 %v2534
        %v2725 = vpop.f32.mrf.mxu0
        %v2726 = vadd.f32 0.0, %v2725
        %v2727 = vpop.f32.mrf.mxu0
        %2728 = vmatprep.mubr.f32.mxu0 0.0
        %2729 = vmatmul.mubr.f32.gmra.mxu0 %v2536
        %v2730 = vpop.f32.mrf.mxu0
        %v2731 = vadd.f32 0.0, %v2730
        %v2732 = vpop.f32.mrf.mxu0
        %2733 = vmatprep.mubr.f32.mxu0 0.0
        %2734 = vmatmul.mubr.f32.gmra.mxu0 %v2530
        %v2735 = vpop.f32.mrf.mxu0
        %v2736 = vadd.f32 0.0, %v2735
        %v2737 = vpop.f32.mrf.mxu0
        %2738 = vmatprep.mubr.f32.mxu0 0.0
        %2739 = vmatmul.mubr.f32.gmra.mxu0 %v2532
        %v2740 = vpop.f32.mrf.mxu0
        %v2741 = vadd.f32 0.0, %v2740
        %v2742 = vpop.f32.mrf.mxu0
        %2743 = vmatprep.mubr.f32.mxu0 0.0
        %2744 = vmatmul.mubr.f32.gmra.mxu0 %v2534
        %v2745 = vpop.f32.mrf.mxu0
        %v2746 = vadd.f32 0.0, %v2745
        %v2747 = vpop.f32.mrf.mxu0
        %2748 = vmatprep.mubr.f32.mxu0 0.0
        %2749 = vmatmul.mubr.f32.gmra.mxu0 %v2536
        %v2750 = vpop.f32.mrf.mxu0
        %v2751 = vadd.f32 0.0, %v2750
        %v2752 = vpop.f32.mrf.mxu0
        %2753 = vmatprep.mubr.f32.mxu0 0.0
        %2754 = vmatmul.mubr.f32.gmra.mxu0 %v2538
        %v2755 = vpop.f32.mrf.mxu0
        %v2756 = vadd.f32 0.0, %v2755
        %v2757 = vpop.f32.mrf.mxu0
        %2758 = vmatprep.mubr.f32.mxu0 0.0
        %2759 = vmatmul.mubr.f32.gmra.mxu0 %v2540
        %v2760 = vpop.f32.mrf.mxu0
        %v2761 = vadd.f32 0.0, %v2760
        %v2762 = vpop.f32.mrf.mxu0
        %2763 = vmatprep.mubr.f32.mxu0 0.0
        %2764 = vmatmul.mubr.f32.gmra.mxu0 %v2542
        %v2765 = vpop.f32.mrf.mxu0
        %v2766 = vadd.f32 0.0, %v2765
        %v2767 = vpop.f32.mrf.mxu0
        %2768 = vmatprep.mubr.f32.mxu0 0.0
        %2769 = vmatmul.mubr.f32.gmra.mxu0 %v2544
        %v2770 = vpop.f32.mrf.mxu0
        %v2771 = vadd.f32 0.0, %v2770
        %v2772 = vpop.f32.mrf.mxu0
        %2773 = vdwg.mxu0
        %v2774 = vadd.f32 %v2300, %v2616
        %v2775 = vadd.f32 %v2305, %v2621
        %v2776 = vadd.f32 %v2310, %v2626
        %v2777 = vadd.f32 %v2315, %v2631
        %v2778 = vadd.f32 %v2320, %v2636
        %v2779 = vadd.f32 %v2325, %v2641
        %v2780 = vadd.f32 %v2330, %v2646
        %v2781 = vadd.f32 %v2335, %v2651
        %v2782 = vadd.f32 %v2340, %v2656
        %v2783 = vadd.f32 %v2345, %v2661
        %v2784 = vadd.f32 %v2350, %v2666
        %v2785 = vadd.f32 %v2355, %v2671
        %v2786 = vadd.f32 %v2360, %v2676
        %v2787 = vadd.f32 %v2365, %v2681
        %v2788 = vadd.f32 %v2370, %v2686
        %v2789 = vadd.f32 %v2375, %v2691
        %v2790 = vadd.f32 %v2380, %v2696
        %v2791 = vadd.f32 %v2385, %v2701
        %v2792 = vadd.f32 %v2390, %v2706
        %v2793 = vadd.f32 %v2395, %v2711
        %v2794 = vadd.f32 %v2400, %v2716
        %v2795 = vadd.f32 %v2405, %v2721
        %v2796 = vadd.f32 %v2410, %v2726
        %v2797 = vadd.f32 %v2415, %v2731
        %v2798 = vadd.f32 %v2420, %v2736
        %v2799 = vadd.f32 %v2425, %v2741
        %v2800 = vadd.f32 %v2430, %v2746
        %v2801 = vadd.f32 %v2435, %v2751
        %v2802 = vadd.f32 %v2440, %v2756
        %v2803 = vadd.f32 %v2445, %v2761
        %v2804 = vadd.f32 %v2450, %v2766
        %v2805 = vadd.f32 %v2455, %v2771
        %s2806 = scalar_lea.vmem %s3, 12
        %v2807 = vld [vmem:[%s2806] sm:$0xf]
        %v2809 = vsel %vm1961, %v2807, 0
        %2811 = vmatprep.subr.mxu0 0.0
        %2812 = vmatpush1.msra.mxu0 0.0
        %2813 = vmatprep.subr.mxu0 0.0
        %2814 = vmatpush1.msra.mxu0 0.0
        %2815 = vmatprep.subr.mxu0 0.0
        %2816 = vmatpush1.msra.mxu0 0.0
        %2817 = vmatprep.subr.mxu0 0.0
        %2818 = vmatpush1.msra.mxu0 0.0
        %2819 = vmatprep.subr.mxu0 0.0
        %2820 = vmatpush1.msra.mxu0 0.0
        %2821 = vmatprep.subr.mxu0 0.0
        %2822 = vmatpush1.msra.mxu0 0.0
        %2823 = vmatprep.subr.mxu0 0.0
        %2824 = vmatpush1.msra.mxu0 0.0
        %2825 = vmatprep.subr.mxu0 0.0
        %2826 = vmatpush1.msra.mxu0 0.0
        %2827 = vmatprep.subr.mxu0 0.0
        %2828 = vmatpush1.msra.mxu0 0.0
        %2829 = vmatprep.subr.mxu0 0.0
        %2830 = vmatpush1.msra.mxu0 0.0
        %2831 = vmatprep.subr.mxu0 0.0
        %2832 = vmatpush1.msra.mxu0 0.0
        %2833 = vmatprep.subr.mxu0 0.0
        %2834 = vmatpush1.msra.mxu0 0.0
        %2835 = vmatprep.subr.mxu0 0.0
        %2836 = vmatpush1.msra.mxu0 0.0
        %2837 = vmatprep.subr.mxu0 0.0
        %2838 = vmatpush1.msra.mxu0 0.0
        %2839 = vmatprep.subr.mxu0 0.0
        %2840 = vmatpush1.msra.mxu0 0.0
        %2841 = vmatprep.subr.mxu0 0.0
        %2842 = vmatpush1.msra.mxu0 %v2809
        %2843 = vmatprep.subr.mxu0 0.0
        %2844 = vmatpush2.msra.mxu0 0.0
        %2845 = vmatprep.subr.mxu0 0.0
        %2846 = vmatpush2.msra.mxu0 0.0
        %2847 = vmatprep.subr.mxu0 0.0
        %2848 = vmatpush2.msra.mxu0 0.0
        %2849 = vmatprep.subr.mxu0 0.0
        %2850 = vmatpush2.msra.mxu0 0.0
        %2851 = vmatprep.subr.mxu0 0.0
        %2852 = vmatpush2.msra.mxu0 0.0
        %2853 = vmatprep.subr.mxu0 0.0
        %2854 = vmatpush2.msra.mxu0 0.0
        %2855 = vmatprep.subr.mxu0 0.0
        %2856 = vmatpush2.msra.mxu0 0.0
        %2857 = vmatprep.subr.mxu0 0.0
        %2858 = vmatpush2.msra.mxu0 0.0
        %2859 = vmatprep.subr.mxu0 0.0
        %2860 = vmatpush2.msra.mxu0 0.0
        %2861 = vmatprep.subr.mxu0 0.0
        %2862 = vmatpush2.msra.mxu0 0.0
        %2863 = vmatprep.subr.mxu0 0.0
        %2864 = vmatpush2.msra.mxu0 0.0
        %2865 = vmatprep.subr.mxu0 0.0
        %2866 = vmatpush2.msra.mxu0 0.0
        %2867 = vmatprep.subr.mxu0 0.0
        %2868 = vmatpush2.msra.mxu0 0.0
        %2869 = vmatprep.subr.mxu0 0.0
        %2870 = vmatpush2.msra.mxu0 0.0
        %2871 = vmatprep.subr.mxu0 0.0
        %2872 = vmatpush2.msra.mxu0 0.0
        %2873 = vmatprep.subr.mxu0 0.0
        %2874 = vmatpush2.msra.mxu0 0.0
        %2875 = vmatprep.mubr.f32.mxu0 0.0
        %2876 = vmatmul.mubr.f32.gmra.mxu0 %v2198
        %v2877 = vpop.f32.mrf.mxu0
        %v2878 = vadd.f32 0.0, %v2877
        %v2879 = vpop.f32.mrf.mxu0
        %2880 = vmatprep.mubr.f32.mxu0 0.0
        %2881 = vmatmul.mubr.f32.gmra.mxu0 %v2200
        %v2882 = vpop.f32.mrf.mxu0
        %v2883 = vadd.f32 0.0, %v2882
        %v2884 = vpop.f32.mrf.mxu0
        %2885 = vmatprep.mubr.f32.mxu0 0.0
        %2886 = vmatmul.mubr.f32.gmra.mxu0 %v2202
        %v2887 = vpop.f32.mrf.mxu0
        %v2888 = vadd.f32 0.0, %v2887
        %v2889 = vpop.f32.mrf.mxu0
        %2890 = vmatprep.mubr.f32.mxu0 0.0
        %2891 = vmatmul.mubr.f32.gmra.mxu0 %v2204
        %v2892 = vpop.f32.mrf.mxu0
        %v2893 = vadd.f32 0.0, %v2892
        %v2894 = vpop.f32.mrf.mxu0
        %2895 = vmatprep.mubr.f32.mxu0 0.0
        %2896 = vmatmul.mubr.f32.gmra.mxu0 %v2198
        %v2897 = vpop.f32.mrf.mxu0
        %v2898 = vadd.f32 0.0, %v2897
        %v2899 = vpop.f32.mrf.mxu0
        %2900 = vmatprep.mubr.f32.mxu0 0.0
        %2901 = vmatmul.mubr.f32.gmra.mxu0 %v2200
        %v2902 = vpop.f32.mrf.mxu0
        %v2903 = vadd.f32 0.0, %v2902
        %v2904 = vpop.f32.mrf.mxu0
        %2905 = vmatprep.mubr.f32.mxu0 0.0
        %2906 = vmatmul.mubr.f32.gmra.mxu0 %v2202
        %v2907 = vpop.f32.mrf.mxu0
        %v2908 = vadd.f32 0.0, %v2907
        %v2909 = vpop.f32.mrf.mxu0
        %2910 = vmatprep.mubr.f32.mxu0 0.0
        %2911 = vmatmul.mubr.f32.gmra.mxu0 %v2204
        %v2912 = vpop.f32.mrf.mxu0
        %v2913 = vadd.f32 0.0, %v2912
        %v2914 = vpop.f32.mrf.mxu0
        %2915 = vmatprep.mubr.f32.mxu0 0.0
        %2916 = vmatmul.mubr.f32.gmra.mxu0 %v2206
        %v2917 = vpop.f32.mrf.mxu0
        %v2918 = vadd.f32 0.0, %v2917
        %v2919 = vpop.f32.mrf.mxu0
        %2920 = vmatprep.mubr.f32.mxu0 0.0
        %2921 = vmatmul.mubr.f32.gmra.mxu0 %v2208
        %v2922 = vpop.f32.mrf.mxu0
        %v2923 = vadd.f32 0.0, %v2922
        %v2924 = vpop.f32.mrf.mxu0
        %2925 = vmatprep.mubr.f32.mxu0 0.0
        %2926 = vmatmul.mubr.f32.gmra.mxu0 %v2210
        %v2927 = vpop.f32.mrf.mxu0
        %v2928 = vadd.f32 0.0, %v2927
        %v2929 = vpop.f32.mrf.mxu0
        %2930 = vmatprep.mubr.f32.mxu0 0.0
        %2931 = vmatmul.mubr.f32.gmra.mxu0 %v2212
        %v2932 = vpop.f32.mrf.mxu0
        %v2933 = vadd.f32 0.0, %v2932
        %v2934 = vpop.f32.mrf.mxu0
        %2935 = vmatprep.mubr.f32.mxu0 0.0
        %2936 = vmatmul.mubr.f32.gmra.mxu0 %v2206
        %v2937 = vpop.f32.mrf.mxu0
        %v2938 = vadd.f32 0.0, %v2937
        %v2939 = vpop.f32.mrf.mxu0
        %2940 = vmatprep.mubr.f32.mxu0 0.0
        %2941 = vmatmul.mubr.f32.gmra.mxu0 %v2208
        %v2942 = vpop.f32.mrf.mxu0
        %v2943 = vadd.f32 0.0, %v2942
        %v2944 = vpop.f32.mrf.mxu0
        %2945 = vmatprep.mubr.f32.mxu0 0.0
        %2946 = vmatmul.mubr.f32.gmra.mxu0 %v2210
        %v2947 = vpop.f32.mrf.mxu0
        %v2948 = vadd.f32 0.0, %v2947
        %v2949 = vpop.f32.mrf.mxu0
        %2950 = vmatprep.mubr.f32.mxu0 0.0
        %2951 = vmatmul.mubr.f32.gmra.mxu0 %v2212
        %v2952 = vpop.f32.mrf.mxu0
        %v2953 = vadd.f32 0.0, %v2952
        %v2954 = vpop.f32.mrf.mxu0
        %2955 = vmatprep.mubr.f32.mxu0 0.0
        %2956 = vmatmul.mubr.f32.gmra.mxu0 %v2214
        %v2957 = vpop.f32.mrf.mxu0
        %v2958 = vadd.f32 0.0, %v2957
        %v2959 = vpop.f32.mrf.mxu0
        %2960 = vmatprep.mubr.f32.mxu0 0.0
        %2961 = vmatmul.mubr.f32.gmra.mxu0 %v2216
        %v2962 = vpop.f32.mrf.mxu0
        %v2963 = vadd.f32 0.0, %v2962
        %v2964 = vpop.f32.mrf.mxu0
        %2965 = vmatprep.mubr.f32.mxu0 0.0
        %2966 = vmatmul.mubr.f32.gmra.mxu0 %v2218
        %v2967 = vpop.f32.mrf.mxu0
        %v2968 = vadd.f32 0.0, %v2967
        %v2969 = vpop.f32.mrf.mxu0
        %2970 = vmatprep.mubr.f32.mxu0 0.0
        %2971 = vmatmul.mubr.f32.gmra.mxu0 %v2220
        %v2972 = vpop.f32.mrf.mxu0
        %v2973 = vadd.f32 0.0, %v2972
        %v2974 = vpop.f32.mrf.mxu0
        %2975 = vmatprep.mubr.f32.mxu0 0.0
        %2976 = vmatmul.mubr.f32.gmra.mxu0 %v2214
        %v2977 = vpop.f32.mrf.mxu0
        %v2978 = vadd.f32 0.0, %v2977
        %v2979 = vpop.f32.mrf.mxu0
        %2980 = vmatprep.mubr.f32.mxu0 0.0
        %2981 = vmatmul.mubr.f32.gmra.mxu0 %v2216
        %v2982 = vpop.f32.mrf.mxu0
        %v2983 = vadd.f32 0.0, %v2982
        %v2984 = vpop.f32.mrf.mxu0
        %2985 = vmatprep.mubr.f32.mxu0 0.0
        %2986 = vmatmul.mubr.f32.gmra.mxu0 %v2218
        %v2987 = vpop.f32.mrf.mxu0
        %v2988 = vadd.f32 0.0, %v2987
        %v2989 = vpop.f32.mrf.mxu0
        %2990 = vmatprep.mubr.f32.mxu0 0.0
        %2991 = vmatmul.mubr.f32.gmra.mxu0 %v2220
        %v2992 = vpop.f32.mrf.mxu0
        %v2993 = vadd.f32 0.0, %v2992
        %v2994 = vpop.f32.mrf.mxu0
        %2995 = vmatprep.mubr.f32.mxu0 0.0
        %2996 = vmatmul.mubr.f32.gmra.mxu0 %v2222
        %v2997 = vpop.f32.mrf.mxu0
        %v2998 = vadd.f32 0.0, %v2997
        %v2999 = vpop.f32.mrf.mxu0
        %3000 = vmatprep.mubr.f32.mxu0 0.0
        %3001 = vmatmul.mubr.f32.gmra.mxu0 %v2224
        %v3002 = vpop.f32.mrf.mxu0
        %v3003 = vadd.f32 0.0, %v3002
        %v3004 = vpop.f32.mrf.mxu0
        %3005 = vmatprep.mubr.f32.mxu0 0.0
        %3006 = vmatmul.mubr.f32.gmra.mxu0 %v2226
        %v3007 = vpop.f32.mrf.mxu0
        %v3008 = vadd.f32 0.0, %v3007
        %v3009 = vpop.f32.mrf.mxu0
        %3010 = vmatprep.mubr.f32.mxu0 0.0
        %3011 = vmatmul.mubr.f32.gmra.mxu0 %v2228
        %v3012 = vpop.f32.mrf.mxu0
        %v3013 = vadd.f32 0.0, %v3012
        %v3014 = vpop.f32.mrf.mxu0
        %3015 = vmatprep.mubr.f32.mxu0 0.0
        %3016 = vmatmul.mubr.f32.gmra.mxu0 %v2222
        %v3017 = vpop.f32.mrf.mxu0
        %v3018 = vadd.f32 0.0, %v3017
        %v3019 = vpop.f32.mrf.mxu0
        %3020 = vmatprep.mubr.f32.mxu0 0.0
        %3021 = vmatmul.mubr.f32.gmra.mxu0 %v2224
        %v3022 = vpop.f32.mrf.mxu0
        %v3023 = vadd.f32 0.0, %v3022
        %v3024 = vpop.f32.mrf.mxu0
        %3025 = vmatprep.mubr.f32.mxu0 0.0
        %3026 = vmatmul.mubr.f32.gmra.mxu0 %v2226
        %v3027 = vpop.f32.mrf.mxu0
        %v3028 = vadd.f32 0.0, %v3027
        %v3029 = vpop.f32.mrf.mxu0
        %3030 = vmatprep.mubr.f32.mxu0 0.0
        %3031 = vmatmul.mubr.f32.gmra.mxu0 %v2228
        %v3032 = vpop.f32.mrf.mxu0
        %v3033 = vadd.f32 0.0, %v3032
        %v3034 = vpop.f32.mrf.mxu0
        %3035 = vdwg.mxu0
        %v3036 = vadd.f32 %v2774, %v2878
        %v3037 = vadd.f32 %v2775, %v2883
        %v3038 = vadd.f32 %v2776, %v2888
        %v3039 = vadd.f32 %v2777, %v2893
        %v3040 = vadd.f32 %v2778, %v2898
        %v3041 = vadd.f32 %v2779, %v2903
        %v3042 = vadd.f32 %v2780, %v2908
        %v3043 = vadd.f32 %v2781, %v2913
        %v3044 = vadd.f32 %v2782, %v2918
        %v3045 = vadd.f32 %v2783, %v2923
        %v3046 = vadd.f32 %v2784, %v2928
        %v3047 = vadd.f32 %v2785, %v2933
        %v3048 = vadd.f32 %v2786, %v2938
        %v3049 = vadd.f32 %v2787, %v2943
        %v3050 = vadd.f32 %v2788, %v2948
        %v3051 = vadd.f32 %v2789, %v2953
        %v3052 = vadd.f32 %v2790, %v2958
        %v3053 = vadd.f32 %v2791, %v2963
        %v3054 = vadd.f32 %v2792, %v2968
        %v3055 = vadd.f32 %v2793, %v2973
        %v3056 = vadd.f32 %v2794, %v2978
        %v3057 = vadd.f32 %v2795, %v2983
        %v3058 = vadd.f32 %v2796, %v2988
        %v3059 = vadd.f32 %v2797, %v2993
        %v3060 = vadd.f32 %v2798, %v2998
        %v3061 = vadd.f32 %v2799, %v3003
        %v3062 = vadd.f32 %v2800, %v3008
        %v3063 = vadd.f32 %v2801, %v3013
        %v3064 = vadd.f32 %v2802, %v3018
        %v3065 = vadd.f32 %v2803, %v3023
        %v3066 = vadd.f32 %v2804, %v3028
        %v3067 = vadd.f32 %v2805, %v3033
        %s3068 = scalar_lea.vmem %s3, 16
        %v3069 = vld [vmem:[%s3068] sm:$0xf]
        %v3071 = vsel %vm1961, %v3069, 0
        %3073 = vmatprep.subr.mxu0 0.0
        %3074 = vmatpush1.msra.mxu0 0.0
        %3075 = vmatprep.subr.mxu0 0.0
        %3076 = vmatpush1.msra.mxu0 0.0
        %3077 = vmatprep.subr.mxu0 0.0
        %3078 = vmatpush1.msra.mxu0 0.0
        %3079 = vmatprep.subr.mxu0 0.0
        %3080 = vmatpush1.msra.mxu0 0.0
        %3081 = vmatprep.subr.mxu0 0.0
        %3082 = vmatpush1.msra.mxu0 0.0
        %3083 = vmatprep.subr.mxu0 0.0
        %3084 = vmatpush1.msra.mxu0 0.0
        %3085 = vmatprep.subr.mxu0 0.0
        %3086 = vmatpush1.msra.mxu0 0.0
        %3087 = vmatprep.subr.mxu0 0.0
        %3088 = vmatpush1.msra.mxu0 0.0
        %3089 = vmatprep.subr.mxu0 0.0
        %3090 = vmatpush1.msra.mxu0 0.0
        %3091 = vmatprep.subr.mxu0 0.0
        %3092 = vmatpush1.msra.mxu0 0.0
        %3093 = vmatprep.subr.mxu0 0.0
        %3094 = vmatpush1.msra.mxu0 0.0
        %3095 = vmatprep.subr.mxu0 0.0
        %3096 = vmatpush1.msra.mxu0 0.0
        %3097 = vmatprep.subr.mxu0 0.0
        %3098 = vmatpush1.msra.mxu0 0.0
        %3099 = vmatprep.subr.mxu0 0.0
        %3100 = vmatpush1.msra.mxu0 0.0
        %3101 = vmatprep.subr.mxu0 0.0
        %3102 = vmatpush1.msra.mxu0 0.0
        %3103 = vmatprep.subr.mxu0 0.0
        %3104 = vmatpush1.msra.mxu0 %v3071
        %3105 = vmatprep.subr.mxu0 0.0
        %3106 = vmatpush2.msra.mxu0 0.0
        %3107 = vmatprep.subr.mxu0 0.0
        %3108 = vmatpush2.msra.mxu0 0.0
        %3109 = vmatprep.subr.mxu0 0.0
        %3110 = vmatpush2.msra.mxu0 0.0
        %3111 = vmatprep.subr.mxu0 0.0
        %3112 = vmatpush2.msra.mxu0 0.0
        %3113 = vmatprep.subr.mxu0 0.0
        %3114 = vmatpush2.msra.mxu0 0.0
        %3115 = vmatprep.subr.mxu0 0.0
        %3116 = vmatpush2.msra.mxu0 0.0
        %3117 = vmatprep.subr.mxu0 0.0
        %3118 = vmatpush2.msra.mxu0 0.0
        %3119 = vmatprep.subr.mxu0 0.0
        %3120 = vmatpush2.msra.mxu0 0.0
        %3121 = vmatprep.subr.mxu0 0.0
        %3122 = vmatpush2.msra.mxu0 0.0
        %3123 = vmatprep.subr.mxu0 0.0
        %3124 = vmatpush2.msra.mxu0 0.0
        %3125 = vmatprep.subr.mxu0 0.0
        %3126 = vmatpush2.msra.mxu0 0.0
        %3127 = vmatprep.subr.mxu0 0.0
        %3128 = vmatpush2.msra.mxu0 0.0
        %3129 = vmatprep.subr.mxu0 0.0
        %3130 = vmatpush2.msra.mxu0 0.0
        %3131 = vmatprep.subr.mxu0 0.0
        %3132 = vmatpush2.msra.mxu0 0.0
        %3133 = vmatprep.subr.mxu0 0.0
        %3134 = vmatpush2.msra.mxu0 0.0
        %3135 = vmatprep.subr.mxu0 0.0
        %3136 = vmatpush2.msra.mxu0 0.0
        %3137 = vmatprep.mubr.f32.mxu0 0.0
        %3138 = vmatmul.mubr.f32.gmra.mxu0 %v1929
        %v3139 = vpop.f32.mrf.mxu0
        %v3140 = vadd.f32 0.0, %v3139
        %v3141 = vpop.f32.mrf.mxu0
        %3142 = vmatprep.mubr.f32.mxu0 0.0
        %3143 = vmatmul.mubr.f32.gmra.mxu0 %v1931
        %v3144 = vpop.f32.mrf.mxu0
        %v3145 = vadd.f32 0.0, %v3144
        %v3146 = vpop.f32.mrf.mxu0
        %3147 = vmatprep.mubr.f32.mxu0 0.0
        %3148 = vmatmul.mubr.f32.gmra.mxu0 %v1933
        %v3149 = vpop.f32.mrf.mxu0
        %v3150 = vadd.f32 0.0, %v3149
        %v3151 = vpop.f32.mrf.mxu0
        %3152 = vmatprep.mubr.f32.mxu0 0.0
        %3153 = vmatmul.mubr.f32.gmra.mxu0 %v1935
        %v3154 = vpop.f32.mrf.mxu0
        %v3155 = vadd.f32 0.0, %v3154
        %v3156 = vpop.f32.mrf.mxu0
        %3157 = vmatprep.mubr.f32.mxu0 0.0
        %3158 = vmatmul.mubr.f32.gmra.mxu0 %v1929
        %v3159 = vpop.f32.mrf.mxu0
        %v3160 = vadd.f32 0.0, %v3159
        %v3161 = vpop.f32.mrf.mxu0
        %3162 = vmatprep.mubr.f32.mxu0 0.0
        %3163 = vmatmul.mubr.f32.gmra.mxu0 %v1931
        %v3164 = vpop.f32.mrf.mxu0
        %v3165 = vadd.f32 0.0, %v3164
        %v3166 = vpop.f32.mrf.mxu0
        %3167 = vmatprep.mubr.f32.mxu0 0.0
        %3168 = vmatmul.mubr.f32.gmra.mxu0 %v1933
        %v3169 = vpop.f32.mrf.mxu0
        %v3170 = vadd.f32 0.0, %v3169
        %v3171 = vpop.f32.mrf.mxu0
        %3172 = vmatprep.mubr.f32.mxu0 0.0
        %3173 = vmatmul.mubr.f32.gmra.mxu0 %v1935
        %v3174 = vpop.f32.mrf.mxu0
        %v3175 = vadd.f32 0.0, %v3174
        %v3176 = vpop.f32.mrf.mxu0
        %3177 = vmatprep.mubr.f32.mxu0 0.0
        %3178 = vmatmul.mubr.f32.gmra.mxu0 %v1937
        %v3179 = vpop.f32.mrf.mxu0
        %v3180 = vadd.f32 0.0, %v3179
        %v3181 = vpop.f32.mrf.mxu0
        %3182 = vmatprep.mubr.f32.mxu0 0.0
        %3183 = vmatmul.mubr.f32.gmra.mxu0 %v1939
        %v3184 = vpop.f32.mrf.mxu0
        %v3185 = vadd.f32 0.0, %v3184
        %v3186 = vpop.f32.mrf.mxu0
        %3187 = vmatprep.mubr.f32.mxu0 0.0
        %3188 = vmatmul.mubr.f32.gmra.mxu0 %v1941
        %v3189 = vpop.f32.mrf.mxu0
        %v3190 = vadd.f32 0.0, %v3189
        %v3191 = vpop.f32.mrf.mxu0
        %3192 = vmatprep.mubr.f32.mxu0 0.0
        %3193 = vmatmul.mubr.f32.gmra.mxu0 %v1943
        %v3194 = vpop.f32.mrf.mxu0
        %v3195 = vadd.f32 0.0, %v3194
        %v3196 = vpop.f32.mrf.mxu0
        %3197 = vmatprep.mubr.f32.mxu0 0.0
        %3198 = vmatmul.mubr.f32.gmra.mxu0 %v1937
        %v3199 = vpop.f32.mrf.mxu0
        %v3200 = vadd.f32 0.0, %v3199
        %v3201 = vpop.f32.mrf.mxu0
        %3202 = vmatprep.mubr.f32.mxu0 0.0
        %3203 = vmatmul.mubr.f32.gmra.mxu0 %v1939
        %v3204 = vpop.f32.mrf.mxu0
        %v3205 = vadd.f32 0.0, %v3204
        %v3206 = vpop.f32.mrf.mxu0
        %3207 = vmatprep.mubr.f32.mxu0 0.0
        %3208 = vmatmul.mubr.f32.gmra.mxu0 %v1941
        %v3209 = vpop.f32.mrf.mxu0
        %v3210 = vadd.f32 0.0, %v3209
        %v3211 = vpop.f32.mrf.mxu0
        %3212 = vmatprep.mubr.f32.mxu0 0.0
        %3213 = vmatmul.mubr.f32.gmra.mxu0 %v1943
        %v3214 = vpop.f32.mrf.mxu0
        %v3215 = vadd.f32 0.0, %v3214
        %v3216 = vpop.f32.mrf.mxu0
        %3217 = vmatprep.mubr.f32.mxu0 0.0
        %3218 = vmatmul.mubr.f32.gmra.mxu0 %v1945
        %v3219 = vpop.f32.mrf.mxu0
        %v3220 = vadd.f32 0.0, %v3219
        %v3221 = vpop.f32.mrf.mxu0
        %3222 = vmatprep.mubr.f32.mxu0 0.0
        %3223 = vmatmul.mubr.f32.gmra.mxu0 %v1947
        %v3224 = vpop.f32.mrf.mxu0
        %v3225 = vadd.f32 0.0, %v3224
        %v3226 = vpop.f32.mrf.mxu0
        %3227 = vmatprep.mubr.f32.mxu0 0.0
        %3228 = vmatmul.mubr.f32.gmra.mxu0 %v1949
        %v3229 = vpop.f32.mrf.mxu0
        %v3230 = vadd.f32 0.0, %v3229
        %v3231 = vpop.f32.mrf.mxu0
        %3232 = vmatprep.mubr.f32.mxu0 0.0
        %3233 = vmatmul.mubr.f32.gmra.mxu0 %v1951
        %v3234 = vpop.f32.mrf.mxu0
        %v3235 = vadd.f32 0.0, %v3234
        %v3236 = vpop.f32.mrf.mxu0
        %3237 = vmatprep.mubr.f32.mxu0 0.0
        %3238 = vmatmul.mubr.f32.gmra.mxu0 %v1945
        %v3239 = vpop.f32.mrf.mxu0
        %v3240 = vadd.f32 0.0, %v3239
        %v3241 = vpop.f32.mrf.mxu0
        %3242 = vmatprep.mubr.f32.mxu0 0.0
        %3243 = vmatmul.mubr.f32.gmra.mxu0 %v1947
        %v3244 = vpop.f32.mrf.mxu0
        %v3245 = vadd.f32 0.0, %v3244
        %v3246 = vpop.f32.mrf.mxu0
        %3247 = vmatprep.mubr.f32.mxu0 0.0
        %3248 = vmatmul.mubr.f32.gmra.mxu0 %v1949
        %v3249 = vpop.f32.mrf.mxu0
        %v3250 = vadd.f32 0.0, %v3249
        %v3251 = vpop.f32.mrf.mxu0
        %3252 = vmatprep.mubr.f32.mxu0 0.0
        %3253 = vmatmul.mubr.f32.gmra.mxu0 %v1951
        %v3254 = vpop.f32.mrf.mxu0
        %v3255 = vadd.f32 0.0, %v3254
        %v3256 = vpop.f32.mrf.mxu0
        %3257 = vmatprep.mubr.f32.mxu0 0.0
        %3258 = vmatmul.mubr.f32.gmra.mxu0 %v1953
        %v3259 = vpop.f32.mrf.mxu0
        %v3260 = vadd.f32 0.0, %v3259
        %v3261 = vpop.f32.mrf.mxu0
        %3262 = vmatprep.mubr.f32.mxu0 0.0
        %3263 = vmatmul.mubr.f32.gmra.mxu0 %v1955
        %v3264 = vpop.f32.mrf.mxu0
        %v3265 = vadd.f32 0.0, %v3264
        %v3266 = vpop.f32.mrf.mxu0
        %3267 = vmatprep.mubr.f32.mxu0 0.0
        %3268 = vmatmul.mubr.f32.gmra.mxu0 %v1957
        %v3269 = vpop.f32.mrf.mxu0
        %v3270 = vadd.f32 0.0, %v3269
        %v3271 = vpop.f32.mrf.mxu0
        %3272 = vmatprep.mubr.f32.mxu0 0.0
        %3273 = vmatmul.mubr.f32.gmra.mxu0 %v1959
        %v3274 = vpop.f32.mrf.mxu0
        %v3275 = vadd.f32 0.0, %v3274
        %v3276 = vpop.f32.mrf.mxu0
        %3277 = vmatprep.mubr.f32.mxu0 0.0
        %3278 = vmatmul.mubr.f32.gmra.mxu0 %v1953
        %v3279 = vpop.f32.mrf.mxu0
        %v3280 = vadd.f32 0.0, %v3279
        %v3281 = vpop.f32.mrf.mxu0
        %3282 = vmatprep.mubr.f32.mxu0 0.0
        %3283 = vmatmul.mubr.f32.gmra.mxu0 %v1955
        %v3284 = vpop.f32.mrf.mxu0
        %v3285 = vadd.f32 0.0, %v3284
        %v3286 = vpop.f32.mrf.mxu0
        %3287 = vmatprep.mubr.f32.mxu0 0.0
        %3288 = vmatmul.mubr.f32.gmra.mxu0 %v1957
        %v3289 = vpop.f32.mrf.mxu0
        %v3290 = vadd.f32 0.0, %v3289
        %v3291 = vpop.f32.mrf.mxu0
        %3292 = vmatprep.mubr.f32.mxu0 0.0
        %3293 = vmatmul.mubr.f32.gmra.mxu0 %v1959
        %v3294 = vpop.f32.mrf.mxu0
        %v3295 = vadd.f32 0.0, %v3294
        %v3296 = vpop.f32.mrf.mxu0
        %3297 = vdwg.mxu0
        %v3298 = vadd.f32 %v3036, %v3140
        %v3299 = vadd.f32 %v3037, %v3145
        %v3300 = vadd.f32 %v3038, %v3150
        %v3301 = vadd.f32 %v3039, %v3155
        %v3302 = vadd.f32 %v3040, %v3160
        %v3303 = vadd.f32 %v3041, %v3165
        %v3304 = vadd.f32 %v3042, %v3170
        %v3305 = vadd.f32 %v3043, %v3175
        %v3306 = vadd.f32 %v3044, %v3180
        %v3307 = vadd.f32 %v3045, %v3185
        %v3308 = vadd.f32 %v3046, %v3190
        %v3309 = vadd.f32 %v3047, %v3195
        %v3310 = vadd.f32 %v3048, %v3200
        %v3311 = vadd.f32 %v3049, %v3205
        %v3312 = vadd.f32 %v3050, %v3210
        %v3313 = vadd.f32 %v3051, %v3215
        %v3314 = vadd.f32 %v3052, %v3220
        %v3315 = vadd.f32 %v3053, %v3225
        %v3316 = vadd.f32 %v3054, %v3230
        %v3317 = vadd.f32 %v3055, %v3235
        %v3318 = vadd.f32 %v3056, %v3240
        %v3319 = vadd.f32 %v3057, %v3245
        %v3320 = vadd.f32 %v3058, %v3250
        %v3321 = vadd.f32 %v3059, %v3255
        %v3322 = vadd.f32 %v3060, %v3260
        %v3323 = vadd.f32 %v3061, %v3265
        %v3324 = vadd.f32 %v3062, %v3270
        %v3325 = vadd.f32 %v3063, %v3275
        %v3326 = vadd.f32 %v3064, %v3280
        %v3327 = vadd.f32 %v3065, %v3285
        %v3328 = vadd.f32 %v3066, %v3290
        %v3329 = vadd.f32 %v3067, %v3295
        %s3330 = scalar_lea.vmem %s3, 20
        %v3331 = vld [vmem:[%s3330] sm:$0xf]
        %v3333 = vsel %vm1961, %v3331, 0
        %3335 = vmatprep.subr.mxu0 0.0
        %3336 = vmatpush1.msra.mxu0 0.0
        %3337 = vmatprep.subr.mxu0 0.0
        %3338 = vmatpush1.msra.mxu0 0.0
        %3339 = vmatprep.subr.mxu0 0.0
        %3340 = vmatpush1.msra.mxu0 0.0
        %3341 = vmatprep.subr.mxu0 0.0
        %3342 = vmatpush1.msra.mxu0 0.0
        %3343 = vmatprep.subr.mxu0 0.0
        %3344 = vmatpush1.msra.mxu0 0.0
        %3345 = vmatprep.subr.mxu0 0.0
        %3346 = vmatpush1.msra.mxu0 0.0
        %3347 = vmatprep.subr.mxu0 0.0
        %3348 = vmatpush1.msra.mxu0 0.0
        %3349 = vmatprep.subr.mxu0 0.0
        %3350 = vmatpush1.msra.mxu0 0.0
        %3351 = vmatprep.subr.mxu0 0.0
        %3352 = vmatpush1.msra.mxu0 0.0
        %3353 = vmatprep.subr.mxu0 0.0
        %3354 = vmatpush1.msra.mxu0 0.0
        %3355 = vmatprep.subr.mxu0 0.0
        %3356 = vmatpush1.msra.mxu0 0.0
        %3357 = vmatprep.subr.mxu0 0.0
        %3358 = vmatpush1.msra.mxu0 0.0
        %3359 = vmatprep.subr.mxu0 0.0
        %3360 = vmatpush1.msra.mxu0 0.0
        %3361 = vmatprep.subr.mxu0 0.0
        %3362 = vmatpush1.msra.mxu0 0.0
        %3363 = vmatprep.subr.mxu0 0.0
        %3364 = vmatpush1.msra.mxu0 0.0
        %3365 = vmatprep.subr.mxu0 0.0
        %3366 = vmatpush1.msra.mxu0 %v3333
        %3367 = vmatprep.subr.mxu0 0.0
        %3368 = vmatpush2.msra.mxu0 0.0
        %3369 = vmatprep.subr.mxu0 0.0
        %3370 = vmatpush2.msra.mxu0 0.0
        %3371 = vmatprep.subr.mxu0 0.0
        %3372 = vmatpush2.msra.mxu0 0.0
        %3373 = vmatprep.subr.mxu0 0.0
        %3374 = vmatpush2.msra.mxu0 0.0
        %3375 = vmatprep.subr.mxu0 0.0
        %3376 = vmatpush2.msra.mxu0 0.0
        %3377 = vmatprep.subr.mxu0 0.0
        %3378 = vmatpush2.msra.mxu0 0.0
        %3379 = vmatprep.subr.mxu0 0.0
        %3380 = vmatpush2.msra.mxu0 0.0
        %3381 = vmatprep.subr.mxu0 0.0
        %3382 = vmatpush2.msra.mxu0 0.0
        %3383 = vmatprep.subr.mxu0 0.0
        %3384 = vmatpush2.msra.mxu0 0.0
        %3385 = vmatprep.subr.mxu0 0.0
        %3386 = vmatpush2.msra.mxu0 0.0
        %3387 = vmatprep.subr.mxu0 0.0
        %3388 = vmatpush2.msra.mxu0 0.0
        %3389 = vmatprep.subr.mxu0 0.0
        %3390 = vmatpush2.msra.mxu0 0.0
        %3391 = vmatprep.subr.mxu0 0.0
        %3392 = vmatpush2.msra.mxu0 0.0
        %3393 = vmatprep.subr.mxu0 0.0
        %3394 = vmatpush2.msra.mxu0 0.0
        %3395 = vmatprep.subr.mxu0 0.0
        %3396 = vmatpush2.msra.mxu0 0.0
        %3397 = vmatprep.subr.mxu0 0.0
        %3398 = vmatpush2.msra.mxu0 0.0
        %3399 = vmatprep.mubr.f32.mxu0 0.0
        %3400 = vmatmul.mubr.f32.gmra.mxu0 %v2514
        %v3401 = vpop.f32.mrf.mxu0
        %v3402 = vadd.f32 0.0, %v3401
        %v3403 = vpop.f32.mrf.mxu0
        %3404 = vmatprep.mubr.f32.mxu0 0.0
        %3405 = vmatmul.mubr.f32.gmra.mxu0 %v2516
        %v3406 = vpop.f32.mrf.mxu0
        %v3407 = vadd.f32 0.0, %v3406
        %v3408 = vpop.f32.mrf.mxu0
        %3409 = vmatprep.mubr.f32.mxu0 0.0
        %3410 = vmatmul.mubr.f32.gmra.mxu0 %v2518
        %v3411 = vpop.f32.mrf.mxu0
        %v3412 = vadd.f32 0.0, %v3411
        %v3413 = vpop.f32.mrf.mxu0
        %3414 = vmatprep.mubr.f32.mxu0 0.0
        %3415 = vmatmul.mubr.f32.gmra.mxu0 %v2520
        %v3416 = vpop.f32.mrf.mxu0
        %v3417 = vadd.f32 0.0, %v3416
        %v3418 = vpop.f32.mrf.mxu0
        %3419 = vmatprep.mubr.f32.mxu0 0.0
        %3420 = vmatmul.mubr.f32.gmra.mxu0 %v2514
        %v3421 = vpop.f32.mrf.mxu0
        %v3422 = vadd.f32 0.0, %v3421
        %v3423 = vpop.f32.mrf.mxu0
        %3424 = vmatprep.mubr.f32.mxu0 0.0
        %3425 = vmatmul.mubr.f32.gmra.mxu0 %v2516
        %v3426 = vpop.f32.mrf.mxu0
        %v3427 = vadd.f32 0.0, %v3426
        %v3428 = vpop.f32.mrf.mxu0
        %3429 = vmatprep.mubr.f32.mxu0 0.0
        %3430 = vmatmul.mubr.f32.gmra.mxu0 %v2518
        %v3431 = vpop.f32.mrf.mxu0
        %v3432 = vadd.f32 0.0, %v3431
        %v3433 = vpop.f32.mrf.mxu0
        %3434 = vmatprep.mubr.f32.mxu0 0.0
        %3435 = vmatmul.mubr.f32.gmra.mxu0 %v2520
        %v3436 = vpop.f32.mrf.mxu0
        %v3437 = vadd.f32 0.0, %v3436
        %v3438 = vpop.f32.mrf.mxu0
        %3439 = vmatprep.mubr.f32.mxu0 0.0
        %3440 = vmatmul.mubr.f32.gmra.mxu0 %v2522
        %v3441 = vpop.f32.mrf.mxu0
        %v3442 = vadd.f32 0.0, %v3441
        %v3443 = vpop.f32.mrf.mxu0
        %3444 = vmatprep.mubr.f32.mxu0 0.0
        %3445 = vmatmul.mubr.f32.gmra.mxu0 %v2524
        %v3446 = vpop.f32.mrf.mxu0
        %v3447 = vadd.f32 0.0, %v3446
        %v3448 = vpop.f32.mrf.mxu0
        %3449 = vmatprep.mubr.f32.mxu0 0.0
        %3450 = vmatmul.mubr.f32.gmra.mxu0 %v2526
        %v3451 = vpop.f32.mrf.mxu0
        %v3452 = vadd.f32 0.0, %v3451
        %v3453 = vpop.f32.mrf.mxu0
        %3454 = vmatprep.mubr.f32.mxu0 0.0
        %3455 = vmatmul.mubr.f32.gmra.mxu0 %v2528
        %v3456 = vpop.f32.mrf.mxu0
        %v3457 = vadd.f32 0.0, %v3456
        %v3458 = vpop.f32.mrf.mxu0
        %3459 = vmatprep.mubr.f32.mxu0 0.0
        %3460 = vmatmul.mubr.f32.gmra.mxu0 %v2522
        %v3461 = vpop.f32.mrf.mxu0
        %v3462 = vadd.f32 0.0, %v3461
        %v3463 = vpop.f32.mrf.mxu0
        %3464 = vmatprep.mubr.f32.mxu0 0.0
        %3465 = vmatmul.mubr.f32.gmra.mxu0 %v2524
        %v3466 = vpop.f32.mrf.mxu0
        %v3467 = vadd.f32 0.0, %v3466
        %v3468 = vpop.f32.mrf.mxu0
        %3469 = vmatprep.mubr.f32.mxu0 0.0
        %3470 = vmatmul.mubr.f32.gmra.mxu0 %v2526
        %v3471 = vpop.f32.mrf.mxu0
        %v3472 = vadd.f32 0.0, %v3471
        %v3473 = vpop.f32.mrf.mxu0
        %3474 = vmatprep.mubr.f32.mxu0 0.0
        %3475 = vmatmul.mubr.f32.gmra.mxu0 %v2528
        %v3476 = vpop.f32.mrf.mxu0
        %v3477 = vadd.f32 0.0, %v3476
        %v3478 = vpop.f32.mrf.mxu0
        %3479 = vmatprep.mubr.f32.mxu0 0.0
        %3480 = vmatmul.mubr.f32.gmra.mxu0 %v2530
        %v3481 = vpop.f32.mrf.mxu0
        %v3482 = vadd.f32 0.0, %v3481
        %v3483 = vpop.f32.mrf.mxu0
        %3484 = vmatprep.mubr.f32.mxu0 0.0
        %3485 = vmatmul.mubr.f32.gmra.mxu0 %v2532
        %v3486 = vpop.f32.mrf.mxu0
        %v3487 = vadd.f32 0.0, %v3486
        %v3488 = vpop.f32.mrf.mxu0
        %3489 = vmatprep.mubr.f32.mxu0 0.0
        %3490 = vmatmul.mubr.f32.gmra.mxu0 %v2534
        %v3491 = vpop.f32.mrf.mxu0
        %v3492 = vadd.f32 0.0, %v3491
        %v3493 = vpop.f32.mrf.mxu0
        %3494 = vmatprep.mubr.f32.mxu0 0.0
        %3495 = vmatmul.mubr.f32.gmra.mxu0 %v2536
        %v3496 = vpop.f32.mrf.mxu0
        %v3497 = vadd.f32 0.0, %v3496
        %v3498 = vpop.f32.mrf.mxu0
        %3499 = vmatprep.mubr.f32.mxu0 0.0
        %3500 = vmatmul.mubr.f32.gmra.mxu0 %v2530
        %v3501 = vpop.f32.mrf.mxu0
        %v3502 = vadd.f32 0.0, %v3501
        %v3503 = vpop.f32.mrf.mxu0
        %3504 = vmatprep.mubr.f32.mxu0 0.0
        %3505 = vmatmul.mubr.f32.gmra.mxu0 %v2532
        %v3506 = vpop.f32.mrf.mxu0
        %v3507 = vadd.f32 0.0, %v3506
        %v3508 = vpop.f32.mrf.mxu0
        %3509 = vmatprep.mubr.f32.mxu0 0.0
        %3510 = vmatmul.mubr.f32.gmra.mxu0 %v2534
        %v3511 = vpop.f32.mrf.mxu0
        %v3512 = vadd.f32 0.0, %v3511
        %v3513 = vpop.f32.mrf.mxu0
        %3514 = vmatprep.mubr.f32.mxu0 0.0
        %3515 = vmatmul.mubr.f32.gmra.mxu0 %v2536
        %v3516 = vpop.f32.mrf.mxu0
        %v3517 = vadd.f32 0.0, %v3516
        %v3518 = vpop.f32.mrf.mxu0
        %3519 = vmatprep.mubr.f32.mxu0 0.0
        %3520 = vmatmul.mubr.f32.gmra.mxu0 %v2538
        %v3521 = vpop.f32.mrf.mxu0
        %v3522 = vadd.f32 0.0, %v3521
        %v3523 = vpop.f32.mrf.mxu0
        %3524 = vmatprep.mubr.f32.mxu0 0.0
        %3525 = vmatmul.mubr.f32.gmra.mxu0 %v2540
        %v3526 = vpop.f32.mrf.mxu0
        %v3527 = vadd.f32 0.0, %v3526
        %v3528 = vpop.f32.mrf.mxu0
        %3529 = vmatprep.mubr.f32.mxu0 0.0
        %3530 = vmatmul.mubr.f32.gmra.mxu0 %v2542
        %v3531 = vpop.f32.mrf.mxu0
        %v3532 = vadd.f32 0.0, %v3531
        %v3533 = vpop.f32.mrf.mxu0
        %3534 = vmatprep.mubr.f32.mxu0 0.0
        %3535 = vmatmul.mubr.f32.gmra.mxu0 %v2544
        %v3536 = vpop.f32.mrf.mxu0
        %v3537 = vadd.f32 0.0, %v3536
        %v3538 = vpop.f32.mrf.mxu0
        %3539 = vmatprep.mubr.f32.mxu0 0.0
        %3540 = vmatmul.mubr.f32.gmra.mxu0 %v2538
        %v3541 = vpop.f32.mrf.mxu0
        %v3542 = vadd.f32 0.0, %v3541
        %v3543 = vpop.f32.mrf.mxu0
        %3544 = vmatprep.mubr.f32.mxu0 0.0
        %3545 = vmatmul.mubr.f32.gmra.mxu0 %v2540
        %v3546 = vpop.f32.mrf.mxu0
        %v3547 = vadd.f32 0.0, %v3546
        %v3548 = vpop.f32.mrf.mxu0
        %3549 = vmatprep.mubr.f32.mxu0 0.0
        %3550 = vmatmul.mubr.f32.gmra.mxu0 %v2542
        %v3551 = vpop.f32.mrf.mxu0
        %v3552 = vadd.f32 0.0, %v3551
        %v3553 = vpop.f32.mrf.mxu0
        %3554 = vmatprep.mubr.f32.mxu0 0.0
        %3555 = vmatmul.mubr.f32.gmra.mxu0 %v2544
        %v3556 = vpop.f32.mrf.mxu0
        %v3557 = vadd.f32 0.0, %v3556
        %v3558 = vpop.f32.mrf.mxu0
        %3559 = vdwg.mxu0
        %v3560 = vadd.f32 %v3298, %v3402
        %v3561 = vadd.f32 %v3299, %v3407
        %v3562 = vadd.f32 %v3300, %v3412
        %v3563 = vadd.f32 %v3301, %v3417
        %v3564 = vadd.f32 %v3302, %v3422
        %v3565 = vadd.f32 %v3303, %v3427
        %v3566 = vadd.f32 %v3304, %v3432
        %v3567 = vadd.f32 %v3305, %v3437
        %v3568 = vadd.f32 %v3306, %v3442
        %v3569 = vadd.f32 %v3307, %v3447
        %v3570 = vadd.f32 %v3308, %v3452
        %v3571 = vadd.f32 %v3309, %v3457
        %v3572 = vadd.f32 %v3310, %v3462
        %v3573 = vadd.f32 %v3311, %v3467
        %v3574 = vadd.f32 %v3312, %v3472
        %v3575 = vadd.f32 %v3313, %v3477
        %v3576 = vadd.f32 %v3314, %v3482
        %v3577 = vadd.f32 %v3315, %v3487
        %v3578 = vadd.f32 %v3316, %v3492
        %v3579 = vadd.f32 %v3317, %v3497
        %v3580 = vadd.f32 %v3318, %v3502
        %v3581 = vadd.f32 %v3319, %v3507
        %v3582 = vadd.f32 %v3320, %v3512
        %v3583 = vadd.f32 %v3321, %v3517
        %v3584 = vadd.f32 %v3322, %v3522
        %v3585 = vadd.f32 %v3323, %v3527
        %v3586 = vadd.f32 %v3324, %v3532
        %v3587 = vadd.f32 %v3325, %v3537
        %v3588 = vadd.f32 %v3326, %v3542
        %v3589 = vadd.f32 %v3327, %v3547
        %v3590 = vadd.f32 %v3328, %v3552
        %v3591 = vadd.f32 %v3329, %v3557
        %s3592 = scalar_lea.vmem %s3, 24
        %v3593 = vld [vmem:[%s3592] sm:$0xf]
        %v3595 = vsel %vm1920, %v1854, 0
        %v3597 = vsel %vm1920, %v1832, 0
        %v3599 = vsel %vm1920, %v1834, 0
        %v3601 = vsel %vm1920, %v1836, 0
        %v3604 = vsel %vm1961, %v3593, 0
        %3606 = vmatprep.subr.mxu0 0.0
        %3607 = vmatpush1.msra.mxu0 0.0
        %3608 = vmatprep.subr.mxu0 0.0
        %3609 = vmatpush1.msra.mxu0 0.0
        %3610 = vmatprep.subr.mxu0 0.0
        %3611 = vmatpush1.msra.mxu0 0.0
        %3612 = vmatprep.subr.mxu0 0.0
        %3613 = vmatpush1.msra.mxu0 0.0
        %3614 = vmatprep.subr.mxu0 0.0
        %3615 = vmatpush1.msra.mxu0 0.0
        %3616 = vmatprep.subr.mxu0 0.0
        %3617 = vmatpush1.msra.mxu0 0.0
        %3618 = vmatprep.subr.mxu0 0.0
        %3619 = vmatpush1.msra.mxu0 0.0
        %3620 = vmatprep.subr.mxu0 0.0
        %3621 = vmatpush1.msra.mxu0 0.0
        %3622 = vmatprep.subr.mxu0 0.0
        %3623 = vmatpush1.msra.mxu0 0.0
        %3624 = vmatprep.subr.mxu0 0.0
        %3625 = vmatpush1.msra.mxu0 0.0
        %3626 = vmatprep.subr.mxu0 0.0
        %3627 = vmatpush1.msra.mxu0 0.0
        %3628 = vmatprep.subr.mxu0 0.0
        %3629 = vmatpush1.msra.mxu0 0.0
        %3630 = vmatprep.subr.mxu0 0.0
        %3631 = vmatpush1.msra.mxu0 0.0
        %3632 = vmatprep.subr.mxu0 0.0
        %3633 = vmatpush1.msra.mxu0 0.0
        %3634 = vmatprep.subr.mxu0 0.0
        %3635 = vmatpush1.msra.mxu0 0.0
        %3636 = vmatprep.subr.mxu0 0.0
        %3637 = vmatpush1.msra.mxu0 %v3604
        %3638 = vmatprep.subr.mxu0 0.0
        %3639 = vmatpush2.msra.mxu0 0.0
        %3640 = vmatprep.subr.mxu0 0.0
        %3641 = vmatpush2.msra.mxu0 0.0
        %3642 = vmatprep.subr.mxu0 0.0
        %3643 = vmatpush2.msra.mxu0 0.0
        %3644 = vmatprep.subr.mxu0 0.0
        %3645 = vmatpush2.msra.mxu0 0.0
        %3646 = vmatprep.subr.mxu0 0.0
        %3647 = vmatpush2.msra.mxu0 0.0
        %3648 = vmatprep.subr.mxu0 0.0
        %3649 = vmatpush2.msra.mxu0 0.0
        %3650 = vmatprep.subr.mxu0 0.0
        %3651 = vmatpush2.msra.mxu0 0.0
        %3652 = vmatprep.subr.mxu0 0.0
        %3653 = vmatpush2.msra.mxu0 0.0
        %3654 = vmatprep.subr.mxu0 0.0
        %3655 = vmatpush2.msra.mxu0 0.0
        %3656 = vmatprep.subr.mxu0 0.0
        %3657 = vmatpush2.msra.mxu0 0.0
        %3658 = vmatprep.subr.mxu0 0.0
        %3659 = vmatpush2.msra.mxu0 0.0
        %3660 = vmatprep.subr.mxu0 0.0
        %3661 = vmatpush2.msra.mxu0 0.0
        %3662 = vmatprep.subr.mxu0 0.0
        %3663 = vmatpush2.msra.mxu0 0.0
        %3664 = vmatprep.subr.mxu0 0.0
        %3665 = vmatpush2.msra.mxu0 0.0
        %3666 = vmatprep.subr.mxu0 0.0
        %3667 = vmatpush2.msra.mxu0 0.0
        %3668 = vmatprep.subr.mxu0 0.0
        %3669 = vmatpush2.msra.mxu0 0.0
        %3670 = vmatprep.mubr.f32.mxu0 0.0
        %3671 = vmatmul.mubr.f32.gmra.mxu0 %v2198
        %v3672 = vpop.f32.mrf.mxu0
        %v3673 = vadd.f32 0.0, %v3672
        %v3674 = vpop.f32.mrf.mxu0
        %3675 = vmatprep.mubr.f32.mxu0 0.0
        %3676 = vmatmul.mubr.f32.gmra.mxu0 %v2200
        %v3677 = vpop.f32.mrf.mxu0
        %v3678 = vadd.f32 0.0, %v3677
        %v3679 = vpop.f32.mrf.mxu0
        %3680 = vmatprep.mubr.f32.mxu0 0.0
        %3681 = vmatmul.mubr.f32.gmra.mxu0 %v2202
        %v3682 = vpop.f32.mrf.mxu0
        %v3683 = vadd.f32 0.0, %v3682
        %v3684 = vpop.f32.mrf.mxu0
        %3685 = vmatprep.mubr.f32.mxu0 0.0
        %3686 = vmatmul.mubr.f32.gmra.mxu0 %v2204
        %v3687 = vpop.f32.mrf.mxu0
        %v3688 = vadd.f32 0.0, %v3687
        %v3689 = vpop.f32.mrf.mxu0
        %3690 = vmatprep.mubr.f32.mxu0 0.0
        %3691 = vmatmul.mubr.f32.gmra.mxu0 %v2206
        %v3692 = vpop.f32.mrf.mxu0
        %v3693 = vadd.f32 0.0, %v3692
        %v3694 = vpop.f32.mrf.mxu0
        %3695 = vmatprep.mubr.f32.mxu0 0.0
        %3696 = vmatmul.mubr.f32.gmra.mxu0 %v2208
        %v3697 = vpop.f32.mrf.mxu0
        %v3698 = vadd.f32 0.0, %v3697
        %v3699 = vpop.f32.mrf.mxu0
        %3700 = vmatprep.mubr.f32.mxu0 0.0
        %3701 = vmatmul.mubr.f32.gmra.mxu0 %v2210
        %v3702 = vpop.f32.mrf.mxu0
        %v3703 = vadd.f32 0.0, %v3702
        %v3704 = vpop.f32.mrf.mxu0
        %3705 = vmatprep.mubr.f32.mxu0 0.0
        %3706 = vmatmul.mubr.f32.gmra.mxu0 %v2212
        %v3707 = vpop.f32.mrf.mxu0
        %v3708 = vadd.f32 0.0, %v3707
        %v3709 = vpop.f32.mrf.mxu0
        %3710 = vmatprep.mubr.f32.mxu0 0.0
        %3711 = vmatmul.mubr.f32.gmra.mxu0 %v2206
        %v3712 = vpop.f32.mrf.mxu0
        %v3713 = vadd.f32 0.0, %v3712
        %v3714 = vpop.f32.mrf.mxu0
        %3715 = vmatprep.mubr.f32.mxu0 0.0
        %3716 = vmatmul.mubr.f32.gmra.mxu0 %v2208
        %v3717 = vpop.f32.mrf.mxu0
        %v3718 = vadd.f32 0.0, %v3717
        %v3719 = vpop.f32.mrf.mxu0
        %3720 = vmatprep.mubr.f32.mxu0 0.0
        %3721 = vmatmul.mubr.f32.gmra.mxu0 %v2210
        %v3722 = vpop.f32.mrf.mxu0
        %v3723 = vadd.f32 0.0, %v3722
        %v3724 = vpop.f32.mrf.mxu0
        %3725 = vmatprep.mubr.f32.mxu0 0.0
        %3726 = vmatmul.mubr.f32.gmra.mxu0 %v2212
        %v3727 = vpop.f32.mrf.mxu0
        %v3728 = vadd.f32 0.0, %v3727
        %v3729 = vpop.f32.mrf.mxu0
        %3730 = vmatprep.mubr.f32.mxu0 0.0
        %3731 = vmatmul.mubr.f32.gmra.mxu0 %v2214
        %v3732 = vpop.f32.mrf.mxu0
        %v3733 = vadd.f32 0.0, %v3732
        %v3734 = vpop.f32.mrf.mxu0
        %3735 = vmatprep.mubr.f32.mxu0 0.0
        %3736 = vmatmul.mubr.f32.gmra.mxu0 %v2216
        %v3737 = vpop.f32.mrf.mxu0
        %v3738 = vadd.f32 0.0, %v3737
        %v3739 = vpop.f32.mrf.mxu0
        %3740 = vmatprep.mubr.f32.mxu0 0.0
        %3741 = vmatmul.mubr.f32.gmra.mxu0 %v2218
        %v3742 = vpop.f32.mrf.mxu0
        %v3743 = vadd.f32 0.0, %v3742
        %v3744 = vpop.f32.mrf.mxu0
        %3745 = vmatprep.mubr.f32.mxu0 0.0
        %3746 = vmatmul.mubr.f32.gmra.mxu0 %v2220
        %v3747 = vpop.f32.mrf.mxu0
        %v3748 = vadd.f32 0.0, %v3747
        %v3749 = vpop.f32.mrf.mxu0
        %3750 = vmatprep.mubr.f32.mxu0 0.0
        %3751 = vmatmul.mubr.f32.gmra.mxu0 %v2214
        %v3752 = vpop.f32.mrf.mxu0
        %v3753 = vadd.f32 0.0, %v3752
        %v3754 = vpop.f32.mrf.mxu0
        %3755 = vmatprep.mubr.f32.mxu0 0.0
        %3756 = vmatmul.mubr.f32.gmra.mxu0 %v2216
        %v3757 = vpop.f32.mrf.mxu0
        %v3758 = vadd.f32 0.0, %v3757
        %v3759 = vpop.f32.mrf.mxu0
        %3760 = vmatprep.mubr.f32.mxu0 0.0
        %3761 = vmatmul.mubr.f32.gmra.mxu0 %v2218
        %v3762 = vpop.f32.mrf.mxu0
        %v3763 = vadd.f32 0.0, %v3762
        %v3764 = vpop.f32.mrf.mxu0
        %3765 = vmatprep.mubr.f32.mxu0 0.0
        %3766 = vmatmul.mubr.f32.gmra.mxu0 %v2220
        %v3767 = vpop.f32.mrf.mxu0
        %v3768 = vadd.f32 0.0, %v3767
        %v3769 = vpop.f32.mrf.mxu0
        %3770 = vmatprep.mubr.f32.mxu0 0.0
        %3771 = vmatmul.mubr.f32.gmra.mxu0 %v2222
        %v3772 = vpop.f32.mrf.mxu0
        %v3773 = vadd.f32 0.0, %v3772
        %v3774 = vpop.f32.mrf.mxu0
        %3775 = vmatprep.mubr.f32.mxu0 0.0
        %3776 = vmatmul.mubr.f32.gmra.mxu0 %v2224
        %v3777 = vpop.f32.mrf.mxu0
        %v3778 = vadd.f32 0.0, %v3777
        %v3779 = vpop.f32.mrf.mxu0
        %3780 = vmatprep.mubr.f32.mxu0 0.0
        %3781 = vmatmul.mubr.f32.gmra.mxu0 %v2226
        %v3782 = vpop.f32.mrf.mxu0
        %v3783 = vadd.f32 0.0, %v3782
        %v3784 = vpop.f32.mrf.mxu0
        %3785 = vmatprep.mubr.f32.mxu0 0.0
        %3786 = vmatmul.mubr.f32.gmra.mxu0 %v2228
        %v3787 = vpop.f32.mrf.mxu0
        %v3788 = vadd.f32 0.0, %v3787
        %v3789 = vpop.f32.mrf.mxu0
        %3790 = vmatprep.mubr.f32.mxu0 0.0
        %3791 = vmatmul.mubr.f32.gmra.mxu0 %v2222
        %v3792 = vpop.f32.mrf.mxu0
        %v3793 = vadd.f32 0.0, %v3792
        %v3794 = vpop.f32.mrf.mxu0
        %3795 = vmatprep.mubr.f32.mxu0 0.0
        %3796 = vmatmul.mubr.f32.gmra.mxu0 %v2224
        %v3797 = vpop.f32.mrf.mxu0
        %v3798 = vadd.f32 0.0, %v3797
        %v3799 = vpop.f32.mrf.mxu0
        %3800 = vmatprep.mubr.f32.mxu0 0.0
        %3801 = vmatmul.mubr.f32.gmra.mxu0 %v2226
        %v3802 = vpop.f32.mrf.mxu0
        %v3803 = vadd.f32 0.0, %v3802
        %v3804 = vpop.f32.mrf.mxu0
        %3805 = vmatprep.mubr.f32.mxu0 0.0
        %3806 = vmatmul.mubr.f32.gmra.mxu0 %v2228
        %v3807 = vpop.f32.mrf.mxu0
        %v3808 = vadd.f32 0.0, %v3807
        %v3809 = vpop.f32.mrf.mxu0
        %3810 = vmatprep.mubr.f32.mxu0 0.0
        %3811 = vmatmul.mubr.f32.gmra.mxu0 %v3595
        %v3812 = vpop.f32.mrf.mxu0
        %v3813 = vadd.f32 0.0, %v3812
        %v3814 = vpop.f32.mrf.mxu0
        %3815 = vmatprep.mubr.f32.mxu0 0.0
        %3816 = vmatmul.mubr.f32.gmra.mxu0 %v3597
        %v3817 = vpop.f32.mrf.mxu0
        %v3818 = vadd.f32 0.0, %v3817
        %v3819 = vpop.f32.mrf.mxu0
        %3820 = vmatprep.mubr.f32.mxu0 0.0
        %3821 = vmatmul.mubr.f32.gmra.mxu0 %v3599
        %v3822 = vpop.f32.mrf.mxu0
        %v3823 = vadd.f32 0.0, %v3822
        %v3824 = vpop.f32.mrf.mxu0
        %3825 = vmatprep.mubr.f32.mxu0 0.0
        %3826 = vmatmul.mubr.f32.gmra.mxu0 %v3601
        %v3827 = vpop.f32.mrf.mxu0
        %v3828 = vadd.f32 0.0, %v3827
        %v3829 = vpop.f32.mrf.mxu0
        %3830 = vdwg.mxu0
        %v3831 = vadd.f32 %v3560, %v3673
        %v3832 = vadd.f32 %v3561, %v3678
        %v3833 = vadd.f32 %v3562, %v3683
        %v3834 = vadd.f32 %v3563, %v3688
        %v3835 = vadd.f32 %v3564, %v3693
        %v3836 = vadd.f32 %v3565, %v3698
        %v3837 = vadd.f32 %v3566, %v3703
        %v3838 = vadd.f32 %v3567, %v3708
        %v3839 = vadd.f32 %v3568, %v3713
        %v3840 = vadd.f32 %v3569, %v3718
        %v3841 = vadd.f32 %v3570, %v3723
        %v3842 = vadd.f32 %v3571, %v3728
        %v3843 = vadd.f32 %v3572, %v3733
        %v3844 = vadd.f32 %v3573, %v3738
        %v3845 = vadd.f32 %v3574, %v3743
        %v3846 = vadd.f32 %v3575, %v3748
        %v3847 = vadd.f32 %v3576, %v3753
        %v3848 = vadd.f32 %v3577, %v3758
        %v3849 = vadd.f32 %v3578, %v3763
        %v3850 = vadd.f32 %v3579, %v3768
        %v3851 = vadd.f32 %v3580, %v3773
        %v3852 = vadd.f32 %v3581, %v3778
        %v3853 = vadd.f32 %v3582, %v3783
        %v3854 = vadd.f32 %v3583, %v3788
        %v3855 = vadd.f32 %v3584, %v3793
        %v3856 = vadd.f32 %v3585, %v3798
        %v3857 = vadd.f32 %v3586, %v3803
        %v3858 = vadd.f32 %v3587, %v3808
        %v3859 = vadd.f32 %v3588, %v3813
        %v3860 = vadd.f32 %v3589, %v3818
        %v3861 = vadd.f32 %v3590, %v3823
        %v3862 = vadd.f32 %v3591, %v3828
        %v3864 = vrot.slane %v1854, 1
        %v3865 = vrot.slane %v1832, 1
        %v3866 = vsel %vm1872, %v3864, %v3865
        %v3867 = vrot.slane %v1834, 1
        %v3868 = vsel %vm1872, %v3865, %v3867
        %v3869 = vrot.slane %v1836, 1
        %v3870 = vsel %vm1872, %v3867, %v3869
        %v3871 = vrot.slane %v1860, 1
        %v3872 = vsel %vm1872, %v3869, %v3871
        %s3873 = scalar_lea.vmem %s3, 28
        %v3874 = vld [vmem:[%s3873] sm:$0xf]
        %v3875 = vsel %vm1920, %v3866, 0
        %v3877 = vsel %vm1920, %v3868, 0
        %v3879 = vsel %vm1920, %v3870, 0
        %v3881 = vsel %vm1920, %v3872, 0
        %v3884 = vsel %vm1961, %v3874, 0
        %3886 = vmatprep.subr.mxu0 0.0
        %3887 = vmatpush1.msra.mxu0 0.0
        %3888 = vmatprep.subr.mxu0 0.0
        %3889 = vmatpush1.msra.mxu0 0.0
        %3890 = vmatprep.subr.mxu0 0.0
        %3891 = vmatpush1.msra.mxu0 0.0
        %3892 = vmatprep.subr.mxu0 0.0
        %3893 = vmatpush1.msra.mxu0 0.0
        %3894 = vmatprep.subr.mxu0 0.0
        %3895 = vmatpush1.msra.mxu0 0.0
        %3896 = vmatprep.subr.mxu0 0.0
        %3897 = vmatpush1.msra.mxu0 0.0
        %3898 = vmatprep.subr.mxu0 0.0
        %3899 = vmatpush1.msra.mxu0 0.0
        %3900 = vmatprep.subr.mxu0 0.0
        %3901 = vmatpush1.msra.mxu0 0.0
        %3902 = vmatprep.subr.mxu0 0.0
        %3903 = vmatpush1.msra.mxu0 0.0
        %3904 = vmatprep.subr.mxu0 0.0
        %3905 = vmatpush1.msra.mxu0 0.0
        %3906 = vmatprep.subr.mxu0 0.0
        %3907 = vmatpush1.msra.mxu0 0.0
        %3908 = vmatprep.subr.mxu0 0.0
        %3909 = vmatpush1.msra.mxu0 0.0
        %3910 = vmatprep.subr.mxu0 0.0
        %3911 = vmatpush1.msra.mxu0 0.0
        %3912 = vmatprep.subr.mxu0 0.0
        %3913 = vmatpush1.msra.mxu0 0.0
        %3914 = vmatprep.subr.mxu0 0.0
        %3915 = vmatpush1.msra.mxu0 0.0
        %3916 = vmatprep.subr.mxu0 0.0
        %3917 = vmatpush1.msra.mxu0 %v3884
        %3918 = vmatprep.subr.mxu0 0.0
        %3919 = vmatpush2.msra.mxu0 0.0
        %3920 = vmatprep.subr.mxu0 0.0
        %3921 = vmatpush2.msra.mxu0 0.0
        %3922 = vmatprep.subr.mxu0 0.0
        %3923 = vmatpush2.msra.mxu0 0.0
        %3924 = vmatprep.subr.mxu0 0.0
        %3925 = vmatpush2.msra.mxu0 0.0
        %3926 = vmatprep.subr.mxu0 0.0
        %3927 = vmatpush2.msra.mxu0 0.0
        %3928 = vmatprep.subr.mxu0 0.0
        %3929 = vmatpush2.msra.mxu0 0.0
        %3930 = vmatprep.subr.mxu0 0.0
        %3931 = vmatpush2.msra.mxu0 0.0
        %3932 = vmatprep.subr.mxu0 0.0
        %3933 = vmatpush2.msra.mxu0 0.0
        %3934 = vmatprep.subr.mxu0 0.0
        %3935 = vmatpush2.msra.mxu0 0.0
        %3936 = vmatprep.subr.mxu0 0.0
        %3937 = vmatpush2.msra.mxu0 0.0
        %3938 = vmatprep.subr.mxu0 0.0
        %3939 = vmatpush2.msra.mxu0 0.0
        %3940 = vmatprep.subr.mxu0 0.0
        %3941 = vmatpush2.msra.mxu0 0.0
        %3942 = vmatprep.subr.mxu0 0.0
        %3943 = vmatpush2.msra.mxu0 0.0
        %3944 = vmatprep.subr.mxu0 0.0
        %3945 = vmatpush2.msra.mxu0 0.0
        %3946 = vmatprep.subr.mxu0 0.0
        %3947 = vmatpush2.msra.mxu0 0.0
        %3948 = vmatprep.subr.mxu0 0.0
        %3949 = vmatpush2.msra.mxu0 0.0
        %3950 = vmatprep.mubr.f32.mxu0 0.0
        %3951 = vmatmul.mubr.f32.gmra.mxu0 %v1929
        %v3952 = vpop.f32.mrf.mxu0
        %v3953 = vadd.f32 0.0, %v3952
        %v3954 = vpop.f32.mrf.mxu0
        %3955 = vmatprep.mubr.f32.mxu0 0.0
        %3956 = vmatmul.mubr.f32.gmra.mxu0 %v1931
        %v3957 = vpop.f32.mrf.mxu0
        %v3958 = vadd.f32 0.0, %v3957
        %v3959 = vpop.f32.mrf.mxu0
        %3960 = vmatprep.mubr.f32.mxu0 0.0
        %3961 = vmatmul.mubr.f32.gmra.mxu0 %v1933
        %v3962 = vpop.f32.mrf.mxu0
        %v3963 = vadd.f32 0.0, %v3962
        %v3964 = vpop.f32.mrf.mxu0
        %3965 = vmatprep.mubr.f32.mxu0 0.0
        %3966 = vmatmul.mubr.f32.gmra.mxu0 %v1935
        %v3967 = vpop.f32.mrf.mxu0
        %v3968 = vadd.f32 0.0, %v3967
        %v3969 = vpop.f32.mrf.mxu0
        %3970 = vmatprep.mubr.f32.mxu0 0.0
        %3971 = vmatmul.mubr.f32.gmra.mxu0 %v1937
        %v3972 = vpop.f32.mrf.mxu0
        %v3973 = vadd.f32 0.0, %v3972
        %v3974 = vpop.f32.mrf.mxu0
        %3975 = vmatprep.mubr.f32.mxu0 0.0
        %3976 = vmatmul.mubr.f32.gmra.mxu0 %v1939
        %v3977 = vpop.f32.mrf.mxu0
        %v3978 = vadd.f32 0.0, %v3977
        %v3979 = vpop.f32.mrf.mxu0
        %3980 = vmatprep.mubr.f32.mxu0 0.0
        %3981 = vmatmul.mubr.f32.gmra.mxu0 %v1941
        %v3982 = vpop.f32.mrf.mxu0
        %v3983 = vadd.f32 0.0, %v3982
        %v3984 = vpop.f32.mrf.mxu0
        %3985 = vmatprep.mubr.f32.mxu0 0.0
        %3986 = vmatmul.mubr.f32.gmra.mxu0 %v1943
        %v3987 = vpop.f32.mrf.mxu0
        %v3988 = vadd.f32 0.0, %v3987
        %v3989 = vpop.f32.mrf.mxu0
        %3990 = vmatprep.mubr.f32.mxu0 0.0
        %3991 = vmatmul.mubr.f32.gmra.mxu0 %v1937
        %v3992 = vpop.f32.mrf.mxu0
        %v3993 = vadd.f32 0.0, %v3992
        %v3994 = vpop.f32.mrf.mxu0
        %3995 = vmatprep.mubr.f32.mxu0 0.0
        %3996 = vmatmul.mubr.f32.gmra.mxu0 %v1939
        %v3997 = vpop.f32.mrf.mxu0
        %v3998 = vadd.f32 0.0, %v3997
        %v3999 = vpop.f32.mrf.mxu0
        %4000 = vmatprep.mubr.f32.mxu0 0.0
        %4001 = vmatmul.mubr.f32.gmra.mxu0 %v1941
        %v4002 = vpop.f32.mrf.mxu0
        %v4003 = vadd.f32 0.0, %v4002
        %v4004 = vpop.f32.mrf.mxu0
        %4005 = vmatprep.mubr.f32.mxu0 0.0
        %4006 = vmatmul.mubr.f32.gmra.mxu0 %v1943
        %v4007 = vpop.f32.mrf.mxu0
        %v4008 = vadd.f32 0.0, %v4007
        %v4009 = vpop.f32.mrf.mxu0
        %4010 = vmatprep.mubr.f32.mxu0 0.0
        %4011 = vmatmul.mubr.f32.gmra.mxu0 %v1945
        %v4012 = vpop.f32.mrf.mxu0
        %v4013 = vadd.f32 0.0, %v4012
        %v4014 = vpop.f32.mrf.mxu0
        %4015 = vmatprep.mubr.f32.mxu0 0.0
        %4016 = vmatmul.mubr.f32.gmra.mxu0 %v1947
        %v4017 = vpop.f32.mrf.mxu0
        %v4018 = vadd.f32 0.0, %v4017
        %v4019 = vpop.f32.mrf.mxu0
        %4020 = vmatprep.mubr.f32.mxu0 0.0
        %4021 = vmatmul.mubr.f32.gmra.mxu0 %v1949
        %v4022 = vpop.f32.mrf.mxu0
        %v4023 = vadd.f32 0.0, %v4022
        %v4024 = vpop.f32.mrf.mxu0
        %4025 = vmatprep.mubr.f32.mxu0 0.0
        %4026 = vmatmul.mubr.f32.gmra.mxu0 %v1951
        %v4027 = vpop.f32.mrf.mxu0
        %v4028 = vadd.f32 0.0, %v4027
        %v4029 = vpop.f32.mrf.mxu0
        %4030 = vmatprep.mubr.f32.mxu0 0.0
        %4031 = vmatmul.mubr.f32.gmra.mxu0 %v1945
        %v4032 = vpop.f32.mrf.mxu0
        %v4033 = vadd.f32 0.0, %v4032
        %v4034 = vpop.f32.mrf.mxu0
        %4035 = vmatprep.mubr.f32.mxu0 0.0
        %4036 = vmatmul.mubr.f32.gmra.mxu0 %v1947
        %v4037 = vpop.f32.mrf.mxu0
        %v4038 = vadd.f32 0.0, %v4037
        %v4039 = vpop.f32.mrf.mxu0
        %4040 = vmatprep.mubr.f32.mxu0 0.0
        %4041 = vmatmul.mubr.f32.gmra.mxu0 %v1949
        %v4042 = vpop.f32.mrf.mxu0
        %v4043 = vadd.f32 0.0, %v4042
        %v4044 = vpop.f32.mrf.mxu0
        %4045 = vmatprep.mubr.f32.mxu0 0.0
        %4046 = vmatmul.mubr.f32.gmra.mxu0 %v1951
        %v4047 = vpop.f32.mrf.mxu0
        %v4048 = vadd.f32 0.0, %v4047
        %v4049 = vpop.f32.mrf.mxu0
        %4050 = vmatprep.mubr.f32.mxu0 0.0
        %4051 = vmatmul.mubr.f32.gmra.mxu0 %v1953
        %v4052 = vpop.f32.mrf.mxu0
        %v4053 = vadd.f32 0.0, %v4052
        %v4054 = vpop.f32.mrf.mxu0
        %4055 = vmatprep.mubr.f32.mxu0 0.0
        %4056 = vmatmul.mubr.f32.gmra.mxu0 %v1955
        %v4057 = vpop.f32.mrf.mxu0
        %v4058 = vadd.f32 0.0, %v4057
        %v4059 = vpop.f32.mrf.mxu0
        %4060 = vmatprep.mubr.f32.mxu0 0.0
        %4061 = vmatmul.mubr.f32.gmra.mxu0 %v1957
        %v4062 = vpop.f32.mrf.mxu0
        %v4063 = vadd.f32 0.0, %v4062
        %v4064 = vpop.f32.mrf.mxu0
        %4065 = vmatprep.mubr.f32.mxu0 0.0
        %4066 = vmatmul.mubr.f32.gmra.mxu0 %v1959
        %v4067 = vpop.f32.mrf.mxu0
        %v4068 = vadd.f32 0.0, %v4067
        %v4069 = vpop.f32.mrf.mxu0
        %4070 = vmatprep.mubr.f32.mxu0 0.0
        %4071 = vmatmul.mubr.f32.gmra.mxu0 %v1953
        %v4072 = vpop.f32.mrf.mxu0
        %v4073 = vadd.f32 0.0, %v4072
        %v4074 = vpop.f32.mrf.mxu0
        %4075 = vmatprep.mubr.f32.mxu0 0.0
        %4076 = vmatmul.mubr.f32.gmra.mxu0 %v1955
        %v4077 = vpop.f32.mrf.mxu0
        %v4078 = vadd.f32 0.0, %v4077
        %v4079 = vpop.f32.mrf.mxu0
        %4080 = vmatprep.mubr.f32.mxu0 0.0
        %4081 = vmatmul.mubr.f32.gmra.mxu0 %v1957
        %v4082 = vpop.f32.mrf.mxu0
        %v4083 = vadd.f32 0.0, %v4082
        %v4084 = vpop.f32.mrf.mxu0
        %4085 = vmatprep.mubr.f32.mxu0 0.0
        %4086 = vmatmul.mubr.f32.gmra.mxu0 %v1959
        %v4087 = vpop.f32.mrf.mxu0
        %v4088 = vadd.f32 0.0, %v4087
        %v4089 = vpop.f32.mrf.mxu0
        %4090 = vmatprep.mubr.f32.mxu0 0.0
        %4091 = vmatmul.mubr.f32.gmra.mxu0 %v3875
        %v4092 = vpop.f32.mrf.mxu0
        %v4093 = vadd.f32 0.0, %v4092
        %v4094 = vpop.f32.mrf.mxu0
        %4095 = vmatprep.mubr.f32.mxu0 0.0
        %4096 = vmatmul.mubr.f32.gmra.mxu0 %v3877
        %v4097 = vpop.f32.mrf.mxu0
        %v4098 = vadd.f32 0.0, %v4097
        %v4099 = vpop.f32.mrf.mxu0
        %4100 = vmatprep.mubr.f32.mxu0 0.0
        %4101 = vmatmul.mubr.f32.gmra.mxu0 %v3879
        %v4102 = vpop.f32.mrf.mxu0
        %v4103 = vadd.f32 0.0, %v4102
        %v4104 = vpop.f32.mrf.mxu0
        %4105 = vmatprep.mubr.f32.mxu0 0.0
        %4106 = vmatmul.mubr.f32.gmra.mxu0 %v3881
        %v4107 = vpop.f32.mrf.mxu0
        %v4108 = vadd.f32 0.0, %v4107
        %v4109 = vpop.f32.mrf.mxu0
        %4110 = vdwg.mxu0
        %v4111 = vadd.f32 %v3831, %v3953
        %v4112 = vadd.f32 %v3832, %v3958
        %v4113 = vadd.f32 %v3833, %v3963
        %v4114 = vadd.f32 %v3834, %v3968
        %v4115 = vadd.f32 %v3835, %v3973
        %v4116 = vadd.f32 %v3836, %v3978
        %v4117 = vadd.f32 %v3837, %v3983
        %v4118 = vadd.f32 %v3838, %v3988
        %v4119 = vadd.f32 %v3839, %v3993
        %v4120 = vadd.f32 %v3840, %v3998
        %v4121 = vadd.f32 %v3841, %v4003
        %v4122 = vadd.f32 %v3842, %v4008
        %v4123 = vadd.f32 %v3843, %v4013
        %v4124 = vadd.f32 %v3844, %v4018
        %v4125 = vadd.f32 %v3845, %v4023
        %v4126 = vadd.f32 %v3846, %v4028
        %v4127 = vadd.f32 %v3847, %v4033
        %v4128 = vadd.f32 %v3848, %v4038
        %v4129 = vadd.f32 %v3849, %v4043
        %v4130 = vadd.f32 %v3850, %v4048
        %v4131 = vadd.f32 %v3851, %v4053
        %v4132 = vadd.f32 %v3852, %v4058
        %v4133 = vadd.f32 %v3853, %v4063
        %v4134 = vadd.f32 %v3854, %v4068
        %v4135 = vadd.f32 %v3855, %v4073
        %v4136 = vadd.f32 %v3856, %v4078
        %v4137 = vadd.f32 %v3857, %v4083
        %v4138 = vadd.f32 %v3858, %v4088
        %v4139 = vadd.f32 %v3859, %v4093
        %v4140 = vadd.f32 %v3860, %v4098
        %v4141 = vadd.f32 %v3861, %v4103
        %v4142 = vadd.f32 %v3862, %v4108
        %v4143 = vrot.slane %v1854, 2
        %v4144 = vrot.slane %v1832, 2
        %v4145 = vsel %vm2458, %v4143, %v4144
        %v4146 = vrot.slane %v1834, 2
        %v4147 = vsel %vm2458, %v4144, %v4146
        %v4148 = vrot.slane %v1836, 2
        %v4149 = vsel %vm2458, %v4146, %v4148
        %v4150 = vrot.slane %v1860, 2
        %v4151 = vsel %vm2458, %v4148, %v4150
        %s4152 = scalar_lea.vmem %s3, 32
        %v4153 = vld [vmem:[%s4152] sm:$0xf]
        %v4154 = vsel %vm1920, %v4145, 0
        %v4156 = vsel %vm1920, %v4147, 0
        %v4158 = vsel %vm1920, %v4149, 0
        %v4160 = vsel %vm1920, %v4151, 0
        %v4163 = vsel %vm1961, %v4153, 0
        %4165 = vmatprep.subr.mxu0 0.0
        %4166 = vmatpush1.msra.mxu0 0.0
        %4167 = vmatprep.subr.mxu0 0.0
        %4168 = vmatpush1.msra.mxu0 0.0
        %4169 = vmatprep.subr.mxu0 0.0
        %4170 = vmatpush1.msra.mxu0 0.0
        %4171 = vmatprep.subr.mxu0 0.0
        %4172 = vmatpush1.msra.mxu0 0.0
        %4173 = vmatprep.subr.mxu0 0.0
        %4174 = vmatpush1.msra.mxu0 0.0
        %4175 = vmatprep.subr.mxu0 0.0
        %4176 = vmatpush1.msra.mxu0 0.0
        %4177 = vmatprep.subr.mxu0 0.0
        %4178 = vmatpush1.msra.mxu0 0.0
        %4179 = vmatprep.subr.mxu0 0.0
        %4180 = vmatpush1.msra.mxu0 0.0
        %4181 = vmatprep.subr.mxu0 0.0
        %4182 = vmatpush1.msra.mxu0 0.0
        %4183 = vmatprep.subr.mxu0 0.0
        %4184 = vmatpush1.msra.mxu0 0.0
        %4185 = vmatprep.subr.mxu0 0.0
        %4186 = vmatpush1.msra.mxu0 0.0
        %4187 = vmatprep.subr.mxu0 0.0
        %4188 = vmatpush1.msra.mxu0 0.0
        %4189 = vmatprep.subr.mxu0 0.0
        %4190 = vmatpush1.msra.mxu0 0.0
        %4191 = vmatprep.subr.mxu0 0.0
        %4192 = vmatpush1.msra.mxu0 0.0
        %4193 = vmatprep.subr.mxu0 0.0
        %4194 = vmatpush1.msra.mxu0 0.0
        %4195 = vmatprep.subr.mxu0 0.0
        %4196 = vmatpush1.msra.mxu0 %v4163
        %4197 = vmatprep.subr.mxu0 0.0
        %4198 = vmatpush2.msra.mxu0 0.0
        %4199 = vmatprep.subr.mxu0 0.0
        %4200 = vmatpush2.msra.mxu0 0.0
        %4201 = vmatprep.subr.mxu0 0.0
        %4202 = vmatpush2.msra.mxu0 0.0
        %4203 = vmatprep.subr.mxu0 0.0
        %4204 = vmatpush2.msra.mxu0 0.0
        %4205 = vmatprep.subr.mxu0 0.0
        %4206 = vmatpush2.msra.mxu0 0.0
        %4207 = vmatprep.subr.mxu0 0.0
        %4208 = vmatpush2.msra.mxu0 0.0
        %4209 = vmatprep.subr.mxu0 0.0
        %4210 = vmatpush2.msra.mxu0 0.0
        %4211 = vmatprep.subr.mxu0 0.0
        %4212 = vmatpush2.msra.mxu0 0.0
        %4213 = vmatprep.subr.mxu0 0.0
        %4214 = vmatpush2.msra.mxu0 0.0
        %4215 = vmatprep.subr.mxu0 0.0
        %4216 = vmatpush2.msra.mxu0 0.0
        %4217 = vmatprep.subr.mxu0 0.0
        %4218 = vmatpush2.msra.mxu0 0.0
        %4219 = vmatprep.subr.mxu0 0.0
        %4220 = vmatpush2.msra.mxu0 0.0
        %4221 = vmatprep.subr.mxu0 0.0
        %4222 = vmatpush2.msra.mxu0 0.0
        %4223 = vmatprep.subr.mxu0 0.0
        %4224 = vmatpush2.msra.mxu0 0.0
        %4225 = vmatprep.subr.mxu0 0.0
        %4226 = vmatpush2.msra.mxu0 0.0
        %4227 = vmatprep.subr.mxu0 0.0
        %4228 = vmatpush2.msra.mxu0 0.0
        %4229 = vmatprep.mubr.f32.mxu0 0.0
        %4230 = vmatmul.mubr.f32.gmra.mxu0 %v2514
        %v4231 = vpop.f32.mrf.mxu0
        %v4232 = vadd.f32 0.0, %v4231
        %v4233 = vpop.f32.mrf.mxu0
        %4234 = vmatprep.mubr.f32.mxu0 0.0
        %4235 = vmatmul.mubr.f32.gmra.mxu0 %v2516
        %v4236 = vpop.f32.mrf.mxu0
        %v4237 = vadd.f32 0.0, %v4236
        %v4238 = vpop.f32.mrf.mxu0
        %4239 = vmatprep.mubr.f32.mxu0 0.0
        %4240 = vmatmul.mubr.f32.gmra.mxu0 %v2518
        %v4241 = vpop.f32.mrf.mxu0
        %v4242 = vadd.f32 0.0, %v4241
        %v4243 = vpop.f32.mrf.mxu0
        %4244 = vmatprep.mubr.f32.mxu0 0.0
        %4245 = vmatmul.mubr.f32.gmra.mxu0 %v2520
        %v4246 = vpop.f32.mrf.mxu0
        %v4247 = vadd.f32 0.0, %v4246
        %v4248 = vpop.f32.mrf.mxu0
        %4249 = vmatprep.mubr.f32.mxu0 0.0
        %4250 = vmatmul.mubr.f32.gmra.mxu0 %v2522
        %v4251 = vpop.f32.mrf.mxu0
        %v4252 = vadd.f32 0.0, %v4251
        %v4253 = vpop.f32.mrf.mxu0
        %4254 = vmatprep.mubr.f32.mxu0 0.0
        %4255 = vmatmul.mubr.f32.gmra.mxu0 %v2524
        %v4256 = vpop.f32.mrf.mxu0
        %v4257 = vadd.f32 0.0, %v4256
        %v4258 = vpop.f32.mrf.mxu0
        %4259 = vmatprep.mubr.f32.mxu0 0.0
        %4260 = vmatmul.mubr.f32.gmra.mxu0 %v2526
        %v4261 = vpop.f32.mrf.mxu0
        %v4262 = vadd.f32 0.0, %v4261
        %v4263 = vpop.f32.mrf.mxu0
        %4264 = vmatprep.mubr.f32.mxu0 0.0
        %4265 = vmatmul.mubr.f32.gmra.mxu0 %v2528
        %v4266 = vpop.f32.mrf.mxu0
        %v4267 = vadd.f32 0.0, %v4266
        %v4268 = vpop.f32.mrf.mxu0
        %4269 = vmatprep.mubr.f32.mxu0 0.0
        %4270 = vmatmul.mubr.f32.gmra.mxu0 %v2522
        %v4271 = vpop.f32.mrf.mxu0
        %v4272 = vadd.f32 0.0, %v4271
        %v4273 = vpop.f32.mrf.mxu0
        %4274 = vmatprep.mubr.f32.mxu0 0.0
        %4275 = vmatmul.mubr.f32.gmra.mxu0 %v2524
        %v4276 = vpop.f32.mrf.mxu0
        %v4277 = vadd.f32 0.0, %v4276
        %v4278 = vpop.f32.mrf.mxu0
        %4279 = vmatprep.mubr.f32.mxu0 0.0
        %4280 = vmatmul.mubr.f32.gmra.mxu0 %v2526
        %v4281 = vpop.f32.mrf.mxu0
        %v4282 = vadd.f32 0.0, %v4281
        %v4283 = vpop.f32.mrf.mxu0
        %4284 = vmatprep.mubr.f32.mxu0 0.0
        %4285 = vmatmul.mubr.f32.gmra.mxu0 %v2528
        %v4286 = vpop.f32.mrf.mxu0
        %v4287 = vadd.f32 0.0, %v4286
        %v4288 = vpop.f32.mrf.mxu0
        %4289 = vmatprep.mubr.f32.mxu0 0.0
        %4290 = vmatmul.mubr.f32.gmra.mxu0 %v2530
        %v4291 = vpop.f32.mrf.mxu0
        %v4292 = vadd.f32 0.0, %v4291
        %v4293 = vpop.f32.mrf.mxu0
        %4294 = vmatprep.mubr.f32.mxu0 0.0
        %4295 = vmatmul.mubr.f32.gmra.mxu0 %v2532
        %v4296 = vpop.f32.mrf.mxu0
        %v4297 = vadd.f32 0.0, %v4296
        %v4298 = vpop.f32.mrf.mxu0
        %4299 = vmatprep.mubr.f32.mxu0 0.0
        %4300 = vmatmul.mubr.f32.gmra.mxu0 %v2534
        %v4301 = vpop.f32.mrf.mxu0
        %v4302 = vadd.f32 0.0, %v4301
        %v4303 = vpop.f32.mrf.mxu0
        %4304 = vmatprep.mubr.f32.mxu0 0.0
        %4305 = vmatmul.mubr.f32.gmra.mxu0 %v2536
        %v4306 = vpop.f32.mrf.mxu0
        %v4307 = vadd.f32 0.0, %v4306
        %v4308 = vpop.f32.mrf.mxu0
        %4309 = vmatprep.mubr.f32.mxu0 0.0
        %4310 = vmatmul.mubr.f32.gmra.mxu0 %v2530
        %v4311 = vpop.f32.mrf.mxu0
        %v4312 = vadd.f32 0.0, %v4311
        %v4313 = vpop.f32.mrf.mxu0
        %4314 = vmatprep.mubr.f32.mxu0 0.0
        %4315 = vmatmul.mubr.f32.gmra.mxu0 %v2532
        %v4316 = vpop.f32.mrf.mxu0
        %v4317 = vadd.f32 0.0, %v4316
        %v4318 = vpop.f32.mrf.mxu0
        %4319 = vmatprep.mubr.f32.mxu0 0.0
        %4320 = vmatmul.mubr.f32.gmra.mxu0 %v2534
        %v4321 = vpop.f32.mrf.mxu0
        %v4322 = vadd.f32 0.0, %v4321
        %v4323 = vpop.f32.mrf.mxu0
        %4324 = vmatprep.mubr.f32.mxu0 0.0
        %4325 = vmatmul.mubr.f32.gmra.mxu0 %v2536
        %v4326 = vpop.f32.mrf.mxu0
        %v4327 = vadd.f32 0.0, %v4326
        %v4328 = vpop.f32.mrf.mxu0
        %4329 = vmatprep.mubr.f32.mxu0 0.0
        %4330 = vmatmul.mubr.f32.gmra.mxu0 %v2538
        %v4331 = vpop.f32.mrf.mxu0
        %v4332 = vadd.f32 0.0, %v4331
        %v4333 = vpop.f32.mrf.mxu0
        %4334 = vmatprep.mubr.f32.mxu0 0.0
        %4335 = vmatmul.mubr.f32.gmra.mxu0 %v2540
        %v4336 = vpop.f32.mrf.mxu0
        %v4337 = vadd.f32 0.0, %v4336
        %v4338 = vpop.f32.mrf.mxu0
        %4339 = vmatprep.mubr.f32.mxu0 0.0
        %4340 = vmatmul.mubr.f32.gmra.mxu0 %v2542
        %v4341 = vpop.f32.mrf.mxu0
        %v4342 = vadd.f32 0.0, %v4341
        %v4343 = vpop.f32.mrf.mxu0
        %4344 = vmatprep.mubr.f32.mxu0 0.0
        %4345 = vmatmul.mubr.f32.gmra.mxu0 %v2544
        %v4346 = vpop.f32.mrf.mxu0
        %v4347 = vadd.f32 0.0, %v4346
        %v4348 = vpop.f32.mrf.mxu0
        %4349 = vmatprep.mubr.f32.mxu0 0.0
        %4350 = vmatmul.mubr.f32.gmra.mxu0 %v2538
        %v4351 = vpop.f32.mrf.mxu0
        %v4352 = vadd.f32 0.0, %v4351
        %v4353 = vpop.f32.mrf.mxu0
        %4354 = vmatprep.mubr.f32.mxu0 0.0
        %4355 = vmatmul.mubr.f32.gmra.mxu0 %v2540
        %v4356 = vpop.f32.mrf.mxu0
        %v4357 = vadd.f32 0.0, %v4356
        %v4358 = vpop.f32.mrf.mxu0
        %4359 = vmatprep.mubr.f32.mxu0 0.0
        %4360 = vmatmul.mubr.f32.gmra.mxu0 %v2542
        %v4361 = vpop.f32.mrf.mxu0
        %v4362 = vadd.f32 0.0, %v4361
        %v4363 = vpop.f32.mrf.mxu0
        %4364 = vmatprep.mubr.f32.mxu0 0.0
        %4365 = vmatmul.mubr.f32.gmra.mxu0 %v2544
        %v4366 = vpop.f32.mrf.mxu0
        %v4367 = vadd.f32 0.0, %v4366
        %v4368 = vpop.f32.mrf.mxu0
        %4369 = vmatprep.mubr.f32.mxu0 0.0
        %4370 = vmatmul.mubr.f32.gmra.mxu0 %v4154
        %v4371 = vpop.f32.mrf.mxu0
        %v4372 = vadd.f32 0.0, %v4371
        %v4373 = vpop.f32.mrf.mxu0
        %4374 = vmatprep.mubr.f32.mxu0 0.0
        %4375 = vmatmul.mubr.f32.gmra.mxu0 %v4156
        %v4376 = vpop.f32.mrf.mxu0
        %v4377 = vadd.f32 0.0, %v4376
        %v4378 = vpop.f32.mrf.mxu0
        %4379 = vmatprep.mubr.f32.mxu0 0.0
        %4380 = vmatmul.mubr.f32.gmra.mxu0 %v4158
        %v4381 = vpop.f32.mrf.mxu0
        %v4382 = vadd.f32 0.0, %v4381
        %v4383 = vpop.f32.mrf.mxu0
        %4384 = vmatprep.mubr.f32.mxu0 0.0
        %4385 = vmatmul.mubr.f32.gmra.mxu0 %v4160
        %v4386 = vpop.f32.mrf.mxu0
        %v4387 = vadd.f32 0.0, %v4386
        %v4388 = vpop.f32.mrf.mxu0
        %4389 = vdwg.mxu0
        %v4390 = vadd.f32 %v4111, %v4232
        %v4391 = vadd.f32 %v4112, %v4237
        %v4392 = vadd.f32 %v4113, %v4242
        %v4393 = vadd.f32 %v4114, %v4247
        %v4394 = vadd.f32 %v4115, %v4252
        %v4395 = vadd.f32 %v4116, %v4257
        %v4396 = vadd.f32 %v4117, %v4262
        %v4397 = vadd.f32 %v4118, %v4267
        %v4398 = vadd.f32 %v4119, %v4272
        %v4399 = vadd.f32 %v4120, %v4277
        %v4400 = vadd.f32 %v4121, %v4282
        %v4401 = vadd.f32 %v4122, %v4287
        %v4402 = vadd.f32 %v4123, %v4292
        %v4403 = vadd.f32 %v4124, %v4297
        %v4404 = vadd.f32 %v4125, %v4302
        %v4405 = vadd.f32 %v4126, %v4307
        %v4406 = vadd.f32 %v4127, %v4312
        %v4407 = vadd.f32 %v4128, %v4317
        %v4408 = vadd.f32 %v4129, %v4322
        %v4409 = vadd.f32 %v4130, %v4327
        %v4410 = vadd.f32 %v4131, %v4332
        %v4411 = vadd.f32 %v4132, %v4337
        %v4412 = vadd.f32 %v4133, %v4342
        %v4413 = vadd.f32 %v4134, %v4347
        %v4414 = vadd.f32 %v4135, %v4352
        %v4415 = vadd.f32 %v4136, %v4357
        %v4416 = vadd.f32 %v4137, %v4362
        %v4417 = vadd.f32 %v4138, %v4367
        %v4418 = vadd.f32 %v4139, %v4372
        %v4419 = vadd.f32 %v4140, %v4377
        %v4420 = vadd.f32 %v4141, %v4382
        %v4421 = vadd.f32 %v4142, %v4387
        %vm4422 = vcmask 64512
        %4423 = vst.msk [vmem:[%s328] sm:$0xff] %vm4422, %v4390
        %4424 = vst.msk [vmem:[%s328 + $0x8] sm:$0xff] %vm4422, %v4391
        %4425 = vst.msk [vmem:[%s328 + $0x10] sm:$0xff] %vm4422, %v4392
        %4426 = vst.msk [vmem:[%s328 + $0x18] sm:$0xff] %vm4422, %v4393
        %4427 = vst.msk [vmem:[%s328 + $0x20] sm:$0xff] %vm4422, %v4394
        %4428 = vst.msk [vmem:[%s328 + $0x28] sm:$0xff] %vm4422, %v4395
        %4429 = vst.msk [vmem:[%s328 + $0x30] sm:$0xff] %vm4422, %v4396
        %4430 = vst.msk [vmem:[%s328 + $0x38] sm:$0xff] %vm4422, %v4397
        %4431 = vst.msk [vmem:[%s328 + $0x40] sm:$0xff] %vm4422, %v4398
        %4432 = vst.msk [vmem:[%s328 + $0x48] sm:$0xff] %vm4422, %v4399
        %4433 = vst.msk [vmem:[%s328 + $0x50] sm:$0xff] %vm4422, %v4400
        %4434 = vst.msk [vmem:[%s328 + $0x58] sm:$0xff] %vm4422, %v4401
        %4435 = vst.msk [vmem:[%s328 + $0x60] sm:$0xff] %vm4422, %v4402
        %4436 = vst.msk [vmem:[%s328 + $0x68] sm:$0xff] %vm4422, %v4403
        %4437 = vst.msk [vmem:[%s328 + $0x70] sm:$0xff] %vm4422, %v4404
        %4438 = vst.msk [vmem:[%s328 + $0x78] sm:$0xff] %vm4422, %v4405
        %4439 = vst.msk [vmem:[%s328 + $0x80] sm:$0xff] %vm4422, %v4406
        %4440 = vst.msk [vmem:[%s328 + $0x88] sm:$0xff] %vm4422, %v4407
        %4441 = vst.msk [vmem:[%s328 + $0x90] sm:$0xff] %vm4422, %v4408
        %4442 = vst.msk [vmem:[%s328 + $0x98] sm:$0xff] %vm4422, %v4409
        %4443 = vst.msk [vmem:[%s328 + $0xa0] sm:$0xff] %vm4422, %v4410
        %4444 = vst.msk [vmem:[%s328 + $0xa8] sm:$0xff] %vm4422, %v4411
        %4445 = vst.msk [vmem:[%s328 + $0xb0] sm:$0xff] %vm4422, %v4412
        %4446 = vst.msk [vmem:[%s328 + $0xb8] sm:$0xff] %vm4422, %v4413
        %4447 = vst.msk [vmem:[%s328 + $0xc0] sm:$0xff] %vm4422, %v4414
        %4448 = vst.msk [vmem:[%s328 + $0xc8] sm:$0xff] %vm4422, %v4415
        %4449 = vst.msk [vmem:[%s328 + $0xd0] sm:$0xff] %vm4422, %v4416
        %4450 = vst.msk [vmem:[%s328 + $0xd8] sm:$0xff] %vm4422, %v4417
        %4451 = vst.msk [vmem:[%s328 + $0xe0] sm:$0xff] %vm4422, %v4418
        %4452 = vst.msk [vmem:[%s328 + $0xe8] sm:$0xff] %vm4422, %v4419
        %4453 = vst.msk [vmem:[%s328 + $0xf0] sm:$0xff] %vm4422, %v4420
        %4454 = vst.msk [vmem:[%s328 + $0xf8] sm:$0xff] %vm4422, %v4421
        %v4455 = vsel %vm4422, %v4390, 0.0
        %v4456 = vsel %vm4422, %v4391, 0.0
        %v4457 = vadd.f32 %v4455, %v4456
        %v4458 = vsel %vm4422, %v4392, 0.0
        %v4459 = vadd.f32 %v4457, %v4458
        %v4460 = vsel %vm4422, %v4393, 0.0
        %v4461 = vadd.f32 %v4459, %v4460
        %v4462 = vsel %vm4422, %v4394, 0.0
        %v4463 = vadd.f32 %v4461, %v4462
        %v4464 = vsel %vm4422, %v4395, 0.0
        %v4465 = vadd.f32 %v4463, %v4464
        %v4466 = vsel %vm4422, %v4396, 0.0
        %v4467 = vadd.f32 %v4465, %v4466
        %v4468 = vsel %vm4422, %v4397, 0.0
        %v4469 = vadd.f32 %v4467, %v4468
        %v4470 = vsel %vm4422, %v4398, 0.0
        %v4471 = vadd.f32 %v4469, %v4470
        %v4472 = vsel %vm4422, %v4399, 0.0
        %v4473 = vadd.f32 %v4471, %v4472
        %v4474 = vsel %vm4422, %v4400, 0.0
        %v4475 = vadd.f32 %v4473, %v4474
        %v4476 = vsel %vm4422, %v4401, 0.0
        %v4477 = vadd.f32 %v4475, %v4476
        %v4478 = vsel %vm4422, %v4402, 0.0
        %v4479 = vadd.f32 %v4477, %v4478
        %v4480 = vsel %vm4422, %v4403, 0.0
        %v4481 = vadd.f32 %v4479, %v4480
        %v4482 = vsel %vm4422, %v4404, 0.0
        %v4483 = vadd.f32 %v4481, %v4482
        %v4484 = vsel %vm4422, %v4405, 0.0
        %v4485 = vadd.f32 %v4483, %v4484
        %v4486 = vsel %vm4422, %v4406, 0.0
        %v4487 = vadd.f32 %v4485, %v4486
        %v4488 = vsel %vm4422, %v4407, 0.0
        %v4489 = vadd.f32 %v4487, %v4488
        %v4490 = vsel %vm4422, %v4408, 0.0
        %v4491 = vadd.f32 %v4489, %v4490
        %v4492 = vsel %vm4422, %v4409, 0.0
        %v4493 = vadd.f32 %v4491, %v4492
        %v4494 = vsel %vm4422, %v4410, 0.0
        %v4495 = vadd.f32 %v4493, %v4494
        %v4496 = vsel %vm4422, %v4411, 0.0
        %v4497 = vadd.f32 %v4495, %v4496
        %v4498 = vsel %vm4422, %v4412, 0.0
        %v4499 = vadd.f32 %v4497, %v4498
        %v4500 = vsel %vm4422, %v4413, 0.0
        %v4501 = vadd.f32 %v4499, %v4500
        %v4502 = vsel %vm4422, %v4414, 0.0
        %v4503 = vadd.f32 %v4501, %v4502
        %v4504 = vsel %vm4422, %v4415, 0.0
        %v4505 = vadd.f32 %v4503, %v4504
        %v4506 = vsel %vm4422, %v4416, 0.0
        %v4507 = vadd.f32 %v4505, %v4506
        %v4508 = vsel %vm4422, %v4417, 0.0
        %v4509 = vadd.f32 %v4507, %v4508
        %v4510 = vsel %vm4422, %v4418, 0.0
        %v4511 = vadd.f32 %v4509, %v4510
        %v4512 = vsel %vm4422, %v4419, 0.0
        %v4513 = vadd.f32 %v4511, %v4512
        %v4514 = vsel %vm4422, %v4420, 0.0
        %v4515 = vadd.f32 %v4513, %v4514
        %v4516 = vsel %vm4422, %v4421, 0.0
        %v4517 = vadd.f32 %v4515, %v4516
        %4518 = vadd.xlane.f32.xlu0 %v4517
        %v4519 = vpop.xlane.xlu0 %4518
        %v4520 = vrot.slane %v4519, 4
        %v4521 = vadd.f32 %v4519, %v4520
        %v4522 = vrot.slane %v4521, 2
        %v4523 = vadd.f32 %v4521, %v4522
        %v4524 = vrot.slane %v4523, 1
        %v4525 = vadd.f32 %v4523, %v4524
        %s4526 = vtos %v4525
        %v4527 = vmul.f32 %v4390, %v4390
        %v4528 = vmul.f32 %v4391, %v4391
        %v4529 = vmul.f32 %v4392, %v4392
        %v4530 = vmul.f32 %v4393, %v4393
        %v4531 = vmul.f32 %v4394, %v4394
        %v4532 = vmul.f32 %v4395, %v4395
        %v4533 = vmul.f32 %v4396, %v4396
        %v4534 = vmul.f32 %v4397, %v4397
        %v4535 = vmul.f32 %v4398, %v4398
        %v4536 = vmul.f32 %v4399, %v4399
        %v4537 = vmul.f32 %v4400, %v4400
        %v4538 = vmul.f32 %v4401, %v4401
        %v4539 = vmul.f32 %v4402, %v4402
        %v4540 = vmul.f32 %v4403, %v4403
        %v4541 = vmul.f32 %v4404, %v4404
        %v4542 = vmul.f32 %v4405, %v4405
        %v4543 = vmul.f32 %v4406, %v4406
        %v4544 = vmul.f32 %v4407, %v4407
        %v4545 = vmul.f32 %v4408, %v4408
        %v4546 = vmul.f32 %v4409, %v4409
        %v4547 = vmul.f32 %v4410, %v4410
        %v4548 = vmul.f32 %v4411, %v4411
        %v4549 = vmul.f32 %v4412, %v4412
        %v4550 = vmul.f32 %v4413, %v4413
        %v4551 = vmul.f32 %v4414, %v4414
        %v4552 = vmul.f32 %v4415, %v4415
        %v4553 = vmul.f32 %v4416, %v4416
        %v4554 = vmul.f32 %v4417, %v4417
        %v4555 = vmul.f32 %v4418, %v4418
        %v4556 = vmul.f32 %v4419, %v4419
        %v4557 = vmul.f32 %v4420, %v4420
        %v4558 = vmul.f32 %v4421, %v4421
        %v4559 = vsel %vm4422, %v4527, 0.0
        %v4560 = vsel %vm4422, %v4528, 0.0
        %v4561 = vadd.f32 %v4559, %v4560
        %v4562 = vsel %vm4422, %v4529, 0.0
        %v4563 = vadd.f32 %v4561, %v4562
        %v4564 = vsel %vm4422, %v4530, 0.0
        %v4565 = vadd.f32 %v4563, %v4564
        %v4566 = vsel %vm4422, %v4531, 0.0
        %v4567 = vadd.f32 %v4565, %v4566
        %v4568 = vsel %vm4422, %v4532, 0.0
        %v4569 = vadd.f32 %v4567, %v4568
        %v4570 = vsel %vm4422, %v4533, 0.0
        %v4571 = vadd.f32 %v4569, %v4570
        %v4572 = vsel %vm4422, %v4534, 0.0
        %v4573 = vadd.f32 %v4571, %v4572
        %v4574 = vsel %vm4422, %v4535, 0.0
        %v4575 = vadd.f32 %v4573, %v4574
        %v4576 = vsel %vm4422, %v4536, 0.0
        %v4577 = vadd.f32 %v4575, %v4576
        %v4578 = vsel %vm4422, %v4537, 0.0
        %v4579 = vadd.f32 %v4577, %v4578
        %v4580 = vsel %vm4422, %v4538, 0.0
        %v4581 = vadd.f32 %v4579, %v4580
        %v4582 = vsel %vm4422, %v4539, 0.0
        %v4583 = vadd.f32 %v4581, %v4582
        %v4584 = vsel %vm4422, %v4540, 0.0
        %v4585 = vadd.f32 %v4583, %v4584
        %v4586 = vsel %vm4422, %v4541, 0.0
        %v4587 = vadd.f32 %v4585, %v4586
        %v4588 = vsel %vm4422, %v4542, 0.0
        %v4589 = vadd.f32 %v4587, %v4588
        %v4590 = vsel %vm4422, %v4543, 0.0
        %v4591 = vadd.f32 %v4589, %v4590
        %v4592 = vsel %vm4422, %v4544, 0.0
        %v4593 = vadd.f32 %v4591, %v4592
        %v4594 = vsel %vm4422, %v4545, 0.0
        %v4595 = vadd.f32 %v4593, %v4594
        %v4596 = vsel %vm4422, %v4546, 0.0
        %v4597 = vadd.f32 %v4595, %v4596
        %v4598 = vsel %vm4422, %v4547, 0.0
        %v4599 = vadd.f32 %v4597, %v4598
        %v4600 = vsel %vm4422, %v4548, 0.0
        %v4601 = vadd.f32 %v4599, %v4600
        %v4602 = vsel %vm4422, %v4549, 0.0
        %v4603 = vadd.f32 %v4601, %v4602
        %v4604 = vsel %vm4422, %v4550, 0.0
        %v4605 = vadd.f32 %v4603, %v4604
        %v4606 = vsel %vm4422, %v4551, 0.0
        %v4607 = vadd.f32 %v4605, %v4606
        %v4608 = vsel %vm4422, %v4552, 0.0
        %v4609 = vadd.f32 %v4607, %v4608
        %v4610 = vsel %vm4422, %v4553, 0.0
        %v4611 = vadd.f32 %v4609, %v4610
        %v4612 = vsel %vm4422, %v4554, 0.0
        %v4613 = vadd.f32 %v4611, %v4612
        %v4614 = vsel %vm4422, %v4555, 0.0
        %v4615 = vadd.f32 %v4613, %v4614
        %v4616 = vsel %vm4422, %v4556, 0.0
        %v4617 = vadd.f32 %v4615, %v4616
        %v4618 = vsel %vm4422, %v4557, 0.0
        %v4619 = vadd.f32 %v4617, %v4618
        %v4620 = vsel %vm4422, %v4558, 0.0
        %v4621 = vadd.f32 %v4619, %v4620
        %4622 = vadd.xlane.f32.xlu0 %v4621
        %v4623 = vpop.xlane.xlu0 %4622
        %v4624 = vrot.slane %v4623, 4
        %v4625 = vadd.f32 %v4623, %v4624
        %v4626 = vrot.slane %v4625, 2
        %v4627 = vadd.f32 %v4625, %v4626
        %v4628 = vrot.slane %v4627, 1
        %v4629 = vadd.f32 %v4627, %v4628
        %s4630 = vtos %v4629
        %v4631 = vstv %s4526
        %v4632 = vstv %s4630
        %v4633 = vsel %vm1794, %v4631, %v4632
        %4634 = vst [vmem:[%s337] sm:$0x3] %v4633
        %s4635 = smul.u32 8, %s23
        %p4636 = scmp.lt.s32.totalorder %s22, 1
        %s4637 = scalar_select %p4636, %s22, 1
        %p4638 = scmp.lt.s32.totalorder %s4635, 31
        %s4639 = scalar_select %p4638, %s4635, 31
        %s4640 = smul.addr %s4639, 4
        %s4641 = smul.addr %s4637, 128
        %s4642 = sadd.s32 %s4640, %s4641
        %s4643 = smul.addr %s4642, 8
        %s4644 = scalar_lea.vmem %s4, %s4643
        %p4645 = scmp.lt.s32.totalorder %s22, 1
        %s4646 = scalar_select %p4645, %s22, 1
        %p4647 = scmp.lt.s32.totalorder %s23, 3
        %s4648 = scalar_select %p4647, %s23, 3
        %s4649 = smul.addr %s4646, 4
        %s4650 = sadd.s32 %s4648, %s4649
        %s4651 = smul.addr %s4650, 2
        %s4652 = scalar_lea.vmem %s5, %s4651
        // Predicated region
        $region41: #{res_up_layer.2} parent=35 // pred_check
          %p4653 = pneg %p148
        $region42: #{res_up_layer.2} parent=35 // pred_check_branch
          %4655 = sbr.rel (%p4653) target = $region44
        $region43: #{res_up_layer.2} parent=35 // pred_region
          %s4656 = smul.u32 8, %s23
        $region44: #{res_up_layer.2} parent=35 // pred_fallthru
          _
        // Predicated region
        $region45: #{res_up_layer.2} parent=35 // pred_check
          %p4657 = pneg %p176
        $region46: #{res_up_layer.2} parent=35 // pred_check_branch
          %4659 = sbr.rel (%p4657) target = $region48
        $region47: #{res_up_layer.2} parent=35 // pred_region
          _
        $region48: #{res_up_layer.2} parent=35 // pred_fallthru
          _
      $region36: #{res_up_layer.2} parent=5 // pred_fallthru
        _
      %p4660 = scmp.le.s32.totalorder 2, %s13
      // Predicated region
      $region49: #{res_up_layer.2} parent=5 // pred_check
        %p4661 = pneg %p4660
      $region50: #{res_up_layer.2} parent=5 // pred_check_branch
        %4663 = sbr.rel (%p4661) target = $region52
      $region51: #{res_up_layer.2} parent=5 // pred_region
        %s4664 = ssub.s32 %s13, 2
        // Predicated region
        $region53: #{res_up_layer.2} parent=51 // pred_check
          %p4665 = pneg %p154
        $region54: #{res_up_layer.2} parent=51 // pred_check_branch
          %4667 = sbr.rel (%p4665) target = $region56
        $region55: #{res_up_layer.2} parent=51 // pred_region
          %s4668 = smul.u32 8, %s25
          %p4669 = scmp.lt.s32.totalorder %s24, 1
          %s4670 = scalar_select %p4669, %s24, 1
          %p4671 = scmp.lt.s32.totalorder %s4668, 31
          %s4672 = scalar_select %p4671, %s4668, 31
          %s4673 = smul.addr %s4672, 4
          %s4674 = smul.addr %s4670, 128
          %s4675 = sadd.s32 %s4673, %s4674
          %s4676 = smul.addr %s4675, 8
          %s4677 = scalar_lea.vmem %s4, %s4676
        $region56: #{res_up_layer.2} parent=51 // pred_fallthru
          _
        // Predicated region
        $region57: #{res_up_layer.2} parent=51 // pred_check
          %p4678 = pneg %p182
        $region58: #{res_up_layer.2} parent=51 // pred_check_branch
          %4680 = sbr.rel (%p4678) target = $region60
        $region59: #{res_up_layer.2} parent=51 // pred_region
          %p4681 = scmp.lt.s32.totalorder %s24, 1
          %s4682 = scalar_select %p4681, %s24, 1
          %p4683 = scmp.lt.s32.totalorder %s25, 3
          %s4684 = scalar_select %p4683, %s25, 3
          %s4685 = smul.addr %s4682, 4
          %s4686 = sadd.s32 %s4684, %s4685
          %s4687 = smul.addr %s4686, 2
          %s4688 = scalar_lea.vmem %s5, %s4687
        $region60: #{res_up_layer.2} parent=51 // pred_fallthru
          _
      $region52: #{res_up_layer.2} parent=5 // pred_fallthru
        _
    $region6: #{res_up_layer.2} parent=1 // loop_footer
      %s17 = sadd.s32 1, %s13
    $region7: #{res_up_layer.2} parent=1 // loop_footer_branch
      %12 = sbr.rel target = $region3
    $region8: #{res_up_layer.2} parent=1 // loop_exit
      _
    %4689 = vsyncpa [#allocation3], 1
    %s4690 = scalar_lea.sflag [#allocation3], 1
    %4691 = vsyncpa %s4690, 1

// kernel: res_up_layer.3
$region0: #{res_up_layer.3}
  #allocation0 [shape = 'u32[]', space=smem, size = 0x4, offset = 0x4, fixed_abs, tag = 'smem constant byte address 0x4 - core index']
  #allocation1 [shape = 'u32[144,128]{1,0:T(1,128)}', space=vmem, size = 0x12000, scoped, tag = 'internal scratch']
  %s0 = inlined_call_operand.vmem [shape: f32[2,2], index: 0, kind: input, shape index: {}]
  %s1 = inlined_call_operand.vmem [shape: f32[2,32,32,8], index: 1, kind: input, shape index: {}]
  %s2 = inlined_call_operand.vmem [shape: f32[2,4,2,32,8], index: 2, kind: input, shape index: {}]
  %s3 = inlined_call_operand.vmem [shape: f32[2,16,16,4], index: 3, kind: input, shape index: {}]
  %s4 = inlined_call_operand.vmem [shape: f32[9,8,8], index: 4, kind: input, shape index: {}]
  %s5 = inlined_call_operand.vmem [shape: f32[4,8], index: 5, kind: input, shape index: {}]
  %s6 = inlined_call_operand.vmem [shape: f32[1,8], index: 6, kind: input, shape index: {}]
  %s7 = inlined_call_operand.vmem [shape: f32[2,32,32,8], index: 7, kind: output, shape index: {}]
  %s8 = sld [smem:[#allocation0]]
  $region65: #{res_up_layer.3} parent=0
    _
  %s10 = ssub.s32 1, %s8
  %s11 = scalar_select 0, %s10, %s8
  $region1: #{res_up_layer.3} parent=0
    #allocation2 [shape = 'u8[1024]{0}', space=smem, size = 0x400, scoped, tag = 'input window, operand 0, single buffered']
    #allocation3 [shape = 's32[2]{0}', space=sflag, size = 0x8, scoped, tag = 'scoped memory for res_up_layer.3']
    %12 = vsyncpa [#allocation3], 0
    loop: start=0, step=1, limit=10
    $region2: #{res_up_layer.3} parent=1 // loop_pre_header
      _
    $region3: #{res_up_layer.3} parent=1 // loop_header
      %s14 = sphi 0, %s18
      %p15 = scmp.ge.s32.totalorder %s14, 10
      %s21 = sphi 0, %s33
      %s22 = sphi 0, %s29
      %s23 = sphi 0, %s21
      %s24 = sphi 0, %s22
      %s25 = sphi 0, %s23
      %s26 = sphi 0, %s24
      %s34 = sphi 0, %s34
      %s36 = sphi 0, %s34
      %s37 = sphi 0, %s36
      %s51 = sphi 0, %s37
      %s59 = sphi 0, %s61
      %s62 = sphi 0, %s59
      %s63 = sphi 0, %s62
      %s79 = sphi 0, %s63
      %s87 = sphi 0, %s89
      %s90 = sphi 0, %s87
      %s91 = sphi 0, %s90
      %s107 = sphi 0, %s91
      %s115 = sphi 0, %s117
      %s118 = sphi 0, %s115
      %s119 = sphi 0, %s118
      %s135 = sphi 0, %s119
      %s139 = sphi 0, %s139
      %s141 = sphi 0, %s139
      %s142 = sphi 0, %s141
      %s156 = sphi 0, %s142
      %s160 = sphi 0, %s160
      %s162 = sphi 0, %s160
      %s163 = sphi 0, %s162
      %s177 = sphi 0, %s163
      %s181 = sphi 0, %s181
      %s183 = sphi 0, %s181
      %s184 = sphi 0, %s183
      %s198 = sphi 0, %s184
      %s206 = sphi 0, %s208
      %s209 = sphi 0, %s206
      %s210 = sphi 0, %s209
      %s226 = sphi 0, %s210
    $region4: #{res_up_layer.3} parent=1 // loop_header_branch
      %17 = sbr.rel (%p15) target = $region8
    $region5: #{res_up_layer.3} parent=1 // loop_body
      %s19 = ssub.s32 %s14, 1
      %s20 = ssub.s32 %s14, 2
      %s27 = sadd.s32 1, %s22
      %p28 = scmp.ge.s32.totalorder %s27, 4
      %s29 = scalar_select %p28, 0, %s27
      %s30 = sadd.s32 1, %s21
      %s31 = scalar_select %p28, %s30, %s21
      %p32 = scmp.ge.s32.totalorder %s31, 2
      %s33 = scalar_select %p32, 0, %s31
      %s35 = sadd.s32 %s34, 1
      %p38 = scmp.eq.s32.totalorder %s14, 7
      %p39 = scmp.ne.s32.totalorder %s34, %s36
      %p40 = scmp.eq.s32.totalorder %s14, 0
      %p41 = por %p39, %p40
      %p42 = scmp.ne.s32.totalorder %s34, %s36
      %p43 = scmp.eq.s32.totalorder %s19, 7
      %p44 = por %p42, %p43
      %p45 = scmp.ne.s32.totalorder %s36, %s37
      %p46 = scmp.eq.s32.totalorder %s19, 0
      %p47 = por %p45, %p46
      %p48 = scmp.ne.s32.totalorder %s36, %s37
      %p49 = scmp.eq.s32.totalorder %s20, 7
      %p50 = por %p48, %p49
      %p52 = scmp.ne.s32.totalorder %s37, %s51
      %p53 = scmp.eq.s32.totalorder %s20, 0
      %p54 = por %p52, %p53
      %s55 = ssub.s32 %s21, %s33
      %s56 = ssub.s32 %s22, %s29
      %s57 = sor.u32 %s55, %s56
      %p58 = scmp.eq.s32.totalorder %s57, 0
      %s60 = sadd.s32 %s59, 1
      %s61 = scalar_select %p58, %s59, %s60
      %p64 = pneg %p58
      %p65 = scmp.eq.s32.totalorder %s14, 7
      %p66 = por %p64, %p65
      %p67 = scmp.ne.s32.totalorder %s59, %s62
      %p68 = scmp.eq.s32.totalorder %s14, 0
      %p69 = por %p67, %p68
      %p70 = scmp.ne.s32.totalorder %s59, %s62
      %p71 = scmp.eq.s32.totalorder %s19, 7
      %p72 = por %p70, %p71
      %p73 = scmp.ne.s32.totalorder %s62, %s63
      %p74 = scmp.eq.s32.totalorder %s19, 0
      %p75 = por %p73, %p74
      %p76 = scmp.ne.s32.totalorder %s62, %s63
      %p77 = scmp.eq.s32.totalorder %s20, 7
      %p78 = por %p76, %p77
      %p80 = scmp.ne.s32.totalorder %s63, %s79
      %p81 = scmp.eq.s32.totalorder %s20, 0
      %p82 = por %p80, %p81
      %s83 = ssub.s32 %s21, %s33
      %s84 = ssub.s32 %s22, %s29
      %s85 = sor.u32 %s83, %s84
      %p86 = scmp.eq.s32.totalorder %s85, 0
      %s88 = sadd.s32 %s87, 1
      %s89 = scalar_select %p86, %s87, %s88
      %p92 = pneg %p86
      %p93 = scmp.eq.s32.totalorder %s14, 7
      %p94 = por %p92, %p93
      %p95 = scmp.ne.s32.totalorder %s87, %s90
      %p96 = scmp.eq.s32.totalorder %s14, 0
      %p97 = por %p95, %p96
      %p98 = scmp.ne.s32.totalorder %s87, %s90
      %p99 = scmp.eq.s32.totalorder %s19, 7
      %p100 = por %p98, %p99
      %p101 = scmp.ne.s32.totalorder %s90, %s91
      %p102 = scmp.eq.s32.totalorder %s19, 0
      %p103 = por %p101, %p102
      %p104 = scmp.ne.s32.totalorder %s90, %s91
      %p105 = scmp.eq.s32.totalorder %s20, 7
      %p106 = por %p104, %p105
      %p108 = scmp.ne.s32.totalorder %s91, %s107
      %p109 = scmp.eq.s32.totalorder %s20, 0
      %p110 = por %p108, %p109
      %s111 = ssub.s32 %s21, %s33
      %s112 = ssub.s32 %s22, %s29
      %s113 = sor.u32 %s111, %s112
      %p114 = scmp.eq.s32.totalorder %s113, 0
      %s116 = sadd.s32 %s115, 1
      %s117 = scalar_select %p114, %s115, %s116
      %p120 = pneg %p114
      %p121 = scmp.eq.s32.totalorder %s14, 7
      %p122 = por %p120, %p121
      %p123 = scmp.ne.s32.totalorder %s115, %s118
      %p124 = scmp.eq.s32.totalorder %s14, 0
      %p125 = por %p123, %p124
      %p126 = scmp.ne.s32.totalorder %s115, %s118
      %p127 = scmp.eq.s32.totalorder %s19, 7
      %p128 = por %p126, %p127
      %p129 = scmp.ne.s32.totalorder %s118, %s119
      %p130 = scmp.eq.s32.totalorder %s19, 0
      %p131 = por %p129, %p130
      %p132 = scmp.ne.s32.totalorder %s118, %s119
      %p133 = scmp.eq.s32.totalorder %s20, 7
      %p134 = por %p132, %p133
      %p136 = scmp.ne.s32.totalorder %s119, %s135
      %p137 = scmp.eq.s32.totalorder %s20, 0
      %p138 = por %p136, %p137
      %s140 = sadd.s32 %s139, 1
      %p143 = scmp.eq.s32.totalorder %s14, 7
      %p144 = scmp.ne.s32.totalorder %s139, %s141
      %p145 = scmp.eq.s32.totalorder %s14, 0
      %p146 = por %p144, %p145
      %p147 = scmp.ne.s32.totalorder %s139, %s141
      %p148 = scmp.eq.s32.totalorder %s19, 7
      %p149 = por %p147, %p148
      %p150 = scmp.ne.s32.totalorder %s141, %s142
      %p151 = scmp.eq.s32.totalorder %s19, 0
      %p152 = por %p150, %p151
      %p153 = scmp.ne.s32.totalorder %s141, %s142
      %p154 = scmp.eq.s32.totalorder %s20, 7
      %p155 = por %p153, %p154
      %p157 = scmp.ne.s32.totalorder %s142, %s156
      %p158 = scmp.eq.s32.totalorder %s20, 0
      %p159 = por %p157, %p158
      %s161 = sadd.s32 %s160, 1
      %p164 = scmp.eq.s32.totalorder %s14, 7
      %p165 = scmp.ne.s32.totalorder %s160, %s162
      %p166 = scmp.eq.s32.totalorder %s14, 0
      %p167 = por %p165, %p166
      %p168 = scmp.ne.s32.totalorder %s160, %s162
      %p169 = scmp.eq.s32.totalorder %s19, 7
      %p170 = por %p168, %p169
      %p171 = scmp.ne.s32.totalorder %s162, %s163
      %p172 = scmp.eq.s32.totalorder %s19, 0
      %p173 = por %p171, %p172
      %p174 = scmp.ne.s32.totalorder %s162, %s163
      %p175 = scmp.eq.s32.totalorder %s20, 7
      %p176 = por %p174, %p175
      %p178 = scmp.ne.s32.totalorder %s163, %s177
      %p179 = scmp.eq.s32.totalorder %s20, 0
      %p180 = por %p178, %p179
      %s182 = sadd.s32 %s181, 1
      %p185 = scmp.eq.s32.totalorder %s14, 7
      %p186 = scmp.ne.s32.totalorder %s181, %s183
      %p187 = scmp.eq.s32.totalorder %s14, 0
      %p188 = por %p186, %p187
      %p189 = scmp.ne.s32.totalorder %s181, %s183
      %p190 = scmp.eq.s32.totalorder %s19, 7
      %p191 = por %p189, %p190
      %p192 = scmp.ne.s32.totalorder %s183, %s184
      %p193 = scmp.eq.s32.totalorder %s19, 0
      %p194 = por %p192, %p193
      %p195 = scmp.ne.s32.totalorder %s183, %s184
      %p196 = scmp.eq.s32.totalorder %s20, 7
      %p197 = por %p195, %p196
      %p199 = scmp.ne.s32.totalorder %s184, %s198
      %p200 = scmp.eq.s32.totalorder %s20, 0
      %p201 = por %p199, %p200
      %s202 = ssub.s32 %s21, %s33
      %s203 = ssub.s32 %s22, %s29
      %s204 = sor.u32 %s202, %s203
      %p205 = scmp.eq.s32.totalorder %s204, 0
      %s207 = sadd.s32 %s206, 1
      %s208 = scalar_select %p205, %s206, %s207
      %p211 = pneg %p205
      %p212 = scmp.eq.s32.totalorder %s14, 7
      %p213 = por %p211, %p212
      %p214 = scmp.ne.s32.totalorder %s206, %s209
      %p215 = scmp.eq.s32.totalorder %s14, 0
      %p216 = por %p214, %p215
      %p217 = scmp.ne.s32.totalorder %s206, %s209
      %p218 = scmp.eq.s32.totalorder %s19, 7
      %p219 = por %p217, %p218
      %p220 = scmp.ne.s32.totalorder %s209, %s210
      %p221 = scmp.eq.s32.totalorder %s19, 0
      %p222 = por %p220, %p221
      %p223 = scmp.ne.s32.totalorder %s209, %s210
      %p224 = scmp.eq.s32.totalorder %s20, 7
      %p225 = por %p223, %p224
      %p227 = scmp.ne.s32.totalorder %s210, %s226
      %p228 = scmp.eq.s32.totalorder %s20, 0
      %p229 = por %p227, %p228
      %p230 = scmp.le.s32.totalorder 1, %s14
      %p231 = scmp.lt.s32.totalorder %s14, 9
      %p232 = pnand %p230, %p231
      %p233 = pneg %p232
      // Predicated region
      $region9: #{res_up_layer.3} parent=5 // pred_check
        _
      $region10: #{res_up_layer.3} parent=5 // pred_check_branch
        %235 = sbr.rel (%p232) target = $region12
      $region11: #{res_up_layer.3} parent=5 // pred_region
        %s236 = ssub.s32 %s14, 1
        // Predicated region
        $region13: #{res_up_layer.3} parent=11 // pred_check
          %p237 = pneg %p47
        $region14: #{res_up_layer.3} parent=11 // pred_check_branch
          %239 = sbr.rel (%p237) target = $region16
        $region15: #{res_up_layer.3} parent=11 // pred_region
          %s241 = ssub.s32 32, 32
          %242 = vsyncadd [#allocation3], %s241
          %s244 = sshll.u32 %s0, 4
          %s245 = int_to_ptr.vmem [resolvable:$true] %s244
          %247 = dma.vmem_to_smem %s245, 32, [#allocation2], [#allocation3]
        $region16: #{res_up_layer.3} parent=11 // pred_fallthru
          _
        // Predicated region
        $region17: #{res_up_layer.3} parent=11 // pred_check
          %p248 = pneg %p152
        $region18: #{res_up_layer.3} parent=11 // pred_check_branch
          %250 = sbr.rel (%p248) target = $region20
        $region19: #{res_up_layer.3} parent=11 // pred_region
          _
        $region20: #{res_up_layer.3} parent=11 // pred_fallthru
          _
        // Predicated region
        $region21: #{res_up_layer.3} parent=11 // pred_check
          %p251 = pneg %p173
        $region22: #{res_up_layer.3} parent=11 // pred_check_branch
          %253 = sbr.rel (%p251) target = $region24
        $region23: #{res_up_layer.3} parent=11 // pred_region
          _
        $region24: #{res_up_layer.3} parent=11 // pred_fallthru
          _
        // Predicated region
        $region25: #{res_up_layer.3} parent=11 // pred_check
          %p254 = pneg %p194
        $region26: #{res_up_layer.3} parent=11 // pred_check_branch
          %256 = sbr.rel (%p254) target = $region28
        $region27: #{res_up_layer.3} parent=11 // pred_region
          _
        $region28: #{res_up_layer.3} parent=11 // pred_fallthru
          _
      $region12: #{res_up_layer.3} parent=5 // pred_fallthru
        _
      %p257 = scmp.lt.s32.totalorder %s14, 8
      // Predicated region
      $region29: #{res_up_layer.3} parent=5 // pred_check
        %p258 = pneg %p257
      $region30: #{res_up_layer.3} parent=5 // pred_check_branch
        %260 = sbr.rel (%p258) target = $region32
      $region31: #{res_up_layer.3} parent=5 // pred_region
        // Predicated region
        $region33: #{res_up_layer.3} parent=31 // pred_check
          %p261 = pneg %p69
        $region34: #{res_up_layer.3} parent=31 // pred_check_branch
          %263 = sbr.rel (%p261) target = $region36
        $region35: #{res_up_layer.3} parent=31 // pred_region
          %s264 = smul.u32 8, %s22
          %p265 = scmp.lt.s32.totalorder %s21, 1
          %s266 = scalar_select %p265, %s21, 1
          %p267 = scmp.lt.s32.totalorder %s264, 31
          %s268 = scalar_select %p267, %s264, 31
          %s269 = smul.addr %s268, 4
          %s270 = smul.addr %s266, 128
          %s271 = sadd.s32 %s269, %s270
          %s272 = smul.addr %s271, 8
          %s273 = scalar_lea.vmem %s1, %s272
          %s274 = smul.u32 8, %s22
        $region36: #{res_up_layer.3} parent=31 // pred_fallthru
          _
        // Predicated region
        $region37: #{res_up_layer.3} parent=31 // pred_check
          %p275 = pneg %p97
        $region38: #{res_up_layer.3} parent=31 // pred_check_branch
          %277 = sbr.rel (%p275) target = $region40
        $region39: #{res_up_layer.3} parent=31 // pred_region
          %p278 = scmp.lt.s32.totalorder %s21, 1
          %s279 = scalar_select %p278, %s21, 1
          %p280 = scmp.lt.s32.totalorder %s22, 3
          %s281 = scalar_select %p280, %s22, 3
          %s282 = smul.addr %s281, 8
          %s283 = smul.addr %s279, 32
          %s284 = sadd.s32 %s282, %s283
          %s285 = smul.addr %s284, 8
          %s286 = scalar_lea.vmem %s2, %s285
        $region40: #{res_up_layer.3} parent=31 // pred_fallthru
          _
        // Predicated region
        $region41: #{res_up_layer.3} parent=31 // pred_check
          %p287 = pneg %p125
        $region42: #{res_up_layer.3} parent=31 // pred_check_branch
          %289 = sbr.rel (%p287) target = $region44
        $region43: #{res_up_layer.3} parent=31 // pred_region
          %s290 = smul.u32 4, %s22
          %p291 = scmp.lt.s32.totalorder %s21, 1
          %s292 = scalar_select %p291, %s21, 1
          %p293 = scmp.lt.s32.totalorder %s290, 15
          %s294 = scalar_select %p293, %s290, 15
          %s295 = smul.addr %s294, 2
          %s296 = smul.addr %s292, 32
          %s297 = sadd.s32 %s295, %s296
          %s298 = smul.addr %s297, 8
          %s299 = scalar_lea.vmem %s3, %s298
          %s300 = smul.u32 4, %s22
        $region44: #{res_up_layer.3} parent=31 // pred_fallthru
          _
      $region32: #{res_up_layer.3} parent=5 // pred_fallthru
        _
      %p301 = scmp.le.s32.totalorder 1, %s14
      %p302 = scmp.lt.s32.totalorder %s14, 9
      %p303 = pnand %p301, %p302
      %p304 = pneg %p303
      // Predicated region
      $region45: #{res_up_layer.3} parent=5 // pred_check
        _
      $region46: #{res_up_layer.3} parent=5 // pred_check_branch
        %306 = sbr.rel (%p303) target = $region48
      $region47: #{res_up_layer.3} parent=5 // pred_region
        %s307 = ssub.s32 %s14, 1
        // Predicated region
        $region49: #{res_up_layer.3} parent=47 // pred_check
          %p308 = pneg %p47
        $region50: #{res_up_layer.3} parent=47 // pred_check_branch
          %310 = sbr.rel (%p308) target = $region52
        $region51: #{res_up_layer.3} parent=47 // pred_region
          %311 = dma.done [#allocation3], 32
        $region52: #{res_up_layer.3} parent=47 // pred_fallthru
          _
        %312 = sfence
        %p313 = pneg %p47
        %p314 = pneg %p44
        %s315 = smul.u32 8, %s24
        %p316 = scmp.lt.s32.totalorder %s23, 1
        %s317 = scalar_select %p316, %s23, 1
        %p318 = scmp.lt.s32.totalorder %s315, 31
        %s319 = scalar_select %p318, %s315, 31
        %s320 = smul.addr %s319, 4
        %s321 = smul.addr %s317, 128
        %s322 = sadd.s32 %s320, %s321
        %s323 = smul.addr %s322, 8
        %s324 = scalar_lea.vmem %s1, %s323
        %p325 = pneg %p75
        %p326 = pneg %p72
        %p327 = scmp.lt.s32.totalorder %s23, 1
        %s328 = scalar_select %p327, %s23, 1
        %p329 = scmp.lt.s32.totalorder %s24, 3
        %s330 = scalar_select %p329, %s24, 3
        %s331 = smul.addr %s330, 8
        %s332 = smul.addr %s328, 32
        %s333 = sadd.s32 %s331, %s332
        %s334 = smul.addr %s333, 8
        %s335 = scalar_lea.vmem %s2, %s334
        %p336 = pneg %p103
        %p337 = pneg %p100
        %s338 = smul.u32 4, %s24
        %p339 = scmp.lt.s32.totalorder %s23, 1
        %s340 = scalar_select %p339, %s23, 1
        %p341 = scmp.lt.s32.totalorder %s338, 15
        %s342 = scalar_select %p341, %s338, 15
        %s343 = smul.addr %s342, 2
        %s344 = smul.addr %s340, 32
        %s345 = sadd.s32 %s343, %s344
        %s346 = smul.addr %s345, 8
        %s347 = scalar_lea.vmem %s3, %s346
        %p348 = pneg %p131
        %p349 = pneg %p128
        %p350 = pneg %p152
        %p351 = pneg %p149
        %p352 = pneg %p173
        %p353 = pneg %p170
        %p354 = pneg %p194
        %p355 = pneg %p191
        %p356 = pneg %p222
        %p357 = pneg %p219
        %s358 = smul.u32 8, %s24
        %p359 = scmp.lt.s32.totalorder %s23, 1
        %s360 = scalar_select %p359, %s23, 1
        %p361 = scmp.lt.s32.totalorder %s358, 31
        %s362 = scalar_select %p361, %s358, 31
        %s363 = smul.addr %s362, 4
        %s364 = smul.addr %s360, 128
        %s365 = sadd.s32 %s363, %s364
        %s366 = smul.addr %s365, 8
        %s367 = scalar_lea.vmem %s7, %s366
        %s368 = smul.u32 8, %s24
        %p369 = scmp.lt.s32.totalorder %s23, 1
        %s370 = scalar_select %p369, %s23, 1
        %p371 = scmp.lt.s32.totalorder %s368, 31
        %s372 = scalar_select %p371, %s368, 31
        %s373 = smul.addr %s372, 4
        %s374 = smul.addr %s370, 128
        %s375 = sadd.s32 %s373, %s374
        %s376 = smul.addr %s375, 8
        %s377 = scalar_lea.vmem %s1, %s376
        %s378 = smul.u32 8, %s24
        %p379 = scmp.lt.s32.totalorder %s23, 1
        %s380 = scalar_select %p379, %s23, 1
        %p381 = scmp.lt.s32.totalorder %s24, 3
        %s382 = scalar_select %p381, %s24, 3
        %s383 = smul.addr %s382, 8
        %s384 = smul.addr %s380, 32
        %s385 = sadd.s32 %s383, %s384
        %s386 = smul.addr %s385, 8
        %s387 = scalar_lea.vmem %s2, %s386
        %s388 = smul.u32 4, %s24
        %p389 = scmp.lt.s32.totalorder %s23, 1
        %s390 = scalar_select %p389, %s23, 1
        %p391 = scmp.lt.s32.totalorder %s388, 15
        %s392 = scalar_select %p391, %s388, 15
        %s393 = smul.addr %s392, 2
        %s394 = smul.addr %s390, 32
        %s395 = sadd.s32 %s393, %s394
        %s396 = smul.addr %s395, 8
        %s397 = scalar_lea.vmem %s3, %s396
        %s398 = smul.u32 4, %s24
        %s399 = smul.u32 8, %s24
        %p400 = scmp.lt.s32.totalorder %s23, 1
        %s401 = scalar_select %p400, %s23, 1
        %p402 = scmp.lt.s32.totalorder %s399, 31
        %s403 = scalar_select %p402, %s399, 31
        %s404 = smul.addr %s403, 4
        %s405 = smul.addr %s401, 128
        %s406 = sadd.s32 %s404, %s405
        %s407 = smul.addr %s406, 8
        %s408 = scalar_lea.vmem %s7, %s407
        %s409 = smul.u32 8, %s24
        %s410 = smul.u32 %s23, 128
        %s411 = sld [smem:[#allocation2 + %s410]]
        %s412 = sadd.s32 %s410, 1
        %s413 = sld [smem:[#allocation2 + %s412]]
        %v414 = vld [vmem:[%s377] sm:$0xff]
        %v415 = vld [vmem:[%s377 + $0x8] sm:$0xff]
        %v416 = vld [vmem:[%s377 + $0x10] sm:$0xff]
        %v417 = vld [vmem:[%s377 + $0x18] sm:$0xff]
        %v418 = vld [vmem:[%s377 + $0x20] sm:$0xff]
        %v419 = vld [vmem:[%s377 + $0x28] sm:$0xff]
        %v420 = vld [vmem:[%s377 + $0x30] sm:$0xff]
        %v421 = vld [vmem:[%s377 + $0x38] sm:$0xff]
        %v422 = vld [vmem:[%s377 + $0x40] sm:$0xff]
        %v423 = vld [vmem:[%s377 + $0x48] sm:$0xff]
        %v424 = vld [vmem:[%s377 + $0x50] sm:$0xff]
        %v425 = vld [vmem:[%s377 + $0x58] sm:$0xff]
        %v426 = vld [vmem:[%s377 + $0x60] sm:$0xff]
        %v427 = vld [vmem:[%s377 + $0x68] sm:$0xff]
        %v428 = vld [vmem:[%s377 + $0x70] sm:$0xff]
        %v429 = vld [vmem:[%s377 + $0x78] sm:$0xff]
        %v430 = vld [vmem:[%s377 + $0x80] sm:$0xff]
        %v431 = vld [vmem:[%s377 + $0x88] sm:$0xff]
        %v432 = vld [vmem:[%s377 + $0x90] sm:$0xff]
        %v433 = vld [vmem:[%s377 + $0x98] sm:$0xff]
        %v434 = vld [vmem:[%s377 + $0xa0] sm:$0xff]
        %v435 = vld [vmem:[%s377 + $0xa8] sm:$0xff]
        %v436 = vld [vmem:[%s377 + $0xb0] sm:$0xff]
        %v437 = vld [vmem:[%s377 + $0xb8] sm:$0xff]
        %v438 = vld [vmem:[%s377 + $0xc0] sm:$0xff]
        %v439 = vld [vmem:[%s377 + $0xc8] sm:$0xff]
        %v440 = vld [vmem:[%s377 + $0xd0] sm:$0xff]
        %v441 = vld [vmem:[%s377 + $0xd8] sm:$0xff]
        %v442 = vld [vmem:[%s377 + $0xe0] sm:$0xff]
        %v443 = vld [vmem:[%s377 + $0xe8] sm:$0xff]
        %v444 = vld [vmem:[%s377 + $0xf0] sm:$0xff]
        %v445 = vld [vmem:[%s377 + $0xf8] sm:$0xff]
        %v446 = vld [vmem:[%s387] sm:$0xff]
        %v447 = vld [vmem:[%s387 + $0x8] sm:$0xff]
        %v448 = vld [vmem:[%s387 + $0x10] sm:$0xff]
        %v449 = vld [vmem:[%s387 + $0x18] sm:$0xff]
        %v450 = vld [vmem:[%s387 + $0x20] sm:$0xff]
        %v451 = vld [vmem:[%s387 + $0x28] sm:$0xff]
        %v452 = vld [vmem:[%s387 + $0x30] sm:$0xff]
        %v453 = vld [vmem:[%s387 + $0x38] sm:$0xff]
        %v454 = vstv %s411
        %v455 = vmul.f32 %v414, %v454
        %v456 = vmul.f32 %v415, %v454
        %v457 = vmul.f32 %v416, %v454
        %v458 = vmul.f32 %v417, %v454
        %v459 = vmul.f32 %v418, %v454
        %v460 = vmul.f32 %v419, %v454
        %v461 = vmul.f32 %v420, %v454
        %v462 = vmul.f32 %v421, %v454
        %v463 = vmul.f32 %v422, %v454
        %v464 = vmul.f32 %v423, %v454
        %v465 = vmul.f32 %v424, %v454
        %v466 = vmul.f32 %v425, %v454
        %v467 = vmul.f32 %v426, %v454
        %v468 = vmul.f32 %v427, %v454
        %v469 = vmul.f32 %v428, %v454
        %v470 = vmul.f32 %v429, %v454
        %v471 = vmul.f32 %v430, %v454
        %v472 = vmul.f32 %v431, %v454
        %v473 = vmul.f32 %v432, %v454
        %v474 = vmul.f32 %v433, %v454
        %v475 = vmul.f32 %v434, %v454
        %v476 = vmul.f32 %v435, %v454
        %v477 = vmul.f32 %v436, %v454
        %v478 = vmul.f32 %v437, %v454
        %v479 = vmul.f32 %v438, %v454
        %v480 = vmul.f32 %v439, %v454
        %v481 = vmul.f32 %v440, %v454
        %v482 = vmul.f32 %v441, %v454
        %v483 = vmul.f32 %v442, %v454
        %v484 = vmul.f32 %v443, %v454
        %v485 = vmul.f32 %v444, %v454
        %v486 = vmul.f32 %v445, %v454
        %v487 = vstv %s413
        %v488 = vadd.f32 %v455, %v487
        %v489 = vadd.f32 %v456, %v487
        %v490 = vadd.f32 %v457, %v487
        %v491 = vadd.f32 %v458, %v487
        %v492 = vadd.f32 %v459, %v487
        %v493 = vadd.f32 %v460, %v487
        %v494 = vadd.f32 %v461, %v487
        %v495 = vadd.f32 %v462, %v487
        %v496 = vadd.f32 %v463, %v487
        %v497 = vadd.f32 %v464, %v487
        %v498 = vadd.f32 %v465, %v487
        %v499 = vadd.f32 %v466, %v487
        %v500 = vadd.f32 %v467, %v487
        %v501 = vadd.f32 %v468, %v487
        %v502 = vadd.f32 %v469, %v487
        %v503 = vadd.f32 %v470, %v487
        %v504 = vadd.f32 %v471, %v487
        %v505 = vadd.f32 %v472, %v487
        %v506 = vadd.f32 %v473, %v487
        %v507 = vadd.f32 %v474, %v487
        %v508 = vadd.f32 %v475, %v487
        %v509 = vadd.f32 %v476, %v487
        %v510 = vadd.f32 %v477, %v487
        %v511 = vadd.f32 %v478, %v487
        %v512 = vadd.f32 %v479, %v487
        %v513 = vadd.f32 %v480, %v487
        %v514 = vadd.f32 %v481, %v487
        %v515 = vadd.f32 %v482, %v487
        %v516 = vadd.f32 %v483, %v487
        %v517 = vadd.f32 %v484, %v487
        %v518 = vadd.f32 %v485, %v487
        %v519 = vadd.f32 %v486, %v487
        %v520 = vmax.f32 %v488, 0.0
        %v521 = vmax.f32 %v489, 0.0
        %v522 = vmax.f32 %v490, 0.0
        %v523 = vmax.f32 %v491, 0.0
        %v524 = vmax.f32 %v492, 0.0
        %v525 = vmax.f32 %v493, 0.0
        %v526 = vmax.f32 %v494, 0.0
        %v527 = vmax.f32 %v495, 0.0
        %v528 = vmax.f32 %v496, 0.0
        %v529 = vmax.f32 %v497, 0.0
        %v530 = vmax.f32 %v498, 0.0
        %v531 = vmax.f32 %v499, 0.0
        %v532 = vmax.f32 %v500, 0.0
        %v533 = vmax.f32 %v501, 0.0
        %v534 = vmax.f32 %v502, 0.0
        %v535 = vmax.f32 %v503, 0.0
        %v536 = vmax.f32 %v504, 0.0
        %v537 = vmax.f32 %v505, 0.0
        %v538 = vmax.f32 %v506, 0.0
        %v539 = vmax.f32 %v507, 0.0
        %v540 = vmax.f32 %v508, 0.0
        %v541 = vmax.f32 %v509, 0.0
        %v542 = vmax.f32 %v510, 0.0
        %v543 = vmax.f32 %v511, 0.0
        %v544 = vmax.f32 %v512, 0.0
        %v545 = vmax.f32 %v513, 0.0
        %v546 = vmax.f32 %v514, 0.0
        %v547 = vmax.f32 %v515, 0.0
        %v548 = vmax.f32 %v516, 0.0
        %v549 = vmax.f32 %v517, 0.0
        %v550 = vmax.f32 %v518, 0.0
        %v551 = vmax.f32 %v519, 0.0
        %v552 = vmul.f32 %v446, %v454
        %v553 = vmul.f32 %v447, %v454
        %v554 = vmul.f32 %v448, %v454
        %v555 = vmul.f32 %v449, %v454
        %v556 = vadd.f32 %v552, %v487
        %v557 = vadd.f32 %v553, %v487
        %v558 = vadd.f32 %v554, %v487
        %v559 = vadd.f32 %v555, %v487
        %v560 = vmax.f32 %v556, 0.0
        %v561 = vmax.f32 %v557, 0.0
        %v562 = vmax.f32 %v558, 0.0
        %v563 = vmax.f32 %v559, 0.0
        %p564 = scmp.gt.s32.totalorder %s24, 0
        %s565 = scalar_select %p564, 1.0, 0.0
        %v566 = vstv %s565
        %v567 = vmul.f32 %v560, %v566
        %v568 = vmul.f32 %v561, %v566
        %v569 = vmul.f32 %v562, %v566
        %v570 = vmul.f32 %v563, %v566
        %v571 = vmul.f32 %v450, %v454
        %v572 = vmul.f32 %v451, %v454
        %v573 = vmul.f32 %v452, %v454
        %v574 = vmul.f32 %v453, %v454
        %v575 = vadd.f32 %v571, %v487
        %v576 = vadd.f32 %v572, %v487
        %v577 = vadd.f32 %v573, %v487
        %v578 = vadd.f32 %v574, %v487
        %v579 = vmax.f32 %v575, 0.0
        %v580 = vmax.f32 %v576, 0.0
        %v581 = vmax.f32 %v577, 0.0
        %v582 = vmax.f32 %v578, 0.0
        %p583 = scmp.lt.s32.totalorder %s24, 3
        %s584 = scalar_select %p583, 1.0, 0.0
        %v585 = vstv %s584
        %v586 = vmul.f32 %v579, %v585
        %v587 = vmul.f32 %v580, %v585
        %v588 = vmul.f32 %v581, %v585
        %v589 = vmul.f32 %v582, %v585
        %vm630 = vcmask 1040384
        %v631 = vrot.slane %v567, 7
        %v632 = vrot.slane %v568, 7
        %v633 = vsel %vm630, %v631, %v632
        %v634 = vrot.slane %v569, 7
        %v635 = vsel %vm630, %v632, %v634
        %v636 = vrot.slane %v570, 7
        %v637 = vsel %vm630, %v634, %v636
        %v638 = vrot.slane %v520, 7
        %v639 = vrot.slane %v521, 7
        %v640 = vsel %vm630, %v638, %v639
        %v641 = vrot.slane %v522, 7
        %v642 = vsel %vm630, %v639, %v641
        %v643 = vrot.slane %v523, 7
        %v644 = vsel %vm630, %v641, %v643
        %v645 = vrot.slane %v524, 7
        %v646 = vrot.slane %v525, 7
        %v647 = vsel %vm630, %v645, %v646
        %v648 = vrot.slane %v526, 7
        %v649 = vsel %vm630, %v646, %v648
        %v650 = vrot.slane %v527, 7
        %v651 = vsel %vm630, %v648, %v650
        %v652 = vrot.slane %v528, 7
        %v653 = vrot.slane %v529, 7
        %v654 = vsel %vm630, %v652, %v653
        %v655 = vrot.slane %v530, 7
        %v656 = vsel %vm630, %v653, %v655
        %v657 = vrot.slane %v531, 7
        %v658 = vsel %vm630, %v655, %v657
        %v659 = vrot.slane %v532, 7
        %v660 = vrot.slane %v533, 7
        %v661 = vsel %vm630, %v659, %v660
        %v662 = vrot.slane %v534, 7
        %v663 = vsel %vm630, %v660, %v662
        %v664 = vrot.slane %v535, 7
        %v665 = vsel %vm630, %v662, %v664
        %v666 = vrot.slane %v536, 7
        %v667 = vrot.slane %v537, 7
        %v668 = vsel %vm630, %v666, %v667
        %v669 = vrot.slane %v538, 7
        %v670 = vsel %vm630, %v667, %v669
        %v671 = vrot.slane %v539, 7
        %v672 = vsel %vm630, %v669, %v671
        %v673 = vrot.slane %v540, 7
        %v674 = vrot.slane %v541, 7
        %v675 = vsel %vm630, %v673, %v674
        %v676 = vrot.slane %v542, 7
        %v677 = vsel %vm630, %v674, %v676
        %v678 = vrot.slane %v543, 7
        %v679 = vsel %vm630, %v676, %v678
        %v680 = vrot.slane %v544, 7
        %v681 = vrot.slane %v545, 7
        %v682 = vsel %vm630, %v680, %v681
        %v683 = vrot.slane %v546, 7
        %v684 = vsel %vm630, %v681, %v683
        %v685 = vrot.slane %v547, 7
        %v686 = vsel %vm630, %v683, %v685
        %v687 = vrot.slane %v548, 7
        %v688 = vrot.slane %v549, 7
        %v689 = vsel %vm630, %v687, %v688
        %v690 = vrot.slane %v550, 7
        %v691 = vsel %vm630, %v688, %v690
        %v692 = vrot.slane %v551, 7
        %v693 = vsel %vm630, %v690, %v692
        %v694 = vrot.slane %v586, 7
        %v695 = vrot.slane %v587, 7
        %v696 = vsel %vm630, %v694, %v695
        %v697 = vrot.slane %v588, 7
        %v698 = vsel %vm630, %v695, %v697
        %v699 = vrot.slane %v589, 7
        %v700 = vsel %vm630, %v697, %v699
        %v721 = vsel %vm630, 0.0, %v631
        %v722 = vsel %vm630, 0.0, %v638
        %v723 = vsel %vm630, 0.0, %v645
        %v724 = vsel %vm630, 0.0, %v652
        %v725 = vsel %vm630, 0.0, %v659
        %v726 = vsel %vm630, 0.0, %v666
        %v727 = vsel %vm630, 0.0, %v673
        %v728 = vsel %vm630, 0.0, %v680
        %v729 = vsel %vm630, 0.0, %v687
        %v730 = vsel %vm630, 0.0, %v694
        %v731 = vsel %vm630, %v636, 0.0
        %v732 = vsel %vm630, %v643, 0.0
        %v733 = vsel %vm630, %v650, 0.0
        %v734 = vsel %vm630, %v657, 0.0
        %v735 = vsel %vm630, %v664, 0.0
        %v736 = vsel %vm630, %v671, 0.0
        %v737 = vsel %vm630, %v678, 0.0
        %v738 = vsel %vm630, %v685, 0.0
        %v739 = vsel %vm630, %v692, 0.0
        %v740 = vsel %vm630, %v699, 0.0
        %v741 = vld [vmem:[%s4] sm:$0xff]
        %vm758 = vcmask 1046528
        %v759 = vrot.slane %v721, 1
        %v760 = vrot.slane %v633, 1
        %v761 = vsel %vm758, %v759, %v760
        %v762 = vrot.slane %v635, 1
        %v763 = vsel %vm758, %v760, %v762
        %v764 = vrot.slane %v637, 1
        %v765 = vsel %vm758, %v762, %v764
        %v766 = vrot.slane %v731, 1
        %v767 = vsel %vm758, %v764, %v766
        %v768 = vrot.slane %v722, 1
        %v769 = vrot.slane %v640, 1
        %v770 = vsel %vm758, %v768, %v769
        %v771 = vrot.slane %v642, 1
        %v772 = vsel %vm758, %v769, %v771
        %v773 = vrot.slane %v644, 1
        %v774 = vsel %vm758, %v771, %v773
        %v775 = vrot.slane %v732, 1
        %v776 = vsel %vm758, %v773, %v775
        %v777 = vrot.slane %v723, 1
        %v778 = vrot.slane %v647, 1
        %v779 = vsel %vm758, %v777, %v778
        %v780 = vrot.slane %v649, 1
        %v781 = vsel %vm758, %v778, %v780
        %v782 = vrot.slane %v651, 1
        %v783 = vsel %vm758, %v780, %v782
        %v784 = vrot.slane %v733, 1
        %v785 = vsel %vm758, %v782, %v784
        %v786 = vrot.slane %v724, 1
        %v787 = vrot.slane %v654, 1
        %v788 = vsel %vm758, %v786, %v787
        %v789 = vrot.slane %v656, 1
        %v790 = vsel %vm758, %v787, %v789
        %v791 = vrot.slane %v658, 1
        %v792 = vsel %vm758, %v789, %v791
        %v793 = vrot.slane %v734, 1
        %v794 = vsel %vm758, %v791, %v793
        %v795 = vrot.slane %v725, 1
        %v796 = vrot.slane %v661, 1
        %v797 = vsel %vm758, %v795, %v796
        %v798 = vrot.slane %v663, 1
        %v799 = vsel %vm758, %v796, %v798
        %v800 = vrot.slane %v665, 1
        %v801 = vsel %vm758, %v798, %v800
        %v802 = vrot.slane %v735, 1
        %v803 = vsel %vm758, %v800, %v802
        %v804 = vrot.slane %v726, 1
        %v805 = vrot.slane %v668, 1
        %v806 = vsel %vm758, %v804, %v805
        %v807 = vrot.slane %v670, 1
        %v808 = vsel %vm758, %v805, %v807
        %v809 = vrot.slane %v672, 1
        %v810 = vsel %vm758, %v807, %v809
        %v811 = vrot.slane %v736, 1
        %v812 = vsel %vm758, %v809, %v811
        %v813 = vrot.slane %v727, 1
        %v814 = vrot.slane %v675, 1
        %v815 = vsel %vm758, %v813, %v814
        %v816 = vrot.slane %v677, 1
        %v817 = vsel %vm758, %v814, %v816
        %v818 = vrot.slane %v679, 1
        %v819 = vsel %vm758, %v816, %v818
        %v820 = vrot.slane %v737, 1
        %v821 = vsel %vm758, %v818, %v820
        %v822 = vrot.slane %v728, 1
        %v823 = vrot.slane %v682, 1
        %v824 = vsel %vm758, %v822, %v823
        %v825 = vrot.slane %v684, 1
        %v826 = vsel %vm758, %v823, %v825
        %v827 = vrot.slane %v686, 1
        %v828 = vsel %vm758, %v825, %v827
        %v829 = vrot.slane %v738, 1
        %v830 = vsel %vm758, %v827, %v829
        %s831 = scalar_lea.vmem %s4, 8
        %v832 = vld [vmem:[%s831] sm:$0xff]
        %vm833 = vcmask 64512
        %v834 = vsel %vm833, %v761, 0
        %v836 = vsel %vm833, %v763, 0
        %v838 = vsel %vm833, %v765, 0
        %v840 = vsel %vm833, %v767, 0
        %v842 = vsel %vm833, %v770, 0
        %v844 = vsel %vm833, %v772, 0
        %v846 = vsel %vm833, %v774, 0
        %v848 = vsel %vm833, %v776, 0
        %v850 = vsel %vm833, %v779, 0
        %v852 = vsel %vm833, %v781, 0
        %v854 = vsel %vm833, %v783, 0
        %v856 = vsel %vm833, %v785, 0
        %v858 = vsel %vm833, %v788, 0
        %v860 = vsel %vm833, %v790, 0
        %v862 = vsel %vm833, %v792, 0
        %v864 = vsel %vm833, %v794, 0
        %v866 = vsel %vm833, %v797, 0
        %v868 = vsel %vm833, %v799, 0
        %v870 = vsel %vm833, %v801, 0
        %v872 = vsel %vm833, %v803, 0
        %v874 = vsel %vm833, %v806, 0
        %v876 = vsel %vm833, %v808, 0
        %v878 = vsel %vm833, %v810, 0
        %v880 = vsel %vm833, %v812, 0
        %v882 = vsel %vm833, %v815, 0
        %v884 = vsel %vm833, %v817, 0
        %v886 = vsel %vm833, %v819, 0
        %v888 = vsel %vm833, %v821, 0
        %v890 = vsel %vm833, %v824, 0
        %v892 = vsel %vm833, %v826, 0
        %v894 = vsel %vm833, %v828, 0
        %v896 = vsel %vm833, %v830, 0
        %898 = vmatprep.subr.mxu0 0.0
        %899 = vmatpush1.msra.mxu0 0.0
        %900 = vmatprep.subr.mxu0 0.0
        %901 = vmatpush1.msra.mxu0 0.0
        %902 = vmatprep.subr.mxu0 0.0
        %903 = vmatpush1.msra.mxu0 0.0
        %904 = vmatprep.subr.mxu0 0.0
        %905 = vmatpush1.msra.mxu0 0.0
        %906 = vmatprep.subr.mxu0 0.0
        %907 = vmatpush1.msra.mxu0 0.0
        %908 = vmatprep.subr.mxu0 0.0
        %909 = vmatpush1.msra.mxu0 0.0
        %910 = vmatprep.subr.mxu0 0.0
        %911 = vmatpush1.msra.mxu0 0.0
        %912 = vmatprep.subr.mxu0 0.0
        %913 = vmatpush1.msra.mxu0 0.0
        %914 = vmatprep.subr.mxu0 0.0
        %915 = vmatpush1.msra.mxu0 0.0
        %916 = vmatprep.subr.mxu0 0.0
        %917 = vmatpush1.msra.mxu0 0.0
        %918 = vmatprep.subr.mxu0 0.0
        %919 = vmatpush1.msra.mxu0 0.0
        %920 = vmatprep.subr.mxu0 0.0
        %921 = vmatpush1.msra.mxu0 0.0
        %922 = vmatprep.subr.mxu0 0.0
        %923 = vmatpush1.msra.mxu0 0.0
        %924 = vmatprep.subr.mxu0 0.0
        %925 = vmatpush1.msra.mxu0 0.0
        %926 = vmatprep.subr.mxu0 0.0
        %927 = vmatpush1.msra.mxu0 0.0
        %928 = vmatprep.subr.mxu0 0.0
        %929 = vmatpush1.msra.mxu0 %v832
        %930 = vmatprep.subr.mxu0 0.0
        %931 = vmatpush2.msra.mxu0 0.0
        %932 = vmatprep.subr.mxu0 0.0
        %933 = vmatpush2.msra.mxu0 0.0
        %934 = vmatprep.subr.mxu0 0.0
        %935 = vmatpush2.msra.mxu0 0.0
        %936 = vmatprep.subr.mxu0 0.0
        %937 = vmatpush2.msra.mxu0 0.0
        %938 = vmatprep.subr.mxu0 0.0
        %939 = vmatpush2.msra.mxu0 0.0
        %940 = vmatprep.subr.mxu0 0.0
        %941 = vmatpush2.msra.mxu0 0.0
        %942 = vmatprep.subr.mxu0 0.0
        %943 = vmatpush2.msra.mxu0 0.0
        %944 = vmatprep.subr.mxu0 0.0
        %945 = vmatpush2.msra.mxu0 0.0
        %946 = vmatprep.subr.mxu0 0.0
        %947 = vmatpush2.msra.mxu0 0.0
        %948 = vmatprep.subr.mxu0 0.0
        %949 = vmatpush2.msra.mxu0 0.0
        %950 = vmatprep.subr.mxu0 0.0
        %951 = vmatpush2.msra.mxu0 0.0
        %952 = vmatprep.subr.mxu0 0.0
        %953 = vmatpush2.msra.mxu0 0.0
        %954 = vmatprep.subr.mxu0 0.0
        %955 = vmatpush2.msra.mxu0 0.0
        %956 = vmatprep.subr.mxu0 0.0
        %957 = vmatpush2.msra.mxu0 0.0
        %958 = vmatprep.subr.mxu0 0.0
        %959 = vmatpush2.msra.mxu0 0.0
        %960 = vmatprep.subr.mxu0 0.0
        %961 = vmatpush2.msra.mxu0 0.0
        %962 = vmatprep.mubr.f32.mxu0 0.0
        %963 = vmatmul.mubr.f32.gmra.mxu0 %v834
        %v964 = vpop.f32.mrf.mxu0
        %v965 = vadd.f32 0.0, %v964
        %v966 = vpop.f32.mrf.mxu0
        %967 = vmatprep.mubr.f32.mxu0 0.0
        %968 = vmatmul.mubr.f32.gmra.mxu0 %v836
        %v969 = vpop.f32.mrf.mxu0
        %v970 = vadd.f32 0.0, %v969
        %v971 = vpop.f32.mrf.mxu0
        %972 = vmatprep.mubr.f32.mxu0 0.0
        %973 = vmatmul.mubr.f32.gmra.mxu0 %v838
        %v974 = vpop.f32.mrf.mxu0
        %v975 = vadd.f32 0.0, %v974
        %v976 = vpop.f32.mrf.mxu0
        %977 = vmatprep.mubr.f32.mxu0 0.0
        %978 = vmatmul.mubr.f32.gmra.mxu0 %v840
        %v979 = vpop.f32.mrf.mxu0
        %v980 = vadd.f32 0.0, %v979
        %v981 = vpop.f32.mrf.mxu0
        %982 = vmatprep.mubr.f32.mxu0 0.0
        %983 = vmatmul.mubr.f32.gmra.mxu0 %v842
        %v984 = vpop.f32.mrf.mxu0
        %v985 = vadd.f32 0.0, %v984
        %v986 = vpop.f32.mrf.mxu0
        %987 = vmatprep.mubr.f32.mxu0 0.0
        %988 = vmatmul.mubr.f32.gmra.mxu0 %v844
        %v989 = vpop.f32.mrf.mxu0
        %v990 = vadd.f32 0.0, %v989
        %v991 = vpop.f32.mrf.mxu0
        %992 = vmatprep.mubr.f32.mxu0 0.0
        %993 = vmatmul.mubr.f32.gmra.mxu0 %v846
        %v994 = vpop.f32.mrf.mxu0
        %v995 = vadd.f32 0.0, %v994
        %v996 = vpop.f32.mrf.mxu0
        %997 = vmatprep.mubr.f32.mxu0 0.0
        %998 = vmatmul.mubr.f32.gmra.mxu0 %v848
        %v999 = vpop.f32.mrf.mxu0
        %v1000 = vadd.f32 0.0, %v999
        %v1001 = vpop.f32.mrf.mxu0
        %1002 = vmatprep.mubr.f32.mxu0 0.0
        %1003 = vmatmul.mubr.f32.gmra.mxu0 %v850
        %v1004 = vpop.f32.mrf.mxu0
        %v1005 = vadd.f32 0.0, %v1004
        %v1006 = vpop.f32.mrf.mxu0
        %1007 = vmatprep.mubr.f32.mxu0 0.0
        %1008 = vmatmul.mubr.f32.gmra.mxu0 %v852
        %v1009 = vpop.f32.mrf.mxu0
        %v1010 = vadd.f32 0.0, %v1009
        %v1011 = vpop.f32.mrf.mxu0
        %1012 = vmatprep.mubr.f32.mxu0 0.0
        %1013 = vmatmul.mubr.f32.gmra.mxu0 %v854
        %v1014 = vpop.f32.mrf.mxu0
        %v1015 = vadd.f32 0.0, %v1014
        %v1016 = vpop.f32.mrf.mxu0
        %1017 = vmatprep.mubr.f32.mxu0 0.0
        %1018 = vmatmul.mubr.f32.gmra.mxu0 %v856
        %v1019 = vpop.f32.mrf.mxu0
        %v1020 = vadd.f32 0.0, %v1019
        %v1021 = vpop.f32.mrf.mxu0
        %1022 = vmatprep.mubr.f32.mxu0 0.0
        %1023 = vmatmul.mubr.f32.gmra.mxu0 %v858
        %v1024 = vpop.f32.mrf.mxu0
        %v1025 = vadd.f32 0.0, %v1024
        %v1026 = vpop.f32.mrf.mxu0
        %1027 = vmatprep.mubr.f32.mxu0 0.0
        %1028 = vmatmul.mubr.f32.gmra.mxu0 %v860
        %v1029 = vpop.f32.mrf.mxu0
        %v1030 = vadd.f32 0.0, %v1029
        %v1031 = vpop.f32.mrf.mxu0
        %1032 = vmatprep.mubr.f32.mxu0 0.0
        %1033 = vmatmul.mubr.f32.gmra.mxu0 %v862
        %v1034 = vpop.f32.mrf.mxu0
        %v1035 = vadd.f32 0.0, %v1034
        %v1036 = vpop.f32.mrf.mxu0
        %1037 = vmatprep.mubr.f32.mxu0 0.0
        %1038 = vmatmul.mubr.f32.gmra.mxu0 %v864
        %v1039 = vpop.f32.mrf.mxu0
        %v1040 = vadd.f32 0.0, %v1039
        %v1041 = vpop.f32.mrf.mxu0
        %1042 = vmatprep.mubr.f32.mxu0 0.0
        %1043 = vmatmul.mubr.f32.gmra.mxu0 %v866
        %v1044 = vpop.f32.mrf.mxu0
        %v1045 = vadd.f32 0.0, %v1044
        %v1046 = vpop.f32.mrf.mxu0
        %1047 = vmatprep.mubr.f32.mxu0 0.0
        %1048 = vmatmul.mubr.f32.gmra.mxu0 %v868
        %v1049 = vpop.f32.mrf.mxu0
        %v1050 = vadd.f32 0.0, %v1049
        %v1051 = vpop.f32.mrf.mxu0
        %1052 = vmatprep.mubr.f32.mxu0 0.0
        %1053 = vmatmul.mubr.f32.gmra.mxu0 %v870
        %v1054 = vpop.f32.mrf.mxu0
        %v1055 = vadd.f32 0.0, %v1054
        %v1056 = vpop.f32.mrf.mxu0
        %1057 = vmatprep.mubr.f32.mxu0 0.0
        %1058 = vmatmul.mubr.f32.gmra.mxu0 %v872
        %v1059 = vpop.f32.mrf.mxu0
        %v1060 = vadd.f32 0.0, %v1059
        %v1061 = vpop.f32.mrf.mxu0
        %1062 = vmatprep.mubr.f32.mxu0 0.0
        %1063 = vmatmul.mubr.f32.gmra.mxu0 %v874
        %v1064 = vpop.f32.mrf.mxu0
        %v1065 = vadd.f32 0.0, %v1064
        %v1066 = vpop.f32.mrf.mxu0
        %1067 = vmatprep.mubr.f32.mxu0 0.0
        %1068 = vmatmul.mubr.f32.gmra.mxu0 %v876
        %v1069 = vpop.f32.mrf.mxu0
        %v1070 = vadd.f32 0.0, %v1069
        %v1071 = vpop.f32.mrf.mxu0
        %1072 = vmatprep.mubr.f32.mxu0 0.0
        %1073 = vmatmul.mubr.f32.gmra.mxu0 %v878
        %v1074 = vpop.f32.mrf.mxu0
        %v1075 = vadd.f32 0.0, %v1074
        %v1076 = vpop.f32.mrf.mxu0
        %1077 = vmatprep.mubr.f32.mxu0 0.0
        %1078 = vmatmul.mubr.f32.gmra.mxu0 %v880
        %v1079 = vpop.f32.mrf.mxu0
        %v1080 = vadd.f32 0.0, %v1079
        %v1081 = vpop.f32.mrf.mxu0
        %1082 = vmatprep.mubr.f32.mxu0 0.0
        %1083 = vmatmul.mubr.f32.gmra.mxu0 %v882
        %v1084 = vpop.f32.mrf.mxu0
        %v1085 = vadd.f32 0.0, %v1084
        %v1086 = vpop.f32.mrf.mxu0
        %1087 = vmatprep.mubr.f32.mxu0 0.0
        %1088 = vmatmul.mubr.f32.gmra.mxu0 %v884
        %v1089 = vpop.f32.mrf.mxu0
        %v1090 = vadd.f32 0.0, %v1089
        %v1091 = vpop.f32.mrf.mxu0
        %1092 = vmatprep.mubr.f32.mxu0 0.0
        %1093 = vmatmul.mubr.f32.gmra.mxu0 %v886
        %v1094 = vpop.f32.mrf.mxu0
        %v1095 = vadd.f32 0.0, %v1094
        %v1096 = vpop.f32.mrf.mxu0
        %1097 = vmatprep.mubr.f32.mxu0 0.0
        %1098 = vmatmul.mubr.f32.gmra.mxu0 %v888
        %v1099 = vpop.f32.mrf.mxu0
        %v1100 = vadd.f32 0.0, %v1099
        %v1101 = vpop.f32.mrf.mxu0
        %1102 = vmatprep.mubr.f32.mxu0 0.0
        %1103 = vmatmul.mubr.f32.gmra.mxu0 %v890
        %v1104 = vpop.f32.mrf.mxu0
        %v1105 = vadd.f32 0.0, %v1104
        %v1106 = vpop.f32.mrf.mxu0
        %1107 = vmatprep.mubr.f32.mxu0 0.0
        %1108 = vmatmul.mubr.f32.gmra.mxu0 %v892
        %v1109 = vpop.f32.mrf.mxu0
        %v1110 = vadd.f32 0.0, %v1109
        %v1111 = vpop.f32.mrf.mxu0
        %1112 = vmatprep.mubr.f32.mxu0 0.0
        %1113 = vmatmul.mubr.f32.gmra.mxu0 %v894
        %v1114 = vpop.f32.mrf.mxu0
        %v1115 = vadd.f32 0.0, %v1114
        %v1116 = vpop.f32.mrf.mxu0
        %1117 = vmatprep.mubr.f32.mxu0 0.0
        %1118 = vmatmul.mubr.f32.gmra.mxu0 %v896
        %v1119 = vpop.f32.mrf.mxu0
        %v1120 = vadd.f32 0.0, %v1119
        %v1121 = vpop.f32.mrf.mxu0
        %1122 = vdwg.mxu0
        %v1123 = vsel %vm833, %v721, 0
        %v1125 = vsel %vm833, %v633, 0
        %v1127 = vsel %vm833, %v635, 0
        %v1129 = vsel %vm833, %v637, 0
        %v1131 = vsel %vm833, %v722, 0
        %v1133 = vsel %vm833, %v640, 0
        %v1135 = vsel %vm833, %v642, 0
        %v1137 = vsel %vm833, %v644, 0
        %v1139 = vsel %vm833, %v723, 0
        %v1141 = vsel %vm833, %v647, 0
        %v1143 = vsel %vm833, %v649, 0
        %v1145 = vsel %vm833, %v651, 0
        %v1147 = vsel %vm833, %v724, 0
        %v1149 = vsel %vm833, %v654, 0
        %v1151 = vsel %vm833, %v656, 0
        %v1153 = vsel %vm833, %v658, 0
        %v1155 = vsel %vm833, %v725, 0
        %v1157 = vsel %vm833, %v661, 0
        %v1159 = vsel %vm833, %v663, 0
        %v1161 = vsel %vm833, %v665, 0
        %v1163 = vsel %vm833, %v726, 0
        %v1165 = vsel %vm833, %v668, 0
        %v1167 = vsel %vm833, %v670, 0
        %v1169 = vsel %vm833, %v672, 0
        %v1171 = vsel %vm833, %v727, 0
        %v1173 = vsel %vm833, %v675, 0
        %v1175 = vsel %vm833, %v677, 0
        %v1177 = vsel %vm833, %v679, 0
        %v1179 = vsel %vm833, %v728, 0
        %v1181 = vsel %vm833, %v682, 0
        %v1183 = vsel %vm833, %v684, 0
        %v1185 = vsel %vm833, %v686, 0
        %1187 = vmatprep.subr.mxu0 0.0
        %1188 = vmatpush1.msra.mxu0 0.0
        %1189 = vmatprep.subr.mxu0 0.0
        %1190 = vmatpush1.msra.mxu0 0.0
        %1191 = vmatprep.subr.mxu0 0.0
        %1192 = vmatpush1.msra.mxu0 0.0
        %1193 = vmatprep.subr.mxu0 0.0
        %1194 = vmatpush1.msra.mxu0 0.0
        %1195 = vmatprep.subr.mxu0 0.0
        %1196 = vmatpush1.msra.mxu0 0.0
        %1197 = vmatprep.subr.mxu0 0.0
        %1198 = vmatpush1.msra.mxu0 0.0
        %1199 = vmatprep.subr.mxu0 0.0
        %1200 = vmatpush1.msra.mxu0 0.0
        %1201 = vmatprep.subr.mxu0 0.0
        %1202 = vmatpush1.msra.mxu0 0.0
        %1203 = vmatprep.subr.mxu0 0.0
        %1204 = vmatpush1.msra.mxu0 0.0
        %1205 = vmatprep.subr.mxu0 0.0
        %1206 = vmatpush1.msra.mxu0 0.0
        %1207 = vmatprep.subr.mxu0 0.0
        %1208 = vmatpush1.msra.mxu0 0.0
        %1209 = vmatprep.subr.mxu0 0.0
        %1210 = vmatpush1.msra.mxu0 0.0
        %1211 = vmatprep.subr.mxu0 0.0
        %1212 = vmatpush1.msra.mxu0 0.0
        %1213 = vmatprep.subr.mxu0 0.0
        %1214 = vmatpush1.msra.mxu0 0.0
        %1215 = vmatprep.subr.mxu0 0.0
        %1216 = vmatpush1.msra.mxu0 0.0
        %1217 = vmatprep.subr.mxu0 0.0
        %1218 = vmatpush1.msra.mxu0 %v741
        %1219 = vmatprep.subr.mxu0 0.0
        %1220 = vmatpush2.msra.mxu0 0.0
        %1221 = vmatprep.subr.mxu0 0.0
        %1222 = vmatpush2.msra.mxu0 0.0
        %1223 = vmatprep.subr.mxu0 0.0
        %1224 = vmatpush2.msra.mxu0 0.0
        %1225 = vmatprep.subr.mxu0 0.0
        %1226 = vmatpush2.msra.mxu0 0.0
        %1227 = vmatprep.subr.mxu0 0.0
        %1228 = vmatpush2.msra.mxu0 0.0
        %1229 = vmatprep.subr.mxu0 0.0
        %1230 = vmatpush2.msra.mxu0 0.0
        %1231 = vmatprep.subr.mxu0 0.0
        %1232 = vmatpush2.msra.mxu0 0.0
        %1233 = vmatprep.subr.mxu0 0.0
        %1234 = vmatpush2.msra.mxu0 0.0
        %1235 = vmatprep.subr.mxu0 0.0
        %1236 = vmatpush2.msra.mxu0 0.0
        %1237 = vmatprep.subr.mxu0 0.0
        %1238 = vmatpush2.msra.mxu0 0.0
        %1239 = vmatprep.subr.mxu0 0.0
        %1240 = vmatpush2.msra.mxu0 0.0
        %1241 = vmatprep.subr.mxu0 0.0
        %1242 = vmatpush2.msra.mxu0 0.0
        %1243 = vmatprep.subr.mxu0 0.0
        %1244 = vmatpush2.msra.mxu0 0.0
        %1245 = vmatprep.subr.mxu0 0.0
        %1246 = vmatpush2.msra.mxu0 0.0
        %1247 = vmatprep.subr.mxu0 0.0
        %1248 = vmatpush2.msra.mxu0 0.0
        %1249 = vmatprep.subr.mxu0 0.0
        %1250 = vmatpush2.msra.mxu0 0.0
        %1251 = vmatprep.mubr.f32.mxu0 0.0
        %1252 = vmatmul.mubr.f32.gmra.mxu0 %v1123
        %v1253 = vpop.f32.mrf.mxu0
        %v1254 = vadd.f32 %v965, %v1253
        %v1255 = vpop.f32.mrf.mxu0
        %1256 = vmatprep.mubr.f32.mxu0 0.0
        %1257 = vmatmul.mubr.f32.gmra.mxu0 %v1125
        %v1258 = vpop.f32.mrf.mxu0
        %v1259 = vadd.f32 %v970, %v1258
        %v1260 = vpop.f32.mrf.mxu0
        %1261 = vmatprep.mubr.f32.mxu0 0.0
        %1262 = vmatmul.mubr.f32.gmra.mxu0 %v1127
        %v1263 = vpop.f32.mrf.mxu0
        %v1264 = vadd.f32 %v975, %v1263
        %v1265 = vpop.f32.mrf.mxu0
        %1266 = vmatprep.mubr.f32.mxu0 0.0
        %1267 = vmatmul.mubr.f32.gmra.mxu0 %v1129
        %v1268 = vpop.f32.mrf.mxu0
        %v1269 = vadd.f32 %v980, %v1268
        %v1270 = vpop.f32.mrf.mxu0
        %1271 = vmatprep.mubr.f32.mxu0 0.0
        %1272 = vmatmul.mubr.f32.gmra.mxu0 %v1131
        %v1273 = vpop.f32.mrf.mxu0
        %v1274 = vadd.f32 %v985, %v1273
        %v1275 = vpop.f32.mrf.mxu0
        %1276 = vmatprep.mubr.f32.mxu0 0.0
        %1277 = vmatmul.mubr.f32.gmra.mxu0 %v1133
        %v1278 = vpop.f32.mrf.mxu0
        %v1279 = vadd.f32 %v990, %v1278
        %v1280 = vpop.f32.mrf.mxu0
        %1281 = vmatprep.mubr.f32.mxu0 0.0
        %1282 = vmatmul.mubr.f32.gmra.mxu0 %v1135
        %v1283 = vpop.f32.mrf.mxu0
        %v1284 = vadd.f32 %v995, %v1283
        %v1285 = vpop.f32.mrf.mxu0
        %1286 = vmatprep.mubr.f32.mxu0 0.0
        %1287 = vmatmul.mubr.f32.gmra.mxu0 %v1137
        %v1288 = vpop.f32.mrf.mxu0
        %v1289 = vadd.f32 %v1000, %v1288
        %v1290 = vpop.f32.mrf.mxu0
        %1291 = vmatprep.mubr.f32.mxu0 0.0
        %1292 = vmatmul.mubr.f32.gmra.mxu0 %v1139
        %v1293 = vpop.f32.mrf.mxu0
        %v1294 = vadd.f32 %v1005, %v1293
        %v1295 = vpop.f32.mrf.mxu0
        %1296 = vmatprep.mubr.f32.mxu0 0.0
        %1297 = vmatmul.mubr.f32.gmra.mxu0 %v1141
        %v1298 = vpop.f32.mrf.mxu0
        %v1299 = vadd.f32 %v1010, %v1298
        %v1300 = vpop.f32.mrf.mxu0
        %1301 = vmatprep.mubr.f32.mxu0 0.0
        %1302 = vmatmul.mubr.f32.gmra.mxu0 %v1143
        %v1303 = vpop.f32.mrf.mxu0
        %v1304 = vadd.f32 %v1015, %v1303
        %v1305 = vpop.f32.mrf.mxu0
        %1306 = vmatprep.mubr.f32.mxu0 0.0
        %1307 = vmatmul.mubr.f32.gmra.mxu0 %v1145
        %v1308 = vpop.f32.mrf.mxu0
        %v1309 = vadd.f32 %v1020, %v1308
        %v1310 = vpop.f32.mrf.mxu0
        %1311 = vmatprep.mubr.f32.mxu0 0.0
        %1312 = vmatmul.mubr.f32.gmra.mxu0 %v1147
        %v1313 = vpop.f32.mrf.mxu0
        %v1314 = vadd.f32 %v1025, %v1313
        %v1315 = vpop.f32.mrf.mxu0
        %1316 = vmatprep.mubr.f32.mxu0 0.0
        %1317 = vmatmul.mubr.f32.gmra.mxu0 %v1149
        %v1318 = vpop.f32.mrf.mxu0
        %v1319 = vadd.f32 %v1030, %v1318
        %v1320 = vpop.f32.mrf.mxu0
        %1321 = vmatprep.mubr.f32.mxu0 0.0
        %1322 = vmatmul.mubr.f32.gmra.mxu0 %v1151
        %v1323 = vpop.f32.mrf.mxu0
        %v1324 = vadd.f32 %v1035, %v1323
        %v1325 = vpop.f32.mrf.mxu0
        %1326 = vmatprep.mubr.f32.mxu0 0.0
        %1327 = vmatmul.mubr.f32.gmra.mxu0 %v1153
        %v1328 = vpop.f32.mrf.mxu0
        %v1329 = vadd.f32 %v1040, %v1328
        %v1330 = vpop.f32.mrf.mxu0
        %1331 = vmatprep.mubr.f32.mxu0 0.0
        %1332 = vmatmul.mubr.f32.gmra.mxu0 %v1155
        %v1333 = vpop.f32.mrf.mxu0
        %v1334 = vadd.f32 %v1045, %v1333
        %v1335 = vpop.f32.mrf.mxu0
        %1336 = vmatprep.mubr.f32.mxu0 0.0
        %1337 = vmatmul.mubr.f32.gmra.mxu0 %v1157
        %v1338 = vpop.f32.mrf.mxu0
        %v1339 = vadd.f32 %v1050, %v1338
        %v1340 = vpop.f32.mrf.mxu0
        %1341 = vmatprep.mubr.f32.mxu0 0.0
        %1342 = vmatmul.mubr.f32.gmra.mxu0 %v1159
        %v1343 = vpop.f32.mrf.mxu0
        %v1344 = vadd.f32 %v1055, %v1343
        %v1345 = vpop.f32.mrf.mxu0
        %1346 = vmatprep.mubr.f32.mxu0 0.0
        %1347 = vmatmul.mubr.f32.gmra.mxu0 %v1161
        %v1348 = vpop.f32.mrf.mxu0
        %v1349 = vadd.f32 %v1060, %v1348
        %v1350 = vpop.f32.mrf.mxu0
        %1351 = vmatprep.mubr.f32.mxu0 0.0
        %1352 = vmatmul.mubr.f32.gmra.mxu0 %v1163
        %v1353 = vpop.f32.mrf.mxu0
        %v1354 = vadd.f32 %v1065, %v1353
        %v1355 = vpop.f32.mrf.mxu0
        %1356 = vmatprep.mubr.f32.mxu0 0.0
        %1357 = vmatmul.mubr.f32.gmra.mxu0 %v1165
        %v1358 = vpop.f32.mrf.mxu0
        %v1359 = vadd.f32 %v1070, %v1358
        %v1360 = vpop.f32.mrf.mxu0
        %1361 = vmatprep.mubr.f32.mxu0 0.0
        %1362 = vmatmul.mubr.f32.gmra.mxu0 %v1167
        %v1363 = vpop.f32.mrf.mxu0
        %v1364 = vadd.f32 %v1075, %v1363
        %v1365 = vpop.f32.mrf.mxu0
        %1366 = vmatprep.mubr.f32.mxu0 0.0
        %1367 = vmatmul.mubr.f32.gmra.mxu0 %v1169
        %v1368 = vpop.f32.mrf.mxu0
        %v1369 = vadd.f32 %v1080, %v1368
        %v1370 = vpop.f32.mrf.mxu0
        %1371 = vmatprep.mubr.f32.mxu0 0.0
        %1372 = vmatmul.mubr.f32.gmra.mxu0 %v1171
        %v1373 = vpop.f32.mrf.mxu0
        %v1374 = vadd.f32 %v1085, %v1373
        %v1375 = vpop.f32.mrf.mxu0
        %1376 = vmatprep.mubr.f32.mxu0 0.0
        %1377 = vmatmul.mubr.f32.gmra.mxu0 %v1173
        %v1378 = vpop.f32.mrf.mxu0
        %v1379 = vadd.f32 %v1090, %v1378
        %v1380 = vpop.f32.mrf.mxu0
        %1381 = vmatprep.mubr.f32.mxu0 0.0
        %1382 = vmatmul.mubr.f32.gmra.mxu0 %v1175
        %v1383 = vpop.f32.mrf.mxu0
        %v1384 = vadd.f32 %v1095, %v1383
        %v1385 = vpop.f32.mrf.mxu0
        %1386 = vmatprep.mubr.f32.mxu0 0.0
        %1387 = vmatmul.mubr.f32.gmra.mxu0 %v1177
        %v1388 = vpop.f32.mrf.mxu0
        %v1389 = vadd.f32 %v1100, %v1388
        %v1390 = vpop.f32.mrf.mxu0
        %1391 = vmatprep.mubr.f32.mxu0 0.0
        %1392 = vmatmul.mubr.f32.gmra.mxu0 %v1179
        %v1393 = vpop.f32.mrf.mxu0
        %v1394 = vadd.f32 %v1105, %v1393
        %v1395 = vpop.f32.mrf.mxu0
        %1396 = vmatprep.mubr.f32.mxu0 0.0
        %1397 = vmatmul.mubr.f32.gmra.mxu0 %v1181
        %v1398 = vpop.f32.mrf.mxu0
        %v1399 = vadd.f32 %v1110, %v1398
        %v1400 = vpop.f32.mrf.mxu0
        %1401 = vmatprep.mubr.f32.mxu0 0.0
        %1402 = vmatmul.mubr.f32.gmra.mxu0 %v1183
        %v1403 = vpop.f32.mrf.mxu0
        %v1404 = vadd.f32 %v1115, %v1403
        %v1405 = vpop.f32.mrf.mxu0
        %1406 = vmatprep.mubr.f32.mxu0 0.0
        %1407 = vmatmul.mubr.f32.gmra.mxu0 %v1185
        %v1408 = vpop.f32.mrf.mxu0
        %v1409 = vadd.f32 %v1120, %v1408
        %v1410 = vpop.f32.mrf.mxu0
        %1411 = vdwg.mxu0
        %vm1412 = vcmask 1045504
        %v1413 = vrot.slane %v721, 2
        %v1414 = vrot.slane %v633, 2
        %v1415 = vsel %vm1412, %v1413, %v1414
        %v1416 = vrot.slane %v635, 2
        %v1417 = vsel %vm1412, %v1414, %v1416
        %v1418 = vrot.slane %v637, 2
        %v1419 = vsel %vm1412, %v1416, %v1418
        %v1420 = vrot.slane %v731, 2
        %v1421 = vsel %vm1412, %v1418, %v1420
        %v1422 = vrot.slane %v722, 2
        %v1423 = vrot.slane %v640, 2
        %v1424 = vsel %vm1412, %v1422, %v1423
        %v1425 = vrot.slane %v642, 2
        %v1426 = vsel %vm1412, %v1423, %v1425
        %v1427 = vrot.slane %v644, 2
        %v1428 = vsel %vm1412, %v1425, %v1427
        %v1429 = vrot.slane %v732, 2
        %v1430 = vsel %vm1412, %v1427, %v1429
        %v1431 = vrot.slane %v723, 2
        %v1432 = vrot.slane %v647, 2
        %v1433 = vsel %vm1412, %v1431, %v1432
        %v1434 = vrot.slane %v649, 2
        %v1435 = vsel %vm1412, %v1432, %v1434
        %v1436 = vrot.slane %v651, 2
        %v1437 = vsel %vm1412, %v1434, %v1436
        %v1438 = vrot.slane %v733, 2
        %v1439 = vsel %vm1412, %v1436, %v1438
        %v1440 = vrot.slane %v724, 2
        %v1441 = vrot.slane %v654, 2
        %v1442 = vsel %vm1412, %v1440, %v1441
        %v1443 = vrot.slane %v656, 2
        %v1444 = vsel %vm1412, %v1441, %v1443
        %v1445 = vrot.slane %v658, 2
        %v1446 = vsel %vm1412, %v1443, %v1445
        %v1447 = vrot.slane %v734, 2
        %v1448 = vsel %vm1412, %v1445, %v1447
        %v1449 = vrot.slane %v725, 2
        %v1450 = vrot.slane %v661, 2
        %v1451 = vsel %vm1412, %v1449, %v1450
        %v1452 = vrot.slane %v663, 2
        %v1453 = vsel %vm1412, %v1450, %v1452
        %v1454 = vrot.slane %v665, 2
        %v1455 = vsel %vm1412, %v1452, %v1454
        %v1456 = vrot.slane %v735, 2
        %v1457 = vsel %vm1412, %v1454, %v1456
        %v1458 = vrot.slane %v726, 2
        %v1459 = vrot.slane %v668, 2
        %v1460 = vsel %vm1412, %v1458, %v1459
        %v1461 = vrot.slane %v670, 2
        %v1462 = vsel %vm1412, %v1459, %v1461
        %v1463 = vrot.slane %v672, 2
        %v1464 = vsel %vm1412, %v1461, %v1463
        %v1465 = vrot.slane %v736, 2
        %v1466 = vsel %vm1412, %v1463, %v1465
        %v1467 = vrot.slane %v727, 2
        %v1468 = vrot.slane %v675, 2
        %v1469 = vsel %vm1412, %v1467, %v1468
        %v1470 = vrot.slane %v677, 2
        %v1471 = vsel %vm1412, %v1468, %v1470
        %v1472 = vrot.slane %v679, 2
        %v1473 = vsel %vm1412, %v1470, %v1472
        %v1474 = vrot.slane %v737, 2
        %v1475 = vsel %vm1412, %v1472, %v1474
        %v1476 = vrot.slane %v728, 2
        %v1477 = vrot.slane %v682, 2
        %v1478 = vsel %vm1412, %v1476, %v1477
        %v1479 = vrot.slane %v684, 2
        %v1480 = vsel %vm1412, %v1477, %v1479
        %v1481 = vrot.slane %v686, 2
        %v1482 = vsel %vm1412, %v1479, %v1481
        %v1483 = vrot.slane %v738, 2
        %v1484 = vsel %vm1412, %v1481, %v1483
        %s1485 = scalar_lea.vmem %s4, 16
        %v1486 = vld [vmem:[%s1485] sm:$0xff]
        %v1487 = vsel %vm833, %v1415, 0
        %v1489 = vsel %vm833, %v1417, 0
        %v1491 = vsel %vm833, %v1419, 0
        %v1493 = vsel %vm833, %v1421, 0
        %v1495 = vsel %vm833, %v1424, 0
        %v1497 = vsel %vm833, %v1426, 0
        %v1499 = vsel %vm833, %v1428, 0
        %v1501 = vsel %vm833, %v1430, 0
        %v1503 = vsel %vm833, %v1433, 0
        %v1505 = vsel %vm833, %v1435, 0
        %v1507 = vsel %vm833, %v1437, 0
        %v1509 = vsel %vm833, %v1439, 0
        %v1511 = vsel %vm833, %v1442, 0
        %v1513 = vsel %vm833, %v1444, 0
        %v1515 = vsel %vm833, %v1446, 0
        %v1517 = vsel %vm833, %v1448, 0
        %v1519 = vsel %vm833, %v1451, 0
        %v1521 = vsel %vm833, %v1453, 0
        %v1523 = vsel %vm833, %v1455, 0
        %v1525 = vsel %vm833, %v1457, 0
        %v1527 = vsel %vm833, %v1460, 0
        %v1529 = vsel %vm833, %v1462, 0
        %v1531 = vsel %vm833, %v1464, 0
        %v1533 = vsel %vm833, %v1466, 0
        %v1535 = vsel %vm833, %v1469, 0
        %v1537 = vsel %vm833, %v1471, 0
        %v1539 = vsel %vm833, %v1473, 0
        %v1541 = vsel %vm833, %v1475, 0
        %v1543 = vsel %vm833, %v1478, 0
        %v1545 = vsel %vm833, %v1480, 0
        %v1547 = vsel %vm833, %v1482, 0
        %v1549 = vsel %vm833, %v1484, 0
        %1551 = vmatprep.subr.mxu0 0.0
        %1552 = vmatpush1.msra.mxu0 0.0
        %1553 = vmatprep.subr.mxu0 0.0
        %1554 = vmatpush1.msra.mxu0 0.0
        %1555 = vmatprep.subr.mxu0 0.0
        %1556 = vmatpush1.msra.mxu0 0.0
        %1557 = vmatprep.subr.mxu0 0.0
        %1558 = vmatpush1.msra.mxu0 0.0
        %1559 = vmatprep.subr.mxu0 0.0
        %1560 = vmatpush1.msra.mxu0 0.0
        %1561 = vmatprep.subr.mxu0 0.0
        %1562 = vmatpush1.msra.mxu0 0.0
        %1563 = vmatprep.subr.mxu0 0.0
        %1564 = vmatpush1.msra.mxu0 0.0
        %1565 = vmatprep.subr.mxu0 0.0
        %1566 = vmatpush1.msra.mxu0 0.0
        %1567 = vmatprep.subr.mxu0 0.0
        %1568 = vmatpush1.msra.mxu0 0.0
        %1569 = vmatprep.subr.mxu0 0.0
        %1570 = vmatpush1.msra.mxu0 0.0
        %1571 = vmatprep.subr.mxu0 0.0
        %1572 = vmatpush1.msra.mxu0 0.0
        %1573 = vmatprep.subr.mxu0 0.0
        %1574 = vmatpush1.msra.mxu0 0.0
        %1575 = vmatprep.subr.mxu0 0.0
        %1576 = vmatpush1.msra.mxu0 0.0
        %1577 = vmatprep.subr.mxu0 0.0
        %1578 = vmatpush1.msra.mxu0 0.0
        %1579 = vmatprep.subr.mxu0 0.0
        %1580 = vmatpush1.msra.mxu0 0.0
        %1581 = vmatprep.subr.mxu0 0.0
        %1582 = vmatpush1.msra.mxu0 %v1486
        %1583 = vmatprep.subr.mxu0 0.0
        %1584 = vmatpush2.msra.mxu0 0.0
        %1585 = vmatprep.subr.mxu0 0.0
        %1586 = vmatpush2.msra.mxu0 0.0
        %1587 = vmatprep.subr.mxu0 0.0
        %1588 = vmatpush2.msra.mxu0 0.0
        %1589 = vmatprep.subr.mxu0 0.0
        %1590 = vmatpush2.msra.mxu0 0.0
        %1591 = vmatprep.subr.mxu0 0.0
        %1592 = vmatpush2.msra.mxu0 0.0
        %1593 = vmatprep.subr.mxu0 0.0
        %1594 = vmatpush2.msra.mxu0 0.0
        %1595 = vmatprep.subr.mxu0 0.0
        %1596 = vmatpush2.msra.mxu0 0.0
        %1597 = vmatprep.subr.mxu0 0.0
        %1598 = vmatpush2.msra.mxu0 0.0
        %1599 = vmatprep.subr.mxu0 0.0
        %1600 = vmatpush2.msra.mxu0 0.0
        %1601 = vmatprep.subr.mxu0 0.0
        %1602 = vmatpush2.msra.mxu0 0.0
        %1603 = vmatprep.subr.mxu0 0.0
        %1604 = vmatpush2.msra.mxu0 0.0
        %1605 = vmatprep.subr.mxu0 0.0
        %1606 = vmatpush2.msra.mxu0 0.0
        %1607 = vmatprep.subr.mxu0 0.0
        %1608 = vmatpush2.msra.mxu0 0.0
        %1609 = vmatprep.subr.mxu0 0.0
        %1610 = vmatpush2.msra.mxu0 0.0
        %1611 = vmatprep.subr.mxu0 0.0
        %1612 = vmatpush2.msra.mxu0 0.0
        %1613 = vmatprep.subr.mxu0 0.0
        %1614 = vmatpush2.msra.mxu0 0.0
        %1615 = vmatprep.mubr.f32.mxu0 0.0
        %1616 = vmatmul.mubr.f32.gmra.mxu0 %v1487
        %v1617 = vpop.f32.mrf.mxu0
        %v1618 = vadd.f32 0.0, %v1617
        %v1619 = vpop.f32.mrf.mxu0
        %1620 = vmatprep.mubr.f32.mxu0 0.0
        %1621 = vmatmul.mubr.f32.gmra.mxu0 %v1489
        %v1622 = vpop.f32.mrf.mxu0
        %v1623 = vadd.f32 0.0, %v1622
        %v1624 = vpop.f32.mrf.mxu0
        %1625 = vmatprep.mubr.f32.mxu0 0.0
        %1626 = vmatmul.mubr.f32.gmra.mxu0 %v1491
        %v1627 = vpop.f32.mrf.mxu0
        %v1628 = vadd.f32 0.0, %v1627
        %v1629 = vpop.f32.mrf.mxu0
        %1630 = vmatprep.mubr.f32.mxu0 0.0
        %1631 = vmatmul.mubr.f32.gmra.mxu0 %v1493
        %v1632 = vpop.f32.mrf.mxu0
        %v1633 = vadd.f32 0.0, %v1632
        %v1634 = vpop.f32.mrf.mxu0
        %1635 = vmatprep.mubr.f32.mxu0 0.0
        %1636 = vmatmul.mubr.f32.gmra.mxu0 %v1495
        %v1637 = vpop.f32.mrf.mxu0
        %v1638 = vadd.f32 0.0, %v1637
        %v1639 = vpop.f32.mrf.mxu0
        %1640 = vmatprep.mubr.f32.mxu0 0.0
        %1641 = vmatmul.mubr.f32.gmra.mxu0 %v1497
        %v1642 = vpop.f32.mrf.mxu0
        %v1643 = vadd.f32 0.0, %v1642
        %v1644 = vpop.f32.mrf.mxu0
        %1645 = vmatprep.mubr.f32.mxu0 0.0
        %1646 = vmatmul.mubr.f32.gmra.mxu0 %v1499
        %v1647 = vpop.f32.mrf.mxu0
        %v1648 = vadd.f32 0.0, %v1647
        %v1649 = vpop.f32.mrf.mxu0
        %1650 = vmatprep.mubr.f32.mxu0 0.0
        %1651 = vmatmul.mubr.f32.gmra.mxu0 %v1501
        %v1652 = vpop.f32.mrf.mxu0
        %v1653 = vadd.f32 0.0, %v1652
        %v1654 = vpop.f32.mrf.mxu0
        %1655 = vmatprep.mubr.f32.mxu0 0.0
        %1656 = vmatmul.mubr.f32.gmra.mxu0 %v1503
        %v1657 = vpop.f32.mrf.mxu0
        %v1658 = vadd.f32 0.0, %v1657
        %v1659 = vpop.f32.mrf.mxu0
        %1660 = vmatprep.mubr.f32.mxu0 0.0
        %1661 = vmatmul.mubr.f32.gmra.mxu0 %v1505
        %v1662 = vpop.f32.mrf.mxu0
        %v1663 = vadd.f32 0.0, %v1662
        %v1664 = vpop.f32.mrf.mxu0
        %1665 = vmatprep.mubr.f32.mxu0 0.0
        %1666 = vmatmul.mubr.f32.gmra.mxu0 %v1507
        %v1667 = vpop.f32.mrf.mxu0
        %v1668 = vadd.f32 0.0, %v1667
        %v1669 = vpop.f32.mrf.mxu0
        %1670 = vmatprep.mubr.f32.mxu0 0.0
        %1671 = vmatmul.mubr.f32.gmra.mxu0 %v1509
        %v1672 = vpop.f32.mrf.mxu0
        %v1673 = vadd.f32 0.0, %v1672
        %v1674 = vpop.f32.mrf.mxu0
        %1675 = vmatprep.mubr.f32.mxu0 0.0
        %1676 = vmatmul.mubr.f32.gmra.mxu0 %v1511
        %v1677 = vpop.f32.mrf.mxu0
        %v1678 = vadd.f32 0.0, %v1677
        %v1679 = vpop.f32.mrf.mxu0
        %1680 = vmatprep.mubr.f32.mxu0 0.0
        %1681 = vmatmul.mubr.f32.gmra.mxu0 %v1513
        %v1682 = vpop.f32.mrf.mxu0
        %v1683 = vadd.f32 0.0, %v1682
        %v1684 = vpop.f32.mrf.mxu0
        %1685 = vmatprep.mubr.f32.mxu0 0.0
        %1686 = vmatmul.mubr.f32.gmra.mxu0 %v1515
        %v1687 = vpop.f32.mrf.mxu0
        %v1688 = vadd.f32 0.0, %v1687
        %v1689 = vpop.f32.mrf.mxu0
        %1690 = vmatprep.mubr.f32.mxu0 0.0
        %1691 = vmatmul.mubr.f32.gmra.mxu0 %v1517
        %v1692 = vpop.f32.mrf.mxu0
        %v1693 = vadd.f32 0.0, %v1692
        %v1694 = vpop.f32.mrf.mxu0
        %1695 = vmatprep.mubr.f32.mxu0 0.0
        %1696 = vmatmul.mubr.f32.gmra.mxu0 %v1519
        %v1697 = vpop.f32.mrf.mxu0
        %v1698 = vadd.f32 0.0, %v1697
        %v1699 = vpop.f32.mrf.mxu0
        %1700 = vmatprep.mubr.f32.mxu0 0.0
        %1701 = vmatmul.mubr.f32.gmra.mxu0 %v1521
        %v1702 = vpop.f32.mrf.mxu0
        %v1703 = vadd.f32 0.0, %v1702
        %v1704 = vpop.f32.mrf.mxu0
        %1705 = vmatprep.mubr.f32.mxu0 0.0
        %1706 = vmatmul.mubr.f32.gmra.mxu0 %v1523
        %v1707 = vpop.f32.mrf.mxu0
        %v1708 = vadd.f32 0.0, %v1707
        %v1709 = vpop.f32.mrf.mxu0
        %1710 = vmatprep.mubr.f32.mxu0 0.0
        %1711 = vmatmul.mubr.f32.gmra.mxu0 %v1525
        %v1712 = vpop.f32.mrf.mxu0
        %v1713 = vadd.f32 0.0, %v1712
        %v1714 = vpop.f32.mrf.mxu0
        %1715 = vmatprep.mubr.f32.mxu0 0.0
        %1716 = vmatmul.mubr.f32.gmra.mxu0 %v1527
        %v1717 = vpop.f32.mrf.mxu0
        %v1718 = vadd.f32 0.0, %v1717
        %v1719 = vpop.f32.mrf.mxu0
        %1720 = vmatprep.mubr.f32.mxu0 0.0
        %1721 = vmatmul.mubr.f32.gmra.mxu0 %v1529
        %v1722 = vpop.f32.mrf.mxu0
        %v1723 = vadd.f32 0.0, %v1722
        %v1724 = vpop.f32.mrf.mxu0
        %1725 = vmatprep.mubr.f32.mxu0 0.0
        %1726 = vmatmul.mubr.f32.gmra.mxu0 %v1531
        %v1727 = vpop.f32.mrf.mxu0
        %v1728 = vadd.f32 0.0, %v1727
        %v1729 = vpop.f32.mrf.mxu0
        %1730 = vmatprep.mubr.f32.mxu0 0.0
        %1731 = vmatmul.mubr.f32.gmra.mxu0 %v1533
        %v1732 = vpop.f32.mrf.mxu0
        %v1733 = vadd.f32 0.0, %v1732
        %v1734 = vpop.f32.mrf.mxu0
        %1735 = vmatprep.mubr.f32.mxu0 0.0
        %1736 = vmatmul.mubr.f32.gmra.mxu0 %v1535
        %v1737 = vpop.f32.mrf.mxu0
        %v1738 = vadd.f32 0.0, %v1737
        %v1739 = vpop.f32.mrf.mxu0
        %1740 = vmatprep.mubr.f32.mxu0 0.0
        %1741 = vmatmul.mubr.f32.gmra.mxu0 %v1537
        %v1742 = vpop.f32.mrf.mxu0
        %v1743 = vadd.f32 0.0, %v1742
        %v1744 = vpop.f32.mrf.mxu0
        %1745 = vmatprep.mubr.f32.mxu0 0.0
        %1746 = vmatmul.mubr.f32.gmra.mxu0 %v1539
        %v1747 = vpop.f32.mrf.mxu0
        %v1748 = vadd.f32 0.0, %v1747
        %v1749 = vpop.f32.mrf.mxu0
        %1750 = vmatprep.mubr.f32.mxu0 0.0
        %1751 = vmatmul.mubr.f32.gmra.mxu0 %v1541
        %v1752 = vpop.f32.mrf.mxu0
        %v1753 = vadd.f32 0.0, %v1752
        %v1754 = vpop.f32.mrf.mxu0
        %1755 = vmatprep.mubr.f32.mxu0 0.0
        %1756 = vmatmul.mubr.f32.gmra.mxu0 %v1543
        %v1757 = vpop.f32.mrf.mxu0
        %v1758 = vadd.f32 0.0, %v1757
        %v1759 = vpop.f32.mrf.mxu0
        %1760 = vmatprep.mubr.f32.mxu0 0.0
        %1761 = vmatmul.mubr.f32.gmra.mxu0 %v1545
        %v1762 = vpop.f32.mrf.mxu0
        %v1763 = vadd.f32 0.0, %v1762
        %v1764 = vpop.f32.mrf.mxu0
        %1765 = vmatprep.mubr.f32.mxu0 0.0
        %1766 = vmatmul.mubr.f32.gmra.mxu0 %v1547
        %v1767 = vpop.f32.mrf.mxu0
        %v1768 = vadd.f32 0.0, %v1767
        %v1769 = vpop.f32.mrf.mxu0
        %1770 = vmatprep.mubr.f32.mxu0 0.0
        %1771 = vmatmul.mubr.f32.gmra.mxu0 %v1549
        %v1772 = vpop.f32.mrf.mxu0
        %v1773 = vadd.f32 0.0, %v1772
        %v1774 = vpop.f32.mrf.mxu0
        %1775 = vdwg.mxu0
        %v1776 = vadd.f32 %v1254, %v1618
        %v1777 = vadd.f32 %v1259, %v1623
        %v1778 = vadd.f32 %v1264, %v1628
        %v1779 = vadd.f32 %v1269, %v1633
        %v1780 = vadd.f32 %v1274, %v1638
        %v1781 = vadd.f32 %v1279, %v1643
        %v1782 = vadd.f32 %v1284, %v1648
        %v1783 = vadd.f32 %v1289, %v1653
        %v1784 = vadd.f32 %v1294, %v1658
        %v1785 = vadd.f32 %v1299, %v1663
        %v1786 = vadd.f32 %v1304, %v1668
        %v1787 = vadd.f32 %v1309, %v1673
        %v1788 = vadd.f32 %v1314, %v1678
        %v1789 = vadd.f32 %v1319, %v1683
        %v1790 = vadd.f32 %v1324, %v1688
        %v1791 = vadd.f32 %v1329, %v1693
        %v1792 = vadd.f32 %v1334, %v1698
        %v1793 = vadd.f32 %v1339, %v1703
        %v1794 = vadd.f32 %v1344, %v1708
        %v1795 = vadd.f32 %v1349, %v1713
        %v1796 = vadd.f32 %v1354, %v1718
        %v1797 = vadd.f32 %v1359, %v1723
        %v1798 = vadd.f32 %v1364, %v1728
        %v1799 = vadd.f32 %v1369, %v1733
        %v1800 = vadd.f32 %v1374, %v1738
        %v1801 = vadd.f32 %v1379, %v1743
        %v1802 = vadd.f32 %v1384, %v1748
        %v1803 = vadd.f32 %v1389, %v1753
        %v1804 = vadd.f32 %v1394, %v1758
        %v1805 = vadd.f32 %v1399, %v1763
        %v1806 = vadd.f32 %v1404, %v1768
        %v1807 = vadd.f32 %v1409, %v1773
        %s1808 = scalar_lea.vmem %s4, 24
        %v1809 = vld [vmem:[%s1808] sm:$0xff]
        %v1811 = vsel %vm833, %v729, 0
        %v1813 = vsel %vm833, %v689, 0
        %v1815 = vsel %vm833, %v691, 0
        %v1817 = vsel %vm833, %v693, 0
        %1819 = vmatprep.subr.mxu0 0.0
        %1820 = vmatpush1.msra.mxu0 0.0
        %1821 = vmatprep.subr.mxu0 0.0
        %1822 = vmatpush1.msra.mxu0 0.0
        %1823 = vmatprep.subr.mxu0 0.0
        %1824 = vmatpush1.msra.mxu0 0.0
        %1825 = vmatprep.subr.mxu0 0.0
        %1826 = vmatpush1.msra.mxu0 0.0
        %1827 = vmatprep.subr.mxu0 0.0
        %1828 = vmatpush1.msra.mxu0 0.0
        %1829 = vmatprep.subr.mxu0 0.0
        %1830 = vmatpush1.msra.mxu0 0.0
        %1831 = vmatprep.subr.mxu0 0.0
        %1832 = vmatpush1.msra.mxu0 0.0
        %1833 = vmatprep.subr.mxu0 0.0
        %1834 = vmatpush1.msra.mxu0 0.0
        %1835 = vmatprep.subr.mxu0 0.0
        %1836 = vmatpush1.msra.mxu0 0.0
        %1837 = vmatprep.subr.mxu0 0.0
        %1838 = vmatpush1.msra.mxu0 0.0
        %1839 = vmatprep.subr.mxu0 0.0
        %1840 = vmatpush1.msra.mxu0 0.0
        %1841 = vmatprep.subr.mxu0 0.0
        %1842 = vmatpush1.msra.mxu0 0.0
        %1843 = vmatprep.subr.mxu0 0.0
        %1844 = vmatpush1.msra.mxu0 0.0
        %1845 = vmatprep.subr.mxu0 0.0
        %1846 = vmatpush1.msra.mxu0 0.0
        %1847 = vmatprep.subr.mxu0 0.0
        %1848 = vmatpush1.msra.mxu0 0.0
        %1849 = vmatprep.subr.mxu0 0.0
        %1850 = vmatpush1.msra.mxu0 %v1809
        %1851 = vmatprep.subr.mxu0 0.0
        %1852 = vmatpush2.msra.mxu0 0.0
        %1853 = vmatprep.subr.mxu0 0.0
        %1854 = vmatpush2.msra.mxu0 0.0
        %1855 = vmatprep.subr.mxu0 0.0
        %1856 = vmatpush2.msra.mxu0 0.0
        %1857 = vmatprep.subr.mxu0 0.0
        %1858 = vmatpush2.msra.mxu0 0.0
        %1859 = vmatprep.subr.mxu0 0.0
        %1860 = vmatpush2.msra.mxu0 0.0
        %1861 = vmatprep.subr.mxu0 0.0
        %1862 = vmatpush2.msra.mxu0 0.0
        %1863 = vmatprep.subr.mxu0 0.0
        %1864 = vmatpush2.msra.mxu0 0.0
        %1865 = vmatprep.subr.mxu0 0.0
        %1866 = vmatpush2.msra.mxu0 0.0
        %1867 = vmatprep.subr.mxu0 0.0
        %1868 = vmatpush2.msra.mxu0 0.0
        %1869 = vmatprep.subr.mxu0 0.0
        %1870 = vmatpush2.msra.mxu0 0.0
        %1871 = vmatprep.subr.mxu0 0.0
        %1872 = vmatpush2.msra.mxu0 0.0
        %1873 = vmatprep.subr.mxu0 0.0
        %1874 = vmatpush2.msra.mxu0 0.0
        %1875 = vmatprep.subr.mxu0 0.0
        %1876 = vmatpush2.msra.mxu0 0.0
        %1877 = vmatprep.subr.mxu0 0.0
        %1878 = vmatpush2.msra.mxu0 0.0
        %1879 = vmatprep.subr.mxu0 0.0
        %1880 = vmatpush2.msra.mxu0 0.0
        %1881 = vmatprep.subr.mxu0 0.0
        %1882 = vmatpush2.msra.mxu0 0.0
        %1883 = vmatprep.mubr.f32.mxu0 0.0
        %1884 = vmatmul.mubr.f32.gmra.mxu0 %v1131
        %v1885 = vpop.f32.mrf.mxu0
        %v1886 = vadd.f32 0.0, %v1885
        %v1887 = vpop.f32.mrf.mxu0
        %1888 = vmatprep.mubr.f32.mxu0 0.0
        %1889 = vmatmul.mubr.f32.gmra.mxu0 %v1133
        %v1890 = vpop.f32.mrf.mxu0
        %v1891 = vadd.f32 0.0, %v1890
        %v1892 = vpop.f32.mrf.mxu0
        %1893 = vmatprep.mubr.f32.mxu0 0.0
        %1894 = vmatmul.mubr.f32.gmra.mxu0 %v1135
        %v1895 = vpop.f32.mrf.mxu0
        %v1896 = vadd.f32 0.0, %v1895
        %v1897 = vpop.f32.mrf.mxu0
        %1898 = vmatprep.mubr.f32.mxu0 0.0
        %1899 = vmatmul.mubr.f32.gmra.mxu0 %v1137
        %v1900 = vpop.f32.mrf.mxu0
        %v1901 = vadd.f32 0.0, %v1900
        %v1902 = vpop.f32.mrf.mxu0
        %1903 = vmatprep.mubr.f32.mxu0 0.0
        %1904 = vmatmul.mubr.f32.gmra.mxu0 %v1139
        %v1905 = vpop.f32.mrf.mxu0
        %v1906 = vadd.f32 0.0, %v1905
        %v1907 = vpop.f32.mrf.mxu0
        %1908 = vmatprep.mubr.f32.mxu0 0.0
        %1909 = vmatmul.mubr.f32.gmra.mxu0 %v1141
        %v1910 = vpop.f32.mrf.mxu0
        %v1911 = vadd.f32 0.0, %v1910
        %v1912 = vpop.f32.mrf.mxu0
        %1913 = vmatprep.mubr.f32.mxu0 0.0
        %1914 = vmatmul.mubr.f32.gmra.mxu0 %v1143
        %v1915 = vpop.f32.mrf.mxu0
        %v1916 = vadd.f32 0.0, %v1915
        %v1917 = vpop.f32.mrf.mxu0
        %1918 = vmatprep.mubr.f32.mxu0 0.0
        %1919 = vmatmul.mubr.f32.gmra.mxu0 %v1145
        %v1920 = vpop.f32.mrf.mxu0
        %v1921 = vadd.f32 0.0, %v1920
        %v1922 = vpop.f32.mrf.mxu0
        %1923 = vmatprep.mubr.f32.mxu0 0.0
        %1924 = vmatmul.mubr.f32.gmra.mxu0 %v1147
        %v1925 = vpop.f32.mrf.mxu0
        %v1926 = vadd.f32 0.0, %v1925
        %v1927 = vpop.f32.mrf.mxu0
        %1928 = vmatprep.mubr.f32.mxu0 0.0
        %1929 = vmatmul.mubr.f32.gmra.mxu0 %v1149
        %v1930 = vpop.f32.mrf.mxu0
        %v1931 = vadd.f32 0.0, %v1930
        %v1932 = vpop.f32.mrf.mxu0
        %1933 = vmatprep.mubr.f32.mxu0 0.0
        %1934 = vmatmul.mubr.f32.gmra.mxu0 %v1151
        %v1935 = vpop.f32.mrf.mxu0
        %v1936 = vadd.f32 0.0, %v1935
        %v1937 = vpop.f32.mrf.mxu0
        %1938 = vmatprep.mubr.f32.mxu0 0.0
        %1939 = vmatmul.mubr.f32.gmra.mxu0 %v1153
        %v1940 = vpop.f32.mrf.mxu0
        %v1941 = vadd.f32 0.0, %v1940
        %v1942 = vpop.f32.mrf.mxu0
        %1943 = vmatprep.mubr.f32.mxu0 0.0
        %1944 = vmatmul.mubr.f32.gmra.mxu0 %v1155
        %v1945 = vpop.f32.mrf.mxu0
        %v1946 = vadd.f32 0.0, %v1945
        %v1947 = vpop.f32.mrf.mxu0
        %1948 = vmatprep.mubr.f32.mxu0 0.0
        %1949 = vmatmul.mubr.f32.gmra.mxu0 %v1157
        %v1950 = vpop.f32.mrf.mxu0
        %v1951 = vadd.f32 0.0, %v1950
        %v1952 = vpop.f32.mrf.mxu0
        %1953 = vmatprep.mubr.f32.mxu0 0.0
        %1954 = vmatmul.mubr.f32.gmra.mxu0 %v1159
        %v1955 = vpop.f32.mrf.mxu0
        %v1956 = vadd.f32 0.0, %v1955
        %v1957 = vpop.f32.mrf.mxu0
        %1958 = vmatprep.mubr.f32.mxu0 0.0
        %1959 = vmatmul.mubr.f32.gmra.mxu0 %v1161
        %v1960 = vpop.f32.mrf.mxu0
        %v1961 = vadd.f32 0.0, %v1960
        %v1962 = vpop.f32.mrf.mxu0
        %1963 = vmatprep.mubr.f32.mxu0 0.0
        %1964 = vmatmul.mubr.f32.gmra.mxu0 %v1163
        %v1965 = vpop.f32.mrf.mxu0
        %v1966 = vadd.f32 0.0, %v1965
        %v1967 = vpop.f32.mrf.mxu0
        %1968 = vmatprep.mubr.f32.mxu0 0.0
        %1969 = vmatmul.mubr.f32.gmra.mxu0 %v1165
        %v1970 = vpop.f32.mrf.mxu0
        %v1971 = vadd.f32 0.0, %v1970
        %v1972 = vpop.f32.mrf.mxu0
        %1973 = vmatprep.mubr.f32.mxu0 0.0
        %1974 = vmatmul.mubr.f32.gmra.mxu0 %v1167
        %v1975 = vpop.f32.mrf.mxu0
        %v1976 = vadd.f32 0.0, %v1975
        %v1977 = vpop.f32.mrf.mxu0
        %1978 = vmatprep.mubr.f32.mxu0 0.0
        %1979 = vmatmul.mubr.f32.gmra.mxu0 %v1169
        %v1980 = vpop.f32.mrf.mxu0
        %v1981 = vadd.f32 0.0, %v1980
        %v1982 = vpop.f32.mrf.mxu0
        %1983 = vmatprep.mubr.f32.mxu0 0.0
        %1984 = vmatmul.mubr.f32.gmra.mxu0 %v1171
        %v1985 = vpop.f32.mrf.mxu0
        %v1986 = vadd.f32 0.0, %v1985
        %v1987 = vpop.f32.mrf.mxu0
        %1988 = vmatprep.mubr.f32.mxu0 0.0
        %1989 = vmatmul.mubr.f32.gmra.mxu0 %v1173
        %v1990 = vpop.f32.mrf.mxu0
        %v1991 = vadd.f32 0.0, %v1990
        %v1992 = vpop.f32.mrf.mxu0
        %1993 = vmatprep.mubr.f32.mxu0 0.0
        %1994 = vmatmul.mubr.f32.gmra.mxu0 %v1175
        %v1995 = vpop.f32.mrf.mxu0
        %v1996 = vadd.f32 0.0, %v1995
        %v1997 = vpop.f32.mrf.mxu0
        %1998 = vmatprep.mubr.f32.mxu0 0.0
        %1999 = vmatmul.mubr.f32.gmra.mxu0 %v1177
        %v2000 = vpop.f32.mrf.mxu0
        %v2001 = vadd.f32 0.0, %v2000
        %v2002 = vpop.f32.mrf.mxu0
        %2003 = vmatprep.mubr.f32.mxu0 0.0
        %2004 = vmatmul.mubr.f32.gmra.mxu0 %v1179
        %v2005 = vpop.f32.mrf.mxu0
        %v2006 = vadd.f32 0.0, %v2005
        %v2007 = vpop.f32.mrf.mxu0
        %2008 = vmatprep.mubr.f32.mxu0 0.0
        %2009 = vmatmul.mubr.f32.gmra.mxu0 %v1181
        %v2010 = vpop.f32.mrf.mxu0
        %v2011 = vadd.f32 0.0, %v2010
        %v2012 = vpop.f32.mrf.mxu0
        %2013 = vmatprep.mubr.f32.mxu0 0.0
        %2014 = vmatmul.mubr.f32.gmra.mxu0 %v1183
        %v2015 = vpop.f32.mrf.mxu0
        %v2016 = vadd.f32 0.0, %v2015
        %v2017 = vpop.f32.mrf.mxu0
        %2018 = vmatprep.mubr.f32.mxu0 0.0
        %2019 = vmatmul.mubr.f32.gmra.mxu0 %v1185
        %v2020 = vpop.f32.mrf.mxu0
        %v2021 = vadd.f32 0.0, %v2020
        %v2022 = vpop.f32.mrf.mxu0
        %2023 = vmatprep.mubr.f32.mxu0 0.0
        %2024 = vmatmul.mubr.f32.gmra.mxu0 %v1811
        %v2025 = vpop.f32.mrf.mxu0
        %v2026 = vadd.f32 0.0, %v2025
        %v2027 = vpop.f32.mrf.mxu0
        %2028 = vmatprep.mubr.f32.mxu0 0.0
        %2029 = vmatmul.mubr.f32.gmra.mxu0 %v1813
        %v2030 = vpop.f32.mrf.mxu0
        %v2031 = vadd.f32 0.0, %v2030
        %v2032 = vpop.f32.mrf.mxu0
        %2033 = vmatprep.mubr.f32.mxu0 0.0
        %2034 = vmatmul.mubr.f32.gmra.mxu0 %v1815
        %v2035 = vpop.f32.mrf.mxu0
        %v2036 = vadd.f32 0.0, %v2035
        %v2037 = vpop.f32.mrf.mxu0
        %2038 = vmatprep.mubr.f32.mxu0 0.0
        %2039 = vmatmul.mubr.f32.gmra.mxu0 %v1817
        %v2040 = vpop.f32.mrf.mxu0
        %v2041 = vadd.f32 0.0, %v2040
        %v2042 = vpop.f32.mrf.mxu0
        %2043 = vdwg.mxu0
        %v2044 = vadd.f32 %v1776, %v1886
        %v2045 = vadd.f32 %v1777, %v1891
        %v2046 = vadd.f32 %v1778, %v1896
        %v2047 = vadd.f32 %v1779, %v1901
        %v2048 = vadd.f32 %v1780, %v1906
        %v2049 = vadd.f32 %v1781, %v1911
        %v2050 = vadd.f32 %v1782, %v1916
        %v2051 = vadd.f32 %v1783, %v1921
        %v2052 = vadd.f32 %v1784, %v1926
        %v2053 = vadd.f32 %v1785, %v1931
        %v2054 = vadd.f32 %v1786, %v1936
        %v2055 = vadd.f32 %v1787, %v1941
        %v2056 = vadd.f32 %v1788, %v1946
        %v2057 = vadd.f32 %v1789, %v1951
        %v2058 = vadd.f32 %v1790, %v1956
        %v2059 = vadd.f32 %v1791, %v1961
        %v2060 = vadd.f32 %v1792, %v1966
        %v2061 = vadd.f32 %v1793, %v1971
        %v2062 = vadd.f32 %v1794, %v1976
        %v2063 = vadd.f32 %v1795, %v1981
        %v2064 = vadd.f32 %v1796, %v1986
        %v2065 = vadd.f32 %v1797, %v1991
        %v2066 = vadd.f32 %v1798, %v1996
        %v2067 = vadd.f32 %v1799, %v2001
        %v2068 = vadd.f32 %v1800, %v2006
        %v2069 = vadd.f32 %v1801, %v2011
        %v2070 = vadd.f32 %v1802, %v2016
        %v2071 = vadd.f32 %v1803, %v2021
        %v2072 = vadd.f32 %v1804, %v2026
        %v2073 = vadd.f32 %v1805, %v2031
        %v2074 = vadd.f32 %v1806, %v2036
        %v2075 = vadd.f32 %v1807, %v2041
        %v2077 = vrot.slane %v729, 1
        %v2078 = vrot.slane %v689, 1
        %v2079 = vsel %vm758, %v2077, %v2078
        %v2080 = vrot.slane %v691, 1
        %v2081 = vsel %vm758, %v2078, %v2080
        %v2082 = vrot.slane %v693, 1
        %v2083 = vsel %vm758, %v2080, %v2082
        %v2084 = vrot.slane %v739, 1
        %v2085 = vsel %vm758, %v2082, %v2084
        %s2086 = scalar_lea.vmem %s4, 32
        %v2087 = vld [vmem:[%s2086] sm:$0xff]
        %v2088 = vsel %vm833, %v2079, 0
        %v2090 = vsel %vm833, %v2081, 0
        %v2092 = vsel %vm833, %v2083, 0
        %v2094 = vsel %vm833, %v2085, 0
        %2096 = vmatprep.subr.mxu0 0.0
        %2097 = vmatpush1.msra.mxu0 0.0
        %2098 = vmatprep.subr.mxu0 0.0
        %2099 = vmatpush1.msra.mxu0 0.0
        %2100 = vmatprep.subr.mxu0 0.0
        %2101 = vmatpush1.msra.mxu0 0.0
        %2102 = vmatprep.subr.mxu0 0.0
        %2103 = vmatpush1.msra.mxu0 0.0
        %2104 = vmatprep.subr.mxu0 0.0
        %2105 = vmatpush1.msra.mxu0 0.0
        %2106 = vmatprep.subr.mxu0 0.0
        %2107 = vmatpush1.msra.mxu0 0.0
        %2108 = vmatprep.subr.mxu0 0.0
        %2109 = vmatpush1.msra.mxu0 0.0
        %2110 = vmatprep.subr.mxu0 0.0
        %2111 = vmatpush1.msra.mxu0 0.0
        %2112 = vmatprep.subr.mxu0 0.0
        %2113 = vmatpush1.msra.mxu0 0.0
        %2114 = vmatprep.subr.mxu0 0.0
        %2115 = vmatpush1.msra.mxu0 0.0
        %2116 = vmatprep.subr.mxu0 0.0
        %2117 = vmatpush1.msra.mxu0 0.0
        %2118 = vmatprep.subr.mxu0 0.0
        %2119 = vmatpush1.msra.mxu0 0.0
        %2120 = vmatprep.subr.mxu0 0.0
        %2121 = vmatpush1.msra.mxu0 0.0
        %2122 = vmatprep.subr.mxu0 0.0
        %2123 = vmatpush1.msra.mxu0 0.0
        %2124 = vmatprep.subr.mxu0 0.0
        %2125 = vmatpush1.msra.mxu0 0.0
        %2126 = vmatprep.subr.mxu0 0.0
        %2127 = vmatpush1.msra.mxu0 %v2087
        %2128 = vmatprep.subr.mxu0 0.0
        %2129 = vmatpush2.msra.mxu0 0.0
        %2130 = vmatprep.subr.mxu0 0.0
        %2131 = vmatpush2.msra.mxu0 0.0
        %2132 = vmatprep.subr.mxu0 0.0
        %2133 = vmatpush2.msra.mxu0 0.0
        %2134 = vmatprep.subr.mxu0 0.0
        %2135 = vmatpush2.msra.mxu0 0.0
        %2136 = vmatprep.subr.mxu0 0.0
        %2137 = vmatpush2.msra.mxu0 0.0
        %2138 = vmatprep.subr.mxu0 0.0
        %2139 = vmatpush2.msra.mxu0 0.0
        %2140 = vmatprep.subr.mxu0 0.0
        %2141 = vmatpush2.msra.mxu0 0.0
        %2142 = vmatprep.subr.mxu0 0.0
        %2143 = vmatpush2.msra.mxu0 0.0
        %2144 = vmatprep.subr.mxu0 0.0
        %2145 = vmatpush2.msra.mxu0 0.0
        %2146 = vmatprep.subr.mxu0 0.0
        %2147 = vmatpush2.msra.mxu0 0.0
        %2148 = vmatprep.subr.mxu0 0.0
        %2149 = vmatpush2.msra.mxu0 0.0
        %2150 = vmatprep.subr.mxu0 0.0
        %2151 = vmatpush2.msra.mxu0 0.0
        %2152 = vmatprep.subr.mxu0 0.0
        %2153 = vmatpush2.msra.mxu0 0.0
        %2154 = vmatprep.subr.mxu0 0.0
        %2155 = vmatpush2.msra.mxu0 0.0
        %2156 = vmatprep.subr.mxu0 0.0
        %2157 = vmatpush2.msra.mxu0 0.0
        %2158 = vmatprep.subr.mxu0 0.0
        %2159 = vmatpush2.msra.mxu0 0.0
        %2160 = vmatprep.mubr.f32.mxu0 0.0
        %2161 = vmatmul.mubr.f32.gmra.mxu0 %v842
        %v2162 = vpop.f32.mrf.mxu0
        %v2163 = vadd.f32 0.0, %v2162
        %v2164 = vpop.f32.mrf.mxu0
        %2165 = vmatprep.mubr.f32.mxu0 0.0
        %2166 = vmatmul.mubr.f32.gmra.mxu0 %v844
        %v2167 = vpop.f32.mrf.mxu0
        %v2168 = vadd.f32 0.0, %v2167
        %v2169 = vpop.f32.mrf.mxu0
        %2170 = vmatprep.mubr.f32.mxu0 0.0
        %2171 = vmatmul.mubr.f32.gmra.mxu0 %v846
        %v2172 = vpop.f32.mrf.mxu0
        %v2173 = vadd.f32 0.0, %v2172
        %v2174 = vpop.f32.mrf.mxu0
        %2175 = vmatprep.mubr.f32.mxu0 0.0
        %2176 = vmatmul.mubr.f32.gmra.mxu0 %v848
        %v2177 = vpop.f32.mrf.mxu0
        %v2178 = vadd.f32 0.0, %v2177
        %v2179 = vpop.f32.mrf.mxu0
        %2180 = vmatprep.mubr.f32.mxu0 0.0
        %2181 = vmatmul.mubr.f32.gmra.mxu0 %v850
        %v2182 = vpop.f32.mrf.mxu0
        %v2183 = vadd.f32 0.0, %v2182
        %v2184 = vpop.f32.mrf.mxu0
        %2185 = vmatprep.mubr.f32.mxu0 0.0
        %2186 = vmatmul.mubr.f32.gmra.mxu0 %v852
        %v2187 = vpop.f32.mrf.mxu0
        %v2188 = vadd.f32 0.0, %v2187
        %v2189 = vpop.f32.mrf.mxu0
        %2190 = vmatprep.mubr.f32.mxu0 0.0
        %2191 = vmatmul.mubr.f32.gmra.mxu0 %v854
        %v2192 = vpop.f32.mrf.mxu0
        %v2193 = vadd.f32 0.0, %v2192
        %v2194 = vpop.f32.mrf.mxu0
        %2195 = vmatprep.mubr.f32.mxu0 0.0
        %2196 = vmatmul.mubr.f32.gmra.mxu0 %v856
        %v2197 = vpop.f32.mrf.mxu0
        %v2198 = vadd.f32 0.0, %v2197
        %v2199 = vpop.f32.mrf.mxu0
        %2200 = vmatprep.mubr.f32.mxu0 0.0
        %2201 = vmatmul.mubr.f32.gmra.mxu0 %v858
        %v2202 = vpop.f32.mrf.mxu0
        %v2203 = vadd.f32 0.0, %v2202
        %v2204 = vpop.f32.mrf.mxu0
        %2205 = vmatprep.mubr.f32.mxu0 0.0
        %2206 = vmatmul.mubr.f32.gmra.mxu0 %v860
        %v2207 = vpop.f32.mrf.mxu0
        %v2208 = vadd.f32 0.0, %v2207
        %v2209 = vpop.f32.mrf.mxu0
        %2210 = vmatprep.mubr.f32.mxu0 0.0
        %2211 = vmatmul.mubr.f32.gmra.mxu0 %v862
        %v2212 = vpop.f32.mrf.mxu0
        %v2213 = vadd.f32 0.0, %v2212
        %v2214 = vpop.f32.mrf.mxu0
        %2215 = vmatprep.mubr.f32.mxu0 0.0
        %2216 = vmatmul.mubr.f32.gmra.mxu0 %v864
        %v2217 = vpop.f32.mrf.mxu0
        %v2218 = vadd.f32 0.0, %v2217
        %v2219 = vpop.f32.mrf.mxu0
        %2220 = vmatprep.mubr.f32.mxu0 0.0
        %2221 = vmatmul.mubr.f32.gmra.mxu0 %v866
        %v2222 = vpop.f32.mrf.mxu0
        %v2223 = vadd.f32 0.0, %v2222
        %v2224 = vpop.f32.mrf.mxu0
        %2225 = vmatprep.mubr.f32.mxu0 0.0
        %2226 = vmatmul.mubr.f32.gmra.mxu0 %v868
        %v2227 = vpop.f32.mrf.mxu0
        %v2228 = vadd.f32 0.0, %v2227
        %v2229 = vpop.f32.mrf.mxu0
        %2230 = vmatprep.mubr.f32.mxu0 0.0
        %2231 = vmatmul.mubr.f32.gmra.mxu0 %v870
        %v2232 = vpop.f32.mrf.mxu0
        %v2233 = vadd.f32 0.0, %v2232
        %v2234 = vpop.f32.mrf.mxu0
        %2235 = vmatprep.mubr.f32.mxu0 0.0
        %2236 = vmatmul.mubr.f32.gmra.mxu0 %v872
        %v2237 = vpop.f32.mrf.mxu0
        %v2238 = vadd.f32 0.0, %v2237
        %v2239 = vpop.f32.mrf.mxu0
        %2240 = vmatprep.mubr.f32.mxu0 0.0
        %2241 = vmatmul.mubr.f32.gmra.mxu0 %v874
        %v2242 = vpop.f32.mrf.mxu0
        %v2243 = vadd.f32 0.0, %v2242
        %v2244 = vpop.f32.mrf.mxu0
        %2245 = vmatprep.mubr.f32.mxu0 0.0
        %2246 = vmatmul.mubr.f32.gmra.mxu0 %v876
        %v2247 = vpop.f32.mrf.mxu0
        %v2248 = vadd.f32 0.0, %v2247
        %v2249 = vpop.f32.mrf.mxu0
        %2250 = vmatprep.mubr.f32.mxu0 0.0
        %2251 = vmatmul.mubr.f32.gmra.mxu0 %v878
        %v2252 = vpop.f32.mrf.mxu0
        %v2253 = vadd.f32 0.0, %v2252
        %v2254 = vpop.f32.mrf.mxu0
        %2255 = vmatprep.mubr.f32.mxu0 0.0
        %2256 = vmatmul.mubr.f32.gmra.mxu0 %v880
        %v2257 = vpop.f32.mrf.mxu0
        %v2258 = vadd.f32 0.0, %v2257
        %v2259 = vpop.f32.mrf.mxu0
        %2260 = vmatprep.mubr.f32.mxu0 0.0
        %2261 = vmatmul.mubr.f32.gmra.mxu0 %v882
        %v2262 = vpop.f32.mrf.mxu0
        %v2263 = vadd.f32 0.0, %v2262
        %v2264 = vpop.f32.mrf.mxu0
        %2265 = vmatprep.mubr.f32.mxu0 0.0
        %2266 = vmatmul.mubr.f32.gmra.mxu0 %v884
        %v2267 = vpop.f32.mrf.mxu0
        %v2268 = vadd.f32 0.0, %v2267
        %v2269 = vpop.f32.mrf.mxu0
        %2270 = vmatprep.mubr.f32.mxu0 0.0
        %2271 = vmatmul.mubr.f32.gmra.mxu0 %v886
        %v2272 = vpop.f32.mrf.mxu0
        %v2273 = vadd.f32 0.0, %v2272
        %v2274 = vpop.f32.mrf.mxu0
        %2275 = vmatprep.mubr.f32.mxu0 0.0
        %2276 = vmatmul.mubr.f32.gmra.mxu0 %v888
        %v2277 = vpop.f32.mrf.mxu0
        %v2278 = vadd.f32 0.0, %v2277
        %v2279 = vpop.f32.mrf.mxu0
        %2280 = vmatprep.mubr.f32.mxu0 0.0
        %2281 = vmatmul.mubr.f32.gmra.mxu0 %v890
        %v2282 = vpop.f32.mrf.mxu0
        %v2283 = vadd.f32 0.0, %v2282
        %v2284 = vpop.f32.mrf.mxu0
        %2285 = vmatprep.mubr.f32.mxu0 0.0
        %2286 = vmatmul.mubr.f32.gmra.mxu0 %v892
        %v2287 = vpop.f32.mrf.mxu0
        %v2288 = vadd.f32 0.0, %v2287
        %v2289 = vpop.f32.mrf.mxu0
        %2290 = vmatprep.mubr.f32.mxu0 0.0
        %2291 = vmatmul.mubr.f32.gmra.mxu0 %v894
        %v2292 = vpop.f32.mrf.mxu0
        %v2293 = vadd.f32 0.0, %v2292
        %v2294 = vpop.f32.mrf.mxu0
        %2295 = vmatprep.mubr.f32.mxu0 0.0
        %2296 = vmatmul.mubr.f32.gmra.mxu0 %v896
        %v2297 = vpop.f32.mrf.mxu0
        %v2298 = vadd.f32 0.0, %v2297
        %v2299 = vpop.f32.mrf.mxu0
        %2300 = vmatprep.mubr.f32.mxu0 0.0
        %2301 = vmatmul.mubr.f32.gmra.mxu0 %v2088
        %v2302 = vpop.f32.mrf.mxu0
        %v2303 = vadd.f32 0.0, %v2302
        %v2304 = vpop.f32.mrf.mxu0
        %2305 = vmatprep.mubr.f32.mxu0 0.0
        %2306 = vmatmul.mubr.f32.gmra.mxu0 %v2090
        %v2307 = vpop.f32.mrf.mxu0
        %v2308 = vadd.f32 0.0, %v2307
        %v2309 = vpop.f32.mrf.mxu0
        %2310 = vmatprep.mubr.f32.mxu0 0.0
        %2311 = vmatmul.mubr.f32.gmra.mxu0 %v2092
        %v2312 = vpop.f32.mrf.mxu0
        %v2313 = vadd.f32 0.0, %v2312
        %v2314 = vpop.f32.mrf.mxu0
        %2315 = vmatprep.mubr.f32.mxu0 0.0
        %2316 = vmatmul.mubr.f32.gmra.mxu0 %v2094
        %v2317 = vpop.f32.mrf.mxu0
        %v2318 = vadd.f32 0.0, %v2317
        %v2319 = vpop.f32.mrf.mxu0
        %2320 = vdwg.mxu0
        %v2321 = vadd.f32 %v2044, %v2163
        %v2322 = vadd.f32 %v2045, %v2168
        %v2323 = vadd.f32 %v2046, %v2173
        %v2324 = vadd.f32 %v2047, %v2178
        %v2325 = vadd.f32 %v2048, %v2183
        %v2326 = vadd.f32 %v2049, %v2188
        %v2327 = vadd.f32 %v2050, %v2193
        %v2328 = vadd.f32 %v2051, %v2198
        %v2329 = vadd.f32 %v2052, %v2203
        %v2330 = vadd.f32 %v2053, %v2208
        %v2331 = vadd.f32 %v2054, %v2213
        %v2332 = vadd.f32 %v2055, %v2218
        %v2333 = vadd.f32 %v2056, %v2223
        %v2334 = vadd.f32 %v2057, %v2228
        %v2335 = vadd.f32 %v2058, %v2233
        %v2336 = vadd.f32 %v2059, %v2238
        %v2337 = vadd.f32 %v2060, %v2243
        %v2338 = vadd.f32 %v2061, %v2248
        %v2339 = vadd.f32 %v2062, %v2253
        %v2340 = vadd.f32 %v2063, %v2258
        %v2341 = vadd.f32 %v2064, %v2263
        %v2342 = vadd.f32 %v2065, %v2268
        %v2343 = vadd.f32 %v2066, %v2273
        %v2344 = vadd.f32 %v2067, %v2278
        %v2345 = vadd.f32 %v2068, %v2283
        %v2346 = vadd.f32 %v2069, %v2288
        %v2347 = vadd.f32 %v2070, %v2293
        %v2348 = vadd.f32 %v2071, %v2298
        %v2349 = vadd.f32 %v2072, %v2303
        %v2350 = vadd.f32 %v2073, %v2308
        %v2351 = vadd.f32 %v2074, %v2313
        %v2352 = vadd.f32 %v2075, %v2318
        %v2353 = vrot.slane %v729, 2
        %v2354 = vrot.slane %v689, 2
        %v2355 = vsel %vm1412, %v2353, %v2354
        %v2356 = vrot.slane %v691, 2
        %v2357 = vsel %vm1412, %v2354, %v2356
        %v2358 = vrot.slane %v693, 2
        %v2359 = vsel %vm1412, %v2356, %v2358
        %v2360 = vrot.slane %v739, 2
        %v2361 = vsel %vm1412, %v2358, %v2360
        %s2362 = scalar_lea.vmem %s4, 40
        %v2363 = vld [vmem:[%s2362] sm:$0xff]
        %v2364 = vsel %vm833, %v2355, 0
        %v2366 = vsel %vm833, %v2357, 0
        %v2368 = vsel %vm833, %v2359, 0
        %v2370 = vsel %vm833, %v2361, 0
        %2372 = vmatprep.subr.mxu0 0.0
        %2373 = vmatpush1.msra.mxu0 0.0
        %2374 = vmatprep.subr.mxu0 0.0
        %2375 = vmatpush1.msra.mxu0 0.0
        %2376 = vmatprep.subr.mxu0 0.0
        %2377 = vmatpush1.msra.mxu0 0.0
        %2378 = vmatprep.subr.mxu0 0.0
        %2379 = vmatpush1.msra.mxu0 0.0
        %2380 = vmatprep.subr.mxu0 0.0
        %2381 = vmatpush1.msra.mxu0 0.0
        %2382 = vmatprep.subr.mxu0 0.0
        %2383 = vmatpush1.msra.mxu0 0.0
        %2384 = vmatprep.subr.mxu0 0.0
        %2385 = vmatpush1.msra.mxu0 0.0
        %2386 = vmatprep.subr.mxu0 0.0
        %2387 = vmatpush1.msra.mxu0 0.0
        %2388 = vmatprep.subr.mxu0 0.0
        %2389 = vmatpush1.msra.mxu0 0.0
        %2390 = vmatprep.subr.mxu0 0.0
        %2391 = vmatpush1.msra.mxu0 0.0
        %2392 = vmatprep.subr.mxu0 0.0
        %2393 = vmatpush1.msra.mxu0 0.0
        %2394 = vmatprep.subr.mxu0 0.0
        %2395 = vmatpush1.msra.mxu0 0.0
        %2396 = vmatprep.subr.mxu0 0.0
        %2397 = vmatpush1.msra.mxu0 0.0
        %2398 = vmatprep.subr.mxu0 0.0
        %2399 = vmatpush1.msra.mxu0 0.0
        %2400 = vmatprep.subr.mxu0 0.0
        %2401 = vmatpush1.msra.mxu0 0.0
        %2402 = vmatprep.subr.mxu0 0.0
        %2403 = vmatpush1.msra.mxu0 %v2363
        %2404 = vmatprep.subr.mxu0 0.0
        %2405 = vmatpush2.msra.mxu0 0.0
        %2406 = vmatprep.subr.mxu0 0.0
        %2407 = vmatpush2.msra.mxu0 0.0
        %2408 = vmatprep.subr.mxu0 0.0
        %2409 = vmatpush2.msra.mxu0 0.0
        %2410 = vmatprep.subr.mxu0 0.0
        %2411 = vmatpush2.msra.mxu0 0.0
        %2412 = vmatprep.subr.mxu0 0.0
        %2413 = vmatpush2.msra.mxu0 0.0
        %2414 = vmatprep.subr.mxu0 0.0
        %2415 = vmatpush2.msra.mxu0 0.0
        %2416 = vmatprep.subr.mxu0 0.0
        %2417 = vmatpush2.msra.mxu0 0.0
        %2418 = vmatprep.subr.mxu0 0.0
        %2419 = vmatpush2.msra.mxu0 0.0
        %2420 = vmatprep.subr.mxu0 0.0
        %2421 = vmatpush2.msra.mxu0 0.0
        %2422 = vmatprep.subr.mxu0 0.0
        %2423 = vmatpush2.msra.mxu0 0.0
        %2424 = vmatprep.subr.mxu0 0.0
        %2425 = vmatpush2.msra.mxu0 0.0
        %2426 = vmatprep.subr.mxu0 0.0
        %2427 = vmatpush2.msra.mxu0 0.0
        %2428 = vmatprep.subr.mxu0 0.0
        %2429 = vmatpush2.msra.mxu0 0.0
        %2430 = vmatprep.subr.mxu0 0.0
        %2431 = vmatpush2.msra.mxu0 0.0
        %2432 = vmatprep.subr.mxu0 0.0
        %2433 = vmatpush2.msra.mxu0 0.0
        %2434 = vmatprep.subr.mxu0 0.0
        %2435 = vmatpush2.msra.mxu0 0.0
        %2436 = vmatprep.mubr.f32.mxu0 0.0
        %2437 = vmatmul.mubr.f32.gmra.mxu0 %v1495
        %v2438 = vpop.f32.mrf.mxu0
        %v2439 = vadd.f32 0.0, %v2438
        %v2440 = vpop.f32.mrf.mxu0
        %2441 = vmatprep.mubr.f32.mxu0 0.0
        %2442 = vmatmul.mubr.f32.gmra.mxu0 %v1497
        %v2443 = vpop.f32.mrf.mxu0
        %v2444 = vadd.f32 0.0, %v2443
        %v2445 = vpop.f32.mrf.mxu0
        %2446 = vmatprep.mubr.f32.mxu0 0.0
        %2447 = vmatmul.mubr.f32.gmra.mxu0 %v1499
        %v2448 = vpop.f32.mrf.mxu0
        %v2449 = vadd.f32 0.0, %v2448
        %v2450 = vpop.f32.mrf.mxu0
        %2451 = vmatprep.mubr.f32.mxu0 0.0
        %2452 = vmatmul.mubr.f32.gmra.mxu0 %v1501
        %v2453 = vpop.f32.mrf.mxu0
        %v2454 = vadd.f32 0.0, %v2453
        %v2455 = vpop.f32.mrf.mxu0
        %2456 = vmatprep.mubr.f32.mxu0 0.0
        %2457 = vmatmul.mubr.f32.gmra.mxu0 %v1503
        %v2458 = vpop.f32.mrf.mxu0
        %v2459 = vadd.f32 0.0, %v2458
        %v2460 = vpop.f32.mrf.mxu0
        %2461 = vmatprep.mubr.f32.mxu0 0.0
        %2462 = vmatmul.mubr.f32.gmra.mxu0 %v1505
        %v2463 = vpop.f32.mrf.mxu0
        %v2464 = vadd.f32 0.0, %v2463
        %v2465 = vpop.f32.mrf.mxu0
        %2466 = vmatprep.mubr.f32.mxu0 0.0
        %2467 = vmatmul.mubr.f32.gmra.mxu0 %v1507
        %v2468 = vpop.f32.mrf.mxu0
        %v2469 = vadd.f32 0.0, %v2468
        %v2470 = vpop.f32.mrf.mxu0
        %2471 = vmatprep.mubr.f32.mxu0 0.0
        %2472 = vmatmul.mubr.f32.gmra.mxu0 %v1509
        %v2473 = vpop.f32.mrf.mxu0
        %v2474 = vadd.f32 0.0, %v2473
        %v2475 = vpop.f32.mrf.mxu0
        %2476 = vmatprep.mubr.f32.mxu0 0.0
        %2477 = vmatmul.mubr.f32.gmra.mxu0 %v1511
        %v2478 = vpop.f32.mrf.mxu0
        %v2479 = vadd.f32 0.0, %v2478
        %v2480 = vpop.f32.mrf.mxu0
        %2481 = vmatprep.mubr.f32.mxu0 0.0
        %2482 = vmatmul.mubr.f32.gmra.mxu0 %v1513
        %v2483 = vpop.f32.mrf.mxu0
        %v2484 = vadd.f32 0.0, %v2483
        %v2485 = vpop.f32.mrf.mxu0
        %2486 = vmatprep.mubr.f32.mxu0 0.0
        %2487 = vmatmul.mubr.f32.gmra.mxu0 %v1515
        %v2488 = vpop.f32.mrf.mxu0
        %v2489 = vadd.f32 0.0, %v2488
        %v2490 = vpop.f32.mrf.mxu0
        %2491 = vmatprep.mubr.f32.mxu0 0.0
        %2492 = vmatmul.mubr.f32.gmra.mxu0 %v1517
        %v2493 = vpop.f32.mrf.mxu0
        %v2494 = vadd.f32 0.0, %v2493
        %v2495 = vpop.f32.mrf.mxu0
        %2496 = vmatprep.mubr.f32.mxu0 0.0
        %2497 = vmatmul.mubr.f32.gmra.mxu0 %v1519
        %v2498 = vpop.f32.mrf.mxu0
        %v2499 = vadd.f32 0.0, %v2498
        %v2500 = vpop.f32.mrf.mxu0
        %2501 = vmatprep.mubr.f32.mxu0 0.0
        %2502 = vmatmul.mubr.f32.gmra.mxu0 %v1521
        %v2503 = vpop.f32.mrf.mxu0
        %v2504 = vadd.f32 0.0, %v2503
        %v2505 = vpop.f32.mrf.mxu0
        %2506 = vmatprep.mubr.f32.mxu0 0.0
        %2507 = vmatmul.mubr.f32.gmra.mxu0 %v1523
        %v2508 = vpop.f32.mrf.mxu0
        %v2509 = vadd.f32 0.0, %v2508
        %v2510 = vpop.f32.mrf.mxu0
        %2511 = vmatprep.mubr.f32.mxu0 0.0
        %2512 = vmatmul.mubr.f32.gmra.mxu0 %v1525
        %v2513 = vpop.f32.mrf.mxu0
        %v2514 = vadd.f32 0.0, %v2513
        %v2515 = vpop.f32.mrf.mxu0
        %2516 = vmatprep.mubr.f32.mxu0 0.0
        %2517 = vmatmul.mubr.f32.gmra.mxu0 %v1527
        %v2518 = vpop.f32.mrf.mxu0
        %v2519 = vadd.f32 0.0, %v2518
        %v2520 = vpop.f32.mrf.mxu0
        %2521 = vmatprep.mubr.f32.mxu0 0.0
        %2522 = vmatmul.mubr.f32.gmra.mxu0 %v1529
        %v2523 = vpop.f32.mrf.mxu0
        %v2524 = vadd.f32 0.0, %v2523
        %v2525 = vpop.f32.mrf.mxu0
        %2526 = vmatprep.mubr.f32.mxu0 0.0
        %2527 = vmatmul.mubr.f32.gmra.mxu0 %v1531
        %v2528 = vpop.f32.mrf.mxu0
        %v2529 = vadd.f32 0.0, %v2528
        %v2530 = vpop.f32.mrf.mxu0
        %2531 = vmatprep.mubr.f32.mxu0 0.0
        %2532 = vmatmul.mubr.f32.gmra.mxu0 %v1533
        %v2533 = vpop.f32.mrf.mxu0
        %v2534 = vadd.f32 0.0, %v2533
        %v2535 = vpop.f32.mrf.mxu0
        %2536 = vmatprep.mubr.f32.mxu0 0.0
        %2537 = vmatmul.mubr.f32.gmra.mxu0 %v1535
        %v2538 = vpop.f32.mrf.mxu0
        %v2539 = vadd.f32 0.0, %v2538
        %v2540 = vpop.f32.mrf.mxu0
        %2541 = vmatprep.mubr.f32.mxu0 0.0
        %2542 = vmatmul.mubr.f32.gmra.mxu0 %v1537
        %v2543 = vpop.f32.mrf.mxu0
        %v2544 = vadd.f32 0.0, %v2543
        %v2545 = vpop.f32.mrf.mxu0
        %2546 = vmatprep.mubr.f32.mxu0 0.0
        %2547 = vmatmul.mubr.f32.gmra.mxu0 %v1539
        %v2548 = vpop.f32.mrf.mxu0
        %v2549 = vadd.f32 0.0, %v2548
        %v2550 = vpop.f32.mrf.mxu0
        %2551 = vmatprep.mubr.f32.mxu0 0.0
        %2552 = vmatmul.mubr.f32.gmra.mxu0 %v1541
        %v2553 = vpop.f32.mrf.mxu0
        %v2554 = vadd.f32 0.0, %v2553
        %v2555 = vpop.f32.mrf.mxu0
        %2556 = vmatprep.mubr.f32.mxu0 0.0
        %2557 = vmatmul.mubr.f32.gmra.mxu0 %v1543
        %v2558 = vpop.f32.mrf.mxu0
        %v2559 = vadd.f32 0.0, %v2558
        %v2560 = vpop.f32.mrf.mxu0
        %2561 = vmatprep.mubr.f32.mxu0 0.0
        %2562 = vmatmul.mubr.f32.gmra.mxu0 %v1545
        %v2563 = vpop.f32.mrf.mxu0
        %v2564 = vadd.f32 0.0, %v2563
        %v2565 = vpop.f32.mrf.mxu0
        %2566 = vmatprep.mubr.f32.mxu0 0.0
        %2567 = vmatmul.mubr.f32.gmra.mxu0 %v1547
        %v2568 = vpop.f32.mrf.mxu0
        %v2569 = vadd.f32 0.0, %v2568
        %v2570 = vpop.f32.mrf.mxu0
        %2571 = vmatprep.mubr.f32.mxu0 0.0
        %2572 = vmatmul.mubr.f32.gmra.mxu0 %v1549
        %v2573 = vpop.f32.mrf.mxu0
        %v2574 = vadd.f32 0.0, %v2573
        %v2575 = vpop.f32.mrf.mxu0
        %2576 = vmatprep.mubr.f32.mxu0 0.0
        %2577 = vmatmul.mubr.f32.gmra.mxu0 %v2364
        %v2578 = vpop.f32.mrf.mxu0
        %v2579 = vadd.f32 0.0, %v2578
        %v2580 = vpop.f32.mrf.mxu0
        %2581 = vmatprep.mubr.f32.mxu0 0.0
        %2582 = vmatmul.mubr.f32.gmra.mxu0 %v2366
        %v2583 = vpop.f32.mrf.mxu0
        %v2584 = vadd.f32 0.0, %v2583
        %v2585 = vpop.f32.mrf.mxu0
        %2586 = vmatprep.mubr.f32.mxu0 0.0
        %2587 = vmatmul.mubr.f32.gmra.mxu0 %v2368
        %v2588 = vpop.f32.mrf.mxu0
        %v2589 = vadd.f32 0.0, %v2588
        %v2590 = vpop.f32.mrf.mxu0
        %2591 = vmatprep.mubr.f32.mxu0 0.0
        %2592 = vmatmul.mubr.f32.gmra.mxu0 %v2370
        %v2593 = vpop.f32.mrf.mxu0
        %v2594 = vadd.f32 0.0, %v2593
        %v2595 = vpop.f32.mrf.mxu0
        %2596 = vdwg.mxu0
        %v2597 = vadd.f32 %v2321, %v2439
        %v2598 = vadd.f32 %v2322, %v2444
        %v2599 = vadd.f32 %v2323, %v2449
        %v2600 = vadd.f32 %v2324, %v2454
        %v2601 = vadd.f32 %v2325, %v2459
        %v2602 = vadd.f32 %v2326, %v2464
        %v2603 = vadd.f32 %v2327, %v2469
        %v2604 = vadd.f32 %v2328, %v2474
        %v2605 = vadd.f32 %v2329, %v2479
        %v2606 = vadd.f32 %v2330, %v2484
        %v2607 = vadd.f32 %v2331, %v2489
        %v2608 = vadd.f32 %v2332, %v2494
        %v2609 = vadd.f32 %v2333, %v2499
        %v2610 = vadd.f32 %v2334, %v2504
        %v2611 = vadd.f32 %v2335, %v2509
        %v2612 = vadd.f32 %v2336, %v2514
        %v2613 = vadd.f32 %v2337, %v2519
        %v2614 = vadd.f32 %v2338, %v2524
        %v2615 = vadd.f32 %v2339, %v2529
        %v2616 = vadd.f32 %v2340, %v2534
        %v2617 = vadd.f32 %v2341, %v2539
        %v2618 = vadd.f32 %v2342, %v2544
        %v2619 = vadd.f32 %v2343, %v2549
        %v2620 = vadd.f32 %v2344, %v2554
        %v2621 = vadd.f32 %v2345, %v2559
        %v2622 = vadd.f32 %v2346, %v2564
        %v2623 = vadd.f32 %v2347, %v2569
        %v2624 = vadd.f32 %v2348, %v2574
        %v2625 = vadd.f32 %v2349, %v2579
        %v2626 = vadd.f32 %v2350, %v2584
        %v2627 = vadd.f32 %v2351, %v2589
        %v2628 = vadd.f32 %v2352, %v2594
        %s2629 = scalar_lea.vmem %s4, 48
        %v2630 = vld [vmem:[%s2629] sm:$0xff]
        %v2632 = vsel %vm833, %v730, 0
        %v2634 = vsel %vm833, %v696, 0
        %v2636 = vsel %vm833, %v698, 0
        %v2638 = vsel %vm833, %v700, 0
        %2640 = vmatprep.subr.mxu0 0.0
        %2641 = vmatpush1.msra.mxu0 0.0
        %2642 = vmatprep.subr.mxu0 0.0
        %2643 = vmatpush1.msra.mxu0 0.0
        %2644 = vmatprep.subr.mxu0 0.0
        %2645 = vmatpush1.msra.mxu0 0.0
        %2646 = vmatprep.subr.mxu0 0.0
        %2647 = vmatpush1.msra.mxu0 0.0
        %2648 = vmatprep.subr.mxu0 0.0
        %2649 = vmatpush1.msra.mxu0 0.0
        %2650 = vmatprep.subr.mxu0 0.0
        %2651 = vmatpush1.msra.mxu0 0.0
        %2652 = vmatprep.subr.mxu0 0.0
        %2653 = vmatpush1.msra.mxu0 0.0
        %2654 = vmatprep.subr.mxu0 0.0
        %2655 = vmatpush1.msra.mxu0 0.0
        %2656 = vmatprep.subr.mxu0 0.0
        %2657 = vmatpush1.msra.mxu0 0.0
        %2658 = vmatprep.subr.mxu0 0.0
        %2659 = vmatpush1.msra.mxu0 0.0
        %2660 = vmatprep.subr.mxu0 0.0
        %2661 = vmatpush1.msra.mxu0 0.0
        %2662 = vmatprep.subr.mxu0 0.0
        %2663 = vmatpush1.msra.mxu0 0.0
        %2664 = vmatprep.subr.mxu0 0.0
        %2665 = vmatpush1.msra.mxu0 0.0
        %2666 = vmatprep.subr.mxu0 0.0
        %2667 = vmatpush1.msra.mxu0 0.0
        %2668 = vmatprep.subr.mxu0 0.0
        %2669 = vmatpush1.msra.mxu0 0.0
        %2670 = vmatprep.subr.mxu0 0.0
        %2671 = vmatpush1.msra.mxu0 %v2630
        %2672 = vmatprep.subr.mxu0 0.0
        %2673 = vmatpush2.msra.mxu0 0.0
        %2674 = vmatprep.subr.mxu0 0.0
        %2675 = vmatpush2.msra.mxu0 0.0
        %2676 = vmatprep.subr.mxu0 0.0
        %2677 = vmatpush2.msra.mxu0 0.0
        %2678 = vmatprep.subr.mxu0 0.0
        %2679 = vmatpush2.msra.mxu0 0.0
        %2680 = vmatprep.subr.mxu0 0.0
        %2681 = vmatpush2.msra.mxu0 0.0
        %2682 = vmatprep.subr.mxu0 0.0
        %2683 = vmatpush2.msra.mxu0 0.0
        %2684 = vmatprep.subr.mxu0 0.0
        %2685 = vmatpush2.msra.mxu0 0.0
        %2686 = vmatprep.subr.mxu0 0.0
        %2687 = vmatpush2.msra.mxu0 0.0
        %2688 = vmatprep.subr.mxu0 0.0
        %2689 = vmatpush2.msra.mxu0 0.0
        %2690 = vmatprep.subr.mxu0 0.0
        %2691 = vmatpush2.msra.mxu0 0.0
        %2692 = vmatprep.subr.mxu0 0.0
        %2693 = vmatpush2.msra.mxu0 0.0
        %2694 = vmatprep.subr.mxu0 0.0
        %2695 = vmatpush2.msra.mxu0 0.0
        %2696 = vmatprep.subr.mxu0 0.0
        %2697 = vmatpush2.msra.mxu0 0.0
        %2698 = vmatprep.subr.mxu0 0.0
        %2699 = vmatpush2.msra.mxu0 0.0
        %2700 = vmatprep.subr.mxu0 0.0
        %2701 = vmatpush2.msra.mxu0 0.0
        %2702 = vmatprep.subr.mxu0 0.0
        %2703 = vmatpush2.msra.mxu0 0.0
        %2704 = vmatprep.mubr.f32.mxu0 0.0
        %2705 = vmatmul.mubr.f32.gmra.mxu0 %v1139
        %v2706 = vpop.f32.mrf.mxu0
        %v2707 = vadd.f32 0.0, %v2706
        %v2708 = vpop.f32.mrf.mxu0
        %2709 = vmatprep.mubr.f32.mxu0 0.0
        %2710 = vmatmul.mubr.f32.gmra.mxu0 %v1141
        %v2711 = vpop.f32.mrf.mxu0
        %v2712 = vadd.f32 0.0, %v2711
        %v2713 = vpop.f32.mrf.mxu0
        %2714 = vmatprep.mubr.f32.mxu0 0.0
        %2715 = vmatmul.mubr.f32.gmra.mxu0 %v1143
        %v2716 = vpop.f32.mrf.mxu0
        %v2717 = vadd.f32 0.0, %v2716
        %v2718 = vpop.f32.mrf.mxu0
        %2719 = vmatprep.mubr.f32.mxu0 0.0
        %2720 = vmatmul.mubr.f32.gmra.mxu0 %v1145
        %v2721 = vpop.f32.mrf.mxu0
        %v2722 = vadd.f32 0.0, %v2721
        %v2723 = vpop.f32.mrf.mxu0
        %2724 = vmatprep.mubr.f32.mxu0 0.0
        %2725 = vmatmul.mubr.f32.gmra.mxu0 %v1147
        %v2726 = vpop.f32.mrf.mxu0
        %v2727 = vadd.f32 0.0, %v2726
        %v2728 = vpop.f32.mrf.mxu0
        %2729 = vmatprep.mubr.f32.mxu0 0.0
        %2730 = vmatmul.mubr.f32.gmra.mxu0 %v1149
        %v2731 = vpop.f32.mrf.mxu0
        %v2732 = vadd.f32 0.0, %v2731
        %v2733 = vpop.f32.mrf.mxu0
        %2734 = vmatprep.mubr.f32.mxu0 0.0
        %2735 = vmatmul.mubr.f32.gmra.mxu0 %v1151
        %v2736 = vpop.f32.mrf.mxu0
        %v2737 = vadd.f32 0.0, %v2736
        %v2738 = vpop.f32.mrf.mxu0
        %2739 = vmatprep.mubr.f32.mxu0 0.0
        %2740 = vmatmul.mubr.f32.gmra.mxu0 %v1153
        %v2741 = vpop.f32.mrf.mxu0
        %v2742 = vadd.f32 0.0, %v2741
        %v2743 = vpop.f32.mrf.mxu0
        %2744 = vmatprep.mubr.f32.mxu0 0.0
        %2745 = vmatmul.mubr.f32.gmra.mxu0 %v1155
        %v2746 = vpop.f32.mrf.mxu0
        %v2747 = vadd.f32 0.0, %v2746
        %v2748 = vpop.f32.mrf.mxu0
        %2749 = vmatprep.mubr.f32.mxu0 0.0
        %2750 = vmatmul.mubr.f32.gmra.mxu0 %v1157
        %v2751 = vpop.f32.mrf.mxu0
        %v2752 = vadd.f32 0.0, %v2751
        %v2753 = vpop.f32.mrf.mxu0
        %2754 = vmatprep.mubr.f32.mxu0 0.0
        %2755 = vmatmul.mubr.f32.gmra.mxu0 %v1159
        %v2756 = vpop.f32.mrf.mxu0
        %v2757 = vadd.f32 0.0, %v2756
        %v2758 = vpop.f32.mrf.mxu0
        %2759 = vmatprep.mubr.f32.mxu0 0.0
        %2760 = vmatmul.mubr.f32.gmra.mxu0 %v1161
        %v2761 = vpop.f32.mrf.mxu0
        %v2762 = vadd.f32 0.0, %v2761
        %v2763 = vpop.f32.mrf.mxu0
        %2764 = vmatprep.mubr.f32.mxu0 0.0
        %2765 = vmatmul.mubr.f32.gmra.mxu0 %v1163
        %v2766 = vpop.f32.mrf.mxu0
        %v2767 = vadd.f32 0.0, %v2766
        %v2768 = vpop.f32.mrf.mxu0
        %2769 = vmatprep.mubr.f32.mxu0 0.0
        %2770 = vmatmul.mubr.f32.gmra.mxu0 %v1165
        %v2771 = vpop.f32.mrf.mxu0
        %v2772 = vadd.f32 0.0, %v2771
        %v2773 = vpop.f32.mrf.mxu0
        %2774 = vmatprep.mubr.f32.mxu0 0.0
        %2775 = vmatmul.mubr.f32.gmra.mxu0 %v1167
        %v2776 = vpop.f32.mrf.mxu0
        %v2777 = vadd.f32 0.0, %v2776
        %v2778 = vpop.f32.mrf.mxu0
        %2779 = vmatprep.mubr.f32.mxu0 0.0
        %2780 = vmatmul.mubr.f32.gmra.mxu0 %v1169
        %v2781 = vpop.f32.mrf.mxu0
        %v2782 = vadd.f32 0.0, %v2781
        %v2783 = vpop.f32.mrf.mxu0
        %2784 = vmatprep.mubr.f32.mxu0 0.0
        %2785 = vmatmul.mubr.f32.gmra.mxu0 %v1171
        %v2786 = vpop.f32.mrf.mxu0
        %v2787 = vadd.f32 0.0, %v2786
        %v2788 = vpop.f32.mrf.mxu0
        %2789 = vmatprep.mubr.f32.mxu0 0.0
        %2790 = vmatmul.mubr.f32.gmra.mxu0 %v1173
        %v2791 = vpop.f32.mrf.mxu0
        %v2792 = vadd.f32 0.0, %v2791
        %v2793 = vpop.f32.mrf.mxu0
        %2794 = vmatprep.mubr.f32.mxu0 0.0
        %2795 = vmatmul.mubr.f32.gmra.mxu0 %v1175
        %v2796 = vpop.f32.mrf.mxu0
        %v2797 = vadd.f32 0.0, %v2796
        %v2798 = vpop.f32.mrf.mxu0
        %2799 = vmatprep.mubr.f32.mxu0 0.0
        %2800 = vmatmul.mubr.f32.gmra.mxu0 %v1177
        %v2801 = vpop.f32.mrf.mxu0
        %v2802 = vadd.f32 0.0, %v2801
        %v2803 = vpop.f32.mrf.mxu0
        %2804 = vmatprep.mubr.f32.mxu0 0.0
        %2805 = vmatmul.mubr.f32.gmra.mxu0 %v1179
        %v2806 = vpop.f32.mrf.mxu0
        %v2807 = vadd.f32 0.0, %v2806
        %v2808 = vpop.f32.mrf.mxu0
        %2809 = vmatprep.mubr.f32.mxu0 0.0
        %2810 = vmatmul.mubr.f32.gmra.mxu0 %v1181
        %v2811 = vpop.f32.mrf.mxu0
        %v2812 = vadd.f32 0.0, %v2811
        %v2813 = vpop.f32.mrf.mxu0
        %2814 = vmatprep.mubr.f32.mxu0 0.0
        %2815 = vmatmul.mubr.f32.gmra.mxu0 %v1183
        %v2816 = vpop.f32.mrf.mxu0
        %v2817 = vadd.f32 0.0, %v2816
        %v2818 = vpop.f32.mrf.mxu0
        %2819 = vmatprep.mubr.f32.mxu0 0.0
        %2820 = vmatmul.mubr.f32.gmra.mxu0 %v1185
        %v2821 = vpop.f32.mrf.mxu0
        %v2822 = vadd.f32 0.0, %v2821
        %v2823 = vpop.f32.mrf.mxu0
        %2824 = vmatprep.mubr.f32.mxu0 0.0
        %2825 = vmatmul.mubr.f32.gmra.mxu0 %v1811
        %v2826 = vpop.f32.mrf.mxu0
        %v2827 = vadd.f32 0.0, %v2826
        %v2828 = vpop.f32.mrf.mxu0
        %2829 = vmatprep.mubr.f32.mxu0 0.0
        %2830 = vmatmul.mubr.f32.gmra.mxu0 %v1813
        %v2831 = vpop.f32.mrf.mxu0
        %v2832 = vadd.f32 0.0, %v2831
        %v2833 = vpop.f32.mrf.mxu0
        %2834 = vmatprep.mubr.f32.mxu0 0.0
        %2835 = vmatmul.mubr.f32.gmra.mxu0 %v1815
        %v2836 = vpop.f32.mrf.mxu0
        %v2837 = vadd.f32 0.0, %v2836
        %v2838 = vpop.f32.mrf.mxu0
        %2839 = vmatprep.mubr.f32.mxu0 0.0
        %2840 = vmatmul.mubr.f32.gmra.mxu0 %v1817
        %v2841 = vpop.f32.mrf.mxu0
        %v2842 = vadd.f32 0.0, %v2841
        %v2843 = vpop.f32.mrf.mxu0
        %2844 = vmatprep.mubr.f32.mxu0 0.0
        %2845 = vmatmul.mubr.f32.gmra.mxu0 %v2632
        %v2846 = vpop.f32.mrf.mxu0
        %v2847 = vadd.f32 0.0, %v2846
        %v2848 = vpop.f32.mrf.mxu0
        %2849 = vmatprep.mubr.f32.mxu0 0.0
        %2850 = vmatmul.mubr.f32.gmra.mxu0 %v2634
        %v2851 = vpop.f32.mrf.mxu0
        %v2852 = vadd.f32 0.0, %v2851
        %v2853 = vpop.f32.mrf.mxu0
        %2854 = vmatprep.mubr.f32.mxu0 0.0
        %2855 = vmatmul.mubr.f32.gmra.mxu0 %v2636
        %v2856 = vpop.f32.mrf.mxu0
        %v2857 = vadd.f32 0.0, %v2856
        %v2858 = vpop.f32.mrf.mxu0
        %2859 = vmatprep.mubr.f32.mxu0 0.0
        %2860 = vmatmul.mubr.f32.gmra.mxu0 %v2638
        %v2861 = vpop.f32.mrf.mxu0
        %v2862 = vadd.f32 0.0, %v2861
        %v2863 = vpop.f32.mrf.mxu0
        %2864 = vdwg.mxu0
        %v2865 = vadd.f32 %v2597, %v2707
        %v2866 = vadd.f32 %v2598, %v2712
        %v2867 = vadd.f32 %v2599, %v2717
        %v2868 = vadd.f32 %v2600, %v2722
        %v2869 = vadd.f32 %v2601, %v2727
        %v2870 = vadd.f32 %v2602, %v2732
        %v2871 = vadd.f32 %v2603, %v2737
        %v2872 = vadd.f32 %v2604, %v2742
        %v2873 = vadd.f32 %v2605, %v2747
        %v2874 = vadd.f32 %v2606, %v2752
        %v2875 = vadd.f32 %v2607, %v2757
        %v2876 = vadd.f32 %v2608, %v2762
        %v2877 = vadd.f32 %v2609, %v2767
        %v2878 = vadd.f32 %v2610, %v2772
        %v2879 = vadd.f32 %v2611, %v2777
        %v2880 = vadd.f32 %v2612, %v2782
        %v2881 = vadd.f32 %v2613, %v2787
        %v2882 = vadd.f32 %v2614, %v2792
        %v2883 = vadd.f32 %v2615, %v2797
        %v2884 = vadd.f32 %v2616, %v2802
        %v2885 = vadd.f32 %v2617, %v2807
        %v2886 = vadd.f32 %v2618, %v2812
        %v2887 = vadd.f32 %v2619, %v2817
        %v2888 = vadd.f32 %v2620, %v2822
        %v2889 = vadd.f32 %v2621, %v2827
        %v2890 = vadd.f32 %v2622, %v2832
        %v2891 = vadd.f32 %v2623, %v2837
        %v2892 = vadd.f32 %v2624, %v2842
        %v2893 = vadd.f32 %v2625, %v2847
        %v2894 = vadd.f32 %v2626, %v2852
        %v2895 = vadd.f32 %v2627, %v2857
        %v2896 = vadd.f32 %v2628, %v2862
        %v2898 = vrot.slane %v730, 1
        %v2899 = vrot.slane %v696, 1
        %v2900 = vsel %vm758, %v2898, %v2899
        %v2901 = vrot.slane %v698, 1
        %v2902 = vsel %vm758, %v2899, %v2901
        %v2903 = vrot.slane %v700, 1
        %v2904 = vsel %vm758, %v2901, %v2903
        %v2905 = vrot.slane %v740, 1
        %v2906 = vsel %vm758, %v2903, %v2905
        %s2907 = scalar_lea.vmem %s4, 56
        %v2908 = vld [vmem:[%s2907] sm:$0xff]
        %v2909 = vsel %vm833, %v2900, 0
        %v2911 = vsel %vm833, %v2902, 0
        %v2913 = vsel %vm833, %v2904, 0
        %v2915 = vsel %vm833, %v2906, 0
        %2917 = vmatprep.subr.mxu0 0.0
        %2918 = vmatpush1.msra.mxu0 0.0
        %2919 = vmatprep.subr.mxu0 0.0
        %2920 = vmatpush1.msra.mxu0 0.0
        %2921 = vmatprep.subr.mxu0 0.0
        %2922 = vmatpush1.msra.mxu0 0.0
        %2923 = vmatprep.subr.mxu0 0.0
        %2924 = vmatpush1.msra.mxu0 0.0
        %2925 = vmatprep.subr.mxu0 0.0
        %2926 = vmatpush1.msra.mxu0 0.0
        %2927 = vmatprep.subr.mxu0 0.0
        %2928 = vmatpush1.msra.mxu0 0.0
        %2929 = vmatprep.subr.mxu0 0.0
        %2930 = vmatpush1.msra.mxu0 0.0
        %2931 = vmatprep.subr.mxu0 0.0
        %2932 = vmatpush1.msra.mxu0 0.0
        %2933 = vmatprep.subr.mxu0 0.0
        %2934 = vmatpush1.msra.mxu0 0.0
        %2935 = vmatprep.subr.mxu0 0.0
        %2936 = vmatpush1.msra.mxu0 0.0
        %2937 = vmatprep.subr.mxu0 0.0
        %2938 = vmatpush1.msra.mxu0 0.0
        %2939 = vmatprep.subr.mxu0 0.0
        %2940 = vmatpush1.msra.mxu0 0.0
        %2941 = vmatprep.subr.mxu0 0.0
        %2942 = vmatpush1.msra.mxu0 0.0
        %2943 = vmatprep.subr.mxu0 0.0
        %2944 = vmatpush1.msra.mxu0 0.0
        %2945 = vmatprep.subr.mxu0 0.0
        %2946 = vmatpush1.msra.mxu0 0.0
        %2947 = vmatprep.subr.mxu0 0.0
        %2948 = vmatpush1.msra.mxu0 %v2908
        %2949 = vmatprep.subr.mxu0 0.0
        %2950 = vmatpush2.msra.mxu0 0.0
        %2951 = vmatprep.subr.mxu0 0.0
        %2952 = vmatpush2.msra.mxu0 0.0
        %2953 = vmatprep.subr.mxu0 0.0
        %2954 = vmatpush2.msra.mxu0 0.0
        %2955 = vmatprep.subr.mxu0 0.0
        %2956 = vmatpush2.msra.mxu0 0.0
        %2957 = vmatprep.subr.mxu0 0.0
        %2958 = vmatpush2.msra.mxu0 0.0
        %2959 = vmatprep.subr.mxu0 0.0
        %2960 = vmatpush2.msra.mxu0 0.0
        %2961 = vmatprep.subr.mxu0 0.0
        %2962 = vmatpush2.msra.mxu0 0.0
        %2963 = vmatprep.subr.mxu0 0.0
        %2964 = vmatpush2.msra.mxu0 0.0
        %2965 = vmatprep.subr.mxu0 0.0
        %2966 = vmatpush2.msra.mxu0 0.0
        %2967 = vmatprep.subr.mxu0 0.0
        %2968 = vmatpush2.msra.mxu0 0.0
        %2969 = vmatprep.subr.mxu0 0.0
        %2970 = vmatpush2.msra.mxu0 0.0
        %2971 = vmatprep.subr.mxu0 0.0
        %2972 = vmatpush2.msra.mxu0 0.0
        %2973 = vmatprep.subr.mxu0 0.0
        %2974 = vmatpush2.msra.mxu0 0.0
        %2975 = vmatprep.subr.mxu0 0.0
        %2976 = vmatpush2.msra.mxu0 0.0
        %2977 = vmatprep.subr.mxu0 0.0
        %2978 = vmatpush2.msra.mxu0 0.0
        %2979 = vmatprep.subr.mxu0 0.0
        %2980 = vmatpush2.msra.mxu0 0.0
        %2981 = vmatprep.mubr.f32.mxu0 0.0
        %2982 = vmatmul.mubr.f32.gmra.mxu0 %v850
        %v2983 = vpop.f32.mrf.mxu0
        %v2984 = vadd.f32 0.0, %v2983
        %v2985 = vpop.f32.mrf.mxu0
        %2986 = vmatprep.mubr.f32.mxu0 0.0
        %2987 = vmatmul.mubr.f32.gmra.mxu0 %v852
        %v2988 = vpop.f32.mrf.mxu0
        %v2989 = vadd.f32 0.0, %v2988
        %v2990 = vpop.f32.mrf.mxu0
        %2991 = vmatprep.mubr.f32.mxu0 0.0
        %2992 = vmatmul.mubr.f32.gmra.mxu0 %v854
        %v2993 = vpop.f32.mrf.mxu0
        %v2994 = vadd.f32 0.0, %v2993
        %v2995 = vpop.f32.mrf.mxu0
        %2996 = vmatprep.mubr.f32.mxu0 0.0
        %2997 = vmatmul.mubr.f32.gmra.mxu0 %v856
        %v2998 = vpop.f32.mrf.mxu0
        %v2999 = vadd.f32 0.0, %v2998
        %v3000 = vpop.f32.mrf.mxu0
        %3001 = vmatprep.mubr.f32.mxu0 0.0
        %3002 = vmatmul.mubr.f32.gmra.mxu0 %v858
        %v3003 = vpop.f32.mrf.mxu0
        %v3004 = vadd.f32 0.0, %v3003
        %v3005 = vpop.f32.mrf.mxu0
        %3006 = vmatprep.mubr.f32.mxu0 0.0
        %3007 = vmatmul.mubr.f32.gmra.mxu0 %v860
        %v3008 = vpop.f32.mrf.mxu0
        %v3009 = vadd.f32 0.0, %v3008
        %v3010 = vpop.f32.mrf.mxu0
        %3011 = vmatprep.mubr.f32.mxu0 0.0
        %3012 = vmatmul.mubr.f32.gmra.mxu0 %v862
        %v3013 = vpop.f32.mrf.mxu0
        %v3014 = vadd.f32 0.0, %v3013
        %v3015 = vpop.f32.mrf.mxu0
        %3016 = vmatprep.mubr.f32.mxu0 0.0
        %3017 = vmatmul.mubr.f32.gmra.mxu0 %v864
        %v3018 = vpop.f32.mrf.mxu0
        %v3019 = vadd.f32 0.0, %v3018
        %v3020 = vpop.f32.mrf.mxu0
        %3021 = vmatprep.mubr.f32.mxu0 0.0
        %3022 = vmatmul.mubr.f32.gmra.mxu0 %v866
        %v3023 = vpop.f32.mrf.mxu0
        %v3024 = vadd.f32 0.0, %v3023
        %v3025 = vpop.f32.mrf.mxu0
        %3026 = vmatprep.mubr.f32.mxu0 0.0
        %3027 = vmatmul.mubr.f32.gmra.mxu0 %v868
        %v3028 = vpop.f32.mrf.mxu0
        %v3029 = vadd.f32 0.0, %v3028
        %v3030 = vpop.f32.mrf.mxu0
        %3031 = vmatprep.mubr.f32.mxu0 0.0
        %3032 = vmatmul.mubr.f32.gmra.mxu0 %v870
        %v3033 = vpop.f32.mrf.mxu0
        %v3034 = vadd.f32 0.0, %v3033
        %v3035 = vpop.f32.mrf.mxu0
        %3036 = vmatprep.mubr.f32.mxu0 0.0
        %3037 = vmatmul.mubr.f32.gmra.mxu0 %v872
        %v3038 = vpop.f32.mrf.mxu0
        %v3039 = vadd.f32 0.0, %v3038
        %v3040 = vpop.f32.mrf.mxu0
        %3041 = vmatprep.mubr.f32.mxu0 0.0
        %3042 = vmatmul.mubr.f32.gmra.mxu0 %v874
        %v3043 = vpop.f32.mrf.mxu0
        %v3044 = vadd.f32 0.0, %v3043
        %v3045 = vpop.f32.mrf.mxu0
        %3046 = vmatprep.mubr.f32.mxu0 0.0
        %3047 = vmatmul.mubr.f32.gmra.mxu0 %v876
        %v3048 = vpop.f32.mrf.mxu0
        %v3049 = vadd.f32 0.0, %v3048
        %v3050 = vpop.f32.mrf.mxu0
        %3051 = vmatprep.mubr.f32.mxu0 0.0
        %3052 = vmatmul.mubr.f32.gmra.mxu0 %v878
        %v3053 = vpop.f32.mrf.mxu0
        %v3054 = vadd.f32 0.0, %v3053
        %v3055 = vpop.f32.mrf.mxu0
        %3056 = vmatprep.mubr.f32.mxu0 0.0
        %3057 = vmatmul.mubr.f32.gmra.mxu0 %v880
        %v3058 = vpop.f32.mrf.mxu0
        %v3059 = vadd.f32 0.0, %v3058
        %v3060 = vpop.f32.mrf.mxu0
        %3061 = vmatprep.mubr.f32.mxu0 0.0
        %3062 = vmatmul.mubr.f32.gmra.mxu0 %v882
        %v3063 = vpop.f32.mrf.mxu0
        %v3064 = vadd.f32 0.0, %v3063
        %v3065 = vpop.f32.mrf.mxu0
        %3066 = vmatprep.mubr.f32.mxu0 0.0
        %3067 = vmatmul.mubr.f32.gmra.mxu0 %v884
        %v3068 = vpop.f32.mrf.mxu0
        %v3069 = vadd.f32 0.0, %v3068
        %v3070 = vpop.f32.mrf.mxu0
        %3071 = vmatprep.mubr.f32.mxu0 0.0
        %3072 = vmatmul.mubr.f32.gmra.mxu0 %v886
        %v3073 = vpop.f32.mrf.mxu0
        %v3074 = vadd.f32 0.0, %v3073
        %v3075 = vpop.f32.mrf.mxu0
        %3076 = vmatprep.mubr.f32.mxu0 0.0
        %3077 = vmatmul.mubr.f32.gmra.mxu0 %v888
        %v3078 = vpop.f32.mrf.mxu0
        %v3079 = vadd.f32 0.0, %v3078
        %v3080 = vpop.f32.mrf.mxu0
        %3081 = vmatprep.mubr.f32.mxu0 0.0
        %3082 = vmatmul.mubr.f32.gmra.mxu0 %v890
        %v3083 = vpop.f32.mrf.mxu0
        %v3084 = vadd.f32 0.0, %v3083
        %v3085 = vpop.f32.mrf.mxu0
        %3086 = vmatprep.mubr.f32.mxu0 0.0
        %3087 = vmatmul.mubr.f32.gmra.mxu0 %v892
        %v3088 = vpop.f32.mrf.mxu0
        %v3089 = vadd.f32 0.0, %v3088
        %v3090 = vpop.f32.mrf.mxu0
        %3091 = vmatprep.mubr.f32.mxu0 0.0
        %3092 = vmatmul.mubr.f32.gmra.mxu0 %v894
        %v3093 = vpop.f32.mrf.mxu0
        %v3094 = vadd.f32 0.0, %v3093
        %v3095 = vpop.f32.mrf.mxu0
        %3096 = vmatprep.mubr.f32.mxu0 0.0
        %3097 = vmatmul.mubr.f32.gmra.mxu0 %v896
        %v3098 = vpop.f32.mrf.mxu0
        %v3099 = vadd.f32 0.0, %v3098
        %v3100 = vpop.f32.mrf.mxu0
        %3101 = vmatprep.mubr.f32.mxu0 0.0
        %3102 = vmatmul.mubr.f32.gmra.mxu0 %v2088
        %v3103 = vpop.f32.mrf.mxu0
        %v3104 = vadd.f32 0.0, %v3103
        %v3105 = vpop.f32.mrf.mxu0
        %3106 = vmatprep.mubr.f32.mxu0 0.0
        %3107 = vmatmul.mubr.f32.gmra.mxu0 %v2090
        %v3108 = vpop.f32.mrf.mxu0
        %v3109 = vadd.f32 0.0, %v3108
        %v3110 = vpop.f32.mrf.mxu0
        %3111 = vmatprep.mubr.f32.mxu0 0.0
        %3112 = vmatmul.mubr.f32.gmra.mxu0 %v2092
        %v3113 = vpop.f32.mrf.mxu0
        %v3114 = vadd.f32 0.0, %v3113
        %v3115 = vpop.f32.mrf.mxu0
        %3116 = vmatprep.mubr.f32.mxu0 0.0
        %3117 = vmatmul.mubr.f32.gmra.mxu0 %v2094
        %v3118 = vpop.f32.mrf.mxu0
        %v3119 = vadd.f32 0.0, %v3118
        %v3120 = vpop.f32.mrf.mxu0
        %3121 = vmatprep.mubr.f32.mxu0 0.0
        %3122 = vmatmul.mubr.f32.gmra.mxu0 %v2909
        %v3123 = vpop.f32.mrf.mxu0
        %v3124 = vadd.f32 0.0, %v3123
        %v3125 = vpop.f32.mrf.mxu0
        %3126 = vmatprep.mubr.f32.mxu0 0.0
        %3127 = vmatmul.mubr.f32.gmra.mxu0 %v2911
        %v3128 = vpop.f32.mrf.mxu0
        %v3129 = vadd.f32 0.0, %v3128
        %v3130 = vpop.f32.mrf.mxu0
        %3131 = vmatprep.mubr.f32.mxu0 0.0
        %3132 = vmatmul.mubr.f32.gmra.mxu0 %v2913
        %v3133 = vpop.f32.mrf.mxu0
        %v3134 = vadd.f32 0.0, %v3133
        %v3135 = vpop.f32.mrf.mxu0
        %3136 = vmatprep.mubr.f32.mxu0 0.0
        %3137 = vmatmul.mubr.f32.gmra.mxu0 %v2915
        %v3138 = vpop.f32.mrf.mxu0
        %v3139 = vadd.f32 0.0, %v3138
        %v3140 = vpop.f32.mrf.mxu0
        %3141 = vdwg.mxu0
        %v3142 = vadd.f32 %v2865, %v2984
        %v3143 = vadd.f32 %v2866, %v2989
        %v3144 = vadd.f32 %v2867, %v2994
        %v3145 = vadd.f32 %v2868, %v2999
        %v3146 = vadd.f32 %v2869, %v3004
        %v3147 = vadd.f32 %v2870, %v3009
        %v3148 = vadd.f32 %v2871, %v3014
        %v3149 = vadd.f32 %v2872, %v3019
        %v3150 = vadd.f32 %v2873, %v3024
        %v3151 = vadd.f32 %v2874, %v3029
        %v3152 = vadd.f32 %v2875, %v3034
        %v3153 = vadd.f32 %v2876, %v3039
        %v3154 = vadd.f32 %v2877, %v3044
        %v3155 = vadd.f32 %v2878, %v3049
        %v3156 = vadd.f32 %v2879, %v3054
        %v3157 = vadd.f32 %v2880, %v3059
        %v3158 = vadd.f32 %v2881, %v3064
        %v3159 = vadd.f32 %v2882, %v3069
        %v3160 = vadd.f32 %v2883, %v3074
        %v3161 = vadd.f32 %v2884, %v3079
        %v3162 = vadd.f32 %v2885, %v3084
        %v3163 = vadd.f32 %v2886, %v3089
        %v3164 = vadd.f32 %v2887, %v3094
        %v3165 = vadd.f32 %v2888, %v3099
        %v3166 = vadd.f32 %v2889, %v3104
        %v3167 = vadd.f32 %v2890, %v3109
        %v3168 = vadd.f32 %v2891, %v3114
        %v3169 = vadd.f32 %v2892, %v3119
        %v3170 = vadd.f32 %v2893, %v3124
        %v3171 = vadd.f32 %v2894, %v3129
        %v3172 = vadd.f32 %v2895, %v3134
        %v3173 = vadd.f32 %v2896, %v3139
        %v3174 = vrot.slane %v730, 2
        %v3175 = vrot.slane %v696, 2
        %v3176 = vsel %vm1412, %v3174, %v3175
        %v3177 = vrot.slane %v698, 2
        %v3178 = vsel %vm1412, %v3175, %v3177
        %v3179 = vrot.slane %v700, 2
        %v3180 = vsel %vm1412, %v3177, %v3179
        %v3181 = vrot.slane %v740, 2
        %v3182 = vsel %vm1412, %v3179, %v3181
        %s3183 = scalar_lea.vmem %s4, 64
        %v3184 = vld [vmem:[%s3183] sm:$0xff]
        %v3185 = vsel %vm833, %v3176, 0
        %v3187 = vsel %vm833, %v3178, 0
        %v3189 = vsel %vm833, %v3180, 0
        %v3191 = vsel %vm833, %v3182, 0
        %3193 = vmatprep.subr.mxu0 0.0
        %3194 = vmatpush1.msra.mxu0 0.0
        %3195 = vmatprep.subr.mxu0 0.0
        %3196 = vmatpush1.msra.mxu0 0.0
        %3197 = vmatprep.subr.mxu0 0.0
        %3198 = vmatpush1.msra.mxu0 0.0
        %3199 = vmatprep.subr.mxu0 0.0
        %3200 = vmatpush1.msra.mxu0 0.0
        %3201 = vmatprep.subr.mxu0 0.0
        %3202 = vmatpush1.msra.mxu0 0.0
        %3203 = vmatprep.subr.mxu0 0.0
        %3204 = vmatpush1.msra.mxu0 0.0
        %3205 = vmatprep.subr.mxu0 0.0
        %3206 = vmatpush1.msra.mxu0 0.0
        %3207 = vmatprep.subr.mxu0 0.0
        %3208 = vmatpush1.msra.mxu0 0.0
        %3209 = vmatprep.subr.mxu0 0.0
        %3210 = vmatpush1.msra.mxu0 0.0
        %3211 = vmatprep.subr.mxu0 0.0
        %3212 = vmatpush1.msra.mxu0 0.0
        %3213 = vmatprep.subr.mxu0 0.0
        %3214 = vmatpush1.msra.mxu0 0.0
        %3215 = vmatprep.subr.mxu0 0.0
        %3216 = vmatpush1.msra.mxu0 0.0
        %3217 = vmatprep.subr.mxu0 0.0
        %3218 = vmatpush1.msra.mxu0 0.0
        %3219 = vmatprep.subr.mxu0 0.0
        %3220 = vmatpush1.msra.mxu0 0.0
        %3221 = vmatprep.subr.mxu0 0.0
        %3222 = vmatpush1.msra.mxu0 0.0
        %3223 = vmatprep.subr.mxu0 0.0
        %3224 = vmatpush1.msra.mxu0 %v3184
        %3225 = vmatprep.subr.mxu0 0.0
        %3226 = vmatpush2.msra.mxu0 0.0
        %3227 = vmatprep.subr.mxu0 0.0
        %3228 = vmatpush2.msra.mxu0 0.0
        %3229 = vmatprep.subr.mxu0 0.0
        %3230 = vmatpush2.msra.mxu0 0.0
        %3231 = vmatprep.subr.mxu0 0.0
        %3232 = vmatpush2.msra.mxu0 0.0
        %3233 = vmatprep.subr.mxu0 0.0
        %3234 = vmatpush2.msra.mxu0 0.0
        %3235 = vmatprep.subr.mxu0 0.0
        %3236 = vmatpush2.msra.mxu0 0.0
        %3237 = vmatprep.subr.mxu0 0.0
        %3238 = vmatpush2.msra.mxu0 0.0
        %3239 = vmatprep.subr.mxu0 0.0
        %3240 = vmatpush2.msra.mxu0 0.0
        %3241 = vmatprep.subr.mxu0 0.0
        %3242 = vmatpush2.msra.mxu0 0.0
        %3243 = vmatprep.subr.mxu0 0.0
        %3244 = vmatpush2.msra.mxu0 0.0
        %3245 = vmatprep.subr.mxu0 0.0
        %3246 = vmatpush2.msra.mxu0 0.0
        %3247 = vmatprep.subr.mxu0 0.0
        %3248 = vmatpush2.msra.mxu0 0.0
        %3249 = vmatprep.subr.mxu0 0.0
        %3250 = vmatpush2.msra.mxu0 0.0
        %3251 = vmatprep.subr.mxu0 0.0
        %3252 = vmatpush2.msra.mxu0 0.0
        %3253 = vmatprep.subr.mxu0 0.0
        %3254 = vmatpush2.msra.mxu0 0.0
        %3255 = vmatprep.subr.mxu0 0.0
        %3256 = vmatpush2.msra.mxu0 0.0
        %3257 = vmatprep.mubr.f32.mxu0 0.0
        %3258 = vmatmul.mubr.f32.gmra.mxu0 %v1503
        %v3259 = vpop.f32.mrf.mxu0
        %v3260 = vadd.f32 0.0, %v3259
        %v3261 = vpop.f32.mrf.mxu0
        %3262 = vmatprep.mubr.f32.mxu0 0.0
        %3263 = vmatmul.mubr.f32.gmra.mxu0 %v1505
        %v3264 = vpop.f32.mrf.mxu0
        %v3265 = vadd.f32 0.0, %v3264
        %v3266 = vpop.f32.mrf.mxu0
        %3267 = vmatprep.mubr.f32.mxu0 0.0
        %3268 = vmatmul.mubr.f32.gmra.mxu0 %v1507
        %v3269 = vpop.f32.mrf.mxu0
        %v3270 = vadd.f32 0.0, %v3269
        %v3271 = vpop.f32.mrf.mxu0
        %3272 = vmatprep.mubr.f32.mxu0 0.0
        %3273 = vmatmul.mubr.f32.gmra.mxu0 %v1509
        %v3274 = vpop.f32.mrf.mxu0
        %v3275 = vadd.f32 0.0, %v3274
        %v3276 = vpop.f32.mrf.mxu0
        %3277 = vmatprep.mubr.f32.mxu0 0.0
        %3278 = vmatmul.mubr.f32.gmra.mxu0 %v1511
        %v3279 = vpop.f32.mrf.mxu0
        %v3280 = vadd.f32 0.0, %v3279
        %v3281 = vpop.f32.mrf.mxu0
        %3282 = vmatprep.mubr.f32.mxu0 0.0
        %3283 = vmatmul.mubr.f32.gmra.mxu0 %v1513
        %v3284 = vpop.f32.mrf.mxu0
        %v3285 = vadd.f32 0.0, %v3284
        %v3286 = vpop.f32.mrf.mxu0
        %3287 = vmatprep.mubr.f32.mxu0 0.0
        %3288 = vmatmul.mubr.f32.gmra.mxu0 %v1515
        %v3289 = vpop.f32.mrf.mxu0
        %v3290 = vadd.f32 0.0, %v3289
        %v3291 = vpop.f32.mrf.mxu0
        %3292 = vmatprep.mubr.f32.mxu0 0.0
        %3293 = vmatmul.mubr.f32.gmra.mxu0 %v1517
        %v3294 = vpop.f32.mrf.mxu0
        %v3295 = vadd.f32 0.0, %v3294
        %v3296 = vpop.f32.mrf.mxu0
        %3297 = vmatprep.mubr.f32.mxu0 0.0
        %3298 = vmatmul.mubr.f32.gmra.mxu0 %v1519
        %v3299 = vpop.f32.mrf.mxu0
        %v3300 = vadd.f32 0.0, %v3299
        %v3301 = vpop.f32.mrf.mxu0
        %3302 = vmatprep.mubr.f32.mxu0 0.0
        %3303 = vmatmul.mubr.f32.gmra.mxu0 %v1521
        %v3304 = vpop.f32.mrf.mxu0
        %v3305 = vadd.f32 0.0, %v3304
        %v3306 = vpop.f32.mrf.mxu0
        %3307 = vmatprep.mubr.f32.mxu0 0.0
        %3308 = vmatmul.mubr.f32.gmra.mxu0 %v1523
        %v3309 = vpop.f32.mrf.mxu0
        %v3310 = vadd.f32 0.0, %v3309
        %v3311 = vpop.f32.mrf.mxu0
        %3312 = vmatprep.mubr.f32.mxu0 0.0
        %3313 = vmatmul.mubr.f32.gmra.mxu0 %v1525
        %v3314 = vpop.f32.mrf.mxu0
        %v3315 = vadd.f32 0.0, %v3314
        %v3316 = vpop.f32.mrf.mxu0
        %3317 = vmatprep.mubr.f32.mxu0 0.0
        %3318 = vmatmul.mubr.f32.gmra.mxu0 %v1527
        %v3319 = vpop.f32.mrf.mxu0
        %v3320 = vadd.f32 0.0, %v3319
        %v3321 = vpop.f32.mrf.mxu0
        %3322 = vmatprep.mubr.f32.mxu0 0.0
        %3323 = vmatmul.mubr.f32.gmra.mxu0 %v1529
        %v3324 = vpop.f32.mrf.mxu0
        %v3325 = vadd.f32 0.0, %v3324
        %v3326 = vpop.f32.mrf.mxu0
        %3327 = vmatprep.mubr.f32.mxu0 0.0
        %3328 = vmatmul.mubr.f32.gmra.mxu0 %v1531
        %v3329 = vpop.f32.mrf.mxu0
        %v3330 = vadd.f32 0.0, %v3329
        %v3331 = vpop.f32.mrf.mxu0
        %3332 = vmatprep.mubr.f32.mxu0 0.0
        %3333 = vmatmul.mubr.f32.gmra.mxu0 %v1533
        %v3334 = vpop.f32.mrf.mxu0
        %v3335 = vadd.f32 0.0, %v3334
        %v3336 = vpop.f32.mrf.mxu0
        %3337 = vmatprep.mubr.f32.mxu0 0.0
        %3338 = vmatmul.mubr.f32.gmra.mxu0 %v1535
        %v3339 = vpop.f32.mrf.mxu0
        %v3340 = vadd.f32 0.0, %v3339
        %v3341 = vpop.f32.mrf.mxu0
        %3342 = vmatprep.mubr.f32.mxu0 0.0
        %3343 = vmatmul.mubr.f32.gmra.mxu0 %v1537
        %v3344 = vpop.f32.mrf.mxu0
        %v3345 = vadd.f32 0.0, %v3344
        %v3346 = vpop.f32.mrf.mxu0
        %3347 = vmatprep.mubr.f32.mxu0 0.0
        %3348 = vmatmul.mubr.f32.gmra.mxu0 %v1539
        %v3349 = vpop.f32.mrf.mxu0
        %v3350 = vadd.f32 0.0, %v3349
        %v3351 = vpop.f32.mrf.mxu0
        %3352 = vmatprep.mubr.f32.mxu0 0.0
        %3353 = vmatmul.mubr.f32.gmra.mxu0 %v1541
        %v3354 = vpop.f32.mrf.mxu0
        %v3355 = vadd.f32 0.0, %v3354
        %v3356 = vpop.f32.mrf.mxu0
        %3357 = vmatprep.mubr.f32.mxu0 0.0
        %3358 = vmatmul.mubr.f32.gmra.mxu0 %v1543
        %v3359 = vpop.f32.mrf.mxu0
        %v3360 = vadd.f32 0.0, %v3359
        %v3361 = vpop.f32.mrf.mxu0
        %3362 = vmatprep.mubr.f32.mxu0 0.0
        %3363 = vmatmul.mubr.f32.gmra.mxu0 %v1545
        %v3364 = vpop.f32.mrf.mxu0
        %v3365 = vadd.f32 0.0, %v3364
        %v3366 = vpop.f32.mrf.mxu0
        %3367 = vmatprep.mubr.f32.mxu0 0.0
        %3368 = vmatmul.mubr.f32.gmra.mxu0 %v1547
        %v3369 = vpop.f32.mrf.mxu0
        %v3370 = vadd.f32 0.0, %v3369
        %v3371 = vpop.f32.mrf.mxu0
        %3372 = vmatprep.mubr.f32.mxu0 0.0
        %3373 = vmatmul.mubr.f32.gmra.mxu0 %v1549
        %v3374 = vpop.f32.mrf.mxu0
        %v3375 = vadd.f32 0.0, %v3374
        %v3376 = vpop.f32.mrf.mxu0
        %3377 = vmatprep.mubr.f32.mxu0 0.0
        %3378 = vmatmul.mubr.f32.gmra.mxu0 %v2364
        %v3379 = vpop.f32.mrf.mxu0
        %v3380 = vadd.f32 0.0, %v3379
        %v3381 = vpop.f32.mrf.mxu0
        %3382 = vmatprep.mubr.f32.mxu0 0.0
        %3383 = vmatmul.mubr.f32.gmra.mxu0 %v2366
        %v3384 = vpop.f32.mrf.mxu0
        %v3385 = vadd.f32 0.0, %v3384
        %v3386 = vpop.f32.mrf.mxu0
        %3387 = vmatprep.mubr.f32.mxu0 0.0
        %3388 = vmatmul.mubr.f32.gmra.mxu0 %v2368
        %v3389 = vpop.f32.mrf.mxu0
        %v3390 = vadd.f32 0.0, %v3389
        %v3391 = vpop.f32.mrf.mxu0
        %3392 = vmatprep.mubr.f32.mxu0 0.0
        %3393 = vmatmul.mubr.f32.gmra.mxu0 %v2370
        %v3394 = vpop.f32.mrf.mxu0
        %v3395 = vadd.f32 0.0, %v3394
        %v3396 = vpop.f32.mrf.mxu0
        %3397 = vmatprep.mubr.f32.mxu0 0.0
        %3398 = vmatmul.mubr.f32.gmra.mxu0 %v3185
        %v3399 = vpop.f32.mrf.mxu0
        %v3400 = vadd.f32 0.0, %v3399
        %v3401 = vpop.f32.mrf.mxu0
        %3402 = vmatprep.mubr.f32.mxu0 0.0
        %3403 = vmatmul.mubr.f32.gmra.mxu0 %v3187
        %v3404 = vpop.f32.mrf.mxu0
        %v3405 = vadd.f32 0.0, %v3404
        %v3406 = vpop.f32.mrf.mxu0
        %3407 = vmatprep.mubr.f32.mxu0 0.0
        %3408 = vmatmul.mubr.f32.gmra.mxu0 %v3189
        %v3409 = vpop.f32.mrf.mxu0
        %v3410 = vadd.f32 0.0, %v3409
        %v3411 = vpop.f32.mrf.mxu0
        %3412 = vmatprep.mubr.f32.mxu0 0.0
        %3413 = vmatmul.mubr.f32.gmra.mxu0 %v3191
        %v3414 = vpop.f32.mrf.mxu0
        %v3415 = vadd.f32 0.0, %v3414
        %v3416 = vpop.f32.mrf.mxu0
        %3417 = vdwg.mxu0
        %v3418 = vadd.f32 %v3142, %v3260
        %v3419 = vadd.f32 %v3143, %v3265
        %v3420 = vadd.f32 %v3144, %v3270
        %v3421 = vadd.f32 %v3145, %v3275
        %v3422 = vadd.f32 %v3146, %v3280
        %v3423 = vadd.f32 %v3147, %v3285
        %v3424 = vadd.f32 %v3148, %v3290
        %v3425 = vadd.f32 %v3149, %v3295
        %v3426 = vadd.f32 %v3150, %v3300
        %v3427 = vadd.f32 %v3151, %v3305
        %v3428 = vadd.f32 %v3152, %v3310
        %v3429 = vadd.f32 %v3153, %v3315
        %v3430 = vadd.f32 %v3154, %v3320
        %v3431 = vadd.f32 %v3155, %v3325
        %v3432 = vadd.f32 %v3156, %v3330
        %v3433 = vadd.f32 %v3157, %v3335
        %v3434 = vadd.f32 %v3158, %v3340
        %v3435 = vadd.f32 %v3159, %v3345
        %v3436 = vadd.f32 %v3160, %v3350
        %v3437 = vadd.f32 %v3161, %v3355
        %v3438 = vadd.f32 %v3162, %v3360
        %v3439 = vadd.f32 %v3163, %v3365
        %v3440 = vadd.f32 %v3164, %v3370
        %v3441 = vadd.f32 %v3165, %v3375
        %v3442 = vadd.f32 %v3166, %v3380
        %v3443 = vadd.f32 %v3167, %v3385
        %v3444 = vadd.f32 %v3168, %v3390
        %v3445 = vadd.f32 %v3169, %v3395
        %v3446 = vadd.f32 %v3170, %v3400
        %v3447 = vadd.f32 %v3171, %v3405
        %v3448 = vadd.f32 %v3172, %v3410
        %v3449 = vadd.f32 %v3173, %v3415
        %v3450 = vld [vmem:[%s397] sm:$0xff]
        %v3451 = vld [vmem:[%s397 + $0x8] sm:$0xff]
        %v3452 = vld [vmem:[%s397 + $0x10] sm:$0xff]
        %v3453 = vld [vmem:[%s397 + $0x18] sm:$0xff]
        %v3454 = vld [vmem:[%s397 + $0x20] sm:$0xff]
        %v3455 = vld [vmem:[%s397 + $0x28] sm:$0xff]
        %v3456 = vld [vmem:[%s397 + $0x30] sm:$0xff]
        %v3457 = vld [vmem:[%s397 + $0x38] sm:$0xff]
        %v3458 = vld [vmem:[%s5] sm:$0xf]
        %vm3459 = vcmask 31744
        %v3461 = vsel %vm3459, %v3450, 0
        %v3464 = vsel %vm3459, %v3451, 0
        %v3467 = vsel %vm3459, %v3452, 0
        %v3470 = vsel %vm3459, %v3453, 0
        %v3473 = vsel %vm3459, %v3454, 0
        %v3476 = vsel %vm3459, %v3455, 0
        %v3479 = vsel %vm3459, %v3456, 0
        %v3482 = vsel %vm3459, %v3457, 0
        %vm3484 = vcmask 1043456
        %v3486 = vsel %vm3484, %v3458, 0
        %3488 = vmatprep.subr.mxu0 0.0
        %3489 = vmatpush1.msra.mxu0 0.0
        %3490 = vmatprep.subr.mxu0 0.0
        %3491 = vmatpush1.msra.mxu0 0.0
        %3492 = vmatprep.subr.mxu0 0.0
        %3493 = vmatpush1.msra.mxu0 0.0
        %3494 = vmatprep.subr.mxu0 0.0
        %3495 = vmatpush1.msra.mxu0 0.0
        %3496 = vmatprep.subr.mxu0 0.0
        %3497 = vmatpush1.msra.mxu0 0.0
        %3498 = vmatprep.subr.mxu0 0.0
        %3499 = vmatpush1.msra.mxu0 0.0
        %3500 = vmatprep.subr.mxu0 0.0
        %3501 = vmatpush1.msra.mxu0 0.0
        %3502 = vmatprep.subr.mxu0 0.0
        %3503 = vmatpush1.msra.mxu0 0.0
        %3504 = vmatprep.subr.mxu0 0.0
        %3505 = vmatpush1.msra.mxu0 0.0
        %3506 = vmatprep.subr.mxu0 0.0
        %3507 = vmatpush1.msra.mxu0 0.0
        %3508 = vmatprep.subr.mxu0 0.0
        %3509 = vmatpush1.msra.mxu0 0.0
        %3510 = vmatprep.subr.mxu0 0.0
        %3511 = vmatpush1.msra.mxu0 0.0
        %3512 = vmatprep.subr.mxu0 0.0
        %3513 = vmatpush1.msra.mxu0 0.0
        %3514 = vmatprep.subr.mxu0 0.0
        %3515 = vmatpush1.msra.mxu0 0.0
        %3516 = vmatprep.subr.mxu0 0.0
        %3517 = vmatpush1.msra.mxu0 0.0
        %3518 = vmatprep.subr.mxu0 0.0
        %3519 = vmatpush1.msra.mxu0 %v3486
        %3520 = vmatprep.subr.mxu0 0.0
        %3521 = vmatpush2.msra.mxu0 0.0
        %3522 = vmatprep.subr.mxu0 0.0
        %3523 = vmatpush2.msra.mxu0 0.0
        %3524 = vmatprep.subr.mxu0 0.0
        %3525 = vmatpush2.msra.mxu0 0.0
        %3526 = vmatprep.subr.mxu0 0.0
        %3527 = vmatpush2.msra.mxu0 0.0
        %3528 = vmatprep.subr.mxu0 0.0
        %3529 = vmatpush2.msra.mxu0 0.0
        %3530 = vmatprep.subr.mxu0 0.0
        %3531 = vmatpush2.msra.mxu0 0.0
        %3532 = vmatprep.subr.mxu0 0.0
        %3533 = vmatpush2.msra.mxu0 0.0
        %3534 = vmatprep.subr.mxu0 0.0
        %3535 = vmatpush2.msra.mxu0 0.0
        %3536 = vmatprep.subr.mxu0 0.0
        %3537 = vmatpush2.msra.mxu0 0.0
        %3538 = vmatprep.subr.mxu0 0.0
        %3539 = vmatpush2.msra.mxu0 0.0
        %3540 = vmatprep.subr.mxu0 0.0
        %3541 = vmatpush2.msra.mxu0 0.0
        %3542 = vmatprep.subr.mxu0 0.0
        %3543 = vmatpush2.msra.mxu0 0.0
        %3544 = vmatprep.subr.mxu0 0.0
        %3545 = vmatpush2.msra.mxu0 0.0
        %3546 = vmatprep.subr.mxu0 0.0
        %3547 = vmatpush2.msra.mxu0 0.0
        %3548 = vmatprep.subr.mxu0 0.0
        %3549 = vmatpush2.msra.mxu0 0.0
        %3550 = vmatprep.subr.mxu0 0.0
        %3551 = vmatpush2.msra.mxu0 0.0
        %3552 = vmatprep.mubr.f32.mxu0 0.0
        %3553 = vmatmul.mubr.f32.gmra.mxu0 %v3461
        %v3554 = vpop.f32.mrf.mxu0
        %v3555 = vadd.f32 0.0, %v3554
        %v3556 = vpop.f32.mrf.mxu0
        %3557 = vmatprep.mubr.f32.mxu0 0.0
        %3558 = vmatmul.mubr.f32.gmra.mxu0 %v3464
        %v3559 = vpop.f32.mrf.mxu0
        %v3560 = vadd.f32 0.0, %v3559
        %v3561 = vpop.f32.mrf.mxu0
        %3562 = vmatprep.mubr.f32.mxu0 0.0
        %3563 = vmatmul.mubr.f32.gmra.mxu0 %v3467
        %v3564 = vpop.f32.mrf.mxu0
        %v3565 = vadd.f32 0.0, %v3564
        %v3566 = vpop.f32.mrf.mxu0
        %3567 = vmatprep.mubr.f32.mxu0 0.0
        %3568 = vmatmul.mubr.f32.gmra.mxu0 %v3470
        %v3569 = vpop.f32.mrf.mxu0
        %v3570 = vadd.f32 0.0, %v3569
        %v3571 = vpop.f32.mrf.mxu0
        %3572 = vmatprep.mubr.f32.mxu0 0.0
        %3573 = vmatmul.mubr.f32.gmra.mxu0 %v3473
        %v3574 = vpop.f32.mrf.mxu0
        %v3575 = vadd.f32 0.0, %v3574
        %v3576 = vpop.f32.mrf.mxu0
        %3577 = vmatprep.mubr.f32.mxu0 0.0
        %3578 = vmatmul.mubr.f32.gmra.mxu0 %v3476
        %v3579 = vpop.f32.mrf.mxu0
        %v3580 = vadd.f32 0.0, %v3579
        %v3581 = vpop.f32.mrf.mxu0
        %3582 = vmatprep.mubr.f32.mxu0 0.0
        %3583 = vmatmul.mubr.f32.gmra.mxu0 %v3479
        %v3584 = vpop.f32.mrf.mxu0
        %v3585 = vadd.f32 0.0, %v3584
        %v3586 = vpop.f32.mrf.mxu0
        %3587 = vmatprep.mubr.f32.mxu0 0.0
        %3588 = vmatmul.mubr.f32.gmra.mxu0 %v3482
        %v3589 = vpop.f32.mrf.mxu0
        %v3590 = vadd.f32 0.0, %v3589
        %v3591 = vpop.f32.mrf.mxu0
        %3592 = vdwg.mxu0
        %v3601 = vcombine.high %v3555, %v3555
        %v3603 = vunpack.c.l.s4 1966171168
        %v3604 = vunpack.c.0.s8 %v3603
        %v3605 = vlaneseq
        %v3606 = vshrl.u32 %v3605, 7
        %v3607 = vsub.s32 %v3604, %v3606
        %v3608 = vrot.slane %v3555, %v3607
        %v3610 = vunpack.c.l.s4 1966171168
        %v3611 = vunpack.c.0.s8 %v3610
        %v3612 = vlaneseq
        %v3613 = vshrl.u32 %v3612, 7
        %v3614 = vsub.s32 %v3611, %v3613
        %v3615 = vrot.slane %v3601, %v3614
        %v3616 = vcombine.high %v3608, %v3608
        %v3617 = vcombine.high %v3615, %v3615
        %v3619 = vunpack.c.l.s4 1966171168
        %v3620 = vunpack.c.0.s8 %v3619
        %v3621 = vlaneseq
        %v3622 = vshrl.u32 %v3621, 7
        %v3623 = vsub.s32 %v3620, %v3622
        %v3624 = vrot.slane %v3608, %v3623
        %v3626 = vunpack.c.l.s4 1966171168
        %v3627 = vunpack.c.0.s8 %v3626
        %v3628 = vlaneseq
        %v3629 = vshrl.u32 %v3628, 7
        %v3630 = vsub.s32 %v3627, %v3629
        %v3631 = vrot.slane %v3615, %v3630
        %v3633 = vunpack.c.l.s4 1966171168
        %v3634 = vunpack.c.0.s8 %v3633
        %v3635 = vlaneseq
        %v3636 = vshrl.u32 %v3635, 7
        %v3637 = vsub.s32 %v3634, %v3636
        %v3638 = vrot.slane %v3616, %v3637
        %v3640 = vunpack.c.l.s4 1966171168
        %v3641 = vunpack.c.0.s8 %v3640
        %v3642 = vlaneseq
        %v3643 = vshrl.u32 %v3642, 7
        %v3644 = vsub.s32 %v3641, %v3643
        %v3645 = vrot.slane %v3617, %v3644
        %v3646 = vcombine.high %v3624, %v3624
        %v3647 = vcombine.high %v3631, %v3631
        %v3648 = vcombine.high %v3638, %v3638
        %v3649 = vcombine.high %v3645, %v3645
        %v3650 = vcombine.high %v3560, %v3560
        %v3652 = vunpack.c.l.s4 1966171168
        %v3653 = vunpack.c.0.s8 %v3652
        %v3654 = vlaneseq
        %v3655 = vshrl.u32 %v3654, 7
        %v3656 = vsub.s32 %v3653, %v3655
        %v3657 = vrot.slane %v3560, %v3656
        %v3659 = vunpack.c.l.s4 1966171168
        %v3660 = vunpack.c.0.s8 %v3659
        %v3661 = vlaneseq
        %v3662 = vshrl.u32 %v3661, 7
        %v3663 = vsub.s32 %v3660, %v3662
        %v3664 = vrot.slane %v3650, %v3663
        %v3665 = vcombine.high %v3657, %v3657
        %v3666 = vcombine.high %v3664, %v3664
        %v3668 = vunpack.c.l.s4 1966171168
        %v3669 = vunpack.c.0.s8 %v3668
        %v3670 = vlaneseq
        %v3671 = vshrl.u32 %v3670, 7
        %v3672 = vsub.s32 %v3669, %v3671
        %v3673 = vrot.slane %v3657, %v3672
        %v3675 = vunpack.c.l.s4 1966171168
        %v3676 = vunpack.c.0.s8 %v3675
        %v3677 = vlaneseq
        %v3678 = vshrl.u32 %v3677, 7
        %v3679 = vsub.s32 %v3676, %v3678
        %v3680 = vrot.slane %v3664, %v3679
        %v3682 = vunpack.c.l.s4 1966171168
        %v3683 = vunpack.c.0.s8 %v3682
        %v3684 = vlaneseq
        %v3685 = vshrl.u32 %v3684, 7
        %v3686 = vsub.s32 %v3683, %v3685
        %v3687 = vrot.slane %v3665, %v3686
        %v3689 = vunpack.c.l.s4 1966171168
        %v3690 = vunpack.c.0.s8 %v3689
        %v3691 = vlaneseq
        %v3692 = vshrl.u32 %v3691, 7
        %v3693 = vsub.s32 %v3690, %v3692
        %v3694 = vrot.slane %v3666, %v3693
        %v3695 = vcombine.high %v3673, %v3673
        %v3696 = vcombine.high %v3680, %v3680
        %v3697 = vcombine.high %v3687, %v3687
        %v3698 = vcombine.high %v3694, %v3694
        %v3699 = vcombine.high %v3565, %v3565
        %v3701 = vunpack.c.l.s4 1966171168
        %v3702 = vunpack.c.0.s8 %v3701
        %v3703 = vlaneseq
        %v3704 = vshrl.u32 %v3703, 7
        %v3705 = vsub.s32 %v3702, %v3704
        %v3706 = vrot.slane %v3565, %v3705
        %v3708 = vunpack.c.l.s4 1966171168
        %v3709 = vunpack.c.0.s8 %v3708
        %v3710 = vlaneseq
        %v3711 = vshrl.u32 %v3710, 7
        %v3712 = vsub.s32 %v3709, %v3711
        %v3713 = vrot.slane %v3699, %v3712
        %v3714 = vcombine.high %v3706, %v3706
        %v3715 = vcombine.high %v3713, %v3713
        %v3717 = vunpack.c.l.s4 1966171168
        %v3718 = vunpack.c.0.s8 %v3717
        %v3719 = vlaneseq
        %v3720 = vshrl.u32 %v3719, 7
        %v3721 = vsub.s32 %v3718, %v3720
        %v3722 = vrot.slane %v3706, %v3721
        %v3724 = vunpack.c.l.s4 1966171168
        %v3725 = vunpack.c.0.s8 %v3724
        %v3726 = vlaneseq
        %v3727 = vshrl.u32 %v3726, 7
        %v3728 = vsub.s32 %v3725, %v3727
        %v3729 = vrot.slane %v3713, %v3728
        %v3731 = vunpack.c.l.s4 1966171168
        %v3732 = vunpack.c.0.s8 %v3731
        %v3733 = vlaneseq
        %v3734 = vshrl.u32 %v3733, 7
        %v3735 = vsub.s32 %v3732, %v3734
        %v3736 = vrot.slane %v3714, %v3735
        %v3738 = vunpack.c.l.s4 1966171168
        %v3739 = vunpack.c.0.s8 %v3738
        %v3740 = vlaneseq
        %v3741 = vshrl.u32 %v3740, 7
        %v3742 = vsub.s32 %v3739, %v3741
        %v3743 = vrot.slane %v3715, %v3742
        %v3744 = vcombine.high %v3722, %v3722
        %v3745 = vcombine.high %v3729, %v3729
        %v3746 = vcombine.high %v3736, %v3736
        %v3747 = vcombine.high %v3743, %v3743
        %v3748 = vcombine.high %v3570, %v3570
        %v3750 = vunpack.c.l.s4 1966171168
        %v3751 = vunpack.c.0.s8 %v3750
        %v3752 = vlaneseq
        %v3753 = vshrl.u32 %v3752, 7
        %v3754 = vsub.s32 %v3751, %v3753
        %v3755 = vrot.slane %v3570, %v3754
        %v3757 = vunpack.c.l.s4 1966171168
        %v3758 = vunpack.c.0.s8 %v3757
        %v3759 = vlaneseq
        %v3760 = vshrl.u32 %v3759, 7
        %v3761 = vsub.s32 %v3758, %v3760
        %v3762 = vrot.slane %v3748, %v3761
        %v3763 = vcombine.high %v3755, %v3755
        %v3764 = vcombine.high %v3762, %v3762
        %v3766 = vunpack.c.l.s4 1966171168
        %v3767 = vunpack.c.0.s8 %v3766
        %v3768 = vlaneseq
        %v3769 = vshrl.u32 %v3768, 7
        %v3770 = vsub.s32 %v3767, %v3769
        %v3771 = vrot.slane %v3755, %v3770
        %v3773 = vunpack.c.l.s4 1966171168
        %v3774 = vunpack.c.0.s8 %v3773
        %v3775 = vlaneseq
        %v3776 = vshrl.u32 %v3775, 7
        %v3777 = vsub.s32 %v3774, %v3776
        %v3778 = vrot.slane %v3762, %v3777
        %v3780 = vunpack.c.l.s4 1966171168
        %v3781 = vunpack.c.0.s8 %v3780
        %v3782 = vlaneseq
        %v3783 = vshrl.u32 %v3782, 7
        %v3784 = vsub.s32 %v3781, %v3783
        %v3785 = vrot.slane %v3763, %v3784
        %v3787 = vunpack.c.l.s4 1966171168
        %v3788 = vunpack.c.0.s8 %v3787
        %v3789 = vlaneseq
        %v3790 = vshrl.u32 %v3789, 7
        %v3791 = vsub.s32 %v3788, %v3790
        %v3792 = vrot.slane %v3764, %v3791
        %v3793 = vcombine.high %v3771, %v3771
        %v3794 = vcombine.high %v3778, %v3778
        %v3795 = vcombine.high %v3785, %v3785
        %v3796 = vcombine.high %v3792, %v3792
        %v3797 = vcombine.high %v3575, %v3575
        %v3799 = vunpack.c.l.s4 1966171168
        %v3800 = vunpack.c.0.s8 %v3799
        %v3801 = vlaneseq
        %v3802 = vshrl.u32 %v3801, 7
        %v3803 = vsub.s32 %v3800, %v3802
        %v3804 = vrot.slane %v3575, %v3803
        %v3806 = vunpack.c.l.s4 1966171168
        %v3807 = vunpack.c.0.s8 %v3806
        %v3808 = vlaneseq
        %v3809 = vshrl.u32 %v3808, 7
        %v3810 = vsub.s32 %v3807, %v3809
        %v3811 = vrot.slane %v3797, %v3810
        %v3812 = vcombine.high %v3804, %v3804
        %v3813 = vcombine.high %v3811, %v3811
        %v3815 = vunpack.c.l.s4 1966171168
        %v3816 = vunpack.c.0.s8 %v3815
        %v3817 = vlaneseq
        %v3818 = vshrl.u32 %v3817, 7
        %v3819 = vsub.s32 %v3816, %v3818
        %v3820 = vrot.slane %v3804, %v3819
        %v3822 = vunpack.c.l.s4 1966171168
        %v3823 = vunpack.c.0.s8 %v3822
        %v3824 = vlaneseq
        %v3825 = vshrl.u32 %v3824, 7
        %v3826 = vsub.s32 %v3823, %v3825
        %v3827 = vrot.slane %v3811, %v3826
        %v3829 = vunpack.c.l.s4 1966171168
        %v3830 = vunpack.c.0.s8 %v3829
        %v3831 = vlaneseq
        %v3832 = vshrl.u32 %v3831, 7
        %v3833 = vsub.s32 %v3830, %v3832
        %v3834 = vrot.slane %v3812, %v3833
        %v3836 = vunpack.c.l.s4 1966171168
        %v3837 = vunpack.c.0.s8 %v3836
        %v3838 = vlaneseq
        %v3839 = vshrl.u32 %v3838, 7
        %v3840 = vsub.s32 %v3837, %v3839
        %v3841 = vrot.slane %v3813, %v3840
        %v3842 = vcombine.high %v3820, %v3820
        %v3843 = vcombine.high %v3827, %v3827
        %v3844 = vcombine.high %v3834, %v3834
        %v3845 = vcombine.high %v3841, %v3841
        %v3846 = vcombine.high %v3580, %v3580
        %v3848 = vunpack.c.l.s4 1966171168
        %v3849 = vunpack.c.0.s8 %v3848
        %v3850 = vlaneseq
        %v3851 = vshrl.u32 %v3850, 7
        %v3852 = vsub.s32 %v3849, %v3851
        %v3853 = vrot.slane %v3580, %v3852
        %v3855 = vunpack.c.l.s4 1966171168
        %v3856 = vunpack.c.0.s8 %v3855
        %v3857 = vlaneseq
        %v3858 = vshrl.u32 %v3857, 7
        %v3859 = vsub.s32 %v3856, %v3858
        %v3860 = vrot.slane %v3846, %v3859
        %v3861 = vcombine.high %v3853, %v3853
        %v3862 = vcombine.high %v3860, %v3860
        %v3864 = vunpack.c.l.s4 1966171168
        %v3865 = vunpack.c.0.s8 %v3864
        %v3866 = vlaneseq
        %v3867 = vshrl.u32 %v3866, 7
        %v3868 = vsub.s32 %v3865, %v3867
        %v3869 = vrot.slane %v3853, %v3868
        %v3871 = vunpack.c.l.s4 1966171168
        %v3872 = vunpack.c.0.s8 %v3871
        %v3873 = vlaneseq
        %v3874 = vshrl.u32 %v3873, 7
        %v3875 = vsub.s32 %v3872, %v3874
        %v3876 = vrot.slane %v3860, %v3875
        %v3878 = vunpack.c.l.s4 1966171168
        %v3879 = vunpack.c.0.s8 %v3878
        %v3880 = vlaneseq
        %v3881 = vshrl.u32 %v3880, 7
        %v3882 = vsub.s32 %v3879, %v3881
        %v3883 = vrot.slane %v3861, %v3882
        %v3885 = vunpack.c.l.s4 1966171168
        %v3886 = vunpack.c.0.s8 %v3885
        %v3887 = vlaneseq
        %v3888 = vshrl.u32 %v3887, 7
        %v3889 = vsub.s32 %v3886, %v3888
        %v3890 = vrot.slane %v3862, %v3889
        %v3891 = vcombine.high %v3869, %v3869
        %v3892 = vcombine.high %v3876, %v3876
        %v3893 = vcombine.high %v3883, %v3883
        %v3894 = vcombine.high %v3890, %v3890
        %v3895 = vcombine.high %v3585, %v3585
        %v3897 = vunpack.c.l.s4 1966171168
        %v3898 = vunpack.c.0.s8 %v3897
        %v3899 = vlaneseq
        %v3900 = vshrl.u32 %v3899, 7
        %v3901 = vsub.s32 %v3898, %v3900
        %v3902 = vrot.slane %v3585, %v3901
        %v3904 = vunpack.c.l.s4 1966171168
        %v3905 = vunpack.c.0.s8 %v3904
        %v3906 = vlaneseq
        %v3907 = vshrl.u32 %v3906, 7
        %v3908 = vsub.s32 %v3905, %v3907
        %v3909 = vrot.slane %v3895, %v3908
        %v3910 = vcombine.high %v3902, %v3902
        %v3911 = vcombine.high %v3909, %v3909
        %v3913 = vunpack.c.l.s4 1966171168
        %v3914 = vunpack.c.0.s8 %v3913
        %v3915 = vlaneseq
        %v3916 = vshrl.u32 %v3915, 7
        %v3917 = vsub.s32 %v3914, %v3916
        %v3918 = vrot.slane %v3902, %v3917
        %v3920 = vunpack.c.l.s4 1966171168
        %v3921 = vunpack.c.0.s8 %v3920
        %v3922 = vlaneseq
        %v3923 = vshrl.u32 %v3922, 7
        %v3924 = vsub.s32 %v3921, %v3923
        %v3925 = vrot.slane %v3909, %v3924
        %v3927 = vunpack.c.l.s4 1966171168
        %v3928 = vunpack.c.0.s8 %v3927
        %v3929 = vlaneseq
        %v3930 = vshrl.u32 %v3929, 7
        %v3931 = vsub.s32 %v3928, %v3930
        %v3932 = vrot.slane %v3910, %v3931
        %v3934 = vunpack.c.l.s4 1966171168
        %v3935 = vunpack.c.0.s8 %v3934
        %v3936 = vlaneseq
        %v3937 = vshrl.u32 %v3936, 7
        %v3938 = vsub.s32 %v3935, %v3937
        %v3939 = vrot.slane %v3911, %v3938
        %v3940 = vcombine.high %v3918, %v3918
        %v3941 = vcombine.high %v3925, %v3925
        %v3942 = vcombine.high %v3932, %v3932
        %v3943 = vcombine.high %v3939, %v3939
        %v3944 = vcombine.high %v3590, %v3590
        %v3946 = vunpack.c.l.s4 1966171168
        %v3947 = vunpack.c.0.s8 %v3946
        %v3948 = vlaneseq
        %v3949 = vshrl.u32 %v3948, 7
        %v3950 = vsub.s32 %v3947, %v3949
        %v3951 = vrot.slane %v3590, %v3950
        %v3953 = vunpack.c.l.s4 1966171168
        %v3954 = vunpack.c.0.s8 %v3953
        %v3955 = vlaneseq
        %v3956 = vshrl.u32 %v3955, 7
        %v3957 = vsub.s32 %v3954, %v3956
        %v3958 = vrot.slane %v3944, %v3957
        %v3959 = vcombine.high %v3951, %v3951
        %v3960 = vcombine.high %v3958, %v3958
        %v3962 = vunpack.c.l.s4 1966171168
        %v3963 = vunpack.c.0.s8 %v3962
        %v3964 = vlaneseq
        %v3965 = vshrl.u32 %v3964, 7
        %v3966 = vsub.s32 %v3963, %v3965
        %v3967 = vrot.slane %v3951, %v3966
        %v3969 = vunpack.c.l.s4 1966171168
        %v3970 = vunpack.c.0.s8 %v3969
        %v3971 = vlaneseq
        %v3972 = vshrl.u32 %v3971, 7
        %v3973 = vsub.s32 %v3970, %v3972
        %v3974 = vrot.slane %v3958, %v3973
        %v3976 = vunpack.c.l.s4 1966171168
        %v3977 = vunpack.c.0.s8 %v3976
        %v3978 = vlaneseq
        %v3979 = vshrl.u32 %v3978, 7
        %v3980 = vsub.s32 %v3977, %v3979
        %v3981 = vrot.slane %v3959, %v3980
        %v3983 = vunpack.c.l.s4 1966171168
        %v3984 = vunpack.c.0.s8 %v3983
        %v3985 = vlaneseq
        %v3986 = vshrl.u32 %v3985, 7
        %v3987 = vsub.s32 %v3984, %v3986
        %v3988 = vrot.slane %v3960, %v3987
        %v3989 = vcombine.high %v3967, %v3967
        %v3990 = vcombine.high %v3974, %v3974
        %v3991 = vcombine.high %v3981, %v3981
        %v3992 = vcombine.high %v3988, %v3988
        %v3993 = vlaneseq
        %v3994 = vshrl.u32 %v3993, 7
        %v3995 = vsub.s32 0, %v3994
        %v3996 = vrot.slane %v3624, %v3995
        %v3997 = vlaneseq
        %v3998 = vshrl.u32 %v3997, 7
        %v3999 = vsub.s32 0, %v3998
        %v4000 = vrot.slane %v3638, %v3999
        %v4001 = vlaneseq
        %v4002 = vshrl.u32 %v4001, 7
        %v4003 = vsub.s32 0, %v4002
        %v4004 = vrot.slane %v3646, %v4003
        %v4005 = vlaneseq
        %v4006 = vshrl.u32 %v4005, 7
        %v4007 = vsub.s32 0, %v4006
        %v4008 = vrot.slane %v3648, %v4007
        %v4009 = vlaneseq
        %v4010 = vshrl.u32 %v4009, 7
        %v4011 = vsub.s32 0, %v4010
        %v4012 = vrot.slane %v3631, %v4011
        %v4013 = vlaneseq
        %v4014 = vshrl.u32 %v4013, 7
        %v4015 = vsub.s32 0, %v4014
        %v4016 = vrot.slane %v3645, %v4015
        %v4017 = vlaneseq
        %v4018 = vshrl.u32 %v4017, 7
        %v4019 = vsub.s32 0, %v4018
        %v4020 = vrot.slane %v3647, %v4019
        %v4021 = vlaneseq
        %v4022 = vshrl.u32 %v4021, 7
        %v4023 = vsub.s32 0, %v4022
        %v4024 = vrot.slane %v3649, %v4023
        %v4025 = vlaneseq
        %v4026 = vshrl.u32 %v4025, 7
        %v4027 = vsub.s32 0, %v4026
        %v4028 = vrot.slane %v3673, %v4027
        %v4029 = vlaneseq
        %v4030 = vshrl.u32 %v4029, 7
        %v4031 = vsub.s32 0, %v4030
        %v4032 = vrot.slane %v3687, %v4031
        %v4033 = vlaneseq
        %v4034 = vshrl.u32 %v4033, 7
        %v4035 = vsub.s32 0, %v4034
        %v4036 = vrot.slane %v3695, %v4035
        %v4037 = vlaneseq
        %v4038 = vshrl.u32 %v4037, 7
        %v4039 = vsub.s32 0, %v4038
        %v4040 = vrot.slane %v3697, %v4039
        %v4041 = vlaneseq
        %v4042 = vshrl.u32 %v4041, 7
        %v4043 = vsub.s32 0, %v4042
        %v4044 = vrot.slane %v3680, %v4043
        %v4045 = vlaneseq
        %v4046 = vshrl.u32 %v4045, 7
        %v4047 = vsub.s32 0, %v4046
        %v4048 = vrot.slane %v3694, %v4047
        %v4049 = vlaneseq
        %v4050 = vshrl.u32 %v4049, 7
        %v4051 = vsub.s32 0, %v4050
        %v4052 = vrot.slane %v3696, %v4051
        %v4053 = vlaneseq
        %v4054 = vshrl.u32 %v4053, 7
        %v4055 = vsub.s32 0, %v4054
        %v4056 = vrot.slane %v3698, %v4055
        %v4057 = vlaneseq
        %v4058 = vshrl.u32 %v4057, 7
        %v4059 = vsub.s32 0, %v4058
        %v4060 = vrot.slane %v3722, %v4059
        %v4061 = vlaneseq
        %v4062 = vshrl.u32 %v4061, 7
        %v4063 = vsub.s32 0, %v4062
        %v4064 = vrot.slane %v3736, %v4063
        %v4065 = vlaneseq
        %v4066 = vshrl.u32 %v4065, 7
        %v4067 = vsub.s32 0, %v4066
        %v4068 = vrot.slane %v3744, %v4067
        %v4069 = vlaneseq
        %v4070 = vshrl.u32 %v4069, 7
        %v4071 = vsub.s32 0, %v4070
        %v4072 = vrot.slane %v3746, %v4071
        %v4073 = vlaneseq
        %v4074 = vshrl.u32 %v4073, 7
        %v4075 = vsub.s32 0, %v4074
        %v4076 = vrot.slane %v3729, %v4075
        %v4077 = vlaneseq
        %v4078 = vshrl.u32 %v4077, 7
        %v4079 = vsub.s32 0, %v4078
        %v4080 = vrot.slane %v3743, %v4079
        %v4081 = vlaneseq
        %v4082 = vshrl.u32 %v4081, 7
        %v4083 = vsub.s32 0, %v4082
        %v4084 = vrot.slane %v3745, %v4083
        %v4085 = vlaneseq
        %v4086 = vshrl.u32 %v4085, 7
        %v4087 = vsub.s32 0, %v4086
        %v4088 = vrot.slane %v3747, %v4087
        %v4089 = vlaneseq
        %v4090 = vshrl.u32 %v4089, 7
        %v4091 = vsub.s32 0, %v4090
        %v4092 = vrot.slane %v3771, %v4091
        %v4093 = vlaneseq
        %v4094 = vshrl.u32 %v4093, 7
        %v4095 = vsub.s32 0, %v4094
        %v4096 = vrot.slane %v3785, %v4095
        %v4097 = vlaneseq
        %v4098 = vshrl.u32 %v4097, 7
        %v4099 = vsub.s32 0, %v4098
        %v4100 = vrot.slane %v3793, %v4099
        %v4101 = vlaneseq
        %v4102 = vshrl.u32 %v4101, 7
        %v4103 = vsub.s32 0, %v4102
        %v4104 = vrot.slane %v3795, %v4103
        %v4105 = vlaneseq
        %v4106 = vshrl.u32 %v4105, 7
        %v4107 = vsub.s32 0, %v4106
        %v4108 = vrot.slane %v3778, %v4107
        %v4109 = vlaneseq
        %v4110 = vshrl.u32 %v4109, 7
        %v4111 = vsub.s32 0, %v4110
        %v4112 = vrot.slane %v3792, %v4111
        %v4113 = vlaneseq
        %v4114 = vshrl.u32 %v4113, 7
        %v4115 = vsub.s32 0, %v4114
        %v4116 = vrot.slane %v3794, %v4115
        %v4117 = vlaneseq
        %v4118 = vshrl.u32 %v4117, 7
        %v4119 = vsub.s32 0, %v4118
        %v4120 = vrot.slane %v3796, %v4119
        %v4121 = vlaneseq
        %v4122 = vshrl.u32 %v4121, 7
        %v4123 = vsub.s32 0, %v4122
        %v4124 = vrot.slane %v3820, %v4123
        %v4125 = vlaneseq
        %v4126 = vshrl.u32 %v4125, 7
        %v4127 = vsub.s32 0, %v4126
        %v4128 = vrot.slane %v3834, %v4127
        %v4129 = vlaneseq
        %v4130 = vshrl.u32 %v4129, 7
        %v4131 = vsub.s32 0, %v4130
        %v4132 = vrot.slane %v3842, %v4131
        %v4133 = vlaneseq
        %v4134 = vshrl.u32 %v4133, 7
        %v4135 = vsub.s32 0, %v4134
        %v4136 = vrot.slane %v3844, %v4135
        %v4137 = vlaneseq
        %v4138 = vshrl.u32 %v4137, 7
        %v4139 = vsub.s32 0, %v4138
        %v4140 = vrot.slane %v3827, %v4139
        %v4141 = vlaneseq
        %v4142 = vshrl.u32 %v4141, 7
        %v4143 = vsub.s32 0, %v4142
        %v4144 = vrot.slane %v3841, %v4143
        %v4145 = vlaneseq
        %v4146 = vshrl.u32 %v4145, 7
        %v4147 = vsub.s32 0, %v4146
        %v4148 = vrot.slane %v3843, %v4147
        %v4149 = vlaneseq
        %v4150 = vshrl.u32 %v4149, 7
        %v4151 = vsub.s32 0, %v4150
        %v4152 = vrot.slane %v3845, %v4151
        %v4153 = vlaneseq
        %v4154 = vshrl.u32 %v4153, 7
        %v4155 = vsub.s32 0, %v4154
        %v4156 = vrot.slane %v3869, %v4155
        %v4157 = vlaneseq
        %v4158 = vshrl.u32 %v4157, 7
        %v4159 = vsub.s32 0, %v4158
        %v4160 = vrot.slane %v3883, %v4159
        %v4161 = vlaneseq
        %v4162 = vshrl.u32 %v4161, 7
        %v4163 = vsub.s32 0, %v4162
        %v4164 = vrot.slane %v3891, %v4163
        %v4165 = vlaneseq
        %v4166 = vshrl.u32 %v4165, 7
        %v4167 = vsub.s32 0, %v4166
        %v4168 = vrot.slane %v3893, %v4167
        %v4169 = vlaneseq
        %v4170 = vshrl.u32 %v4169, 7
        %v4171 = vsub.s32 0, %v4170
        %v4172 = vrot.slane %v3876, %v4171
        %v4173 = vlaneseq
        %v4174 = vshrl.u32 %v4173, 7
        %v4175 = vsub.s32 0, %v4174
        %v4176 = vrot.slane %v3890, %v4175
        %v4177 = vlaneseq
        %v4178 = vshrl.u32 %v4177, 7
        %v4179 = vsub.s32 0, %v4178
        %v4180 = vrot.slane %v3892, %v4179
        %v4181 = vlaneseq
        %v4182 = vshrl.u32 %v4181, 7
        %v4183 = vsub.s32 0, %v4182
        %v4184 = vrot.slane %v3894, %v4183
        %v4185 = vlaneseq
        %v4186 = vshrl.u32 %v4185, 7
        %v4187 = vsub.s32 0, %v4186
        %v4188 = vrot.slane %v3918, %v4187
        %v4189 = vlaneseq
        %v4190 = vshrl.u32 %v4189, 7
        %v4191 = vsub.s32 0, %v4190
        %v4192 = vrot.slane %v3932, %v4191
        %v4193 = vlaneseq
        %v4194 = vshrl.u32 %v4193, 7
        %v4195 = vsub.s32 0, %v4194
        %v4196 = vrot.slane %v3940, %v4195
        %v4197 = vlaneseq
        %v4198 = vshrl.u32 %v4197, 7
        %v4199 = vsub.s32 0, %v4198
        %v4200 = vrot.slane %v3942, %v4199
        %v4201 = vlaneseq
        %v4202 = vshrl.u32 %v4201, 7
        %v4203 = vsub.s32 0, %v4202
        %v4204 = vrot.slane %v3925, %v4203
        %v4205 = vlaneseq
        %v4206 = vshrl.u32 %v4205, 7
        %v4207 = vsub.s32 0, %v4206
        %v4208 = vrot.slane %v3939, %v4207
        %v4209 = vlaneseq
        %v4210 = vshrl.u32 %v4209, 7
        %v4211 = vsub.s32 0, %v4210
        %v4212 = vrot.slane %v3941, %v4211
        %v4213 = vlaneseq
        %v4214 = vshrl.u32 %v4213, 7
        %v4215 = vsub.s32 0, %v4214
        %v4216 = vrot.slane %v3943, %v4215
        %v4217 = vlaneseq
        %v4218 = vshrl.u32 %v4217, 7
        %v4219 = vsub.s32 0, %v4218
        %v4220 = vrot.slane %v3967, %v4219
        %v4221 = vlaneseq
        %v4222 = vshrl.u32 %v4221, 7
        %v4223 = vsub.s32 0, %v4222
        %v4224 = vrot.slane %v3981, %v4223
        %v4225 = vlaneseq
        %v4226 = vshrl.u32 %v4225, 7
        %v4227 = vsub.s32 0, %v4226
        %v4228 = vrot.slane %v3989, %v4227
        %v4229 = vlaneseq
        %v4230 = vshrl.u32 %v4229, 7
        %v4231 = vsub.s32 0, %v4230
        %v4232 = vrot.slane %v3991, %v4231
        %v4233 = vlaneseq
        %v4234 = vshrl.u32 %v4233, 7
        %v4235 = vsub.s32 0, %v4234
        %v4236 = vrot.slane %v3974, %v4235
        %v4237 = vlaneseq
        %v4238 = vshrl.u32 %v4237, 7
        %v4239 = vsub.s32 0, %v4238
        %v4240 = vrot.slane %v3988, %v4239
        %v4241 = vlaneseq
        %v4242 = vshrl.u32 %v4241, 7
        %v4243 = vsub.s32 0, %v4242
        %v4244 = vrot.slane %v3990, %v4243
        %v4245 = vlaneseq
        %v4246 = vshrl.u32 %v4245, 7
        %v4247 = vsub.s32 0, %v4246
        %v4248 = vrot.slane %v3992, %v4247
        %v4249 = vcombine.low %v3996, %v4000
        %v4250 = vcombine.low %v4004, %v4008
        %v4252 = vunpack.c.l.s4 1983009808
        %v4253 = vunpack.c.0.s8 %v4252
        %v4254 = vlaneseq
        %v4255 = vshrl.u32 %v4254, 7
        %v4256 = vsub.s32 %v4253, %v4255
        %v4257 = vrot.slane %v4249, %v4256
        %v4259 = vunpack.c.l.s4 1983009808
        %v4260 = vunpack.c.0.s8 %v4259
        %v4261 = vlaneseq
        %v4262 = vshrl.u32 %v4261, 7
        %v4263 = vsub.s32 %v4260, %v4262
        %v4264 = vrot.slane %v4250, %v4263
        %v4265 = vcombine.low %v4257, %v4264
        %v4266 = vcombine.low %v4012, %v4016
        %v4267 = vcombine.low %v4020, %v4024
        %v4269 = vunpack.c.l.s4 1983009808
        %v4270 = vunpack.c.0.s8 %v4269
        %v4271 = vlaneseq
        %v4272 = vshrl.u32 %v4271, 7
        %v4273 = vsub.s32 %v4270, %v4272
        %v4274 = vrot.slane %v4266, %v4273
        %v4276 = vunpack.c.l.s4 1983009808
        %v4277 = vunpack.c.0.s8 %v4276
        %v4278 = vlaneseq
        %v4279 = vshrl.u32 %v4278, 7
        %v4280 = vsub.s32 %v4277, %v4279
        %v4281 = vrot.slane %v4267, %v4280
        %v4282 = vcombine.low %v4274, %v4281
        %v4283 = vcombine.low %v4028, %v4032
        %v4284 = vcombine.low %v4036, %v4040
        %v4286 = vunpack.c.l.s4 1983009808
        %v4287 = vunpack.c.0.s8 %v4286
        %v4288 = vlaneseq
        %v4289 = vshrl.u32 %v4288, 7
        %v4290 = vsub.s32 %v4287, %v4289
        %v4291 = vrot.slane %v4283, %v4290
        %v4293 = vunpack.c.l.s4 1983009808
        %v4294 = vunpack.c.0.s8 %v4293
        %v4295 = vlaneseq
        %v4296 = vshrl.u32 %v4295, 7
        %v4297 = vsub.s32 %v4294, %v4296
        %v4298 = vrot.slane %v4284, %v4297
        %v4299 = vcombine.low %v4291, %v4298
        %v4300 = vcombine.low %v4044, %v4048
        %v4301 = vcombine.low %v4052, %v4056
        %v4303 = vunpack.c.l.s4 1983009808
        %v4304 = vunpack.c.0.s8 %v4303
        %v4305 = vlaneseq
        %v4306 = vshrl.u32 %v4305, 7
        %v4307 = vsub.s32 %v4304, %v4306
        %v4308 = vrot.slane %v4300, %v4307
        %v4310 = vunpack.c.l.s4 1983009808
        %v4311 = vunpack.c.0.s8 %v4310
        %v4312 = vlaneseq
        %v4313 = vshrl.u32 %v4312, 7
        %v4314 = vsub.s32 %v4311, %v4313
        %v4315 = vrot.slane %v4301, %v4314
        %v4316 = vcombine.low %v4308, %v4315
        %v4317 = vcombine.low %v4060, %v4064
        %v4318 = vcombine.low %v4068, %v4072
        %v4320 = vunpack.c.l.s4 1983009808
        %v4321 = vunpack.c.0.s8 %v4320
        %v4322 = vlaneseq
        %v4323 = vshrl.u32 %v4322, 7
        %v4324 = vsub.s32 %v4321, %v4323
        %v4325 = vrot.slane %v4317, %v4324
        %v4327 = vunpack.c.l.s4 1983009808
        %v4328 = vunpack.c.0.s8 %v4327
        %v4329 = vlaneseq
        %v4330 = vshrl.u32 %v4329, 7
        %v4331 = vsub.s32 %v4328, %v4330
        %v4332 = vrot.slane %v4318, %v4331
        %v4333 = vcombine.low %v4325, %v4332
        %v4334 = vcombine.low %v4076, %v4080
        %v4335 = vcombine.low %v4084, %v4088
        %v4337 = vunpack.c.l.s4 1983009808
        %v4338 = vunpack.c.0.s8 %v4337
        %v4339 = vlaneseq
        %v4340 = vshrl.u32 %v4339, 7
        %v4341 = vsub.s32 %v4338, %v4340
        %v4342 = vrot.slane %v4334, %v4341
        %v4344 = vunpack.c.l.s4 1983009808
        %v4345 = vunpack.c.0.s8 %v4344
        %v4346 = vlaneseq
        %v4347 = vshrl.u32 %v4346, 7
        %v4348 = vsub.s32 %v4345, %v4347
        %v4349 = vrot.slane %v4335, %v4348
        %v4350 = vcombine.low %v4342, %v4349
        %v4351 = vcombine.low %v4092, %v4096
        %v4352 = vcombine.low %v4100, %v4104
        %v4354 = vunpack.c.l.s4 1983009808
        %v4355 = vunpack.c.0.s8 %v4354
        %v4356 = vlaneseq
        %v4357 = vshrl.u32 %v4356, 7
        %v4358 = vsub.s32 %v4355, %v4357
        %v4359 = vrot.slane %v4351, %v4358
        %v4361 = vunpack.c.l.s4 1983009808
        %v4362 = vunpack.c.0.s8 %v4361
        %v4363 = vlaneseq
        %v4364 = vshrl.u32 %v4363, 7
        %v4365 = vsub.s32 %v4362, %v4364
        %v4366 = vrot.slane %v4352, %v4365
        %v4367 = vcombine.low %v4359, %v4366
        %v4368 = vcombine.low %v4108, %v4112
        %v4369 = vcombine.low %v4116, %v4120
        %v4371 = vunpack.c.l.s4 1983009808
        %v4372 = vunpack.c.0.s8 %v4371
        %v4373 = vlaneseq
        %v4374 = vshrl.u32 %v4373, 7
        %v4375 = vsub.s32 %v4372, %v4374
        %v4376 = vrot.slane %v4368, %v4375
        %v4378 = vunpack.c.l.s4 1983009808
        %v4379 = vunpack.c.0.s8 %v4378
        %v4380 = vlaneseq
        %v4381 = vshrl.u32 %v4380, 7
        %v4382 = vsub.s32 %v4379, %v4381
        %v4383 = vrot.slane %v4369, %v4382
        %v4384 = vcombine.low %v4376, %v4383
        %v4385 = vcombine.low %v4124, %v4128
        %v4386 = vcombine.low %v4132, %v4136
        %v4388 = vunpack.c.l.s4 1983009808
        %v4389 = vunpack.c.0.s8 %v4388
        %v4390 = vlaneseq
        %v4391 = vshrl.u32 %v4390, 7
        %v4392 = vsub.s32 %v4389, %v4391
        %v4393 = vrot.slane %v4385, %v4392
        %v4395 = vunpack.c.l.s4 1983009808
        %v4396 = vunpack.c.0.s8 %v4395
        %v4397 = vlaneseq
        %v4398 = vshrl.u32 %v4397, 7
        %v4399 = vsub.s32 %v4396, %v4398
        %v4400 = vrot.slane %v4386, %v4399
        %v4401 = vcombine.low %v4393, %v4400
        %v4402 = vcombine.low %v4140, %v4144
        %v4403 = vcombine.low %v4148, %v4152
        %v4405 = vunpack.c.l.s4 1983009808
        %v4406 = vunpack.c.0.s8 %v4405
        %v4407 = vlaneseq
        %v4408 = vshrl.u32 %v4407, 7
        %v4409 = vsub.s32 %v4406, %v4408
        %v4410 = vrot.slane %v4402, %v4409
        %v4412 = vunpack.c.l.s4 1983009808
        %v4413 = vunpack.c.0.s8 %v4412
        %v4414 = vlaneseq
        %v4415 = vshrl.u32 %v4414, 7
        %v4416 = vsub.s32 %v4413, %v4415
        %v4417 = vrot.slane %v4403, %v4416
        %v4418 = vcombine.low %v4410, %v4417
        %v4419 = vcombine.low %v4156, %v4160
        %v4420 = vcombine.low %v4164, %v4168
        %v4422 = vunpack.c.l.s4 1983009808
        %v4423 = vunpack.c.0.s8 %v4422
        %v4424 = vlaneseq
        %v4425 = vshrl.u32 %v4424, 7
        %v4426 = vsub.s32 %v4423, %v4425
        %v4427 = vrot.slane %v4419, %v4426
        %v4429 = vunpack.c.l.s4 1983009808
        %v4430 = vunpack.c.0.s8 %v4429
        %v4431 = vlaneseq
        %v4432 = vshrl.u32 %v4431, 7
        %v4433 = vsub.s32 %v4430, %v4432
        %v4434 = vrot.slane %v4420, %v4433
        %v4435 = vcombine.low %v4427, %v4434
        %v4436 = vcombine.low %v4172, %v4176
        %v4437 = vcombine.low %v4180, %v4184
        %v4439 = vunpack.c.l.s4 1983009808
        %v4440 = vunpack.c.0.s8 %v4439
        %v4441 = vlaneseq
        %v4442 = vshrl.u32 %v4441, 7
        %v4443 = vsub.s32 %v4440, %v4442
        %v4444 = vrot.slane %v4436, %v4443
        %v4446 = vunpack.c.l.s4 1983009808
        %v4447 = vunpack.c.0.s8 %v4446
        %v4448 = vlaneseq
        %v4449 = vshrl.u32 %v4448, 7
        %v4450 = vsub.s32 %v4447, %v4449
        %v4451 = vrot.slane %v4437, %v4450
        %v4452 = vcombine.low %v4444, %v4451
        %v4453 = vcombine.low %v4188, %v4192
        %v4454 = vcombine.low %v4196, %v4200
        %v4456 = vunpack.c.l.s4 1983009808
        %v4457 = vunpack.c.0.s8 %v4456
        %v4458 = vlaneseq
        %v4459 = vshrl.u32 %v4458, 7
        %v4460 = vsub.s32 %v4457, %v4459
        %v4461 = vrot.slane %v4453, %v4460
        %v4463 = vunpack.c.l.s4 1983009808
        %v4464 = vunpack.c.0.s8 %v4463
        %v4465 = vlaneseq
        %v4466 = vshrl.u32 %v4465, 7
        %v4467 = vsub.s32 %v4464, %v4466
        %v4468 = vrot.slane %v4454, %v4467
        %v4469 = vcombine.low %v4461, %v4468
        %v4470 = vcombine.low %v4204, %v4208
        %v4471 = vcombine.low %v4212, %v4216
        %v4473 = vunpack.c.l.s4 1983009808
        %v4474 = vunpack.c.0.s8 %v4473
        %v4475 = vlaneseq
        %v4476 = vshrl.u32 %v4475, 7
        %v4477 = vsub.s32 %v4474, %v4476
        %v4478 = vrot.slane %v4470, %v4477
        %v4480 = vunpack.c.l.s4 1983009808
        %v4481 = vunpack.c.0.s8 %v4480
        %v4482 = vlaneseq
        %v4483 = vshrl.u32 %v4482, 7
        %v4484 = vsub.s32 %v4481, %v4483
        %v4485 = vrot.slane %v4471, %v4484
        %v4486 = vcombine.low %v4478, %v4485
        %v4487 = vcombine.low %v4220, %v4224
        %v4488 = vcombine.low %v4228, %v4232
        %v4490 = vunpack.c.l.s4 1983009808
        %v4491 = vunpack.c.0.s8 %v4490
        %v4492 = vlaneseq
        %v4493 = vshrl.u32 %v4492, 7
        %v4494 = vsub.s32 %v4491, %v4493
        %v4495 = vrot.slane %v4487, %v4494
        %v4497 = vunpack.c.l.s4 1983009808
        %v4498 = vunpack.c.0.s8 %v4497
        %v4499 = vlaneseq
        %v4500 = vshrl.u32 %v4499, 7
        %v4501 = vsub.s32 %v4498, %v4500
        %v4502 = vrot.slane %v4488, %v4501
        %v4503 = vcombine.low %v4495, %v4502
        %v4504 = vcombine.low %v4236, %v4240
        %v4505 = vcombine.low %v4244, %v4248
        %v4507 = vunpack.c.l.s4 1983009808
        %v4508 = vunpack.c.0.s8 %v4507
        %v4509 = vlaneseq
        %v4510 = vshrl.u32 %v4509, 7
        %v4511 = vsub.s32 %v4508, %v4510
        %v4512 = vrot.slane %v4504, %v4511
        %v4514 = vunpack.c.l.s4 1983009808
        %v4515 = vunpack.c.0.s8 %v4514
        %v4516 = vlaneseq
        %v4517 = vshrl.u32 %v4516, 7
        %v4518 = vsub.s32 %v4515, %v4517
        %v4519 = vrot.slane %v4505, %v4518
        %v4520 = vcombine.low %v4512, %v4519
        %v4537 = vadd.f32 %v3418, %v4265
        %v4538 = vadd.f32 %v3419, %v4282
        %v4539 = vadd.f32 %v3420, %v4299
        %v4540 = vadd.f32 %v3421, %v4316
        %v4541 = vadd.f32 %v3422, %v4265
        %v4542 = vadd.f32 %v3423, %v4282
        %v4543 = vadd.f32 %v3424, %v4299
        %v4544 = vadd.f32 %v3425, %v4316
        %v4545 = vadd.f32 %v3426, %v4333
        %v4546 = vadd.f32 %v3427, %v4350
        %v4547 = vadd.f32 %v3428, %v4367
        %v4548 = vadd.f32 %v3429, %v4384
        %v4549 = vadd.f32 %v3430, %v4333
        %v4550 = vadd.f32 %v3431, %v4350
        %v4551 = vadd.f32 %v3432, %v4367
        %v4552 = vadd.f32 %v3433, %v4384
        %v4553 = vadd.f32 %v3434, %v4401
        %v4554 = vadd.f32 %v3435, %v4418
        %v4555 = vadd.f32 %v3436, %v4435
        %v4556 = vadd.f32 %v3437, %v4452
        %v4557 = vadd.f32 %v3438, %v4401
        %v4558 = vadd.f32 %v3439, %v4418
        %v4559 = vadd.f32 %v3440, %v4435
        %v4560 = vadd.f32 %v3441, %v4452
        %v4561 = vadd.f32 %v3442, %v4469
        %v4562 = vadd.f32 %v3443, %v4486
        %v4563 = vadd.f32 %v3444, %v4503
        %v4564 = vadd.f32 %v3445, %v4520
        %v4565 = vadd.f32 %v3446, %v4469
        %v4566 = vadd.f32 %v3447, %v4486
        %v4567 = vadd.f32 %v3448, %v4503
        %v4568 = vadd.f32 %v3449, %v4520
        %v4569 = vld [vmem:[%s6] sm:$0x1]
        %v4571 = vlaneseq
        %v4572 = vshrl.u32 %v4571, 7
        %v4573 = vsub.s32 0, %v4572
        %v4574 = vrot.slane %v4569, %v4573
        %v4576 = vadd.f32 %v4537, %v4574
        %v4577 = vadd.f32 %v4538, %v4574
        %v4578 = vadd.f32 %v4539, %v4574
        %v4579 = vadd.f32 %v4540, %v4574
        %v4580 = vadd.f32 %v4541, %v4574
        %v4581 = vadd.f32 %v4542, %v4574
        %v4582 = vadd.f32 %v4543, %v4574
        %v4583 = vadd.f32 %v4544, %v4574
        %v4584 = vadd.f32 %v4545, %v4574
        %v4585 = vadd.f32 %v4546, %v4574
        %v4586 = vadd.f32 %v4547, %v4574
        %v4587 = vadd.f32 %v4548, %v4574
        %v4588 = vadd.f32 %v4549, %v4574
        %v4589 = vadd.f32 %v4550, %v4574
        %v4590 = vadd.f32 %v4551, %v4574
        %v4591 = vadd.f32 %v4552, %v4574
        %v4592 = vadd.f32 %v4553, %v4574
        %v4593 = vadd.f32 %v4554, %v4574
        %v4594 = vadd.f32 %v4555, %v4574
        %v4595 = vadd.f32 %v4556, %v4574
        %v4596 = vadd.f32 %v4557, %v4574
        %v4597 = vadd.f32 %v4558, %v4574
        %v4598 = vadd.f32 %v4559, %v4574
        %v4599 = vadd.f32 %v4560, %v4574
        %v4600 = vadd.f32 %v4561, %v4574
        %v4601 = vadd.f32 %v4562, %v4574
        %v4602 = vadd.f32 %v4563, %v4574
        %v4603 = vadd.f32 %v4564, %v4574
        %v4604 = vadd.f32 %v4565, %v4574
        %v4605 = vadd.f32 %v4566, %v4574
        %v4606 = vadd.f32 %v4567, %v4574
        %v4607 = vadd.f32 %v4568, %v4574
        %4608 = vst.msk [vmem:[%s408] sm:$0xff] %vm833, %v4576
        %4609 = vst.msk [vmem:[%s408 + $0x8] sm:$0xff] %vm833, %v4577
        %4610 = vst.msk [vmem:[%s408 + $0x10] sm:$0xff] %vm833, %v4578
        %4611 = vst.msk [vmem:[%s408 + $0x18] sm:$0xff] %vm833, %v4579
        %4612 = vst.msk [vmem:[%s408 + $0x20] sm:$0xff] %vm833, %v4580
        %4613 = vst.msk [vmem:[%s408 + $0x28] sm:$0xff] %vm833, %v4581
        %4614 = vst.msk [vmem:[%s408 + $0x30] sm:$0xff] %vm833, %v4582
        %4615 = vst.msk [vmem:[%s408 + $0x38] sm:$0xff] %vm833, %v4583
        %4616 = vst.msk [vmem:[%s408 + $0x40] sm:$0xff] %vm833, %v4584
        %4617 = vst.msk [vmem:[%s408 + $0x48] sm:$0xff] %vm833, %v4585
        %4618 = vst.msk [vmem:[%s408 + $0x50] sm:$0xff] %vm833, %v4586
        %4619 = vst.msk [vmem:[%s408 + $0x58] sm:$0xff] %vm833, %v4587
        %4620 = vst.msk [vmem:[%s408 + $0x60] sm:$0xff] %vm833, %v4588
        %4621 = vst.msk [vmem:[%s408 + $0x68] sm:$0xff] %vm833, %v4589
        %4622 = vst.msk [vmem:[%s408 + $0x70] sm:$0xff] %vm833, %v4590
        %4623 = vst.msk [vmem:[%s408 + $0x78] sm:$0xff] %vm833, %v4591
        %4624 = vst.msk [vmem:[%s408 + $0x80] sm:$0xff] %vm833, %v4592
        %4625 = vst.msk [vmem:[%s408 + $0x88] sm:$0xff] %vm833, %v4593
        %4626 = vst.msk [vmem:[%s408 + $0x90] sm:$0xff] %vm833, %v4594
        %4627 = vst.msk [vmem:[%s408 + $0x98] sm:$0xff] %vm833, %v4595
        %4628 = vst.msk [vmem:[%s408 + $0xa0] sm:$0xff] %vm833, %v4596
        %4629 = vst.msk [vmem:[%s408 + $0xa8] sm:$0xff] %vm833, %v4597
        %4630 = vst.msk [vmem:[%s408 + $0xb0] sm:$0xff] %vm833, %v4598
        %4631 = vst.msk [vmem:[%s408 + $0xb8] sm:$0xff] %vm833, %v4599
        %4632 = vst.msk [vmem:[%s408 + $0xc0] sm:$0xff] %vm833, %v4600
        %4633 = vst.msk [vmem:[%s408 + $0xc8] sm:$0xff] %vm833, %v4601
        %4634 = vst.msk [vmem:[%s408 + $0xd0] sm:$0xff] %vm833, %v4602
        %4635 = vst.msk [vmem:[%s408 + $0xd8] sm:$0xff] %vm833, %v4603
        %4636 = vst.msk [vmem:[%s408 + $0xe0] sm:$0xff] %vm833, %v4604
        %4637 = vst.msk [vmem:[%s408 + $0xe8] sm:$0xff] %vm833, %v4605
        %4638 = vst.msk [vmem:[%s408 + $0xf0] sm:$0xff] %vm833, %v4606
        %4639 = vst.msk [vmem:[%s408 + $0xf8] sm:$0xff] %vm833, %v4607
        %s4640 = smul.u32 8, %s24
        %p4641 = scmp.lt.s32.totalorder %s23, 1
        %s4642 = scalar_select %p4641, %s23, 1
        %p4643 = scmp.lt.s32.totalorder %s4640, 31
        %s4644 = scalar_select %p4643, %s4640, 31
        %s4645 = smul.addr %s4644, 4
        %s4646 = smul.addr %s4642, 128
        %s4647 = sadd.s32 %s4645, %s4646
        %s4648 = smul.addr %s4647, 8
        %s4649 = scalar_lea.vmem %s7, %s4648
        // Predicated region
        $region53: #{res_up_layer.3} parent=47 // pred_check
          %p4650 = pneg %p219
        $region54: #{res_up_layer.3} parent=47 // pred_check_branch
          %4652 = sbr.rel (%p4650) target = $region56
        $region55: #{res_up_layer.3} parent=47 // pred_region
          %s4653 = smul.u32 8, %s24
        $region56: #{res_up_layer.3} parent=47 // pred_fallthru
          _
      $region48: #{res_up_layer.3} parent=5 // pred_fallthru
        _
      %p4654 = scmp.le.s32.totalorder 2, %s14
      // Predicated region
      $region57: #{res_up_layer.3} parent=5 // pred_check
        %p4655 = pneg %p4654
      $region58: #{res_up_layer.3} parent=5 // pred_check_branch
        %4657 = sbr.rel (%p4655) target = $region60
      $region59: #{res_up_layer.3} parent=5 // pred_region
        %s4658 = ssub.s32 %s14, 2
        // Predicated region
        $region61: #{res_up_layer.3} parent=59 // pred_check
          %p4659 = pneg %p225
        $region62: #{res_up_layer.3} parent=59 // pred_check_branch
          %4661 = sbr.rel (%p4659) target = $region64
        $region63: #{res_up_layer.3} parent=59 // pred_region
          %s4662 = smul.u32 8, %s26
          %p4663 = scmp.lt.s32.totalorder %s25, 1
          %s4664 = scalar_select %p4663, %s25, 1
          %p4665 = scmp.lt.s32.totalorder %s4662, 31
          %s4666 = scalar_select %p4665, %s4662, 31
          %s4667 = smul.addr %s4666, 4
          %s4668 = smul.addr %s4664, 128
          %s4669 = sadd.s32 %s4667, %s4668
          %s4670 = smul.addr %s4669, 8
          %s4671 = scalar_lea.vmem %s7, %s4670
        $region64: #{res_up_layer.3} parent=59 // pred_fallthru
          _
      $region60: #{res_up_layer.3} parent=5 // pred_fallthru
        _
    $region6: #{res_up_layer.3} parent=1 // loop_footer
      %s18 = sadd.s32 1, %s14
    $region7: #{res_up_layer.3} parent=1 // loop_footer_branch
      %13 = sbr.rel target = $region3
    $region8: #{res_up_layer.3} parent=1 // loop_exit
      _
    %4672 = vsyncpa [#allocation3], 1
    %s4673 = scalar_lea.sflag [#allocation3], 1
    %4674 = vsyncpa %s4673, 1

</llo_original>
